<compile_context>
chip_gen: v5e
topology: v5e:2x2
jax: 0.10.0
libtpu: 0.0.40
codegen_flags: <defaults>
</compile_context>

<pallas_src>
import jax
import jax.numpy as jnp
from jax.experimental import pallas as pl
from jax.experimental.pallas import tpu as pltpu

NUM_HEADS = 8
NUM_CHUNKS = 4          # torch.split(..., ceil(N // 4)) -> 4 chunks when N % 4 == 0
EPS = 1e-5              # nn.LayerNorm default eps


def _round_up(v, m):
    return ((v + m - 1) // m) * m


# ------------------------------------------------------------------ kernel ---
def _make_kernel(d_true, d_pad, c_pad, hd_pad, num_heads, bt, cpb, s_len):
    inv_d = 1.0 / float(d_true)          # LayerNorm statistics over the true D
    r_rows = cpb * s_len                 # tokens per batch element per step
    m_rows = bt * r_rows                 # rows processed per kernel invocation
    nb = bt * cpb                        # independent attention blocks per step

    def kernel(x_ref, w_qkv_ref, w_proj_ref, w_fc1_ref, w_fc2_ref,
               vec_ref, b_fc1_ref, o_ref):
        # (bt, r_rows, d_pad) -> (m_rows, d_pad); lane padding of x is zero.
        x = x_ref[...].reshape(m_rows, d_pad)

        vecs = vec_ref[...]                               # (6, d_pad) f32
        g1, b1, b_proj = vecs[0:1], vecs[1:2], vecs[2:3]
        g2, b2, b_fc2 = vecs[3:4], vecs[4:5], vecs[5:6]

        # 1 for the true d_true features, 0 for the lane padding.
        feat_mask = (jax.lax.broadcasted_iota(jnp.int32, (1, d_pad), 1)
                     < d_true).astype(jnp.float32)

        def layernorm(y, g, b):
            # biased variance over the TRUE feature count (torch nn.LayerNorm);
            # masking keeps padded lanes exactly zero (g/b padding is zero too).
            mu = jnp.sum(y, axis=-1, keepdims=True) * inv_d
            yc = (y - mu) * feat_mask
            var = jnp.sum(yc * yc, axis=-1, keepdims=True) * inv_d
            return yc * jax.lax.rsqrt(var + EPS) * g + b

        def bf16(a):
            return a.astype(jnp.bfloat16)

        # ---------------- attention branch ------------------------------------
        ln1 = layernorm(x, g1, b1)
        # reduce and qkv are both bias-free -> single fused matmul; the softmax
        # scale is already folded into the q columns of w_qkv (wrapper-side).
        qkv = jnp.dot(bf16(ln1), w_qkv_ref[...],
                      preferred_element_type=jnp.float32)         # (M, 3*Cp)
        q = qkv[:, :c_pad]
        k = qkv[:, c_pad:2 * c_pad]
        v = qkv[:, 2 * c_pad:]

        def split_heads(a):
            # (M, Cp) -> (G = num_heads*nb, S, HDp); group = h*nb + block
            a3 = a.reshape(nb, s_len, c_pad)
            return bf16(jnp.concatenate(
                [a3[:, :, h * hd_pad:(h + 1) * hd_pad] for h in range(num_heads)],
                axis=0))

        qh, kh, vh = split_heads(q), split_heads(k), split_heads(v)

        # one head/chunk-batched contraction pair for the whole block
        s = jnp.einsum('gsd,gtd->gst', qh, kh,
                       preferred_element_type=jnp.float32)        # (G, S, S)
        s = s - jnp.max(s, axis=-1, keepdims=True)
        p = jnp.exp(s)
        p = p * pl.reciprocal(jnp.sum(p, axis=-1, keepdims=True), approx=True)
        ctx = jnp.einsum('gst,gtd->gsd', bf16(p), vh,
                         preferred_element_type=jnp.float32)      # (G, S, HDp)

        # merge heads back to lane-major (M, Cp); head h at lanes [h*HDp, (h+1)*HDp)
        attn = jnp.concatenate(
            [ctx[h * nb:(h + 1) * nb].reshape(m_rows, hd_pad)
             for h in range(num_heads)], axis=-1)

        proj = jnp.dot(bf16(attn), w_proj_ref[...],
                       preferred_element_type=jnp.float32) + b_proj
        x1 = x + proj                                             # f32 residual

        # ---------------- MLP branch ------------------------------------------
        ln2 = layernorm(x1, g2, b2)
        h1 = jnp.maximum(
            jnp.dot(bf16(ln2), w_fc1_ref[...],
                    preferred_element_type=jnp.float32) + b_fc1_ref[...], 0.0)
        mlp = jnp.dot(bf16(h1), w_fc2_ref[...],
                      preferred_element_type=jnp.float32) + b_fc2

        o_ref[...] = (x1 + mlp).reshape(bt, r_rows, d_pad)

    return kernel


# ----------------------------------------------------------------- wrapper ---
def mla_block(x_tokens, params):
    B, N, D = x_tokens.shape
    assert D % (2 * NUM_HEADS) == 0, "dim must split into 8 heads after reduce"
    assert N % NUM_CHUNKS == 0, "token count must be divisible by 4"
    C = D // 2
    HD = C // NUM_HEADS
    HID = D // 4

    # lane-padded sizes (zero padding keeps the math exact)
    Dp = _round_up(D, 128)
    HDp = _round_up(HD, 16)            # 8 heads * HDp -> multiple of 128
    Cp = NUM_HEADS * HDp
    HIDp = _round_up(HID, 128)

    # chunks-per-block and batch-per-block so each grid step has ~128-512 rows
    S = N // NUM_CHUNKS
    CPB = 1
    for c in (4, 2):
        if NUM_CHUNKS % c == 0 and c * S <= 512:
            CPB = c
            break
    R = CPB * S
    assert R % 8 == 0, "token rows per block must be a multiple of 8"
    Bt = 1
    for cand in range(min(B, max(1, 512 // R)), 0, -1):
        if B % cand == 0:
            Bt = cand
            break

    f32, bf16 = jnp.float32, jnp.bfloat16

    def pad_to(a, shape):
        return jnp.pad(a, [(0, t - d) for d, t in zip(a.shape, shape)])

    x_pad = pad_to(x_tokens.astype(f32), (B, N, Dp))

    # ---- weights: lane/head padded, matmul weights stored bf16 (MXU inputs) ----
    # reduce and qkv Linears are both bias-free -> fuse: (D, C) @ (C, 3C) = (D, 3C);
    # fold the softmax scale ((dim // num_heads) ** -0.5, PyTorch uses the
    # UN-reduced dim) into the q columns so the kernel never multiplies by it.
    scale = float((D // NUM_HEADS) ** (-0.5))
    w_fused = params["w_red"].astype(f32) @ params["w_qkv"].astype(f32)   # (D, 3C)
    w_fused = w_fused.reshape(D, 3, NUM_HEADS, HD)
    w_fused = w_fused.at[:, 0].multiply(scale)                            # scale q
    w_qkv = pad_to(w_fused, (Dp, 3, NUM_HEADS, HDp)).reshape(Dp, 3 * Cp).astype(bf16)

    w_proj = params["w_proj"].reshape(NUM_HEADS, HD, D)
    w_proj = pad_to(w_proj, (NUM_HEADS, HDp, Dp)).reshape(Cp, Dp).astype(bf16)
    w_fc1 = pad_to(params["w_fc1"], (Dp, HIDp)).astype(bf16)
    w_fc2 = pad_to(params["w_fc2"], (HIDp, Dp)).astype(bf16)
    b_fc1 = pad_to(params["b_fc1"], (1, HIDp)).astype(f32)
    # pack all (1, D) gains/biases into one (6, Dp) array -> single small window
    vecs = jnp.concatenate(
        [pad_to(params[k], (1, Dp))
         for k in ("g1", "b1", "b_proj", "g2", "b2", "b_fc2")], axis=0).astype(f32)

    kernel = _make_kernel(D, Dp, Cp, HDp, NUM_HEADS, Bt, CPB, S)

    grid = (B // Bt, NUM_CHUNKS // CPB)
    x_spec = pl.BlockSpec((Bt, R, Dp), lambda b, c: (b, c, 0))

    def const_spec(a):
        return pl.BlockSpec(a.shape, lambda b, c: (0, 0))

    out_pad = pl.pallas_call(
        kernel,
        out_shape=jax.ShapeDtypeStruct((B, N, Dp), f32),
        grid_spec=pltpu.PrefetchScalarGridSpec(
            num_scalar_prefetch=0,
            grid=grid,
            in_specs=[x_spec, const_spec(w_qkv), const_spec(w_proj),
                      const_spec(w_fc1), const_spec(w_fc2),
                      const_spec(vecs), const_spec(b_fc1)],
            out_specs=pl.BlockSpec((Bt, R, Dp), lambda b, c: (b, c, 0)),
        ),
        compiler_params=pltpu.CompilerParams(
            dimension_semantics=("parallel", "parallel")),
    )(x_pad, w_qkv, w_proj, w_fc1, w_fc2, vecs, b_fc1)

    return out_pad[:, :, :D]


# ---------------------------------------------------------------- JAX glue ---
def extract_patches_same_3x3(x):
    """torch Unfold(kernel=3, stride=1) with 'same' zero padding, then
    permute(0, 2, 1): (B, C, H, W) -> (B, H*W, 9*C).
    Feature index = c*9 + (ki*3 + kj), matching torch.nn.Unfold ordering."""
    B, C, H, W = x.shape
    xp = jnp.pad(x, ((0, 0), (0, 0), (1, 1), (1, 1)))
    cols = [xp[:, :, ki:ki + H, kj:kj + W] for ki in range(3) for kj in range(3)]
    stk = jnp.stack(cols, axis=2)                  # (B, C, 9, H, W)
    feat = stk.reshape(B, C * 9, H * W)            # (B, 9C, N)
    return jnp.transpose(feat, (0, 2, 1))          # (B, N, 9C)


def init_params(key, D):
    C = D // 2
    HID = D // 4
    ks = jax.random.split(key, 8)
    s = 0.05
    return {
        "g1": jnp.ones((1, D), jnp.float32),
        "b1": jnp.zeros((1, D), jnp.float32),
        "w_red": s * jax.random.normal(ks[0], (D, C), jnp.float32),
        "w_qkv": s * jax.random.normal(ks[1], (C, 3 * C), jnp.float32),
        "w_proj": s * jax.random.normal(ks[2], (C, D), jnp.float32),
        "b_proj": s * jax.random.normal(ks[3], (1, D), jnp.float32),
        "g2": jnp.ones((1, D), jnp.float32),
        "b2": jnp.zeros((1, D), jnp.float32),
        "w_fc1": s * jax.random.normal(ks[4], (D, HID), jnp.float32),
        "b_fc1": s * jax.random.normal(ks[5], (1, HID), jnp.float32),
        "w_fc2": s * jax.random.normal(ks[6], (HID, D), jnp.float32),
        "b_fc2": s * jax.random.normal(ks[7], (1, D), jnp.float32),
    }


def mla_block_ref(x_tokens, p):
    """Pure-JAX f32 reference of the same math (matches the PyTorch forward)."""
    B, N, D = x_tokens.shape
    C = D // 2
    HD = C // NUM_HEADS
    S = N // NUM_CHUNKS
    scale = (D // NUM_HEADS) ** (-0.5)

    def ln(y, g, b):
        mu = jnp.mean(y, axis=-1, keepdims=True)
        var = jnp.mean((y - mu) ** 2, axis=-1, keepdims=True)
        return (y - mu) * jax.lax.rsqrt(var + EPS) * g + b

    out = []
    for bi in range(B):
        x = x_tokens[bi]
        ln1 = ln(x, p["g1"][0], p["b1"][0])
        qkv = (ln1 @ p["w_red"]) @ p["w_qkv"]
        q, k, v = qkv[:, :C], qkv[:, C:2 * C], qkv[:, 2 * C:]
        chunks = []
        for c in range(NUM_CHUNKS):
            heads = []
            for h in range(NUM_HEADS):
                qh = q[c * S:(c + 1) * S, h * HD:(h + 1) * HD]
                kh = k[c * S:(c + 1) * S, h * HD:(h + 1) * HD]
                vh = v[c * S:(c + 1) * S, h * HD:(h + 1) * HD]
                a = jax.nn.softmax(qh @ kh.T * scale, axis=-1)
                heads.append(a @ vh)
            chunks.append(jnp.concatenate(heads, axis=-1))
        attn = jnp.concatenate(chunks, axis=0)
        x1 = x + attn @ p["w_proj"] + p["b_proj"][0]
        ln2 = ln(x1, p["g2"][0], p["b2"][0])
        mlp = jnp.maximum(ln2 @ p["w_fc1"] + p["b_fc1"][0], 0.0) @ p["w_fc2"] + p["b_fc2"][0]
        out.append(x1 + mlp)
    return jnp.stack(out, axis=0)


# -------------------------------------------------------------------- main ---
if __name__ == "__main__":
    B, Cin, H, W = 2, 16, 8, 8          # dim = 9*Cin = 144, N = 64
    D = 9 * Cin
    key = jax.random.PRNGKey(0)
    kx, kp = jax.random.split(key)
    x_img = jax.random.normal(kx, (B, Cin, H, W), jnp.float32)
    params = init_params(kp, D)

    tokens = extract_patches_same_3x3(x_img)      # (B, 64, 144)
    out = jax.block_until_ready(mla_block(tokens, params))

    ref = mla_block_ref(tokens, params)
    err = float(jnp.max(jnp.abs(out - ref)))
    assert out.shape == (B, H * W, D)
    # bf16 MXU inputs (f32 accumulation / LN / softmax / residuals) vs f32 ref
    assert err < 5e-2, f"max abs err {err}"
    print("KERNEL_OK")
</pallas_src>

<mosaic_0001>
module attributes {stable_mosaic.version = 11 : i64} {
  func.func @kernel(%arg0: i32, %arg1: i32, %arg2: memref<2x64x256xf32, #tpu.memory_space<vmem>>, %arg3: memref<256x384xbf16, #tpu.memory_space<vmem>>, %arg4: memref<128x256xbf16, #tpu.memory_space<vmem>>, %arg5: memref<256x128xbf16, #tpu.memory_space<vmem>>, %arg6: memref<128x256xbf16, #tpu.memory_space<vmem>>, %arg7: memref<6x256xf32, #tpu.memory_space<vmem>>, %arg8: memref<1x128xf32, #tpu.memory_space<vmem>>, %arg9: memref<2x64x256xf32, #tpu.memory_space<vmem>>) attributes {dimension_semantics = [#tpu.dimension_semantics<parallel>, #tpu.dimension_semantics<parallel>], iteration_bounds = array<i64: 1, 1>, scalar_prefetch = 0 : i64, scratch_operands = 0 : i64, tpu.core_type = #tpu.core_type<tc>, window_params = [{transform_indices = @transform_0, window_bounds = array<i64: 2, 64, 256>}, {pipeline_mode = #tpu.pipeline_mode<synchronous>, transform_indices = @transform_1, window_bounds = array<i64: 256, 384>}, {pipeline_mode = #tpu.pipeline_mode<synchronous>, transform_indices = @transform_2, window_bounds = array<i64: 128, 256>}, {pipeline_mode = #tpu.pipeline_mode<synchronous>, transform_indices = @transform_3, window_bounds = array<i64: 256, 128>}, {pipeline_mode = #tpu.pipeline_mode<synchronous>, transform_indices = @transform_4, window_bounds = array<i64: 128, 256>}, {pipeline_mode = #tpu.pipeline_mode<synchronous>, transform_indices = @transform_5, window_bounds = array<i64: 6, 256>}, {pipeline_mode = #tpu.pipeline_mode<synchronous>, transform_indices = @transform_6, window_bounds = array<i64: 1, 128>}, {transform_indices = @transform_7, window_bounds = array<i64: 2, 64, 256>}]} {
    %c0 = arith.constant 0 : index
    %c0_0 = arith.constant 0 : index
    %c0_1 = arith.constant 0 : index
    %0 = vector.load %arg2[%c0, %c0_0, %c0_1] : memref<2x64x256xf32, #tpu.memory_space<vmem>>, vector<2x64x256xf32>
    %1 = vector.shape_cast %0 : vector<2x64x256xf32> to vector<128x256xf32>
    %c0_2 = arith.constant 0 : index
    %c0_3 = arith.constant 0 : index
    %2 = vector.load %arg7[%c0_2, %c0_3] : memref<6x256xf32, #tpu.memory_space<vmem>>, vector<6x256xf32>
    %3 = vector.extract_strided_slice %2 {offsets = [0, 0], sizes = [1, 256], strides = [1, 1]} : vector<6x256xf32> to vector<1x256xf32>
    %4 = vector.extract_strided_slice %2 {offsets = [1, 0], sizes = [1, 256], strides = [1, 1]} : vector<6x256xf32> to vector<1x256xf32>
    %5 = vector.extract_strided_slice %2 {offsets = [2, 0], sizes = [1, 256], strides = [1, 1]} : vector<6x256xf32> to vector<1x256xf32>
    %6 = vector.extract_strided_slice %2 {offsets = [3, 0], sizes = [1, 256], strides = [1, 1]} : vector<6x256xf32> to vector<1x256xf32>
    %7 = vector.extract_strided_slice %2 {offsets = [4, 0], sizes = [1, 256], strides = [1, 1]} : vector<6x256xf32> to vector<1x256xf32>
    %8 = vector.extract_strided_slice %2 {offsets = [5, 0], sizes = [1, 256], strides = [1, 1]} : vector<6x256xf32> to vector<1x256xf32>
    %9 = tpu.iota {dimensions = array<i32: 1>} : vector<1x256xi32>
    %c144_i32 = arith.constant 144 : i32
    %10 = vector.broadcast %c144_i32 : i32 to vector<1x256xi32>
    %11 = arith.cmpi slt, %9, %10 : vector<1x256xi32>
    %12 = arith.extui %11 : vector<1x256xi1> to vector<1x256xi32>
    %13 = arith.sitofp %12 : vector<1x256xi32> to vector<1x256xf32>
    %cst = arith.constant dense<0.000000e+00> : vector<128xf32>
    %14 = vector.multi_reduction <add>, %1, %cst [1] : vector<128x256xf32> to vector<128xf32>
    %15 = vector.shape_cast %14 : vector<128xf32> to vector<128x1xf32>
    %cst_4 = arith.constant 0.0069444445 : f32
    %16 = vector.broadcast %cst_4 : f32 to vector<128x1xf32>
    %17 = arith.mulf %15, %16 : vector<128x1xf32>
    %18 = vector.broadcast %17 : vector<128x1xf32> to vector<128x256xf32>
    %19 = arith.subf %1, %18 : vector<128x256xf32>
    %20 = vector.broadcast %13 : vector<1x256xf32> to vector<128x256xf32>
    %21 = arith.mulf %19, %20 : vector<128x256xf32>
    %22 = arith.mulf %21, %21 : vector<128x256xf32>
    %cst_5 = arith.constant dense<0.000000e+00> : vector<128xf32>
    %23 = vector.multi_reduction <add>, %22, %cst_5 [1] : vector<128x256xf32> to vector<128xf32>
    %24 = vector.shape_cast %23 : vector<128xf32> to vector<128x1xf32>
    %cst_6 = arith.constant 0.0069444445 : f32
    %25 = vector.broadcast %cst_6 : f32 to vector<128x1xf32>
    %26 = arith.mulf %24, %25 : vector<128x1xf32>
    %cst_7 = arith.constant 9.99999974E-6 : f32
    %27 = vector.broadcast %cst_7 : f32 to vector<128x1xf32>
    %28 = arith.addf %26, %27 : vector<128x1xf32>
    %29 = math.rsqrt %28 : vector<128x1xf32>
    %30 = vector.broadcast %29 : vector<128x1xf32> to vector<128x256xf32>
    %31 = arith.mulf %21, %30 : vector<128x256xf32>
    %32 = vector.broadcast %3 : vector<1x256xf32> to vector<128x256xf32>
    %33 = arith.mulf %31, %32 : vector<128x256xf32>
    %34 = vector.broadcast %4 : vector<1x256xf32> to vector<128x256xf32>
    %35 = arith.addf %33, %34 : vector<128x256xf32>
    %36 = arith.truncf %35 : vector<128x256xf32> to vector<128x256xbf16>
    %c0_8 = arith.constant 0 : index
    %c0_9 = arith.constant 0 : index
    %37 = vector.load %arg3[%c0_8, %c0_9] : memref<256x384xbf16, #tpu.memory_space<vmem>>, vector<256x384xbf16>
    %cst_10 = arith.constant dense<0.000000e+00> : vector<128x384xf32>
    %38 = tpu.matmul %36, %37, %cst_10 {dimension_numbers = #tpu.dot_dimension_numbers<[1], [0], [0], [1], [0, 0, 1, 1], [], []>} : vector<128x256xbf16>, vector<256x384xbf16>, vector<128x384xf32> -> vector<128x384xf32>
    %39 = vector.extract_strided_slice %38 {offsets = [0, 0], sizes = [128, 128], strides = [1, 1]} : vector<128x384xf32> to vector<128x128xf32>
    %40 = vector.extract_strided_slice %38 {offsets = [0, 128], sizes = [128, 128], strides = [1, 1]} : vector<128x384xf32> to vector<128x128xf32>
    %41 = vector.extract_strided_slice %38 {offsets = [0, 256], sizes = [128, 128], strides = [1, 1]} : vector<128x384xf32> to vector<128x128xf32>
    %42 = vector.shape_cast %39 : vector<128x128xf32> to vector<8x16x128xf32>
    %43 = vector.extract_strided_slice %42 {offsets = [0, 0, 0], sizes = [8, 16, 16], strides = [1, 1, 1]} : vector<8x16x128xf32> to vector<8x16x16xf32>
    %44 = vector.extract_strided_slice %42 {offsets = [0, 0, 16], sizes = [8, 16, 16], strides = [1, 1, 1]} : vector<8x16x128xf32> to vector<8x16x16xf32>
    %45 = vector.extract_strided_slice %42 {offsets = [0, 0, 32], sizes = [8, 16, 16], strides = [1, 1, 1]} : vector<8x16x128xf32> to vector<8x16x16xf32>
    %46 = vector.extract_strided_slice %42 {offsets = [0, 0, 48], sizes = [8, 16, 16], strides = [1, 1, 1]} : vector<8x16x128xf32> to vector<8x16x16xf32>
    %47 = vector.extract_strided_slice %42 {offsets = [0, 0, 64], sizes = [8, 16, 16], strides = [1, 1, 1]} : vector<8x16x128xf32> to vector<8x16x16xf32>
    %48 = vector.extract_strided_slice %42 {offsets = [0, 0, 80], sizes = [8, 16, 16], strides = [1, 1, 1]} : vector<8x16x128xf32> to vector<8x16x16xf32>
    %49 = vector.extract_strided_slice %42 {offsets = [0, 0, 96], sizes = [8, 16, 16], strides = [1, 1, 1]} : vector<8x16x128xf32> to vector<8x16x16xf32>
    %50 = vector.extract_strided_slice %42 {offsets = [0, 0, 112], sizes = [8, 16, 16], strides = [1, 1, 1]} : vector<8x16x128xf32> to vector<8x16x16xf32>
    %51 = tpu.concatenate %43, %44, %45, %46, %47, %48, %49, %50 in 0 : vector<8x16x16xf32>, vector<8x16x16xf32>, vector<8x16x16xf32>, vector<8x16x16xf32>, vector<8x16x16xf32>, vector<8x16x16xf32>, vector<8x16x16xf32>, vector<8x16x16xf32> -> vector<64x16x16xf32>
    %52 = arith.truncf %51 : vector<64x16x16xf32> to vector<64x16x16xbf16>
    %53 = vector.shape_cast %40 : vector<128x128xf32> to vector<8x16x128xf32>
    %54 = vector.extract_strided_slice %53 {offsets = [0, 0, 0], sizes = [8, 16, 16], strides = [1, 1, 1]} : vector<8x16x128xf32> to vector<8x16x16xf32>
    %55 = vector.extract_strided_slice %53 {offsets = [0, 0, 16], sizes = [8, 16, 16], strides = [1, 1, 1]} : vector<8x16x128xf32> to vector<8x16x16xf32>
    %56 = vector.extract_strided_slice %53 {offsets = [0, 0, 32], sizes = [8, 16, 16], strides = [1, 1, 1]} : vector<8x16x128xf32> to vector<8x16x16xf32>
    %57 = vector.extract_strided_slice %53 {offsets = [0, 0, 48], sizes = [8, 16, 16], strides = [1, 1, 1]} : vector<8x16x128xf32> to vector<8x16x16xf32>
    %58 = vector.extract_strided_slice %53 {offsets = [0, 0, 64], sizes = [8, 16, 16], strides = [1, 1, 1]} : vector<8x16x128xf32> to vector<8x16x16xf32>
    %59 = vector.extract_strided_slice %53 {offsets = [0, 0, 80], sizes = [8, 16, 16], strides = [1, 1, 1]} : vector<8x16x128xf32> to vector<8x16x16xf32>
    %60 = vector.extract_strided_slice %53 {offsets = [0, 0, 96], sizes = [8, 16, 16], strides = [1, 1, 1]} : vector<8x16x128xf32> to vector<8x16x16xf32>
    %61 = vector.extract_strided_slice %53 {offsets = [0, 0, 112], sizes = [8, 16, 16], strides = [1, 1, 1]} : vector<8x16x128xf32> to vector<8x16x16xf32>
    %62 = tpu.concatenate %54, %55, %56, %57, %58, %59, %60, %61 in 0 : vector<8x16x16xf32>, vector<8x16x16xf32>, vector<8x16x16xf32>, vector<8x16x16xf32>, vector<8x16x16xf32>, vector<8x16x16xf32>, vector<8x16x16xf32>, vector<8x16x16xf32> -> vector<64x16x16xf32>
    %63 = arith.truncf %62 : vector<64x16x16xf32> to vector<64x16x16xbf16>
    %64 = vector.shape_cast %41 : vector<128x128xf32> to vector<8x16x128xf32>
    %65 = vector.extract_strided_slice %64 {offsets = [0, 0, 0], sizes = [8, 16, 16], strides = [1, 1, 1]} : vector<8x16x128xf32> to vector<8x16x16xf32>
    %66 = vector.extract_strided_slice %64 {offsets = [0, 0, 16], sizes = [8, 16, 16], strides = [1, 1, 1]} : vector<8x16x128xf32> to vector<8x16x16xf32>
    %67 = vector.extract_strided_slice %64 {offsets = [0, 0, 32], sizes = [8, 16, 16], strides = [1, 1, 1]} : vector<8x16x128xf32> to vector<8x16x16xf32>
    %68 = vector.extract_strided_slice %64 {offsets = [0, 0, 48], sizes = [8, 16, 16], strides = [1, 1, 1]} : vector<8x16x128xf32> to vector<8x16x16xf32>
    %69 = vector.extract_strided_slice %64 {offsets = [0, 0, 64], sizes = [8, 16, 16], strides = [1, 1, 1]} : vector<8x16x128xf32> to vector<8x16x16xf32>
    %70 = vector.extract_strided_slice %64 {offsets = [0, 0, 80], sizes = [8, 16, 16], strides = [1, 1, 1]} : vector<8x16x128xf32> to vector<8x16x16xf32>
    %71 = vector.extract_strided_slice %64 {offsets = [0, 0, 96], sizes = [8, 16, 16], strides = [1, 1, 1]} : vector<8x16x128xf32> to vector<8x16x16xf32>
    %72 = vector.extract_strided_slice %64 {offsets = [0, 0, 112], sizes = [8, 16, 16], strides = [1, 1, 1]} : vector<8x16x128xf32> to vector<8x16x16xf32>
    %73 = tpu.concatenate %65, %66, %67, %68, %69, %70, %71, %72 in 0 : vector<8x16x16xf32>, vector<8x16x16xf32>, vector<8x16x16xf32>, vector<8x16x16xf32>, vector<8x16x16xf32>, vector<8x16x16xf32>, vector<8x16x16xf32>, vector<8x16x16xf32> -> vector<64x16x16xf32>
    %74 = arith.truncf %73 : vector<64x16x16xf32> to vector<64x16x16xbf16>
    "tpu.trace_start"() <{level = 10 : i32, message = "gsd,gtd->gst"}> : () -> ()
    %cst_11 = arith.constant dense<0.000000e+00> : vector<64x16x16xf32>
    %75 = tpu.matmul %52, %63, %cst_11 {dimension_numbers = #tpu.dot_dimension_numbers<[2], [2], [1], [1], [0, 0, 0, 1, 1, 1], [0], [0]>} : vector<64x16x16xbf16>, vector<64x16x16xbf16>, vector<64x16x16xf32> -> vector<64x16x16xf32>
    "tpu.trace_stop"() : () -> ()
    %cst_12 = arith.constant dense<0xFF800000> : vector<64x16xf32>
    %76 = vector.multi_reduction <maximumf>, %75, %cst_12 [2] : vector<64x16x16xf32> to vector<64x16xf32>
    %77 = vector.shape_cast %76 : vector<64x16xf32> to vector<64x16x1xf32>
    %78 = vector.broadcast %77 : vector<64x16x1xf32> to vector<64x16x16xf32>
    %79 = arith.subf %75, %78 : vector<64x16x16xf32>
    %80 = math.exp %79 : vector<64x16x16xf32>
    %cst_13 = arith.constant dense<0.000000e+00> : vector<64x16xf32>
    %81 = vector.multi_reduction <add>, %80, %cst_13 [2] : vector<64x16x16xf32> to vector<64x16xf32>
    %82 = vector.shape_cast %81 : vector<64x16xf32> to vector<64x16x1xf32>
    %83 = tpu.reciprocal %82 {approx = true} : vector<64x16x1xf32> -> vector<64x16x1xf32>
    %84 = vector.broadcast %83 : vector<64x16x1xf32> to vector<64x16x16xf32>
    %85 = arith.mulf %80, %84 : vector<64x16x16xf32>
    %86 = arith.truncf %85 : vector<64x16x16xf32> to vector<64x16x16xbf16>
    "tpu.trace_start"() <{level = 10 : i32, message = "gst,gtd->gsd"}> : () -> ()
    %cst_14 = arith.constant dense<0.000000e+00> : vector<64x16x16xf32>
    %87 = tpu.matmul %86, %74, %cst_14 {dimension_numbers = #tpu.dot_dimension_numbers<[2], [1], [1], [2], [0, 0, 0, 1, 1, 2], [0], [0]>} : vector<64x16x16xbf16>, vector<64x16x16xbf16>, vector<64x16x16xf32> -> vector<64x16x16xf32>
    "tpu.trace_stop"() : () -> ()
    %88 = vector.extract_strided_slice %87 {offsets = [0, 0, 0], sizes = [8, 16, 16], strides = [1, 1, 1]} : vector<64x16x16xf32> to vector<8x16x16xf32>
    %89 = vector.shape_cast %88 : vector<8x16x16xf32> to vector<128x16xf32>
    %90 = vector.extract_strided_slice %87 {offsets = [8, 0, 0], sizes = [8, 16, 16], strides = [1, 1, 1]} : vector<64x16x16xf32> to vector<8x16x16xf32>
    %91 = vector.shape_cast %90 : vector<8x16x16xf32> to vector<128x16xf32>
    %92 = vector.extract_strided_slice %87 {offsets = [16, 0, 0], sizes = [8, 16, 16], strides = [1, 1, 1]} : vector<64x16x16xf32> to vector<8x16x16xf32>
    %93 = vector.shape_cast %92 : vector<8x16x16xf32> to vector<128x16xf32>
    %94 = vector.extract_strided_slice %87 {offsets = [24, 0, 0], sizes = [8, 16, 16], strides = [1, 1, 1]} : vector<64x16x16xf32> to vector<8x16x16xf32>
    %95 = vector.shape_cast %94 : vector<8x16x16xf32> to vector<128x16xf32>
    %96 = vector.extract_strided_slice %87 {offsets = [32, 0, 0], sizes = [8, 16, 16], strides = [1, 1, 1]} : vector<64x16x16xf32> to vector<8x16x16xf32>
    %97 = vector.shape_cast %96 : vector<8x16x16xf32> to vector<128x16xf32>
    %98 = vector.extract_strided_slice %87 {offsets = [40, 0, 0], sizes = [8, 16, 16], strides = [1, 1, 1]} : vector<64x16x16xf32> to vector<8x16x16xf32>
    %99 = vector.shape_cast %98 : vector<8x16x16xf32> to vector<128x16xf32>
    %100 = vector.extract_strided_slice %87 {offsets = [48, 0, 0], sizes = [8, 16, 16], strides = [1, 1, 1]} : vector<64x16x16xf32> to vector<8x16x16xf32>
    %101 = vector.shape_cast %100 : vector<8x16x16xf32> to vector<128x16xf32>
    %102 = vector.extract_strided_slice %87 {offsets = [56, 0, 0], sizes = [8, 16, 16], strides = [1, 1, 1]} : vector<64x16x16xf32> to vector<8x16x16xf32>
    %103 = vector.shape_cast %102 : vector<8x16x16xf32> to vector<128x16xf32>
    %104 = tpu.concatenate %89, %91, %93, %95, %97, %99, %101, %103 in 1 : vector<128x16xf32>, vector<128x16xf32>, vector<128x16xf32>, vector<128x16xf32>, vector<128x16xf32>, vector<128x16xf32>, vector<128x16xf32>, vector<128x16xf32> -> vector<128x128xf32>
    %105 = arith.truncf %104 : vector<128x128xf32> to vector<128x128xbf16>
    %c0_15 = arith.constant 0 : index
    %c0_16 = arith.constant 0 : index
    %106 = vector.load %arg4[%c0_15, %c0_16] : memref<128x256xbf16, #tpu.memory_space<vmem>>, vector<128x256xbf16>
    %cst_17 = arith.constant dense<0.000000e+00> : vector<128x256xf32>
    %107 = tpu.matmul %105, %106, %cst_17 {dimension_numbers = #tpu.dot_dimension_numbers<[1], [0], [0], [1], [0, 0, 1, 1], [], []>} : vector<128x128xbf16>, vector<128x256xbf16>, vector<128x256xf32> -> vector<128x256xf32>
    %108 = vector.broadcast %5 : vector<1x256xf32> to vector<128x256xf32>
    %109 = arith.addf %107, %108 : vector<128x256xf32>
    %110 = arith.addf %1, %109 : vector<128x256xf32>
    %cst_18 = arith.constant dense<0.000000e+00> : vector<128xf32>
    %111 = vector.multi_reduction <add>, %110, %cst_18 [1] : vector<128x256xf32> to vector<128xf32>
    %112 = vector.shape_cast %111 : vector<128xf32> to vector<128x1xf32>
    %cst_19 = arith.constant 0.0069444445 : f32
    %113 = vector.broadcast %cst_19 : f32 to vector<128x1xf32>
    %114 = arith.mulf %112, %113 : vector<128x1xf32>
    %115 = vector.broadcast %114 : vector<128x1xf32> to vector<128x256xf32>
    %116 = arith.subf %110, %115 : vector<128x256xf32>
    %117 = vector.broadcast %13 : vector<1x256xf32> to vector<128x256xf32>
    %118 = arith.mulf %116, %117 : vector<128x256xf32>
    %119 = arith.mulf %118, %118 : vector<128x256xf32>
    %cst_20 = arith.constant dense<0.000000e+00> : vector<128xf32>
    %120 = vector.multi_reduction <add>, %119, %cst_20 [1] : vector<128x256xf32> to vector<128xf32>
    %121 = vector.shape_cast %120 : vector<128xf32> to vector<128x1xf32>
    %cst_21 = arith.constant 0.0069444445 : f32
    %122 = vector.broadcast %cst_21 : f32 to vector<128x1xf32>
    %123 = arith.mulf %121, %122 : vector<128x1xf32>
    %cst_22 = arith.constant 9.99999974E-6 : f32
    %124 = vector.broadcast %cst_22 : f32 to vector<128x1xf32>
    %125 = arith.addf %123, %124 : vector<128x1xf32>
    %126 = math.rsqrt %125 : vector<128x1xf32>
    %127 = vector.broadcast %126 : vector<128x1xf32> to vector<128x256xf32>
    %128 = arith.mulf %118, %127 : vector<128x256xf32>
    %129 = vector.broadcast %6 : vector<1x256xf32> to vector<128x256xf32>
    %130 = arith.mulf %128, %129 : vector<128x256xf32>
    %131 = vector.broadcast %7 : vector<1x256xf32> to vector<128x256xf32>
    %132 = arith.addf %130, %131 : vector<128x256xf32>
    %133 = arith.truncf %132 : vector<128x256xf32> to vector<128x256xbf16>
    %c0_23 = arith.constant 0 : index
    %c0_24 = arith.constant 0 : index
    %134 = vector.load %arg5[%c0_23, %c0_24] : memref<256x128xbf16, #tpu.memory_space<vmem>>, vector<256x128xbf16>
    %cst_25 = arith.constant dense<0.000000e+00> : vector<128x128xf32>
    %135 = tpu.matmul %133, %134, %cst_25 {dimension_numbers = #tpu.dot_dimension_numbers<[1], [0], [0], [1], [0, 0, 1, 1], [], []>} : vector<128x256xbf16>, vector<256x128xbf16>, vector<128x128xf32> -> vector<128x128xf32>
    %c0_26 = arith.constant 0 : index
    %c0_27 = arith.constant 0 : index
    %136 = vector.load %arg8[%c0_26, %c0_27] : memref<1x128xf32, #tpu.memory_space<vmem>>, vector<1x128xf32>
    %137 = vector.broadcast %136 : vector<1x128xf32> to vector<128x128xf32>
    %138 = arith.addf %135, %137 : vector<128x128xf32>
    %cst_28 = arith.constant 0.000000e+00 : f32
    %139 = vector.broadcast %cst_28 : f32 to vector<128x128xf32>
    %140 = arith.maximumf %138, %139 : vector<128x128xf32>
    %141 = arith.truncf %140 : vector<128x128xf32> to vector<128x128xbf16>
    %c0_29 = arith.constant 0 : index
    %c0_30 = arith.constant 0 : index
    %142 = vector.load %arg6[%c0_29, %c0_30] : memref<128x256xbf16, #tpu.memory_space<vmem>>, vector<128x256xbf16>
    %cst_31 = arith.constant dense<0.000000e+00> : vector<128x256xf32>
    %143 = tpu.matmul %141, %142, %cst_31 {dimension_numbers = #tpu.dot_dimension_numbers<[1], [0], [0], [1], [0, 0, 1, 1], [], []>} : vector<128x128xbf16>, vector<128x256xbf16>, vector<128x256xf32> -> vector<128x256xf32>
    %144 = vector.broadcast %8 : vector<1x256xf32> to vector<128x256xf32>
    %145 = arith.addf %143, %144 : vector<128x256xf32>
    %146 = arith.addf %110, %145 : vector<128x256xf32>
    %147 = vector.shape_cast %146 : vector<128x256xf32> to vector<2x64x256xf32>
    %c0_32 = arith.constant 0 : index
    %c0_33 = arith.constant 0 : index
    %c0_34 = arith.constant 0 : index
    %148 = vector.load %arg9[%c0_32, %c0_33, %c0_34] : memref<2x64x256xf32, #tpu.memory_space<vmem>>, vector<2x64x256xf32>
    tpu.vector_store %arg9[%c0_32, %c0_33, %c0_34], %147 {strides = array<i32>} : memref<2x64x256xf32, #tpu.memory_space<vmem>>, vector<2x64x256xf32>,
    return
  }
  func.func @transform_0(%arg0: i32, %arg1: i32) -> (i32, i32, i32) {
    %c0_i32 = arith.constant 0 : i32
    %c0_i32_0 = arith.constant 0 : i32
    return %arg0, %arg1, %c0_i32 : i32, i32, i32
  }
  func.func @transform_1(%arg0: i32, %arg1: i32) -> (i32, i32) {
    %c0_i32 = arith.constant 0 : i32
    %c0_i32_0 = arith.constant 0 : i32
    %c0_i32_1 = arith.constant 0 : i32
    return %c0_i32, %c0_i32_0 : i32, i32
  }
  func.func @transform_2(%arg0: i32, %arg1: i32) -> (i32, i32) {
    %c0_i32 = arith.constant 0 : i32
    %c0_i32_0 = arith.constant 0 : i32
    %c0_i32_1 = arith.constant 0 : i32
    return %c0_i32, %c0_i32_0 : i32, i32
  }
  func.func @transform_3(%arg0: i32, %arg1: i32) -> (i32, i32) {
    %c0_i32 = arith.constant 0 : i32
    %c0_i32_0 = arith.constant 0 : i32
    %c0_i32_1 = arith.constant 0 : i32
    return %c0_i32, %c0_i32_0 : i32, i32
  }
  func.func @transform_4(%arg0: i32, %arg1: i32) -> (i32, i32) {
    %c0_i32 = arith.constant 0 : i32
    %c0_i32_0 = arith.constant 0 : i32
    %c0_i32_1 = arith.constant 0 : i32
    return %c0_i32, %c0_i32_0 : i32, i32
  }
  func.func @transform_5(%arg0: i32, %arg1: i32) -> (i32, i32) {
    %c0_i32 = arith.constant 0 : i32
    %c0_i32_0 = arith.constant 0 : i32
    %c0_i32_1 = arith.constant 0 : i32
    return %c0_i32, %c0_i32_0 : i32, i32
  }
  func.func @transform_6(%arg0: i32, %arg1: i32) -> (i32, i32) {
    %c0_i32 = arith.constant 0 : i32
    %c0_i32_0 = arith.constant 0 : i32
    %c0_i32_1 = arith.constant 0 : i32
    return %c0_i32, %c0_i32_0 : i32, i32
  }
  func.func @transform_7(%arg0: i32, %arg1: i32) -> (i32, i32, i32) {
    %c0_i32 = arith.constant 0 : i32
    %c0_i32_0 = arith.constant 0 : i32
    return %arg0, %arg1, %c0_i32 : i32, i32, i32
  }
}

</mosaic_0001>

<llo_original>
// kernel: tpu_custom_call.1
$region0: #{tpu_custom_call.1}
  #allocation0 [shape = 'u32[]', space=smem, size = 0x4, offset = 0x4, fixed_abs, tag = 'smem constant byte address 0x4 - core index']
  #allocation1 [shape = 'u32[72,128]{1,0:T(1,128)}', space=vmem, size = 0x9000, scoped, tag = 'internal scratch']
  %s0 = inlined_call_operand.hbm [shape: f32[2,64,256], index: 0, kind: input, shape index: {}]
  %s1 = inlined_call_operand.hbm [shape: bf16[256,384], index: 1, kind: input, shape index: {}]
  %s2 = inlined_call_operand.hbm [shape: bf16[128,256], index: 2, kind: input, shape index: {}]
  %s3 = inlined_call_operand.hbm [shape: bf16[256,128], index: 3, kind: input, shape index: {}]
  %s4 = inlined_call_operand.hbm [shape: bf16[128,256], index: 4, kind: input, shape index: {}]
  %s5 = inlined_call_operand.hbm [shape: f32[6,256], index: 5, kind: input, shape index: {}]
  %s6 = inlined_call_operand.vmem [shape: f32[1,128], index: 6, kind: input, shape index: {}]
  %s7 = inlined_call_operand.hbm [shape: f32[2,64,256], index: 7, kind: output, shape index: {}]
  %s8 = sld [smem:[#allocation0]]
  $region62: #{tpu_custom_call.1} parent=0
    _
  %s10 = ssub.s32 1, %s8
  %s11 = scalar_select 0, %s10, %s8
  $region1: #{tpu_custom_call.1} parent=0
    #allocation2 [shape = 'u8[131072]{0}', space=vmem, size = 0x20000, scoped, tag = 'input window, operand 0, single buffered']
    #allocation3 [shape = 's32[1]{0}', space=sflag, size = 0x4, scoped, tag = 'scoped memory for tpu_custom_call.1']
    #allocation4 [shape = 's32[1]{0}', space=sflag, size = 0x4, scoped, tag = 'scoped memory for tpu_custom_call.1']
    #allocation5 [shape = 'u8[196608]{0}', space=vmem, size = 0x30000, scoped, tag = 'input window, operand 1, single buffered']
    #allocation6 [shape = 's32[1]{0}', space=sflag, size = 0x4, scoped, tag = 'scoped memory for tpu_custom_call.1']
    #allocation7 [shape = 'u8[65536]{0}', space=vmem, size = 0x10000, scoped, tag = 'input window, operand 2, single buffered']
    #allocation8 [shape = 'u8[65536]{0}', space=vmem, size = 0x10000, scoped, tag = 'input window, operand 3, single buffered']
    #allocation9 [shape = 's32[1]{0}', space=sflag, size = 0x4, scoped, tag = 'scoped memory for tpu_custom_call.1']
    #allocation10 [shape = 'u8[65536]{0}', space=vmem, size = 0x10000, scoped, tag = 'input window, operand 4, single buffered']
    #allocation11 [shape = 'u8[8192]{0}', space=vmem, size = 0x2000, scoped, tag = 'input window, operand 5, single buffered']
    #allocation12 [shape = 's32[1]{0}', space=sflag, size = 0x4, scoped, tag = 'scoped memory for tpu_custom_call.1']
    #allocation13 [shape = 'u8[131072]{0}', space=vmem, size = 0x20000, scoped, tag = 'output window, operand 0, single buffered']
    %12 = vsyncpa [#allocation3], 0
    %13 = vsyncpa [#allocation6], 0
    %14 = vsyncpa [#allocation9], 0
    %15 = vsyncpa [#allocation12], 0
    %16 = vsyncpa [#allocation4], 0
    // Predicated region
    $region2: #{tpu_custom_call.1} parent=1 // pred_check
      _
    $region3: #{tpu_custom_call.1} parent=1 // pred_check_branch
      %18 = sbr.rel (0) target = $region5
    $region4: #{tpu_custom_call.1} parent=1 // pred_region
      %20 = vsyncadd [#allocation3], 0
      %s21 = sshll.u32 %s0, 4
      %s22 = int_to_ptr.hbm [resolvable:$true] %s21
      %s23 = sshll.u32 [#allocation2], 4
      %s24 = int_to_ptr.vmem [resolvable:$true] %s23
      %29 = dma.hbm_to_vmem [thread:$0]  %s22, 4096, %s24, [#allocation3], 256, 256, 16
    $region5: #{tpu_custom_call.1} parent=1 // pred_fallthru
      _
    // Predicated region
    $region6: #{tpu_custom_call.1} parent=1 // pred_check
      _
    $region7: #{tpu_custom_call.1} parent=1 // pred_check_branch
      %31 = sbr.rel (0) target = $region9
    $region8: #{tpu_custom_call.1} parent=1 // pred_region
      %33 = vsyncadd [#allocation6], 0
      %s34 = sshll.u32 %s1, 4
      %s35 = int_to_ptr.hbm [resolvable:$true] %s34
      %s36 = sshll.u32 [#allocation5], 4
      %s37 = int_to_ptr.vmem [resolvable:$true] %s36
      %42 = dma.hbm_to_vmem [thread:$0]  %s35, 6144, %s37, [#allocation6], 192, 192, 12
    $region9: #{tpu_custom_call.1} parent=1 // pred_fallthru
      _
    // Predicated region
    $region10: #{tpu_custom_call.1} parent=1 // pred_check
      _
    $region11: #{tpu_custom_call.1} parent=1 // pred_check_branch
      %44 = sbr.rel (0) target = $region13
    $region12: #{tpu_custom_call.1} parent=1 // pred_region
      %46 = vsyncadd [#allocation6], 0
      %s47 = sshll.u32 %s2, 4
      %s48 = int_to_ptr.hbm [resolvable:$true] %s47
      %s49 = sshll.u32 [#allocation7], 4
      %s50 = int_to_ptr.vmem [resolvable:$true] %s49
      %55 = dma.hbm_to_vmem [thread:$0]  %s48, 2048, %s50, [#allocation6], 128, 128, 8
    $region13: #{tpu_custom_call.1} parent=1 // pred_fallthru
      _
    // Predicated region
    $region14: #{tpu_custom_call.1} parent=1 // pred_check
      _
    $region15: #{tpu_custom_call.1} parent=1 // pred_check_branch
      %57 = sbr.rel (0) target = $region17
    $region16: #{tpu_custom_call.1} parent=1 // pred_region
      %59 = vsyncadd [#allocation9], 0
      %s60 = sshll.u32 %s3, 4
      %s61 = int_to_ptr.hbm [resolvable:$true] %s60
      %s62 = sshll.u32 [#allocation8], 4
      %s63 = int_to_ptr.vmem [resolvable:$true] %s62
      %68 = dma.hbm_to_vmem [thread:$0]  %s61, 2048, %s63, [#allocation9], 64, 64, 4
    $region17: #{tpu_custom_call.1} parent=1 // pred_fallthru
      _
    // Predicated region
    $region18: #{tpu_custom_call.1} parent=1 // pred_check
      _
    $region19: #{tpu_custom_call.1} parent=1 // pred_check_branch
      %70 = sbr.rel (0) target = $region21
    $region20: #{tpu_custom_call.1} parent=1 // pred_region
      %72 = vsyncadd [#allocation9], 0
      %s73 = sshll.u32 %s4, 4
      %s74 = int_to_ptr.hbm [resolvable:$true] %s73
      %s75 = sshll.u32 [#allocation10], 4
      %s76 = int_to_ptr.vmem [resolvable:$true] %s75
      %81 = dma.hbm_to_vmem [thread:$0]  %s74, 2048, %s76, [#allocation9], 128, 128, 8
    $region21: #{tpu_custom_call.1} parent=1 // pred_fallthru
      _
    // Predicated region
    $region22: #{tpu_custom_call.1} parent=1 // pred_check
      _
    $region23: #{tpu_custom_call.1} parent=1 // pred_check_branch
      %83 = sbr.rel (0) target = $region25
    $region24: #{tpu_custom_call.1} parent=1 // pred_region
      %85 = vsyncadd [#allocation12], 0
      %s87 = sshll.u32 %s5, 4
      %s88 = int_to_ptr.hbm [resolvable:$true] %s87
      %s89 = sshll.u32 [#allocation11], 4
      %s90 = int_to_ptr.vmem [resolvable:$true] %s89
      %92 = dma.hbm_to_vmem [thread:$0]  %s88, 256, %s90, [#allocation12]
    $region25: #{tpu_custom_call.1} parent=1 // pred_fallthru
      _
    // Predicated region
    $region26: #{tpu_custom_call.1} parent=1 // pred_check
      _
    $region27: #{tpu_custom_call.1} parent=1 // pred_check_branch
      %94 = sbr.rel (0) target = $region29
    $region28: #{tpu_custom_call.1} parent=1 // pred_region
      _
    $region29: #{tpu_custom_call.1} parent=1 // pred_fallthru
      _
    // Predicated region
    $region30: #{tpu_custom_call.1} parent=1 // pred_check
      _
    $region31: #{tpu_custom_call.1} parent=1 // pred_check_branch
      %96 = sbr.rel (0) target = $region33
    $region32: #{tpu_custom_call.1} parent=1 // pred_region
      %98 = dma.done [#allocation3], 4096
    $region33: #{tpu_custom_call.1} parent=1 // pred_fallthru
      _
    // Predicated region
    $region34: #{tpu_custom_call.1} parent=1 // pred_check
      _
    $region35: #{tpu_custom_call.1} parent=1 // pred_check_branch
      %100 = sbr.rel (0) target = $region37
    $region36: #{tpu_custom_call.1} parent=1 // pred_region
      %102 = dma.done [#allocation6], 6144
    $region37: #{tpu_custom_call.1} parent=1 // pred_fallthru
      _
    // Predicated region
    $region38: #{tpu_custom_call.1} parent=1 // pred_check
      _
    $region39: #{tpu_custom_call.1} parent=1 // pred_check_branch
      %104 = sbr.rel (0) target = $region41
    $region40: #{tpu_custom_call.1} parent=1 // pred_region
      %106 = dma.done [#allocation6], 2048
    $region41: #{tpu_custom_call.1} parent=1 // pred_fallthru
      _
    // Predicated region
    $region42: #{tpu_custom_call.1} parent=1 // pred_check
      _
    $region43: #{tpu_custom_call.1} parent=1 // pred_check_branch
      %108 = sbr.rel (0) target = $region45
    $region44: #{tpu_custom_call.1} parent=1 // pred_region
      %110 = dma.done [#allocation9], 2048
    $region45: #{tpu_custom_call.1} parent=1 // pred_fallthru
      _
    // Predicated region
    $region46: #{tpu_custom_call.1} parent=1 // pred_check
      _
    $region47: #{tpu_custom_call.1} parent=1 // pred_check_branch
      %112 = sbr.rel (0) target = $region49
    $region48: #{tpu_custom_call.1} parent=1 // pred_region
      %114 = dma.done [#allocation9], 2048
    $region49: #{tpu_custom_call.1} parent=1 // pred_fallthru
      _
    // Predicated region
    $region50: #{tpu_custom_call.1} parent=1 // pred_check
      _
    $region51: #{tpu_custom_call.1} parent=1 // pred_check_branch
      %116 = sbr.rel (0) target = $region53
    $region52: #{tpu_custom_call.1} parent=1 // pred_region
      %118 = dma.done [#allocation12], 256
    $region53: #{tpu_custom_call.1} parent=1 // pred_fallthru
      _
    %v120 = vld [vmem:[#allocation2] sm:$0xff]
    %v121 = vld [vmem:[#allocation2 + $0x8] sm:$0xff]
    %v122 = vld [vmem:[#allocation2 + $0x10] sm:$0xff]
    %v123 = vld [vmem:[#allocation2 + $0x18] sm:$0xff]
    %v124 = vld [vmem:[#allocation2 + $0x20] sm:$0xff]
    %v125 = vld [vmem:[#allocation2 + $0x28] sm:$0xff]
    %v126 = vld [vmem:[#allocation2 + $0x30] sm:$0xff]
    %v127 = vld [vmem:[#allocation2 + $0x38] sm:$0xff]
    %v128 = vld [vmem:[#allocation2 + $0x40] sm:$0xff]
    %v129 = vld [vmem:[#allocation2 + $0x48] sm:$0xff]
    %v130 = vld [vmem:[#allocation2 + $0x50] sm:$0xff]
    %v131 = vld [vmem:[#allocation2 + $0x58] sm:$0xff]
    %v132 = vld [vmem:[#allocation2 + $0x60] sm:$0xff]
    %v133 = vld [vmem:[#allocation2 + $0x68] sm:$0xff]
    %v134 = vld [vmem:[#allocation2 + $0x70] sm:$0xff]
    %v135 = vld [vmem:[#allocation2 + $0x78] sm:$0xff]
    %v136 = vld [vmem:[#allocation2 + $0x80] sm:$0xff]
    %v137 = vld [vmem:[#allocation2 + $0x88] sm:$0xff]
    %v138 = vld [vmem:[#allocation2 + $0x90] sm:$0xff]
    %v139 = vld [vmem:[#allocation2 + $0x98] sm:$0xff]
    %v140 = vld [vmem:[#allocation2 + $0xa0] sm:$0xff]
    %v141 = vld [vmem:[#allocation2 + $0xa8] sm:$0xff]
    %v142 = vld [vmem:[#allocation2 + $0xb0] sm:$0xff]
    %v143 = vld [vmem:[#allocation2 + $0xb8] sm:$0xff]
    %v144 = vld [vmem:[#allocation2 + $0xc0] sm:$0xff]
    %v145 = vld [vmem:[#allocation2 + $0xc8] sm:$0xff]
    %v146 = vld [vmem:[#allocation2 + $0xd0] sm:$0xff]
    %v147 = vld [vmem:[#allocation2 + $0xd8] sm:$0xff]
    %v148 = vld [vmem:[#allocation2 + $0xe0] sm:$0xff]
    %v149 = vld [vmem:[#allocation2 + $0xe8] sm:$0xff]
    %v150 = vld [vmem:[#allocation2 + $0xf0] sm:$0xff]
    %v151 = vld [vmem:[#allocation2 + $0xf8] sm:$0xff]
    %v152 = vld [vmem:[#allocation11] sm:$0x3f]
    %v153 = vld [vmem:[#allocation11 + $0x8] sm:$0x3f]
    %v154 = vlaneseq
    %v155 = vand.u32 %v154, 127
    %v156 = vadd.s32 %v155, 128
    %vm157 = vcmp.lt.s32.totalorder %v155, 144
    %vm158 = vcmp.lt.s32.totalorder %v156, 144
    %v159 = vsel %vm157, 1, 0
    %v160 = vsel %vm158, 1, 0
    %v161 = vcvt.s32.f32 %v159
    %v162 = vcvt.s32.f32 %v160
    %v163 = vadd.f32 %v120, %v121
    %164 = vadd.xlane.f32.xlu0 %v163
    %v165 = vpop.xlane.xlu0 %164
    %v166 = vadd.f32 %v122, %v123
    %167 = vadd.xlane.f32.xlu0 %v166
    %v168 = vpop.xlane.xlu0 %167
    %v169 = vadd.f32 %v124, %v125
    %170 = vadd.xlane.f32.xlu0 %v169
    %v171 = vpop.xlane.xlu0 %170
    %v172 = vadd.f32 %v126, %v127
    %173 = vadd.xlane.f32.xlu0 %v172
    %v174 = vpop.xlane.xlu0 %173
    %v175 = vadd.f32 %v128, %v129
    %176 = vadd.xlane.f32.xlu0 %v175
    %v177 = vpop.xlane.xlu0 %176
    %v178 = vadd.f32 %v130, %v131
    %179 = vadd.xlane.f32.xlu0 %v178
    %v180 = vpop.xlane.xlu0 %179
    %v181 = vadd.f32 %v132, %v133
    %182 = vadd.xlane.f32.xlu0 %v181
    %v183 = vpop.xlane.xlu0 %182
    %v184 = vadd.f32 %v134, %v135
    %185 = vadd.xlane.f32.xlu0 %v184
    %v186 = vpop.xlane.xlu0 %185
    %v187 = vadd.f32 %v136, %v137
    %188 = vadd.xlane.f32.xlu0 %v187
    %v189 = vpop.xlane.xlu0 %188
    %v190 = vadd.f32 %v138, %v139
    %191 = vadd.xlane.f32.xlu0 %v190
    %v192 = vpop.xlane.xlu0 %191
    %v193 = vadd.f32 %v140, %v141
    %194 = vadd.xlane.f32.xlu0 %v193
    %v195 = vpop.xlane.xlu0 %194
    %v196 = vadd.f32 %v142, %v143
    %197 = vadd.xlane.f32.xlu0 %v196
    %v198 = vpop.xlane.xlu0 %197
    %v199 = vadd.f32 %v144, %v145
    %200 = vadd.xlane.f32.xlu0 %v199
    %v201 = vpop.xlane.xlu0 %200
    %v202 = vadd.f32 %v146, %v147
    %203 = vadd.xlane.f32.xlu0 %v202
    %v204 = vpop.xlane.xlu0 %203
    %v205 = vadd.f32 %v148, %v149
    %206 = vadd.xlane.f32.xlu0 %v205
    %v207 = vpop.xlane.xlu0 %206
    %v208 = vadd.f32 %v150, %v151
    %209 = vadd.xlane.f32.xlu0 %v208
    %v210 = vpop.xlane.xlu0 %209
    %v211 = vmul.f32 %v165, 0.0069444445
    %v212 = vmul.f32 %v168, 0.0069444445
    %v213 = vmul.f32 %v171, 0.0069444445
    %v214 = vmul.f32 %v174, 0.0069444445
    %v215 = vmul.f32 %v177, 0.0069444445
    %v216 = vmul.f32 %v180, 0.0069444445
    %v217 = vmul.f32 %v183, 0.0069444445
    %v218 = vmul.f32 %v186, 0.0069444445
    %v219 = vmul.f32 %v189, 0.0069444445
    %v220 = vmul.f32 %v192, 0.0069444445
    %v221 = vmul.f32 %v195, 0.0069444445
    %v222 = vmul.f32 %v198, 0.0069444445
    %v223 = vmul.f32 %v201, 0.0069444445
    %v224 = vmul.f32 %v204, 0.0069444445
    %v225 = vmul.f32 %v207, 0.0069444445
    %v226 = vmul.f32 %v210, 0.0069444445
    %v227 = vsub.f32 %v120, %v211
    %v228 = vsub.f32 %v121, %v211
    %v229 = vsub.f32 %v122, %v212
    %v230 = vsub.f32 %v123, %v212
    %v231 = vsub.f32 %v124, %v213
    %v232 = vsub.f32 %v125, %v213
    %v233 = vsub.f32 %v126, %v214
    %v234 = vsub.f32 %v127, %v214
    %v235 = vsub.f32 %v128, %v215
    %v236 = vsub.f32 %v129, %v215
    %v237 = vsub.f32 %v130, %v216
    %v238 = vsub.f32 %v131, %v216
    %v239 = vsub.f32 %v132, %v217
    %v240 = vsub.f32 %v133, %v217
    %v241 = vsub.f32 %v134, %v218
    %v242 = vsub.f32 %v135, %v218
    %v243 = vsub.f32 %v136, %v219
    %v244 = vsub.f32 %v137, %v219
    %v245 = vsub.f32 %v138, %v220
    %v246 = vsub.f32 %v139, %v220
    %v247 = vsub.f32 %v140, %v221
    %v248 = vsub.f32 %v141, %v221
    %v249 = vsub.f32 %v142, %v222
    %v250 = vsub.f32 %v143, %v222
    %v251 = vsub.f32 %v144, %v223
    %v252 = vsub.f32 %v145, %v223
    %v253 = vsub.f32 %v146, %v224
    %v254 = vsub.f32 %v147, %v224
    %v255 = vsub.f32 %v148, %v225
    %v256 = vsub.f32 %v149, %v225
    %v257 = vsub.f32 %v150, %v226
    %v258 = vsub.f32 %v151, %v226
    %v259 = vmul.f32 %v227, %v161
    %v260 = vmul.f32 %v228, %v162
    %v261 = vmul.f32 %v229, %v161
    %v262 = vmul.f32 %v230, %v162
    %v263 = vmul.f32 %v231, %v161
    %v264 = vmul.f32 %v232, %v162
    %v265 = vmul.f32 %v233, %v161
    %v266 = vmul.f32 %v234, %v162
    %v267 = vmul.f32 %v235, %v161
    %v268 = vmul.f32 %v236, %v162
    %v269 = vmul.f32 %v237, %v161
    %v270 = vmul.f32 %v238, %v162
    %v271 = vmul.f32 %v239, %v161
    %v272 = vmul.f32 %v240, %v162
    %v273 = vmul.f32 %v241, %v161
    %v274 = vmul.f32 %v242, %v162
    %v275 = vmul.f32 %v243, %v161
    %v276 = vmul.f32 %v244, %v162
    %v277 = vmul.f32 %v245, %v161
    %v278 = vmul.f32 %v246, %v162
    %v279 = vmul.f32 %v247, %v161
    %v280 = vmul.f32 %v248, %v162
    %v281 = vmul.f32 %v249, %v161
    %v282 = vmul.f32 %v250, %v162
    %v283 = vmul.f32 %v251, %v161
    %v284 = vmul.f32 %v252, %v162
    %v285 = vmul.f32 %v253, %v161
    %v286 = vmul.f32 %v254, %v162
    %v287 = vmul.f32 %v255, %v161
    %v288 = vmul.f32 %v256, %v162
    %v289 = vmul.f32 %v257, %v161
    %v290 = vmul.f32 %v258, %v162
    %v291 = vmul.f32 %v259, %v259
    %v292 = vmul.f32 %v260, %v260
    %v293 = vmul.f32 %v261, %v261
    %v294 = vmul.f32 %v262, %v262
    %v295 = vmul.f32 %v263, %v263
    %v296 = vmul.f32 %v264, %v264
    %v297 = vmul.f32 %v265, %v265
    %v298 = vmul.f32 %v266, %v266
    %v299 = vmul.f32 %v267, %v267
    %v300 = vmul.f32 %v268, %v268
    %v301 = vmul.f32 %v269, %v269
    %v302 = vmul.f32 %v270, %v270
    %v303 = vmul.f32 %v271, %v271
    %v304 = vmul.f32 %v272, %v272
    %v305 = vmul.f32 %v273, %v273
    %v306 = vmul.f32 %v274, %v274
    %v307 = vmul.f32 %v275, %v275
    %v308 = vmul.f32 %v276, %v276
    %v309 = vmul.f32 %v277, %v277
    %v310 = vmul.f32 %v278, %v278
    %v311 = vmul.f32 %v279, %v279
    %v312 = vmul.f32 %v280, %v280
    %v313 = vmul.f32 %v281, %v281
    %v314 = vmul.f32 %v282, %v282
    %v315 = vmul.f32 %v283, %v283
    %v316 = vmul.f32 %v284, %v284
    %v317 = vmul.f32 %v285, %v285
    %v318 = vmul.f32 %v286, %v286
    %v319 = vmul.f32 %v287, %v287
    %v320 = vmul.f32 %v288, %v288
    %v321 = vmul.f32 %v289, %v289
    %v322 = vmul.f32 %v290, %v290
    %v323 = vadd.f32 %v291, %v292
    %324 = vadd.xlane.f32.xlu0 %v323
    %v325 = vpop.xlane.xlu0 %324
    %v326 = vadd.f32 %v293, %v294
    %327 = vadd.xlane.f32.xlu0 %v326
    %v328 = vpop.xlane.xlu0 %327
    %v329 = vadd.f32 %v295, %v296
    %330 = vadd.xlane.f32.xlu0 %v329
    %v331 = vpop.xlane.xlu0 %330
    %v332 = vadd.f32 %v297, %v298
    %333 = vadd.xlane.f32.xlu0 %v332
    %v334 = vpop.xlane.xlu0 %333
    %v335 = vadd.f32 %v299, %v300
    %336 = vadd.xlane.f32.xlu0 %v335
    %v337 = vpop.xlane.xlu0 %336
    %v338 = vadd.f32 %v301, %v302
    %339 = vadd.xlane.f32.xlu0 %v338
    %v340 = vpop.xlane.xlu0 %339
    %v341 = vadd.f32 %v303, %v304
    %342 = vadd.xlane.f32.xlu0 %v341
    %v343 = vpop.xlane.xlu0 %342
    %v344 = vadd.f32 %v305, %v306
    %345 = vadd.xlane.f32.xlu0 %v344
    %v346 = vpop.xlane.xlu0 %345
    %v347 = vadd.f32 %v307, %v308
    %348 = vadd.xlane.f32.xlu0 %v347
    %v349 = vpop.xlane.xlu0 %348
    %v350 = vadd.f32 %v309, %v310
    %351 = vadd.xlane.f32.xlu0 %v350
    %v352 = vpop.xlane.xlu0 %351
    %v353 = vadd.f32 %v311, %v312
    %354 = vadd.xlane.f32.xlu0 %v353
    %v355 = vpop.xlane.xlu0 %354
    %v356 = vadd.f32 %v313, %v314
    %357 = vadd.xlane.f32.xlu0 %v356
    %v358 = vpop.xlane.xlu0 %357
    %v359 = vadd.f32 %v315, %v316
    %360 = vadd.xlane.f32.xlu0 %v359
    %v361 = vpop.xlane.xlu0 %360
    %v362 = vadd.f32 %v317, %v318
    %363 = vadd.xlane.f32.xlu0 %v362
    %v364 = vpop.xlane.xlu0 %363
    %v365 = vadd.f32 %v319, %v320
    %366 = vadd.xlane.f32.xlu0 %v365
    %v367 = vpop.xlane.xlu0 %366
    %v368 = vadd.f32 %v321, %v322
    %369 = vadd.xlane.f32.xlu0 %v368
    %v370 = vpop.xlane.xlu0 %369
    %v371 = vmul.f32 %v325, 0.0069444445
    %v372 = vmul.f32 %v328, 0.0069444445
    %v373 = vmul.f32 %v331, 0.0069444445
    %v374 = vmul.f32 %v334, 0.0069444445
    %v375 = vmul.f32 %v337, 0.0069444445
    %v376 = vmul.f32 %v340, 0.0069444445
    %v377 = vmul.f32 %v343, 0.0069444445
    %v378 = vmul.f32 %v346, 0.0069444445
    %v379 = vmul.f32 %v349, 0.0069444445
    %v380 = vmul.f32 %v352, 0.0069444445
    %v381 = vmul.f32 %v355, 0.0069444445
    %v382 = vmul.f32 %v358, 0.0069444445
    %v383 = vmul.f32 %v361, 0.0069444445
    %v384 = vmul.f32 %v364, 0.0069444445
    %v385 = vmul.f32 %v367, 0.0069444445
    %v386 = vmul.f32 %v370, 0.0069444445
    %v387 = vadd.f32 %v371, 1e-05
    %v388 = vadd.f32 %v372, 1e-05
    %v389 = vadd.f32 %v373, 1e-05
    %v390 = vadd.f32 %v374, 1e-05
    %v391 = vadd.f32 %v375, 1e-05
    %v392 = vadd.f32 %v376, 1e-05
    %v393 = vadd.f32 %v377, 1e-05
    %v394 = vadd.f32 %v378, 1e-05
    %v395 = vadd.f32 %v379, 1e-05
    %v396 = vadd.f32 %v380, 1e-05
    %v397 = vadd.f32 %v381, 1e-05
    %v398 = vadd.f32 %v382, 1e-05
    %v399 = vadd.f32 %v383, 1e-05
    %v400 = vadd.f32 %v384, 1e-05
    %v401 = vadd.f32 %v385, 1e-05
    %v402 = vadd.f32 %v386, 1e-05
    %v403 = vrsqrt.pop %v387
    %v404 = vmul.f32 %v403, %v387
    %v405 = vmul.f32 %v404, %v403
    %v406 = vmul.f32 0.5, %v405
    %v407 = vsub.f32 1.5, %v406
    %v408 = vmul.f32 %v403, %v407
    %vm409 = vweird.f32 %v387
    %vm410 = vweird.f32 %v403
    %vm411 = vmor %vm409, %vm410
    %v412 = vsel %vm411, %v403, %v408
    %v413 = vrsqrt.pop %v388
    %v414 = vmul.f32 %v413, %v388
    %v415 = vmul.f32 %v414, %v413
    %v416 = vmul.f32 0.5, %v415
    %v417 = vsub.f32 1.5, %v416
    %v418 = vmul.f32 %v413, %v417
    %vm419 = vweird.f32 %v388
    %vm420 = vweird.f32 %v413
    %vm421 = vmor %vm419, %vm420
    %v422 = vsel %vm421, %v413, %v418
    %v423 = vrsqrt.pop %v389
    %v424 = vmul.f32 %v423, %v389
    %v425 = vmul.f32 %v424, %v423
    %v426 = vmul.f32 0.5, %v425
    %v427 = vsub.f32 1.5, %v426
    %v428 = vmul.f32 %v423, %v427
    %vm429 = vweird.f32 %v389
    %vm430 = vweird.f32 %v423
    %vm431 = vmor %vm429, %vm430
    %v432 = vsel %vm431, %v423, %v428
    %v433 = vrsqrt.pop %v390
    %v434 = vmul.f32 %v433, %v390
    %v435 = vmul.f32 %v434, %v433
    %v436 = vmul.f32 0.5, %v435
    %v437 = vsub.f32 1.5, %v436
    %v438 = vmul.f32 %v433, %v437
    %vm439 = vweird.f32 %v390
    %vm440 = vweird.f32 %v433
    %vm441 = vmor %vm439, %vm440
    %v442 = vsel %vm441, %v433, %v438
    %v443 = vrsqrt.pop %v391
    %v444 = vmul.f32 %v443, %v391
    %v445 = vmul.f32 %v444, %v443
    %v446 = vmul.f32 0.5, %v445
    %v447 = vsub.f32 1.5, %v446
    %v448 = vmul.f32 %v443, %v447
    %vm449 = vweird.f32 %v391
    %vm450 = vweird.f32 %v443
    %vm451 = vmor %vm449, %vm450
    %v452 = vsel %vm451, %v443, %v448
    %v453 = vrsqrt.pop %v392
    %v454 = vmul.f32 %v453, %v392
    %v455 = vmul.f32 %v454, %v453
    %v456 = vmul.f32 0.5, %v455
    %v457 = vsub.f32 1.5, %v456
    %v458 = vmul.f32 %v453, %v457
    %vm459 = vweird.f32 %v392
    %vm460 = vweird.f32 %v453
    %vm461 = vmor %vm459, %vm460
    %v462 = vsel %vm461, %v453, %v458
    %v463 = vrsqrt.pop %v393
    %v464 = vmul.f32 %v463, %v393
    %v465 = vmul.f32 %v464, %v463
    %v466 = vmul.f32 0.5, %v465
    %v467 = vsub.f32 1.5, %v466
    %v468 = vmul.f32 %v463, %v467
    %vm469 = vweird.f32 %v393
    %vm470 = vweird.f32 %v463
    %vm471 = vmor %vm469, %vm470
    %v472 = vsel %vm471, %v463, %v468
    %v473 = vrsqrt.pop %v394
    %v474 = vmul.f32 %v473, %v394
    %v475 = vmul.f32 %v474, %v473
    %v476 = vmul.f32 0.5, %v475
    %v477 = vsub.f32 1.5, %v476
    %v478 = vmul.f32 %v473, %v477
    %vm479 = vweird.f32 %v394
    %vm480 = vweird.f32 %v473
    %vm481 = vmor %vm479, %vm480
    %v482 = vsel %vm481, %v473, %v478
    %v483 = vrsqrt.pop %v395
    %v484 = vmul.f32 %v483, %v395
    %v485 = vmul.f32 %v484, %v483
    %v486 = vmul.f32 0.5, %v485
    %v487 = vsub.f32 1.5, %v486
    %v488 = vmul.f32 %v483, %v487
    %vm489 = vweird.f32 %v395
    %vm490 = vweird.f32 %v483
    %vm491 = vmor %vm489, %vm490
    %v492 = vsel %vm491, %v483, %v488
    %v493 = vrsqrt.pop %v396
    %v494 = vmul.f32 %v493, %v396
    %v495 = vmul.f32 %v494, %v493
    %v496 = vmul.f32 0.5, %v495
    %v497 = vsub.f32 1.5, %v496
    %v498 = vmul.f32 %v493, %v497
    %vm499 = vweird.f32 %v396
    %vm500 = vweird.f32 %v493
    %vm501 = vmor %vm499, %vm500
    %v502 = vsel %vm501, %v493, %v498
    %v503 = vrsqrt.pop %v397
    %v504 = vmul.f32 %v503, %v397
    %v505 = vmul.f32 %v504, %v503
    %v506 = vmul.f32 0.5, %v505
    %v507 = vsub.f32 1.5, %v506
    %v508 = vmul.f32 %v503, %v507
    %vm509 = vweird.f32 %v397
    %vm510 = vweird.f32 %v503
    %vm511 = vmor %vm509, %vm510
    %v512 = vsel %vm511, %v503, %v508
    %v513 = vrsqrt.pop %v398
    %v514 = vmul.f32 %v513, %v398
    %v515 = vmul.f32 %v514, %v513
    %v516 = vmul.f32 0.5, %v515
    %v517 = vsub.f32 1.5, %v516
    %v518 = vmul.f32 %v513, %v517
    %vm519 = vweird.f32 %v398
    %vm520 = vweird.f32 %v513
    %vm521 = vmor %vm519, %vm520
    %v522 = vsel %vm521, %v513, %v518
    %v523 = vrsqrt.pop %v399
    %v524 = vmul.f32 %v523, %v399
    %v525 = vmul.f32 %v524, %v523
    %v526 = vmul.f32 0.5, %v525
    %v527 = vsub.f32 1.5, %v526
    %v528 = vmul.f32 %v523, %v527
    %vm529 = vweird.f32 %v399
    %vm530 = vweird.f32 %v523
    %vm531 = vmor %vm529, %vm530
    %v532 = vsel %vm531, %v523, %v528
    %v533 = vrsqrt.pop %v400
    %v534 = vmul.f32 %v533, %v400
    %v535 = vmul.f32 %v534, %v533
    %v536 = vmul.f32 0.5, %v535
    %v537 = vsub.f32 1.5, %v536
    %v538 = vmul.f32 %v533, %v537
    %vm539 = vweird.f32 %v400
    %vm540 = vweird.f32 %v533
    %vm541 = vmor %vm539, %vm540
    %v542 = vsel %vm541, %v533, %v538
    %v543 = vrsqrt.pop %v401
    %v544 = vmul.f32 %v543, %v401
    %v545 = vmul.f32 %v544, %v543
    %v546 = vmul.f32 0.5, %v545
    %v547 = vsub.f32 1.5, %v546
    %v548 = vmul.f32 %v543, %v547
    %vm549 = vweird.f32 %v401
    %vm550 = vweird.f32 %v543
    %vm551 = vmor %vm549, %vm550
    %v552 = vsel %vm551, %v543, %v548
    %v553 = vrsqrt.pop %v402
    %v554 = vmul.f32 %v553, %v402
    %v555 = vmul.f32 %v554, %v553
    %v556 = vmul.f32 0.5, %v555
    %v557 = vsub.f32 1.5, %v556
    %v558 = vmul.f32 %v553, %v557
    %vm559 = vweird.f32 %v402
    %vm560 = vweird.f32 %v553
    %vm561 = vmor %vm559, %vm560
    %v562 = vsel %vm561, %v553, %v558
    %v563 = vmul.f32 %v259, %v412
    %v564 = vmul.f32 %v260, %v412
    %v565 = vmul.f32 %v261, %v422
    %v566 = vmul.f32 %v262, %v422
    %v567 = vmul.f32 %v263, %v432
    %v568 = vmul.f32 %v264, %v432
    %v569 = vmul.f32 %v265, %v442
    %v570 = vmul.f32 %v266, %v442
    %v571 = vmul.f32 %v267, %v452
    %v572 = vmul.f32 %v268, %v452
    %v573 = vmul.f32 %v269, %v462
    %v574 = vmul.f32 %v270, %v462
    %v575 = vmul.f32 %v271, %v472
    %v576 = vmul.f32 %v272, %v472
    %v577 = vmul.f32 %v273, %v482
    %v578 = vmul.f32 %v274, %v482
    %v579 = vmul.f32 %v275, %v492
    %v580 = vmul.f32 %v276, %v492
    %v581 = vmul.f32 %v277, %v502
    %v582 = vmul.f32 %v278, %v502
    %v583 = vmul.f32 %v279, %v512
    %v584 = vmul.f32 %v280, %v512
    %v585 = vmul.f32 %v281, %v522
    %v586 = vmul.f32 %v282, %v522
    %v587 = vmul.f32 %v283, %v532
    %v588 = vmul.f32 %v284, %v532
    %v589 = vmul.f32 %v285, %v542
    %v590 = vmul.f32 %v286, %v542
    %v591 = vmul.f32 %v287, %v552
    %v592 = vmul.f32 %v288, %v552
    %v593 = vmul.f32 %v289, %v562
    %v594 = vmul.f32 %v290, %v562
    %v595 = vperm.slane %v152, 0
    %v596 = vperm.slane %v153, 0
    %v597 = vmul.f32 %v563, %v595
    %v598 = vmul.f32 %v564, %v596
    %v599 = vmul.f32 %v565, %v595
    %v600 = vmul.f32 %v566, %v596
    %v601 = vmul.f32 %v567, %v595
    %v602 = vmul.f32 %v568, %v596
    %v603 = vmul.f32 %v569, %v595
    %v604 = vmul.f32 %v570, %v596
    %v605 = vmul.f32 %v571, %v595
    %v606 = vmul.f32 %v572, %v596
    %v607 = vmul.f32 %v573, %v595
    %v608 = vmul.f32 %v574, %v596
    %v609 = vmul.f32 %v575, %v595
    %v610 = vmul.f32 %v576, %v596
    %v611 = vmul.f32 %v577, %v595
    %v612 = vmul.f32 %v578, %v596
    %v613 = vmul.f32 %v579, %v595
    %v614 = vmul.f32 %v580, %v596
    %v615 = vmul.f32 %v581, %v595
    %v616 = vmul.f32 %v582, %v596
    %v617 = vmul.f32 %v583, %v595
    %v618 = vmul.f32 %v584, %v596
    %v619 = vmul.f32 %v585, %v595
    %v620 = vmul.f32 %v586, %v596
    %v621 = vmul.f32 %v587, %v595
    %v622 = vmul.f32 %v588, %v596
    %v623 = vmul.f32 %v589, %v595
    %v624 = vmul.f32 %v590, %v596
    %v625 = vmul.f32 %v591, %v595
    %v626 = vmul.f32 %v592, %v596
    %v627 = vmul.f32 %v593, %v595
    %v628 = vmul.f32 %v594, %v596
    %v629 = vperm.slane %v152, 1
    %v630 = vperm.slane %v153, 1
    %v631 = vadd.f32 %v597, %v629
    %v632 = vadd.f32 %v598, %v630
    %v633 = vadd.f32 %v599, %v629
    %v634 = vadd.f32 %v600, %v630
    %v635 = vadd.f32 %v601, %v629
    %v636 = vadd.f32 %v602, %v630
    %v637 = vadd.f32 %v603, %v629
    %v638 = vadd.f32 %v604, %v630
    %v639 = vadd.f32 %v605, %v629
    %v640 = vadd.f32 %v606, %v630
    %v641 = vadd.f32 %v607, %v629
    %v642 = vadd.f32 %v608, %v630
    %v643 = vadd.f32 %v609, %v629
    %v644 = vadd.f32 %v610, %v630
    %v645 = vadd.f32 %v611, %v629
    %v646 = vadd.f32 %v612, %v630
    %v647 = vadd.f32 %v613, %v629
    %v648 = vadd.f32 %v614, %v630
    %v649 = vadd.f32 %v615, %v629
    %v650 = vadd.f32 %v616, %v630
    %v651 = vadd.f32 %v617, %v629
    %v652 = vadd.f32 %v618, %v630
    %v653 = vadd.f32 %v619, %v629
    %v654 = vadd.f32 %v620, %v630
    %v655 = vadd.f32 %v621, %v629
    %v656 = vadd.f32 %v622, %v630
    %v657 = vadd.f32 %v623, %v629
    %v658 = vadd.f32 %v624, %v630
    %v659 = vadd.f32 %v625, %v629
    %v660 = vadd.f32 %v626, %v630
    %v661 = vadd.f32 %v627, %v629
    %v662 = vadd.f32 %v628, %v630
    %v663 = vpack.c.bf16 %v633, %v631
    %v664 = vpack.c.bf16 %v634, %v632
    %v665 = vpack.c.bf16 %v637, %v635
    %v666 = vpack.c.bf16 %v638, %v636
    %v667 = vpack.c.bf16 %v641, %v639
    %v668 = vpack.c.bf16 %v642, %v640
    %v669 = vpack.c.bf16 %v645, %v643
    %v670 = vpack.c.bf16 %v646, %v644
    %v671 = vpack.c.bf16 %v649, %v647
    %v672 = vpack.c.bf16 %v650, %v648
    %v673 = vpack.c.bf16 %v653, %v651
    %v674 = vpack.c.bf16 %v654, %v652
    %v675 = vpack.c.bf16 %v657, %v655
    %v676 = vpack.c.bf16 %v658, %v656
    %v677 = vpack.c.bf16 %v661, %v659
    %v678 = vpack.c.bf16 %v662, %v660
    %v679 = vld [vmem:[#allocation5] sm:$0xff]
    %v680 = vld [vmem:[#allocation5 + $0x8] sm:$0xf]
    %v681 = vld [vmem:[#allocation5 + $0xc] sm:$0xff]
    %v682 = vld [vmem:[#allocation5 + $0x14] sm:$0xf]
    %v683 = vld [vmem:[#allocation5 + $0x18] sm:$0xff]
    %v684 = vld [vmem:[#allocation5 + $0x20] sm:$0xf]
    %v685 = vld [vmem:[#allocation5 + $0x24] sm:$0xff]
    %v686 = vld [vmem:[#allocation5 + $0x2c] sm:$0xf]
    %v687 = vld [vmem:[#allocation5 + $0x30] sm:$0xff]
    %v688 = vld [vmem:[#allocation5 + $0x38] sm:$0xf]
    %v689 = vld [vmem:[#allocation5 + $0x3c] sm:$0xff]
    %v690 = vld [vmem:[#allocation5 + $0x44] sm:$0xf]
    %v691 = vld [vmem:[#allocation5 + $0x48] sm:$0xff]
    %v692 = vld [vmem:[#allocation5 + $0x50] sm:$0xf]
    %v693 = vld [vmem:[#allocation5 + $0x54] sm:$0xff]
    %v694 = vld [vmem:[#allocation5 + $0x5c] sm:$0xf]
    %v695 = vld [vmem:[#allocation5 + $0x60] sm:$0xff]
    %v696 = vld [vmem:[#allocation5 + $0x68] sm:$0xf]
    %v697 = vld [vmem:[#allocation5 + $0x6c] sm:$0xff]
    %v698 = vld [vmem:[#allocation5 + $0x74] sm:$0xf]
    %v699 = vld [vmem:[#allocation5 + $0x78] sm:$0xff]
    %v700 = vld [vmem:[#allocation5 + $0x80] sm:$0xf]
    %v701 = vld [vmem:[#allocation5 + $0x84] sm:$0xff]
    %v702 = vld [vmem:[#allocation5 + $0x8c] sm:$0xf]
    %v703 = vld [vmem:[#allocation5 + $0x90] sm:$0xff]
    %v704 = vld [vmem:[#allocation5 + $0x98] sm:$0xf]
    %v705 = vld [vmem:[#allocation5 + $0x9c] sm:$0xff]
    %v706 = vld [vmem:[#allocation5 + $0xa4] sm:$0xf]
    %v707 = vld [vmem:[#allocation5 + $0xa8] sm:$0xff]
    %v708 = vld [vmem:[#allocation5 + $0xb0] sm:$0xf]
    %v709 = vld [vmem:[#allocation5 + $0xb4] sm:$0xff]
    %v710 = vld [vmem:[#allocation5 + $0xbc] sm:$0xf]
    %v711 = vld [vmem:[#allocation5 + $0xc0] sm:$0xff]
    %v712 = vld [vmem:[#allocation5 + $0xc8] sm:$0xf]
    %v713 = vld [vmem:[#allocation5 + $0xcc] sm:$0xff]
    %v714 = vld [vmem:[#allocation5 + $0xd4] sm:$0xf]
    %v715 = vld [vmem:[#allocation5 + $0xd8] sm:$0xff]
    %v716 = vld [vmem:[#allocation5 + $0xe0] sm:$0xf]
    %v717 = vld [vmem:[#allocation5 + $0xe4] sm:$0xff]
    %v718 = vld [vmem:[#allocation5 + $0xec] sm:$0xf]
    %v719 = vld [vmem:[#allocation5 + $0xf0] sm:$0xff]
    %v720 = vld [vmem:[#allocation5 + $0xf8] sm:$0xf]
    %v721 = vld [vmem:[#allocation5 + $0xfc] sm:$0xff]
    %v722 = vld [vmem:[#allocation5 + $0x104] sm:$0xf]
    %v723 = vld [vmem:[#allocation5 + $0x108] sm:$0xff]
    %v724 = vld [vmem:[#allocation5 + $0x110] sm:$0xf]
    %v725 = vld [vmem:[#allocation5 + $0x114] sm:$0xff]
    %v726 = vld [vmem:[#allocation5 + $0x11c] sm:$0xf]
    %v727 = vld [vmem:[#allocation5 + $0x120] sm:$0xff]
    %v728 = vld [vmem:[#allocation5 + $0x128] sm:$0xf]
    %v729 = vld [vmem:[#allocation5 + $0x12c] sm:$0xff]
    %v730 = vld [vmem:[#allocation5 + $0x134] sm:$0xf]
    %v731 = vld [vmem:[#allocation5 + $0x138] sm:$0xff]
    %v732 = vld [vmem:[#allocation5 + $0x140] sm:$0xf]
    %v733 = vld [vmem:[#allocation5 + $0x144] sm:$0xff]
    %v734 = vld [vmem:[#allocation5 + $0x14c] sm:$0xf]
    %v735 = vld [vmem:[#allocation5 + $0x150] sm:$0xff]
    %v736 = vld [vmem:[#allocation5 + $0x158] sm:$0xf]
    %v737 = vld [vmem:[#allocation5 + $0x15c] sm:$0xff]
    %v738 = vld [vmem:[#allocation5 + $0x164] sm:$0xf]
    %v739 = vld [vmem:[#allocation5 + $0x168] sm:$0xff]
    %v740 = vld [vmem:[#allocation5 + $0x170] sm:$0xf]
    %v741 = vld [vmem:[#allocation5 + $0x174] sm:$0xff]
    %v742 = vld [vmem:[#allocation5 + $0x17c] sm:$0xf]
    %v807 = vunpack.c.l.b16 %v679
    %v808 = vunpack.c.h.b16 %v679
    %v809 = vunpack.c.l.b16 %v680
    %v810 = vunpack.c.l.b16 %v681
    %v811 = vunpack.c.h.b16 %v681
    %v812 = vunpack.c.l.b16 %v682
    %v813 = vunpack.c.l.b16 %v683
    %v814 = vunpack.c.h.b16 %v683
    %v815 = vunpack.c.l.b16 %v684
    %v816 = vunpack.c.l.b16 %v685
    %v817 = vunpack.c.h.b16 %v685
    %v818 = vunpack.c.l.b16 %v686
    %v819 = vunpack.c.l.b16 %v687
    %v820 = vunpack.c.h.b16 %v687
    %v821 = vunpack.c.l.b16 %v688
    %v822 = vunpack.c.l.b16 %v689
    %v823 = vunpack.c.h.b16 %v689
    %v824 = vunpack.c.l.b16 %v690
    %v825 = vunpack.c.l.b16 %v691
    %v826 = vunpack.c.h.b16 %v691
    %v827 = vunpack.c.l.b16 %v692
    %v828 = vunpack.c.l.b16 %v693
    %v829 = vunpack.c.h.b16 %v693
    %v830 = vunpack.c.l.b16 %v694
    %v831 = vunpack.c.l.b16 %v695
    %v832 = vunpack.c.h.b16 %v695
    %v833 = vunpack.c.l.b16 %v696
    %v834 = vunpack.c.l.b16 %v697
    %v835 = vunpack.c.h.b16 %v697
    %v836 = vunpack.c.l.b16 %v698
    %v837 = vunpack.c.l.b16 %v699
    %v838 = vunpack.c.h.b16 %v699
    %v839 = vunpack.c.l.b16 %v700
    %v840 = vunpack.c.l.b16 %v701
    %v841 = vunpack.c.h.b16 %v701
    %v842 = vunpack.c.l.b16 %v702
    %v843 = vunpack.c.l.b16 %v703
    %v844 = vunpack.c.h.b16 %v703
    %v845 = vunpack.c.l.b16 %v704
    %v846 = vunpack.c.l.b16 %v705
    %v847 = vunpack.c.h.b16 %v705
    %v848 = vunpack.c.l.b16 %v706
    %v849 = vunpack.c.l.b16 %v707
    %v850 = vunpack.c.h.b16 %v707
    %v851 = vunpack.c.l.b16 %v708
    %v852 = vunpack.c.l.b16 %v709
    %v853 = vunpack.c.h.b16 %v709
    %v854 = vunpack.c.l.b16 %v710
    %v855 = vunpack.c.l.b16 %v711
    %v856 = vunpack.c.h.b16 %v711
    %v857 = vunpack.c.l.b16 %v712
    %v858 = vunpack.c.l.b16 %v713
    %v859 = vunpack.c.h.b16 %v713
    %v860 = vunpack.c.l.b16 %v714
    %v861 = vunpack.c.l.b16 %v715
    %v862 = vunpack.c.h.b16 %v715
    %v863 = vunpack.c.l.b16 %v716
    %v864 = vunpack.c.l.b16 %v717
    %v865 = vunpack.c.h.b16 %v717
    %v866 = vunpack.c.l.b16 %v718
    %v867 = vunpack.c.l.b16 %v719
    %v868 = vunpack.c.h.b16 %v719
    %v869 = vunpack.c.l.b16 %v720
    %v870 = vunpack.c.l.b16 %v721
    %v871 = vunpack.c.h.b16 %v721
    %v872 = vunpack.c.l.b16 %v722
    %v873 = vunpack.c.l.b16 %v723
    %v874 = vunpack.c.h.b16 %v723
    %v875 = vunpack.c.l.b16 %v724
    %v876 = vunpack.c.l.b16 %v725
    %v877 = vunpack.c.h.b16 %v725
    %v878 = vunpack.c.l.b16 %v726
    %v879 = vunpack.c.l.b16 %v727
    %v880 = vunpack.c.h.b16 %v727
    %v881 = vunpack.c.l.b16 %v728
    %v882 = vunpack.c.l.b16 %v729
    %v883 = vunpack.c.h.b16 %v729
    %v884 = vunpack.c.l.b16 %v730
    %v885 = vunpack.c.l.b16 %v731
    %v886 = vunpack.c.h.b16 %v731
    %v887 = vunpack.c.l.b16 %v732
    %v888 = vunpack.c.l.b16 %v733
    %v889 = vunpack.c.h.b16 %v733
    %v890 = vunpack.c.l.b16 %v734
    %v891 = vunpack.c.l.b16 %v735
    %v892 = vunpack.c.h.b16 %v735
    %v893 = vunpack.c.l.b16 %v736
    %v894 = vunpack.c.l.b16 %v737
    %v895 = vunpack.c.h.b16 %v737
    %v896 = vunpack.c.l.b16 %v738
    %v897 = vunpack.c.l.b16 %v739
    %v898 = vunpack.c.h.b16 %v739
    %v899 = vunpack.c.l.b16 %v740
    %v900 = vunpack.c.l.b16 %v741
    %v901 = vunpack.c.h.b16 %v741
    %v902 = vunpack.c.l.b16 %v742
    %v903 = vpack.c.b16 %v810, %v807
    %v904 = vpack.c.b16 %v811, %v808
    %v905 = vpack.c.b16 %v812, %v809
    %v906 = vpack.c.b16 %v816, %v813
    %v907 = vpack.c.b16 %v817, %v814
    %v908 = vpack.c.b16 %v818, %v815
    %v909 = vpack.c.b16 %v822, %v819
    %v910 = vpack.c.b16 %v823, %v820
    %v911 = vpack.c.b16 %v824, %v821
    %v912 = vpack.c.b16 %v828, %v825
    %v913 = vpack.c.b16 %v829, %v826
    %v914 = vpack.c.b16 %v830, %v827
    %v915 = vpack.c.b16 %v834, %v831
    %v916 = vpack.c.b16 %v835, %v832
    %v917 = vpack.c.b16 %v836, %v833
    %v918 = vpack.c.b16 %v840, %v837
    %v919 = vpack.c.b16 %v841, %v838
    %v920 = vpack.c.b16 %v842, %v839
    %v921 = vpack.c.b16 %v846, %v843
    %v922 = vpack.c.b16 %v847, %v844
    %v923 = vpack.c.b16 %v848, %v845
    %v924 = vpack.c.b16 %v852, %v849
    %v925 = vpack.c.b16 %v853, %v850
    %v926 = vpack.c.b16 %v854, %v851
    %v927 = vpack.c.b16 %v858, %v855
    %v928 = vpack.c.b16 %v859, %v856
    %v929 = vpack.c.b16 %v860, %v857
    %v930 = vpack.c.b16 %v864, %v861
    %v931 = vpack.c.b16 %v865, %v862
    %v932 = vpack.c.b16 %v866, %v863
    %v933 = vpack.c.b16 %v870, %v867
    %v934 = vpack.c.b16 %v871, %v868
    %v935 = vpack.c.b16 %v872, %v869
    %v936 = vpack.c.b16 %v876, %v873
    %v937 = vpack.c.b16 %v877, %v874
    %v938 = vpack.c.b16 %v878, %v875
    %v939 = vpack.c.b16 %v882, %v879
    %v940 = vpack.c.b16 %v883, %v880
    %v941 = vpack.c.b16 %v884, %v881
    %v942 = vpack.c.b16 %v888, %v885
    %v943 = vpack.c.b16 %v889, %v886
    %v944 = vpack.c.b16 %v890, %v887
    %v945 = vpack.c.b16 %v894, %v891
    %v946 = vpack.c.b16 %v895, %v892
    %v947 = vpack.c.b16 %v896, %v893
    %v948 = vpack.c.b16 %v900, %v897
    %v949 = vpack.c.b16 %v901, %v898
    %v950 = vpack.c.b16 %v902, %v899
    %999 = vmatpush.bf16.msra.mxu0 %v924
    %1000 = vmatpush.bf16.msra.mxu0 %v921
    %1001 = vmatpush.bf16.msra.mxu0 %v918
    %1002 = vmatpush.bf16.msra.mxu0 %v915
    %1003 = vmatpush.bf16.msra.mxu0 %v912
    %1004 = vmatpush.bf16.msra.mxu0 %v909
    %1005 = vmatpush.bf16.msra.mxu0 %v906
    %1006 = vmatpush.bf16.msra.mxu0 %v903
    %1007 = vmatmul.bf16.gmra.mxu0 %v663
    %v1008 = vpop.f32.mrf.mxu0
    %v1009 = vadd.f32 0.0, %v1008
    %v1010 = vpop.f32.mrf.mxu0
    %v1011 = vadd.f32 0.0, %v1010
    %1012 = vmatmul.bf16.gmra.mxu0 %v665
    %v1013 = vpop.f32.mrf.mxu0
    %v1014 = vadd.f32 0.0, %v1013
    %v1015 = vpop.f32.mrf.mxu0
    %v1016 = vadd.f32 0.0, %v1015
    %1017 = vmatmul.bf16.gmra.mxu0 %v667
    %v1018 = vpop.f32.mrf.mxu0
    %v1019 = vadd.f32 0.0, %v1018
    %v1020 = vpop.f32.mrf.mxu0
    %v1021 = vadd.f32 0.0, %v1020
    %1022 = vmatmul.bf16.gmra.mxu0 %v669
    %v1023 = vpop.f32.mrf.mxu0
    %v1024 = vadd.f32 0.0, %v1023
    %v1025 = vpop.f32.mrf.mxu0
    %v1026 = vadd.f32 0.0, %v1025
    %1027 = vmatmul.bf16.gmra.mxu0 %v671
    %v1028 = vpop.f32.mrf.mxu0
    %v1029 = vadd.f32 0.0, %v1028
    %v1030 = vpop.f32.mrf.mxu0
    %v1031 = vadd.f32 0.0, %v1030
    %1032 = vmatmul.bf16.gmra.mxu0 %v673
    %v1033 = vpop.f32.mrf.mxu0
    %v1034 = vadd.f32 0.0, %v1033
    %v1035 = vpop.f32.mrf.mxu0
    %v1036 = vadd.f32 0.0, %v1035
    %1037 = vmatmul.bf16.gmra.mxu0 %v675
    %v1038 = vpop.f32.mrf.mxu0
    %v1039 = vadd.f32 0.0, %v1038
    %v1040 = vpop.f32.mrf.mxu0
    %v1041 = vadd.f32 0.0, %v1040
    %1042 = vmatmul.bf16.gmra.mxu0 %v677
    %v1043 = vpop.f32.mrf.mxu0
    %v1044 = vadd.f32 0.0, %v1043
    %v1045 = vpop.f32.mrf.mxu0
    %v1046 = vadd.f32 0.0, %v1045
    %1047 = vdwg.mxu0
    %1048 = vmatpush.bf16.msra.mxu0 %v948
    %1049 = vmatpush.bf16.msra.mxu0 %v945
    %1050 = vmatpush.bf16.msra.mxu0 %v942
    %1051 = vmatpush.bf16.msra.mxu0 %v939
    %1052 = vmatpush.bf16.msra.mxu0 %v936
    %1053 = vmatpush.bf16.msra.mxu0 %v933
    %1054 = vmatpush.bf16.msra.mxu0 %v930
    %1055 = vmatpush.bf16.msra.mxu0 %v927
    %1056 = vmatmul.bf16.gmra.mxu0 %v664
    %v1057 = vpop.f32.mrf.mxu0
    %v1058 = vadd.f32 %v1009, %v1057
    %v1059 = vpop.f32.mrf.mxu0
    %v1060 = vadd.f32 %v1011, %v1059
    %1061 = vmatmul.bf16.gmra.mxu0 %v666
    %v1062 = vpop.f32.mrf.mxu0
    %v1063 = vadd.f32 %v1014, %v1062
    %v1064 = vpop.f32.mrf.mxu0
    %v1065 = vadd.f32 %v1016, %v1064
    %1066 = vmatmul.bf16.gmra.mxu0 %v668
    %v1067 = vpop.f32.mrf.mxu0
    %v1068 = vadd.f32 %v1019, %v1067
    %v1069 = vpop.f32.mrf.mxu0
    %v1070 = vadd.f32 %v1021, %v1069
    %1071 = vmatmul.bf16.gmra.mxu0 %v670
    %v1072 = vpop.f32.mrf.mxu0
    %v1073 = vadd.f32 %v1024, %v1072
    %v1074 = vpop.f32.mrf.mxu0
    %v1075 = vadd.f32 %v1026, %v1074
    %1076 = vmatmul.bf16.gmra.mxu0 %v672
    %v1077 = vpop.f32.mrf.mxu0
    %v1078 = vadd.f32 %v1029, %v1077
    %v1079 = vpop.f32.mrf.mxu0
    %v1080 = vadd.f32 %v1031, %v1079
    %1081 = vmatmul.bf16.gmra.mxu0 %v674
    %v1082 = vpop.f32.mrf.mxu0
    %v1083 = vadd.f32 %v1034, %v1082
    %v1084 = vpop.f32.mrf.mxu0
    %v1085 = vadd.f32 %v1036, %v1084
    %1086 = vmatmul.bf16.gmra.mxu0 %v676
    %v1087 = vpop.f32.mrf.mxu0
    %v1088 = vadd.f32 %v1039, %v1087
    %v1089 = vpop.f32.mrf.mxu0
    %v1090 = vadd.f32 %v1041, %v1089
    %1091 = vmatmul.bf16.gmra.mxu0 %v678
    %v1092 = vpop.f32.mrf.mxu0
    %v1093 = vadd.f32 %v1044, %v1092
    %v1094 = vpop.f32.mrf.mxu0
    %v1095 = vadd.f32 %v1046, %v1094
    %1096 = vdwg.mxu0
    %1097 = vmatpush.bf16.msra.mxu0 %v925
    %1098 = vmatpush.bf16.msra.mxu0 %v922
    %1099 = vmatpush.bf16.msra.mxu0 %v919
    %1100 = vmatpush.bf16.msra.mxu0 %v916
    %1101 = vmatpush.bf16.msra.mxu0 %v913
    %1102 = vmatpush.bf16.msra.mxu0 %v910
    %1103 = vmatpush.bf16.msra.mxu0 %v907
    %1104 = vmatpush.bf16.msra.mxu0 %v904
    %1105 = vmatmul.bf16.gmra.mxu0 %v663
    %v1106 = vpop.f32.mrf.mxu0
    %v1107 = vadd.f32 0.0, %v1106
    %v1108 = vpop.f32.mrf.mxu0
    %v1109 = vadd.f32 0.0, %v1108
    %1110 = vmatmul.bf16.gmra.mxu0 %v665
    %v1111 = vpop.f32.mrf.mxu0
    %v1112 = vadd.f32 0.0, %v1111
    %v1113 = vpop.f32.mrf.mxu0
    %v1114 = vadd.f32 0.0, %v1113
    %1115 = vmatmul.bf16.gmra.mxu0 %v667
    %v1116 = vpop.f32.mrf.mxu0
    %v1117 = vadd.f32 0.0, %v1116
    %v1118 = vpop.f32.mrf.mxu0
    %v1119 = vadd.f32 0.0, %v1118
    %1120 = vmatmul.bf16.gmra.mxu0 %v669
    %v1121 = vpop.f32.mrf.mxu0
    %v1122 = vadd.f32 0.0, %v1121
    %v1123 = vpop.f32.mrf.mxu0
    %v1124 = vadd.f32 0.0, %v1123
    %1125 = vmatmul.bf16.gmra.mxu0 %v671
    %v1126 = vpop.f32.mrf.mxu0
    %v1127 = vadd.f32 0.0, %v1126
    %v1128 = vpop.f32.mrf.mxu0
    %v1129 = vadd.f32 0.0, %v1128
    %1130 = vmatmul.bf16.gmra.mxu0 %v673
    %v1131 = vpop.f32.mrf.mxu0
    %v1132 = vadd.f32 0.0, %v1131
    %v1133 = vpop.f32.mrf.mxu0
    %v1134 = vadd.f32 0.0, %v1133
    %1135 = vmatmul.bf16.gmra.mxu0 %v675
    %v1136 = vpop.f32.mrf.mxu0
    %v1137 = vadd.f32 0.0, %v1136
    %v1138 = vpop.f32.mrf.mxu0
    %v1139 = vadd.f32 0.0, %v1138
    %1140 = vmatmul.bf16.gmra.mxu0 %v677
    %v1141 = vpop.f32.mrf.mxu0
    %v1142 = vadd.f32 0.0, %v1141
    %v1143 = vpop.f32.mrf.mxu0
    %v1144 = vadd.f32 0.0, %v1143
    %1145 = vdwg.mxu0
    %1146 = vmatpush.bf16.msra.mxu0 %v949
    %1147 = vmatpush.bf16.msra.mxu0 %v946
    %1148 = vmatpush.bf16.msra.mxu0 %v943
    %1149 = vmatpush.bf16.msra.mxu0 %v940
    %1150 = vmatpush.bf16.msra.mxu0 %v937
    %1151 = vmatpush.bf16.msra.mxu0 %v934
    %1152 = vmatpush.bf16.msra.mxu0 %v931
    %1153 = vmatpush.bf16.msra.mxu0 %v928
    %1154 = vmatmul.bf16.gmra.mxu0 %v664
    %v1155 = vpop.f32.mrf.mxu0
    %v1156 = vadd.f32 %v1107, %v1155
    %v1157 = vpop.f32.mrf.mxu0
    %v1158 = vadd.f32 %v1109, %v1157
    %1159 = vmatmul.bf16.gmra.mxu0 %v666
    %v1160 = vpop.f32.mrf.mxu0
    %v1161 = vadd.f32 %v1112, %v1160
    %v1162 = vpop.f32.mrf.mxu0
    %v1163 = vadd.f32 %v1114, %v1162
    %1164 = vmatmul.bf16.gmra.mxu0 %v668
    %v1165 = vpop.f32.mrf.mxu0
    %v1166 = vadd.f32 %v1117, %v1165
    %v1167 = vpop.f32.mrf.mxu0
    %v1168 = vadd.f32 %v1119, %v1167
    %1169 = vmatmul.bf16.gmra.mxu0 %v670
    %v1170 = vpop.f32.mrf.mxu0
    %v1171 = vadd.f32 %v1122, %v1170
    %v1172 = vpop.f32.mrf.mxu0
    %v1173 = vadd.f32 %v1124, %v1172
    %1174 = vmatmul.bf16.gmra.mxu0 %v672
    %v1175 = vpop.f32.mrf.mxu0
    %v1176 = vadd.f32 %v1127, %v1175
    %v1177 = vpop.f32.mrf.mxu0
    %v1178 = vadd.f32 %v1129, %v1177
    %1179 = vmatmul.bf16.gmra.mxu0 %v674
    %v1180 = vpop.f32.mrf.mxu0
    %v1181 = vadd.f32 %v1132, %v1180
    %v1182 = vpop.f32.mrf.mxu0
    %v1183 = vadd.f32 %v1134, %v1182
    %1184 = vmatmul.bf16.gmra.mxu0 %v676
    %v1185 = vpop.f32.mrf.mxu0
    %v1186 = vadd.f32 %v1137, %v1185
    %v1187 = vpop.f32.mrf.mxu0
    %v1188 = vadd.f32 %v1139, %v1187
    %1189 = vmatmul.bf16.gmra.mxu0 %v678
    %v1190 = vpop.f32.mrf.mxu0
    %v1191 = vadd.f32 %v1142, %v1190
    %v1192 = vpop.f32.mrf.mxu0
    %v1193 = vadd.f32 %v1144, %v1192
    %1194 = vdwg.mxu0
    %1195 = vmatpush.bf16.msra.mxu0 %v926
    %1196 = vmatpush.bf16.msra.mxu0 %v923
    %1197 = vmatpush.bf16.msra.mxu0 %v920
    %1198 = vmatpush.bf16.msra.mxu0 %v917
    %1199 = vmatpush.bf16.msra.mxu0 %v914
    %1200 = vmatpush.bf16.msra.mxu0 %v911
    %1201 = vmatpush.bf16.msra.mxu0 %v908
    %1202 = vmatpush.bf16.msra.mxu0 %v905
    %1203 = vmatmul.bf16.gmra.mxu0 %v663
    %v1204 = vpop.f32.mrf.mxu0
    %v1205 = vadd.f32 0.0, %v1204
    %v1206 = vpop.f32.mrf.mxu0
    %v1207 = vadd.f32 0.0, %v1206
    %1208 = vmatmul.bf16.gmra.mxu0 %v665
    %v1209 = vpop.f32.mrf.mxu0
    %v1210 = vadd.f32 0.0, %v1209
    %v1211 = vpop.f32.mrf.mxu0
    %v1212 = vadd.f32 0.0, %v1211
    %1213 = vmatmul.bf16.gmra.mxu0 %v667
    %v1214 = vpop.f32.mrf.mxu0
    %v1215 = vadd.f32 0.0, %v1214
    %v1216 = vpop.f32.mrf.mxu0
    %v1217 = vadd.f32 0.0, %v1216
    %1218 = vmatmul.bf16.gmra.mxu0 %v669
    %v1219 = vpop.f32.mrf.mxu0
    %v1220 = vadd.f32 0.0, %v1219
    %v1221 = vpop.f32.mrf.mxu0
    %v1222 = vadd.f32 0.0, %v1221
    %1223 = vmatmul.bf16.gmra.mxu0 %v671
    %v1224 = vpop.f32.mrf.mxu0
    %v1225 = vadd.f32 0.0, %v1224
    %v1226 = vpop.f32.mrf.mxu0
    %v1227 = vadd.f32 0.0, %v1226
    %1228 = vmatmul.bf16.gmra.mxu0 %v673
    %v1229 = vpop.f32.mrf.mxu0
    %v1230 = vadd.f32 0.0, %v1229
    %v1231 = vpop.f32.mrf.mxu0
    %v1232 = vadd.f32 0.0, %v1231
    %1233 = vmatmul.bf16.gmra.mxu0 %v675
    %v1234 = vpop.f32.mrf.mxu0
    %v1235 = vadd.f32 0.0, %v1234
    %v1236 = vpop.f32.mrf.mxu0
    %v1237 = vadd.f32 0.0, %v1236
    %1238 = vmatmul.bf16.gmra.mxu0 %v677
    %v1239 = vpop.f32.mrf.mxu0
    %v1240 = vadd.f32 0.0, %v1239
    %v1241 = vpop.f32.mrf.mxu0
    %v1242 = vadd.f32 0.0, %v1241
    %1243 = vdwg.mxu0
    %1244 = vmatpush.bf16.msra.mxu0 %v950
    %1245 = vmatpush.bf16.msra.mxu0 %v947
    %1246 = vmatpush.bf16.msra.mxu0 %v944
    %1247 = vmatpush.bf16.msra.mxu0 %v941
    %1248 = vmatpush.bf16.msra.mxu0 %v938
    %1249 = vmatpush.bf16.msra.mxu0 %v935
    %1250 = vmatpush.bf16.msra.mxu0 %v932
    %1251 = vmatpush.bf16.msra.mxu0 %v929
    %1252 = vmatmul.bf16.gmra.mxu0 %v664
    %v1253 = vpop.f32.mrf.mxu0
    %v1254 = vadd.f32 %v1205, %v1253
    %v1255 = vpop.f32.mrf.mxu0
    %v1256 = vadd.f32 %v1207, %v1255
    %1257 = vmatmul.bf16.gmra.mxu0 %v666
    %v1258 = vpop.f32.mrf.mxu0
    %v1259 = vadd.f32 %v1210, %v1258
    %v1260 = vpop.f32.mrf.mxu0
    %v1261 = vadd.f32 %v1212, %v1260
    %1262 = vmatmul.bf16.gmra.mxu0 %v668
    %v1263 = vpop.f32.mrf.mxu0
    %v1264 = vadd.f32 %v1215, %v1263
    %v1265 = vpop.f32.mrf.mxu0
    %v1266 = vadd.f32 %v1217, %v1265
    %1267 = vmatmul.bf16.gmra.mxu0 %v670
    %v1268 = vpop.f32.mrf.mxu0
    %v1269 = vadd.f32 %v1220, %v1268
    %v1270 = vpop.f32.mrf.mxu0
    %v1271 = vadd.f32 %v1222, %v1270
    %1272 = vmatmul.bf16.gmra.mxu0 %v672
    %v1273 = vpop.f32.mrf.mxu0
    %v1274 = vadd.f32 %v1225, %v1273
    %v1275 = vpop.f32.mrf.mxu0
    %v1276 = vadd.f32 %v1227, %v1275
    %1277 = vmatmul.bf16.gmra.mxu0 %v674
    %v1278 = vpop.f32.mrf.mxu0
    %v1279 = vadd.f32 %v1230, %v1278
    %v1280 = vpop.f32.mrf.mxu0
    %v1281 = vadd.f32 %v1232, %v1280
    %1282 = vmatmul.bf16.gmra.mxu0 %v676
    %v1283 = vpop.f32.mrf.mxu0
    %v1284 = vadd.f32 %v1235, %v1283
    %v1285 = vpop.f32.mrf.mxu0
    %v1286 = vadd.f32 %v1237, %v1285
    %1287 = vmatmul.bf16.gmra.mxu0 %v678
    %v1288 = vpop.f32.mrf.mxu0
    %v1289 = vadd.f32 %v1240, %v1288
    %v1290 = vpop.f32.mrf.mxu0
    %v1291 = vadd.f32 %v1242, %v1290
    %1292 = vdwg.mxu0
    %1309 = vrot.lane.b32.xlu0 %v1058, 112
    %v1310 = vpop.permute.xlu0 %1309
    %1311 = vrot.lane.b32.xlu0 %v1060, 112
    %v1312 = vpop.permute.xlu0 %1311
    %1313 = vrot.lane.b32.xlu0 %v1063, 112
    %v1314 = vpop.permute.xlu0 %1313
    %1315 = vrot.lane.b32.xlu0 %v1065, 112
    %v1316 = vpop.permute.xlu0 %1315
    %1317 = vrot.lane.b32.xlu0 %v1068, 112
    %v1318 = vpop.permute.xlu0 %1317
    %1319 = vrot.lane.b32.xlu0 %v1070, 112
    %v1320 = vpop.permute.xlu0 %1319
    %1321 = vrot.lane.b32.xlu0 %v1073, 112
    %v1322 = vpop.permute.xlu0 %1321
    %1323 = vrot.lane.b32.xlu0 %v1075, 112
    %v1324 = vpop.permute.xlu0 %1323
    %1325 = vrot.lane.b32.xlu0 %v1078, 112
    %v1326 = vpop.permute.xlu0 %1325
    %1327 = vrot.lane.b32.xlu0 %v1080, 112
    %v1328 = vpop.permute.xlu0 %1327
    %1329 = vrot.lane.b32.xlu0 %v1083, 112
    %v1330 = vpop.permute.xlu0 %1329
    %1331 = vrot.lane.b32.xlu0 %v1085, 112
    %v1332 = vpop.permute.xlu0 %1331
    %1333 = vrot.lane.b32.xlu0 %v1088, 112
    %v1334 = vpop.permute.xlu0 %1333
    %1335 = vrot.lane.b32.xlu0 %v1090, 112
    %v1336 = vpop.permute.xlu0 %1335
    %1337 = vrot.lane.b32.xlu0 %v1093, 112
    %v1338 = vpop.permute.xlu0 %1337
    %1339 = vrot.lane.b32.xlu0 %v1095, 112
    %v1340 = vpop.permute.xlu0 %1339
    %1357 = vrot.lane.b32.xlu0 %v1058, 96
    %v1358 = vpop.permute.xlu0 %1357
    %1359 = vrot.lane.b32.xlu0 %v1060, 96
    %v1360 = vpop.permute.xlu0 %1359
    %1361 = vrot.lane.b32.xlu0 %v1063, 96
    %v1362 = vpop.permute.xlu0 %1361
    %1363 = vrot.lane.b32.xlu0 %v1065, 96
    %v1364 = vpop.permute.xlu0 %1363
    %1365 = vrot.lane.b32.xlu0 %v1068, 96
    %v1366 = vpop.permute.xlu0 %1365
    %1367 = vrot.lane.b32.xlu0 %v1070, 96
    %v1368 = vpop.permute.xlu0 %1367
    %1369 = vrot.lane.b32.xlu0 %v1073, 96
    %v1370 = vpop.permute.xlu0 %1369
    %1371 = vrot.lane.b32.xlu0 %v1075, 96
    %v1372 = vpop.permute.xlu0 %1371
    %1373 = vrot.lane.b32.xlu0 %v1078, 96
    %v1374 = vpop.permute.xlu0 %1373
    %1375 = vrot.lane.b32.xlu0 %v1080, 96
    %v1376 = vpop.permute.xlu0 %1375
    %1377 = vrot.lane.b32.xlu0 %v1083, 96
    %v1378 = vpop.permute.xlu0 %1377
    %1379 = vrot.lane.b32.xlu0 %v1085, 96
    %v1380 = vpop.permute.xlu0 %1379
    %1381 = vrot.lane.b32.xlu0 %v1088, 96
    %v1382 = vpop.permute.xlu0 %1381
    %1383 = vrot.lane.b32.xlu0 %v1090, 96
    %v1384 = vpop.permute.xlu0 %1383
    %1385 = vrot.lane.b32.xlu0 %v1093, 96
    %v1386 = vpop.permute.xlu0 %1385
    %1387 = vrot.lane.b32.xlu0 %v1095, 96
    %v1388 = vpop.permute.xlu0 %1387
    %1405 = vrot.lane.b32.xlu0 %v1058, 80
    %v1406 = vpop.permute.xlu0 %1405
    %1407 = vrot.lane.b32.xlu0 %v1060, 80
    %v1408 = vpop.permute.xlu0 %1407
    %1409 = vrot.lane.b32.xlu0 %v1063, 80
    %v1410 = vpop.permute.xlu0 %1409
    %1411 = vrot.lane.b32.xlu0 %v1065, 80
    %v1412 = vpop.permute.xlu0 %1411
    %1413 = vrot.lane.b32.xlu0 %v1068, 80
    %v1414 = vpop.permute.xlu0 %1413
    %1415 = vrot.lane.b32.xlu0 %v1070, 80
    %v1416 = vpop.permute.xlu0 %1415
    %1417 = vrot.lane.b32.xlu0 %v1073, 80
    %v1418 = vpop.permute.xlu0 %1417
    %1419 = vrot.lane.b32.xlu0 %v1075, 80
    %v1420 = vpop.permute.xlu0 %1419
    %1421 = vrot.lane.b32.xlu0 %v1078, 80
    %v1422 = vpop.permute.xlu0 %1421
    %1423 = vrot.lane.b32.xlu0 %v1080, 80
    %v1424 = vpop.permute.xlu0 %1423
    %1425 = vrot.lane.b32.xlu0 %v1083, 80
    %v1426 = vpop.permute.xlu0 %1425
    %1427 = vrot.lane.b32.xlu0 %v1085, 80
    %v1428 = vpop.permute.xlu0 %1427
    %1429 = vrot.lane.b32.xlu0 %v1088, 80
    %v1430 = vpop.permute.xlu0 %1429
    %1431 = vrot.lane.b32.xlu0 %v1090, 80
    %v1432 = vpop.permute.xlu0 %1431
    %1433 = vrot.lane.b32.xlu0 %v1093, 80
    %v1434 = vpop.permute.xlu0 %1433
    %1435 = vrot.lane.b32.xlu0 %v1095, 80
    %v1436 = vpop.permute.xlu0 %1435
    %1453 = vrot.lane.b32.xlu0 %v1058, 64
    %v1454 = vpop.permute.xlu0 %1453
    %1455 = vrot.lane.b32.xlu0 %v1060, 64
    %v1456 = vpop.permute.xlu0 %1455
    %1457 = vrot.lane.b32.xlu0 %v1063, 64
    %v1458 = vpop.permute.xlu0 %1457
    %1459 = vrot.lane.b32.xlu0 %v1065, 64
    %v1460 = vpop.permute.xlu0 %1459
    %1461 = vrot.lane.b32.xlu0 %v1068, 64
    %v1462 = vpop.permute.xlu0 %1461
    %1463 = vrot.lane.b32.xlu0 %v1070, 64
    %v1464 = vpop.permute.xlu0 %1463
    %1465 = vrot.lane.b32.xlu0 %v1073, 64
    %v1466 = vpop.permute.xlu0 %1465
    %1467 = vrot.lane.b32.xlu0 %v1075, 64
    %v1468 = vpop.permute.xlu0 %1467
    %1469 = vrot.lane.b32.xlu0 %v1078, 64
    %v1470 = vpop.permute.xlu0 %1469
    %1471 = vrot.lane.b32.xlu0 %v1080, 64
    %v1472 = vpop.permute.xlu0 %1471
    %1473 = vrot.lane.b32.xlu0 %v1083, 64
    %v1474 = vpop.permute.xlu0 %1473
    %1475 = vrot.lane.b32.xlu0 %v1085, 64
    %v1476 = vpop.permute.xlu0 %1475
    %1477 = vrot.lane.b32.xlu0 %v1088, 64
    %v1478 = vpop.permute.xlu0 %1477
    %1479 = vrot.lane.b32.xlu0 %v1090, 64
    %v1480 = vpop.permute.xlu0 %1479
    %1481 = vrot.lane.b32.xlu0 %v1093, 64
    %v1482 = vpop.permute.xlu0 %1481
    %1483 = vrot.lane.b32.xlu0 %v1095, 64
    %v1484 = vpop.permute.xlu0 %1483
    %1501 = vrot.lane.b32.xlu0 %v1058, 48
    %v1502 = vpop.permute.xlu0 %1501
    %1503 = vrot.lane.b32.xlu0 %v1060, 48
    %v1504 = vpop.permute.xlu0 %1503
    %1505 = vrot.lane.b32.xlu0 %v1063, 48
    %v1506 = vpop.permute.xlu0 %1505
    %1507 = vrot.lane.b32.xlu0 %v1065, 48
    %v1508 = vpop.permute.xlu0 %1507
    %1509 = vrot.lane.b32.xlu0 %v1068, 48
    %v1510 = vpop.permute.xlu0 %1509
    %1511 = vrot.lane.b32.xlu0 %v1070, 48
    %v1512 = vpop.permute.xlu0 %1511
    %1513 = vrot.lane.b32.xlu0 %v1073, 48
    %v1514 = vpop.permute.xlu0 %1513
    %1515 = vrot.lane.b32.xlu0 %v1075, 48
    %v1516 = vpop.permute.xlu0 %1515
    %1517 = vrot.lane.b32.xlu0 %v1078, 48
    %v1518 = vpop.permute.xlu0 %1517
    %1519 = vrot.lane.b32.xlu0 %v1080, 48
    %v1520 = vpop.permute.xlu0 %1519
    %1521 = vrot.lane.b32.xlu0 %v1083, 48
    %v1522 = vpop.permute.xlu0 %1521
    %1523 = vrot.lane.b32.xlu0 %v1085, 48
    %v1524 = vpop.permute.xlu0 %1523
    %1525 = vrot.lane.b32.xlu0 %v1088, 48
    %v1526 = vpop.permute.xlu0 %1525
    %1527 = vrot.lane.b32.xlu0 %v1090, 48
    %v1528 = vpop.permute.xlu0 %1527
    %1529 = vrot.lane.b32.xlu0 %v1093, 48
    %v1530 = vpop.permute.xlu0 %1529
    %1531 = vrot.lane.b32.xlu0 %v1095, 48
    %v1532 = vpop.permute.xlu0 %1531
    %1549 = vrot.lane.b32.xlu0 %v1058, 32
    %v1550 = vpop.permute.xlu0 %1549
    %1551 = vrot.lane.b32.xlu0 %v1060, 32
    %v1552 = vpop.permute.xlu0 %1551
    %1553 = vrot.lane.b32.xlu0 %v1063, 32
    %v1554 = vpop.permute.xlu0 %1553
    %1555 = vrot.lane.b32.xlu0 %v1065, 32
    %v1556 = vpop.permute.xlu0 %1555
    %1557 = vrot.lane.b32.xlu0 %v1068, 32
    %v1558 = vpop.permute.xlu0 %1557
    %1559 = vrot.lane.b32.xlu0 %v1070, 32
    %v1560 = vpop.permute.xlu0 %1559
    %1561 = vrot.lane.b32.xlu0 %v1073, 32
    %v1562 = vpop.permute.xlu0 %1561
    %1563 = vrot.lane.b32.xlu0 %v1075, 32
    %v1564 = vpop.permute.xlu0 %1563
    %1565 = vrot.lane.b32.xlu0 %v1078, 32
    %v1566 = vpop.permute.xlu0 %1565
    %1567 = vrot.lane.b32.xlu0 %v1080, 32
    %v1568 = vpop.permute.xlu0 %1567
    %1569 = vrot.lane.b32.xlu0 %v1083, 32
    %v1570 = vpop.permute.xlu0 %1569
    %1571 = vrot.lane.b32.xlu0 %v1085, 32
    %v1572 = vpop.permute.xlu0 %1571
    %1573 = vrot.lane.b32.xlu0 %v1088, 32
    %v1574 = vpop.permute.xlu0 %1573
    %1575 = vrot.lane.b32.xlu0 %v1090, 32
    %v1576 = vpop.permute.xlu0 %1575
    %1577 = vrot.lane.b32.xlu0 %v1093, 32
    %v1578 = vpop.permute.xlu0 %1577
    %1579 = vrot.lane.b32.xlu0 %v1095, 32
    %v1580 = vpop.permute.xlu0 %1579
    %1597 = vrot.lane.b32.xlu0 %v1058, 16
    %v1598 = vpop.permute.xlu0 %1597
    %1599 = vrot.lane.b32.xlu0 %v1060, 16
    %v1600 = vpop.permute.xlu0 %1599
    %1601 = vrot.lane.b32.xlu0 %v1063, 16
    %v1602 = vpop.permute.xlu0 %1601
    %1603 = vrot.lane.b32.xlu0 %v1065, 16
    %v1604 = vpop.permute.xlu0 %1603
    %1605 = vrot.lane.b32.xlu0 %v1068, 16
    %v1606 = vpop.permute.xlu0 %1605
    %1607 = vrot.lane.b32.xlu0 %v1070, 16
    %v1608 = vpop.permute.xlu0 %1607
    %1609 = vrot.lane.b32.xlu0 %v1073, 16
    %v1610 = vpop.permute.xlu0 %1609
    %1611 = vrot.lane.b32.xlu0 %v1075, 16
    %v1612 = vpop.permute.xlu0 %1611
    %1613 = vrot.lane.b32.xlu0 %v1078, 16
    %v1614 = vpop.permute.xlu0 %1613
    %1615 = vrot.lane.b32.xlu0 %v1080, 16
    %v1616 = vpop.permute.xlu0 %1615
    %1617 = vrot.lane.b32.xlu0 %v1083, 16
    %v1618 = vpop.permute.xlu0 %1617
    %1619 = vrot.lane.b32.xlu0 %v1085, 16
    %v1620 = vpop.permute.xlu0 %1619
    %1621 = vrot.lane.b32.xlu0 %v1088, 16
    %v1622 = vpop.permute.xlu0 %1621
    %1623 = vrot.lane.b32.xlu0 %v1090, 16
    %v1624 = vpop.permute.xlu0 %1623
    %1625 = vrot.lane.b32.xlu0 %v1093, 16
    %v1626 = vpop.permute.xlu0 %1625
    %1627 = vrot.lane.b32.xlu0 %v1095, 16
    %v1628 = vpop.permute.xlu0 %1627
    %v1645 = vpack.c.bf16 %v1058, %v1058
    %v1646 = vpack.c.bf16 %v1060, %v1060
    %v1647 = vpack.c.bf16 %v1063, %v1063
    %v1648 = vpack.c.bf16 %v1065, %v1065
    %v1649 = vpack.c.bf16 %v1068, %v1068
    %v1650 = vpack.c.bf16 %v1070, %v1070
    %v1651 = vpack.c.bf16 %v1073, %v1073
    %v1652 = vpack.c.bf16 %v1075, %v1075
    %v1653 = vpack.c.bf16 %v1078, %v1078
    %v1654 = vpack.c.bf16 %v1080, %v1080
    %v1655 = vpack.c.bf16 %v1083, %v1083
    %v1656 = vpack.c.bf16 %v1085, %v1085
    %v1657 = vpack.c.bf16 %v1088, %v1088
    %v1658 = vpack.c.bf16 %v1090, %v1090
    %v1659 = vpack.c.bf16 %v1093, %v1093
    %v1660 = vpack.c.bf16 %v1095, %v1095
    %v1661 = vpack.c.bf16 %v1310, %v1310
    %v1662 = vpack.c.bf16 %v1312, %v1312
    %v1663 = vpack.c.bf16 %v1314, %v1314
    %v1664 = vpack.c.bf16 %v1316, %v1316
    %v1665 = vpack.c.bf16 %v1318, %v1318
    %v1666 = vpack.c.bf16 %v1320, %v1320
    %v1667 = vpack.c.bf16 %v1322, %v1322
    %v1668 = vpack.c.bf16 %v1324, %v1324
    %v1669 = vpack.c.bf16 %v1326, %v1326
    %v1670 = vpack.c.bf16 %v1328, %v1328
    %v1671 = vpack.c.bf16 %v1330, %v1330
    %v1672 = vpack.c.bf16 %v1332, %v1332
    %v1673 = vpack.c.bf16 %v1334, %v1334
    %v1674 = vpack.c.bf16 %v1336, %v1336
    %v1675 = vpack.c.bf16 %v1338, %v1338
    %v1676 = vpack.c.bf16 %v1340, %v1340
    %v1677 = vpack.c.bf16 %v1358, %v1358
    %v1678 = vpack.c.bf16 %v1360, %v1360
    %v1679 = vpack.c.bf16 %v1362, %v1362
    %v1680 = vpack.c.bf16 %v1364, %v1364
    %v1681 = vpack.c.bf16 %v1366, %v1366
    %v1682 = vpack.c.bf16 %v1368, %v1368
    %v1683 = vpack.c.bf16 %v1370, %v1370
    %v1684 = vpack.c.bf16 %v1372, %v1372
    %v1685 = vpack.c.bf16 %v1374, %v1374
    %v1686 = vpack.c.bf16 %v1376, %v1376
    %v1687 = vpack.c.bf16 %v1378, %v1378
    %v1688 = vpack.c.bf16 %v1380, %v1380
    %v1689 = vpack.c.bf16 %v1382, %v1382
    %v1690 = vpack.c.bf16 %v1384, %v1384
    %v1691 = vpack.c.bf16 %v1386, %v1386
    %v1692 = vpack.c.bf16 %v1388, %v1388
    %v1693 = vpack.c.bf16 %v1406, %v1406
    %v1694 = vpack.c.bf16 %v1408, %v1408
    %v1695 = vpack.c.bf16 %v1410, %v1410
    %v1696 = vpack.c.bf16 %v1412, %v1412
    %v1697 = vpack.c.bf16 %v1414, %v1414
    %v1698 = vpack.c.bf16 %v1416, %v1416
    %v1699 = vpack.c.bf16 %v1418, %v1418
    %v1700 = vpack.c.bf16 %v1420, %v1420
    %v1701 = vpack.c.bf16 %v1422, %v1422
    %v1702 = vpack.c.bf16 %v1424, %v1424
    %v1703 = vpack.c.bf16 %v1426, %v1426
    %v1704 = vpack.c.bf16 %v1428, %v1428
    %v1705 = vpack.c.bf16 %v1430, %v1430
    %v1706 = vpack.c.bf16 %v1432, %v1432
    %v1707 = vpack.c.bf16 %v1434, %v1434
    %v1708 = vpack.c.bf16 %v1436, %v1436
    %v1709 = vpack.c.bf16 %v1454, %v1454
    %v1710 = vpack.c.bf16 %v1456, %v1456
    %v1711 = vpack.c.bf16 %v1458, %v1458
    %v1712 = vpack.c.bf16 %v1460, %v1460
    %v1713 = vpack.c.bf16 %v1462, %v1462
    %v1714 = vpack.c.bf16 %v1464, %v1464
    %v1715 = vpack.c.bf16 %v1466, %v1466
    %v1716 = vpack.c.bf16 %v1468, %v1468
    %v1717 = vpack.c.bf16 %v1470, %v1470
    %v1718 = vpack.c.bf16 %v1472, %v1472
    %v1719 = vpack.c.bf16 %v1474, %v1474
    %v1720 = vpack.c.bf16 %v1476, %v1476
    %v1721 = vpack.c.bf16 %v1478, %v1478
    %v1722 = vpack.c.bf16 %v1480, %v1480
    %v1723 = vpack.c.bf16 %v1482, %v1482
    %v1724 = vpack.c.bf16 %v1484, %v1484
    %v1725 = vpack.c.bf16 %v1502, %v1502
    %v1726 = vpack.c.bf16 %v1504, %v1504
    %v1727 = vpack.c.bf16 %v1506, %v1506
    %v1728 = vpack.c.bf16 %v1508, %v1508
    %v1729 = vpack.c.bf16 %v1510, %v1510
    %v1730 = vpack.c.bf16 %v1512, %v1512
    %v1731 = vpack.c.bf16 %v1514, %v1514
    %v1732 = vpack.c.bf16 %v1516, %v1516
    %v1733 = vpack.c.bf16 %v1518, %v1518
    %v1734 = vpack.c.bf16 %v1520, %v1520
    %v1735 = vpack.c.bf16 %v1522, %v1522
    %v1736 = vpack.c.bf16 %v1524, %v1524
    %v1737 = vpack.c.bf16 %v1526, %v1526
    %v1738 = vpack.c.bf16 %v1528, %v1528
    %v1739 = vpack.c.bf16 %v1530, %v1530
    %v1740 = vpack.c.bf16 %v1532, %v1532
    %v1741 = vpack.c.bf16 %v1550, %v1550
    %v1742 = vpack.c.bf16 %v1552, %v1552
    %v1743 = vpack.c.bf16 %v1554, %v1554
    %v1744 = vpack.c.bf16 %v1556, %v1556
    %v1745 = vpack.c.bf16 %v1558, %v1558
    %v1746 = vpack.c.bf16 %v1560, %v1560
    %v1747 = vpack.c.bf16 %v1562, %v1562
    %v1748 = vpack.c.bf16 %v1564, %v1564
    %v1749 = vpack.c.bf16 %v1566, %v1566
    %v1750 = vpack.c.bf16 %v1568, %v1568
    %v1751 = vpack.c.bf16 %v1570, %v1570
    %v1752 = vpack.c.bf16 %v1572, %v1572
    %v1753 = vpack.c.bf16 %v1574, %v1574
    %v1754 = vpack.c.bf16 %v1576, %v1576
    %v1755 = vpack.c.bf16 %v1578, %v1578
    %v1756 = vpack.c.bf16 %v1580, %v1580
    %v1757 = vpack.c.bf16 %v1598, %v1598
    %v1758 = vpack.c.bf16 %v1600, %v1600
    %v1759 = vpack.c.bf16 %v1602, %v1602
    %v1760 = vpack.c.bf16 %v1604, %v1604
    %v1761 = vpack.c.bf16 %v1606, %v1606
    %v1762 = vpack.c.bf16 %v1608, %v1608
    %v1763 = vpack.c.bf16 %v1610, %v1610
    %v1764 = vpack.c.bf16 %v1612, %v1612
    %v1765 = vpack.c.bf16 %v1614, %v1614
    %v1766 = vpack.c.bf16 %v1616, %v1616
    %v1767 = vpack.c.bf16 %v1618, %v1618
    %v1768 = vpack.c.bf16 %v1620, %v1620
    %v1769 = vpack.c.bf16 %v1622, %v1622
    %v1770 = vpack.c.bf16 %v1624, %v1624
    %v1771 = vpack.c.bf16 %v1626, %v1626
    %v1772 = vpack.c.bf16 %v1628, %v1628
    %1789 = vrot.lane.b32.xlu0 %v1156, 112
    %v1790 = vpop.permute.xlu0 %1789
    %1791 = vrot.lane.b32.xlu0 %v1158, 112
    %v1792 = vpop.permute.xlu0 %1791
    %1793 = vrot.lane.b32.xlu0 %v1161, 112
    %v1794 = vpop.permute.xlu0 %1793
    %1795 = vrot.lane.b32.xlu0 %v1163, 112
    %v1796 = vpop.permute.xlu0 %1795
    %1797 = vrot.lane.b32.xlu0 %v1166, 112
    %v1798 = vpop.permute.xlu0 %1797
    %1799 = vrot.lane.b32.xlu0 %v1168, 112
    %v1800 = vpop.permute.xlu0 %1799
    %1801 = vrot.lane.b32.xlu0 %v1171, 112
    %v1802 = vpop.permute.xlu0 %1801
    %1803 = vrot.lane.b32.xlu0 %v1173, 112
    %v1804 = vpop.permute.xlu0 %1803
    %1805 = vrot.lane.b32.xlu0 %v1176, 112
    %v1806 = vpop.permute.xlu0 %1805
    %1807 = vrot.lane.b32.xlu0 %v1178, 112
    %v1808 = vpop.permute.xlu0 %1807
    %1809 = vrot.lane.b32.xlu0 %v1181, 112
    %v1810 = vpop.permute.xlu0 %1809
    %1811 = vrot.lane.b32.xlu0 %v1183, 112
    %v1812 = vpop.permute.xlu0 %1811
    %1813 = vrot.lane.b32.xlu0 %v1186, 112
    %v1814 = vpop.permute.xlu0 %1813
    %1815 = vrot.lane.b32.xlu0 %v1188, 112
    %v1816 = vpop.permute.xlu0 %1815
    %1817 = vrot.lane.b32.xlu0 %v1191, 112
    %v1818 = vpop.permute.xlu0 %1817
    %1819 = vrot.lane.b32.xlu0 %v1193, 112
    %v1820 = vpop.permute.xlu0 %1819
    %1837 = vrot.lane.b32.xlu0 %v1156, 96
    %v1838 = vpop.permute.xlu0 %1837
    %1839 = vrot.lane.b32.xlu0 %v1158, 96
    %v1840 = vpop.permute.xlu0 %1839
    %1841 = vrot.lane.b32.xlu0 %v1161, 96
    %v1842 = vpop.permute.xlu0 %1841
    %1843 = vrot.lane.b32.xlu0 %v1163, 96
    %v1844 = vpop.permute.xlu0 %1843
    %1845 = vrot.lane.b32.xlu0 %v1166, 96
    %v1846 = vpop.permute.xlu0 %1845
    %1847 = vrot.lane.b32.xlu0 %v1168, 96
    %v1848 = vpop.permute.xlu0 %1847
    %1849 = vrot.lane.b32.xlu0 %v1171, 96
    %v1850 = vpop.permute.xlu0 %1849
    %1851 = vrot.lane.b32.xlu0 %v1173, 96
    %v1852 = vpop.permute.xlu0 %1851
    %1853 = vrot.lane.b32.xlu0 %v1176, 96
    %v1854 = vpop.permute.xlu0 %1853
    %1855 = vrot.lane.b32.xlu0 %v1178, 96
    %v1856 = vpop.permute.xlu0 %1855
    %1857 = vrot.lane.b32.xlu0 %v1181, 96
    %v1858 = vpop.permute.xlu0 %1857
    %1859 = vrot.lane.b32.xlu0 %v1183, 96
    %v1860 = vpop.permute.xlu0 %1859
    %1861 = vrot.lane.b32.xlu0 %v1186, 96
    %v1862 = vpop.permute.xlu0 %1861
    %1863 = vrot.lane.b32.xlu0 %v1188, 96
    %v1864 = vpop.permute.xlu0 %1863
    %1865 = vrot.lane.b32.xlu0 %v1191, 96
    %v1866 = vpop.permute.xlu0 %1865
    %1867 = vrot.lane.b32.xlu0 %v1193, 96
    %v1868 = vpop.permute.xlu0 %1867
    %1885 = vrot.lane.b32.xlu0 %v1156, 80
    %v1886 = vpop.permute.xlu0 %1885
    %1887 = vrot.lane.b32.xlu0 %v1158, 80
    %v1888 = vpop.permute.xlu0 %1887
    %1889 = vrot.lane.b32.xlu0 %v1161, 80
    %v1890 = vpop.permute.xlu0 %1889
    %1891 = vrot.lane.b32.xlu0 %v1163, 80
    %v1892 = vpop.permute.xlu0 %1891
    %1893 = vrot.lane.b32.xlu0 %v1166, 80
    %v1894 = vpop.permute.xlu0 %1893
    %1895 = vrot.lane.b32.xlu0 %v1168, 80
    %v1896 = vpop.permute.xlu0 %1895
    %1897 = vrot.lane.b32.xlu0 %v1171, 80
    %v1898 = vpop.permute.xlu0 %1897
    %1899 = vrot.lane.b32.xlu0 %v1173, 80
    %v1900 = vpop.permute.xlu0 %1899
    %1901 = vrot.lane.b32.xlu0 %v1176, 80
    %v1902 = vpop.permute.xlu0 %1901
    %1903 = vrot.lane.b32.xlu0 %v1178, 80
    %v1904 = vpop.permute.xlu0 %1903
    %1905 = vrot.lane.b32.xlu0 %v1181, 80
    %v1906 = vpop.permute.xlu0 %1905
    %1907 = vrot.lane.b32.xlu0 %v1183, 80
    %v1908 = vpop.permute.xlu0 %1907
    %1909 = vrot.lane.b32.xlu0 %v1186, 80
    %v1910 = vpop.permute.xlu0 %1909
    %1911 = vrot.lane.b32.xlu0 %v1188, 80
    %v1912 = vpop.permute.xlu0 %1911
    %1913 = vrot.lane.b32.xlu0 %v1191, 80
    %v1914 = vpop.permute.xlu0 %1913
    %1915 = vrot.lane.b32.xlu0 %v1193, 80
    %v1916 = vpop.permute.xlu0 %1915
    %1933 = vrot.lane.b32.xlu0 %v1156, 64
    %v1934 = vpop.permute.xlu0 %1933
    %1935 = vrot.lane.b32.xlu0 %v1158, 64
    %v1936 = vpop.permute.xlu0 %1935
    %1937 = vrot.lane.b32.xlu0 %v1161, 64
    %v1938 = vpop.permute.xlu0 %1937
    %1939 = vrot.lane.b32.xlu0 %v1163, 64
    %v1940 = vpop.permute.xlu0 %1939
    %1941 = vrot.lane.b32.xlu0 %v1166, 64
    %v1942 = vpop.permute.xlu0 %1941
    %1943 = vrot.lane.b32.xlu0 %v1168, 64
    %v1944 = vpop.permute.xlu0 %1943
    %1945 = vrot.lane.b32.xlu0 %v1171, 64
    %v1946 = vpop.permute.xlu0 %1945
    %1947 = vrot.lane.b32.xlu0 %v1173, 64
    %v1948 = vpop.permute.xlu0 %1947
    %1949 = vrot.lane.b32.xlu0 %v1176, 64
    %v1950 = vpop.permute.xlu0 %1949
    %1951 = vrot.lane.b32.xlu0 %v1178, 64
    %v1952 = vpop.permute.xlu0 %1951
    %1953 = vrot.lane.b32.xlu0 %v1181, 64
    %v1954 = vpop.permute.xlu0 %1953
    %1955 = vrot.lane.b32.xlu0 %v1183, 64
    %v1956 = vpop.permute.xlu0 %1955
    %1957 = vrot.lane.b32.xlu0 %v1186, 64
    %v1958 = vpop.permute.xlu0 %1957
    %1959 = vrot.lane.b32.xlu0 %v1188, 64
    %v1960 = vpop.permute.xlu0 %1959
    %1961 = vrot.lane.b32.xlu0 %v1191, 64
    %v1962 = vpop.permute.xlu0 %1961
    %1963 = vrot.lane.b32.xlu0 %v1193, 64
    %v1964 = vpop.permute.xlu0 %1963
    %1981 = vrot.lane.b32.xlu0 %v1156, 48
    %v1982 = vpop.permute.xlu0 %1981
    %1983 = vrot.lane.b32.xlu0 %v1158, 48
    %v1984 = vpop.permute.xlu0 %1983
    %1985 = vrot.lane.b32.xlu0 %v1161, 48
    %v1986 = vpop.permute.xlu0 %1985
    %1987 = vrot.lane.b32.xlu0 %v1163, 48
    %v1988 = vpop.permute.xlu0 %1987
    %1989 = vrot.lane.b32.xlu0 %v1166, 48
    %v1990 = vpop.permute.xlu0 %1989
    %1991 = vrot.lane.b32.xlu0 %v1168, 48
    %v1992 = vpop.permute.xlu0 %1991
    %1993 = vrot.lane.b32.xlu0 %v1171, 48
    %v1994 = vpop.permute.xlu0 %1993
    %1995 = vrot.lane.b32.xlu0 %v1173, 48
    %v1996 = vpop.permute.xlu0 %1995
    %1997 = vrot.lane.b32.xlu0 %v1176, 48
    %v1998 = vpop.permute.xlu0 %1997
    %1999 = vrot.lane.b32.xlu0 %v1178, 48
    %v2000 = vpop.permute.xlu0 %1999
    %2001 = vrot.lane.b32.xlu0 %v1181, 48
    %v2002 = vpop.permute.xlu0 %2001
    %2003 = vrot.lane.b32.xlu0 %v1183, 48
    %v2004 = vpop.permute.xlu0 %2003
    %2005 = vrot.lane.b32.xlu0 %v1186, 48
    %v2006 = vpop.permute.xlu0 %2005
    %2007 = vrot.lane.b32.xlu0 %v1188, 48
    %v2008 = vpop.permute.xlu0 %2007
    %2009 = vrot.lane.b32.xlu0 %v1191, 48
    %v2010 = vpop.permute.xlu0 %2009
    %2011 = vrot.lane.b32.xlu0 %v1193, 48
    %v2012 = vpop.permute.xlu0 %2011
    %2029 = vrot.lane.b32.xlu0 %v1156, 32
    %v2030 = vpop.permute.xlu0 %2029
    %2031 = vrot.lane.b32.xlu0 %v1158, 32
    %v2032 = vpop.permute.xlu0 %2031
    %2033 = vrot.lane.b32.xlu0 %v1161, 32
    %v2034 = vpop.permute.xlu0 %2033
    %2035 = vrot.lane.b32.xlu0 %v1163, 32
    %v2036 = vpop.permute.xlu0 %2035
    %2037 = vrot.lane.b32.xlu0 %v1166, 32
    %v2038 = vpop.permute.xlu0 %2037
    %2039 = vrot.lane.b32.xlu0 %v1168, 32
    %v2040 = vpop.permute.xlu0 %2039
    %2041 = vrot.lane.b32.xlu0 %v1171, 32
    %v2042 = vpop.permute.xlu0 %2041
    %2043 = vrot.lane.b32.xlu0 %v1173, 32
    %v2044 = vpop.permute.xlu0 %2043
    %2045 = vrot.lane.b32.xlu0 %v1176, 32
    %v2046 = vpop.permute.xlu0 %2045
    %2047 = vrot.lane.b32.xlu0 %v1178, 32
    %v2048 = vpop.permute.xlu0 %2047
    %2049 = vrot.lane.b32.xlu0 %v1181, 32
    %v2050 = vpop.permute.xlu0 %2049
    %2051 = vrot.lane.b32.xlu0 %v1183, 32
    %v2052 = vpop.permute.xlu0 %2051
    %2053 = vrot.lane.b32.xlu0 %v1186, 32
    %v2054 = vpop.permute.xlu0 %2053
    %2055 = vrot.lane.b32.xlu0 %v1188, 32
    %v2056 = vpop.permute.xlu0 %2055
    %2057 = vrot.lane.b32.xlu0 %v1191, 32
    %v2058 = vpop.permute.xlu0 %2057
    %2059 = vrot.lane.b32.xlu0 %v1193, 32
    %v2060 = vpop.permute.xlu0 %2059
    %2077 = vrot.lane.b32.xlu0 %v1156, 16
    %v2078 = vpop.permute.xlu0 %2077
    %2079 = vrot.lane.b32.xlu0 %v1158, 16
    %v2080 = vpop.permute.xlu0 %2079
    %2081 = vrot.lane.b32.xlu0 %v1161, 16
    %v2082 = vpop.permute.xlu0 %2081
    %2083 = vrot.lane.b32.xlu0 %v1163, 16
    %v2084 = vpop.permute.xlu0 %2083
    %2085 = vrot.lane.b32.xlu0 %v1166, 16
    %v2086 = vpop.permute.xlu0 %2085
    %2087 = vrot.lane.b32.xlu0 %v1168, 16
    %v2088 = vpop.permute.xlu0 %2087
    %2089 = vrot.lane.b32.xlu0 %v1171, 16
    %v2090 = vpop.permute.xlu0 %2089
    %2091 = vrot.lane.b32.xlu0 %v1173, 16
    %v2092 = vpop.permute.xlu0 %2091
    %2093 = vrot.lane.b32.xlu0 %v1176, 16
    %v2094 = vpop.permute.xlu0 %2093
    %2095 = vrot.lane.b32.xlu0 %v1178, 16
    %v2096 = vpop.permute.xlu0 %2095
    %2097 = vrot.lane.b32.xlu0 %v1181, 16
    %v2098 = vpop.permute.xlu0 %2097
    %2099 = vrot.lane.b32.xlu0 %v1183, 16
    %v2100 = vpop.permute.xlu0 %2099
    %2101 = vrot.lane.b32.xlu0 %v1186, 16
    %v2102 = vpop.permute.xlu0 %2101
    %2103 = vrot.lane.b32.xlu0 %v1188, 16
    %v2104 = vpop.permute.xlu0 %2103
    %2105 = vrot.lane.b32.xlu0 %v1191, 16
    %v2106 = vpop.permute.xlu0 %2105
    %2107 = vrot.lane.b32.xlu0 %v1193, 16
    %v2108 = vpop.permute.xlu0 %2107
    %v2125 = vpack.c.bf16 %v1156, %v1156
    %v2126 = vpack.c.bf16 %v1158, %v1158
    %v2127 = vpack.c.bf16 %v1161, %v1161
    %v2128 = vpack.c.bf16 %v1163, %v1163
    %v2129 = vpack.c.bf16 %v1166, %v1166
    %v2130 = vpack.c.bf16 %v1168, %v1168
    %v2131 = vpack.c.bf16 %v1171, %v1171
    %v2132 = vpack.c.bf16 %v1173, %v1173
    %v2133 = vpack.c.bf16 %v1176, %v1176
    %v2134 = vpack.c.bf16 %v1178, %v1178
    %v2135 = vpack.c.bf16 %v1181, %v1181
    %v2136 = vpack.c.bf16 %v1183, %v1183
    %v2137 = vpack.c.bf16 %v1186, %v1186
    %v2138 = vpack.c.bf16 %v1188, %v1188
    %v2139 = vpack.c.bf16 %v1191, %v1191
    %v2140 = vpack.c.bf16 %v1193, %v1193
    %v2141 = vpack.c.bf16 %v1790, %v1790
    %v2142 = vpack.c.bf16 %v1792, %v1792
    %v2143 = vpack.c.bf16 %v1794, %v1794
    %v2144 = vpack.c.bf16 %v1796, %v1796
    %v2145 = vpack.c.bf16 %v1798, %v1798
    %v2146 = vpack.c.bf16 %v1800, %v1800
    %v2147 = vpack.c.bf16 %v1802, %v1802
    %v2148 = vpack.c.bf16 %v1804, %v1804
    %v2149 = vpack.c.bf16 %v1806, %v1806
    %v2150 = vpack.c.bf16 %v1808, %v1808
    %v2151 = vpack.c.bf16 %v1810, %v1810
    %v2152 = vpack.c.bf16 %v1812, %v1812
    %v2153 = vpack.c.bf16 %v1814, %v1814
    %v2154 = vpack.c.bf16 %v1816, %v1816
    %v2155 = vpack.c.bf16 %v1818, %v1818
    %v2156 = vpack.c.bf16 %v1820, %v1820
    %v2157 = vpack.c.bf16 %v1838, %v1838
    %v2158 = vpack.c.bf16 %v1840, %v1840
    %v2159 = vpack.c.bf16 %v1842, %v1842
    %v2160 = vpack.c.bf16 %v1844, %v1844
    %v2161 = vpack.c.bf16 %v1846, %v1846
    %v2162 = vpack.c.bf16 %v1848, %v1848
    %v2163 = vpack.c.bf16 %v1850, %v1850
    %v2164 = vpack.c.bf16 %v1852, %v1852
    %v2165 = vpack.c.bf16 %v1854, %v1854
    %v2166 = vpack.c.bf16 %v1856, %v1856
    %v2167 = vpack.c.bf16 %v1858, %v1858
    %v2168 = vpack.c.bf16 %v1860, %v1860
    %v2169 = vpack.c.bf16 %v1862, %v1862
    %v2170 = vpack.c.bf16 %v1864, %v1864
    %v2171 = vpack.c.bf16 %v1866, %v1866
    %v2172 = vpack.c.bf16 %v1868, %v1868
    %v2173 = vpack.c.bf16 %v1886, %v1886
    %v2174 = vpack.c.bf16 %v1888, %v1888
    %v2175 = vpack.c.bf16 %v1890, %v1890
    %v2176 = vpack.c.bf16 %v1892, %v1892
    %v2177 = vpack.c.bf16 %v1894, %v1894
    %v2178 = vpack.c.bf16 %v1896, %v1896
    %v2179 = vpack.c.bf16 %v1898, %v1898
    %v2180 = vpack.c.bf16 %v1900, %v1900
    %v2181 = vpack.c.bf16 %v1902, %v1902
    %v2182 = vpack.c.bf16 %v1904, %v1904
    %v2183 = vpack.c.bf16 %v1906, %v1906
    %v2184 = vpack.c.bf16 %v1908, %v1908
    %v2185 = vpack.c.bf16 %v1910, %v1910
    %v2186 = vpack.c.bf16 %v1912, %v1912
    %v2187 = vpack.c.bf16 %v1914, %v1914
    %v2188 = vpack.c.bf16 %v1916, %v1916
    %v2189 = vpack.c.bf16 %v1934, %v1934
    %v2190 = vpack.c.bf16 %v1936, %v1936
    %v2191 = vpack.c.bf16 %v1938, %v1938
    %v2192 = vpack.c.bf16 %v1940, %v1940
    %v2193 = vpack.c.bf16 %v1942, %v1942
    %v2194 = vpack.c.bf16 %v1944, %v1944
    %v2195 = vpack.c.bf16 %v1946, %v1946
    %v2196 = vpack.c.bf16 %v1948, %v1948
    %v2197 = vpack.c.bf16 %v1950, %v1950
    %v2198 = vpack.c.bf16 %v1952, %v1952
    %v2199 = vpack.c.bf16 %v1954, %v1954
    %v2200 = vpack.c.bf16 %v1956, %v1956
    %v2201 = vpack.c.bf16 %v1958, %v1958
    %v2202 = vpack.c.bf16 %v1960, %v1960
    %v2203 = vpack.c.bf16 %v1962, %v1962
    %v2204 = vpack.c.bf16 %v1964, %v1964
    %v2205 = vpack.c.bf16 %v1982, %v1982
    %v2206 = vpack.c.bf16 %v1984, %v1984
    %v2207 = vpack.c.bf16 %v1986, %v1986
    %v2208 = vpack.c.bf16 %v1988, %v1988
    %v2209 = vpack.c.bf16 %v1990, %v1990
    %v2210 = vpack.c.bf16 %v1992, %v1992
    %v2211 = vpack.c.bf16 %v1994, %v1994
    %v2212 = vpack.c.bf16 %v1996, %v1996
    %v2213 = vpack.c.bf16 %v1998, %v1998
    %v2214 = vpack.c.bf16 %v2000, %v2000
    %v2215 = vpack.c.bf16 %v2002, %v2002
    %v2216 = vpack.c.bf16 %v2004, %v2004
    %v2217 = vpack.c.bf16 %v2006, %v2006
    %v2218 = vpack.c.bf16 %v2008, %v2008
    %v2219 = vpack.c.bf16 %v2010, %v2010
    %v2220 = vpack.c.bf16 %v2012, %v2012
    %v2221 = vpack.c.bf16 %v2030, %v2030
    %v2222 = vpack.c.bf16 %v2032, %v2032
    %v2223 = vpack.c.bf16 %v2034, %v2034
    %v2224 = vpack.c.bf16 %v2036, %v2036
    %v2225 = vpack.c.bf16 %v2038, %v2038
    %v2226 = vpack.c.bf16 %v2040, %v2040
    %v2227 = vpack.c.bf16 %v2042, %v2042
    %v2228 = vpack.c.bf16 %v2044, %v2044
    %v2229 = vpack.c.bf16 %v2046, %v2046
    %v2230 = vpack.c.bf16 %v2048, %v2048
    %v2231 = vpack.c.bf16 %v2050, %v2050
    %v2232 = vpack.c.bf16 %v2052, %v2052
    %v2233 = vpack.c.bf16 %v2054, %v2054
    %v2234 = vpack.c.bf16 %v2056, %v2056
    %v2235 = vpack.c.bf16 %v2058, %v2058
    %v2236 = vpack.c.bf16 %v2060, %v2060
    %v2237 = vpack.c.bf16 %v2078, %v2078
    %v2238 = vpack.c.bf16 %v2080, %v2080
    %v2239 = vpack.c.bf16 %v2082, %v2082
    %v2240 = vpack.c.bf16 %v2084, %v2084
    %v2241 = vpack.c.bf16 %v2086, %v2086
    %v2242 = vpack.c.bf16 %v2088, %v2088
    %v2243 = vpack.c.bf16 %v2090, %v2090
    %v2244 = vpack.c.bf16 %v2092, %v2092
    %v2245 = vpack.c.bf16 %v2094, %v2094
    %v2246 = vpack.c.bf16 %v2096, %v2096
    %v2247 = vpack.c.bf16 %v2098, %v2098
    %v2248 = vpack.c.bf16 %v2100, %v2100
    %v2249 = vpack.c.bf16 %v2102, %v2102
    %v2250 = vpack.c.bf16 %v2104, %v2104
    %v2251 = vpack.c.bf16 %v2106, %v2106
    %v2252 = vpack.c.bf16 %v2108, %v2108
    %2269 = vrot.lane.b32.xlu0 %v1254, 112
    %v2270 = vpop.permute.xlu0 %2269
    %2271 = vrot.lane.b32.xlu0 %v1256, 112
    %v2272 = vpop.permute.xlu0 %2271
    %2273 = vrot.lane.b32.xlu0 %v1259, 112
    %v2274 = vpop.permute.xlu0 %2273
    %2275 = vrot.lane.b32.xlu0 %v1261, 112
    %v2276 = vpop.permute.xlu0 %2275
    %2277 = vrot.lane.b32.xlu0 %v1264, 112
    %v2278 = vpop.permute.xlu0 %2277
    %2279 = vrot.lane.b32.xlu0 %v1266, 112
    %v2280 = vpop.permute.xlu0 %2279
    %2281 = vrot.lane.b32.xlu0 %v1269, 112
    %v2282 = vpop.permute.xlu0 %2281
    %2283 = vrot.lane.b32.xlu0 %v1271, 112
    %v2284 = vpop.permute.xlu0 %2283
    %2285 = vrot.lane.b32.xlu0 %v1274, 112
    %v2286 = vpop.permute.xlu0 %2285
    %2287 = vrot.lane.b32.xlu0 %v1276, 112
    %v2288 = vpop.permute.xlu0 %2287
    %2289 = vrot.lane.b32.xlu0 %v1279, 112
    %v2290 = vpop.permute.xlu0 %2289
    %2291 = vrot.lane.b32.xlu0 %v1281, 112
    %v2292 = vpop.permute.xlu0 %2291
    %2293 = vrot.lane.b32.xlu0 %v1284, 112
    %v2294 = vpop.permute.xlu0 %2293
    %2295 = vrot.lane.b32.xlu0 %v1286, 112
    %v2296 = vpop.permute.xlu0 %2295
    %2297 = vrot.lane.b32.xlu0 %v1289, 112
    %v2298 = vpop.permute.xlu0 %2297
    %2299 = vrot.lane.b32.xlu0 %v1291, 112
    %v2300 = vpop.permute.xlu0 %2299
    %2317 = vrot.lane.b32.xlu0 %v1254, 96
    %v2318 = vpop.permute.xlu0 %2317
    %2319 = vrot.lane.b32.xlu0 %v1256, 96
    %v2320 = vpop.permute.xlu0 %2319
    %2321 = vrot.lane.b32.xlu0 %v1259, 96
    %v2322 = vpop.permute.xlu0 %2321
    %2323 = vrot.lane.b32.xlu0 %v1261, 96
    %v2324 = vpop.permute.xlu0 %2323
    %2325 = vrot.lane.b32.xlu0 %v1264, 96
    %v2326 = vpop.permute.xlu0 %2325
    %2327 = vrot.lane.b32.xlu0 %v1266, 96
    %v2328 = vpop.permute.xlu0 %2327
    %2329 = vrot.lane.b32.xlu0 %v1269, 96
    %v2330 = vpop.permute.xlu0 %2329
    %2331 = vrot.lane.b32.xlu0 %v1271, 96
    %v2332 = vpop.permute.xlu0 %2331
    %2333 = vrot.lane.b32.xlu0 %v1274, 96
    %v2334 = vpop.permute.xlu0 %2333
    %2335 = vrot.lane.b32.xlu0 %v1276, 96
    %v2336 = vpop.permute.xlu0 %2335
    %2337 = vrot.lane.b32.xlu0 %v1279, 96
    %v2338 = vpop.permute.xlu0 %2337
    %2339 = vrot.lane.b32.xlu0 %v1281, 96
    %v2340 = vpop.permute.xlu0 %2339
    %2341 = vrot.lane.b32.xlu0 %v1284, 96
    %v2342 = vpop.permute.xlu0 %2341
    %2343 = vrot.lane.b32.xlu0 %v1286, 96
    %v2344 = vpop.permute.xlu0 %2343
    %2345 = vrot.lane.b32.xlu0 %v1289, 96
    %v2346 = vpop.permute.xlu0 %2345
    %2347 = vrot.lane.b32.xlu0 %v1291, 96
    %v2348 = vpop.permute.xlu0 %2347
    %2365 = vrot.lane.b32.xlu0 %v1254, 80
    %v2366 = vpop.permute.xlu0 %2365
    %2367 = vrot.lane.b32.xlu0 %v1256, 80
    %v2368 = vpop.permute.xlu0 %2367
    %2369 = vrot.lane.b32.xlu0 %v1259, 80
    %v2370 = vpop.permute.xlu0 %2369
    %2371 = vrot.lane.b32.xlu0 %v1261, 80
    %v2372 = vpop.permute.xlu0 %2371
    %2373 = vrot.lane.b32.xlu0 %v1264, 80
    %v2374 = vpop.permute.xlu0 %2373
    %2375 = vrot.lane.b32.xlu0 %v1266, 80
    %v2376 = vpop.permute.xlu0 %2375
    %2377 = vrot.lane.b32.xlu0 %v1269, 80
    %v2378 = vpop.permute.xlu0 %2377
    %2379 = vrot.lane.b32.xlu0 %v1271, 80
    %v2380 = vpop.permute.xlu0 %2379
    %2381 = vrot.lane.b32.xlu0 %v1274, 80
    %v2382 = vpop.permute.xlu0 %2381
    %2383 = vrot.lane.b32.xlu0 %v1276, 80
    %v2384 = vpop.permute.xlu0 %2383
    %2385 = vrot.lane.b32.xlu0 %v1279, 80
    %v2386 = vpop.permute.xlu0 %2385
    %2387 = vrot.lane.b32.xlu0 %v1281, 80
    %v2388 = vpop.permute.xlu0 %2387
    %2389 = vrot.lane.b32.xlu0 %v1284, 80
    %v2390 = vpop.permute.xlu0 %2389
    %2391 = vrot.lane.b32.xlu0 %v1286, 80
    %v2392 = vpop.permute.xlu0 %2391
    %2393 = vrot.lane.b32.xlu0 %v1289, 80
    %v2394 = vpop.permute.xlu0 %2393
    %2395 = vrot.lane.b32.xlu0 %v1291, 80
    %v2396 = vpop.permute.xlu0 %2395
    %2413 = vrot.lane.b32.xlu0 %v1254, 64
    %v2414 = vpop.permute.xlu0 %2413
    %2415 = vrot.lane.b32.xlu0 %v1256, 64
    %v2416 = vpop.permute.xlu0 %2415
    %2417 = vrot.lane.b32.xlu0 %v1259, 64
    %v2418 = vpop.permute.xlu0 %2417
    %2419 = vrot.lane.b32.xlu0 %v1261, 64
    %v2420 = vpop.permute.xlu0 %2419
    %2421 = vrot.lane.b32.xlu0 %v1264, 64
    %v2422 = vpop.permute.xlu0 %2421
    %2423 = vrot.lane.b32.xlu0 %v1266, 64
    %v2424 = vpop.permute.xlu0 %2423
    %2425 = vrot.lane.b32.xlu0 %v1269, 64
    %v2426 = vpop.permute.xlu0 %2425
    %2427 = vrot.lane.b32.xlu0 %v1271, 64
    %v2428 = vpop.permute.xlu0 %2427
    %2429 = vrot.lane.b32.xlu0 %v1274, 64
    %v2430 = vpop.permute.xlu0 %2429
    %2431 = vrot.lane.b32.xlu0 %v1276, 64
    %v2432 = vpop.permute.xlu0 %2431
    %2433 = vrot.lane.b32.xlu0 %v1279, 64
    %v2434 = vpop.permute.xlu0 %2433
    %2435 = vrot.lane.b32.xlu0 %v1281, 64
    %v2436 = vpop.permute.xlu0 %2435
    %2437 = vrot.lane.b32.xlu0 %v1284, 64
    %v2438 = vpop.permute.xlu0 %2437
    %2439 = vrot.lane.b32.xlu0 %v1286, 64
    %v2440 = vpop.permute.xlu0 %2439
    %2441 = vrot.lane.b32.xlu0 %v1289, 64
    %v2442 = vpop.permute.xlu0 %2441
    %2443 = vrot.lane.b32.xlu0 %v1291, 64
    %v2444 = vpop.permute.xlu0 %2443
    %2461 = vrot.lane.b32.xlu0 %v1254, 48
    %v2462 = vpop.permute.xlu0 %2461
    %2463 = vrot.lane.b32.xlu0 %v1256, 48
    %v2464 = vpop.permute.xlu0 %2463
    %2465 = vrot.lane.b32.xlu0 %v1259, 48
    %v2466 = vpop.permute.xlu0 %2465
    %2467 = vrot.lane.b32.xlu0 %v1261, 48
    %v2468 = vpop.permute.xlu0 %2467
    %2469 = vrot.lane.b32.xlu0 %v1264, 48
    %v2470 = vpop.permute.xlu0 %2469
    %2471 = vrot.lane.b32.xlu0 %v1266, 48
    %v2472 = vpop.permute.xlu0 %2471
    %2473 = vrot.lane.b32.xlu0 %v1269, 48
    %v2474 = vpop.permute.xlu0 %2473
    %2475 = vrot.lane.b32.xlu0 %v1271, 48
    %v2476 = vpop.permute.xlu0 %2475
    %2477 = vrot.lane.b32.xlu0 %v1274, 48
    %v2478 = vpop.permute.xlu0 %2477
    %2479 = vrot.lane.b32.xlu0 %v1276, 48
    %v2480 = vpop.permute.xlu0 %2479
    %2481 = vrot.lane.b32.xlu0 %v1279, 48
    %v2482 = vpop.permute.xlu0 %2481
    %2483 = vrot.lane.b32.xlu0 %v1281, 48
    %v2484 = vpop.permute.xlu0 %2483
    %2485 = vrot.lane.b32.xlu0 %v1284, 48
    %v2486 = vpop.permute.xlu0 %2485
    %2487 = vrot.lane.b32.xlu0 %v1286, 48
    %v2488 = vpop.permute.xlu0 %2487
    %2489 = vrot.lane.b32.xlu0 %v1289, 48
    %v2490 = vpop.permute.xlu0 %2489
    %2491 = vrot.lane.b32.xlu0 %v1291, 48
    %v2492 = vpop.permute.xlu0 %2491
    %2509 = vrot.lane.b32.xlu0 %v1254, 32
    %v2510 = vpop.permute.xlu0 %2509
    %2511 = vrot.lane.b32.xlu0 %v1256, 32
    %v2512 = vpop.permute.xlu0 %2511
    %2513 = vrot.lane.b32.xlu0 %v1259, 32
    %v2514 = vpop.permute.xlu0 %2513
    %2515 = vrot.lane.b32.xlu0 %v1261, 32
    %v2516 = vpop.permute.xlu0 %2515
    %2517 = vrot.lane.b32.xlu0 %v1264, 32
    %v2518 = vpop.permute.xlu0 %2517
    %2519 = vrot.lane.b32.xlu0 %v1266, 32
    %v2520 = vpop.permute.xlu0 %2519
    %2521 = vrot.lane.b32.xlu0 %v1269, 32
    %v2522 = vpop.permute.xlu0 %2521
    %2523 = vrot.lane.b32.xlu0 %v1271, 32
    %v2524 = vpop.permute.xlu0 %2523
    %2525 = vrot.lane.b32.xlu0 %v1274, 32
    %v2526 = vpop.permute.xlu0 %2525
    %2527 = vrot.lane.b32.xlu0 %v1276, 32
    %v2528 = vpop.permute.xlu0 %2527
    %2529 = vrot.lane.b32.xlu0 %v1279, 32
    %v2530 = vpop.permute.xlu0 %2529
    %2531 = vrot.lane.b32.xlu0 %v1281, 32
    %v2532 = vpop.permute.xlu0 %2531
    %2533 = vrot.lane.b32.xlu0 %v1284, 32
    %v2534 = vpop.permute.xlu0 %2533
    %2535 = vrot.lane.b32.xlu0 %v1286, 32
    %v2536 = vpop.permute.xlu0 %2535
    %2537 = vrot.lane.b32.xlu0 %v1289, 32
    %v2538 = vpop.permute.xlu0 %2537
    %2539 = vrot.lane.b32.xlu0 %v1291, 32
    %v2540 = vpop.permute.xlu0 %2539
    %2557 = vrot.lane.b32.xlu0 %v1254, 16
    %v2558 = vpop.permute.xlu0 %2557
    %2559 = vrot.lane.b32.xlu0 %v1256, 16
    %v2560 = vpop.permute.xlu0 %2559
    %2561 = vrot.lane.b32.xlu0 %v1259, 16
    %v2562 = vpop.permute.xlu0 %2561
    %2563 = vrot.lane.b32.xlu0 %v1261, 16
    %v2564 = vpop.permute.xlu0 %2563
    %2565 = vrot.lane.b32.xlu0 %v1264, 16
    %v2566 = vpop.permute.xlu0 %2565
    %2567 = vrot.lane.b32.xlu0 %v1266, 16
    %v2568 = vpop.permute.xlu0 %2567
    %2569 = vrot.lane.b32.xlu0 %v1269, 16
    %v2570 = vpop.permute.xlu0 %2569
    %2571 = vrot.lane.b32.xlu0 %v1271, 16
    %v2572 = vpop.permute.xlu0 %2571
    %2573 = vrot.lane.b32.xlu0 %v1274, 16
    %v2574 = vpop.permute.xlu0 %2573
    %2575 = vrot.lane.b32.xlu0 %v1276, 16
    %v2576 = vpop.permute.xlu0 %2575
    %2577 = vrot.lane.b32.xlu0 %v1279, 16
    %v2578 = vpop.permute.xlu0 %2577
    %2579 = vrot.lane.b32.xlu0 %v1281, 16
    %v2580 = vpop.permute.xlu0 %2579
    %2581 = vrot.lane.b32.xlu0 %v1284, 16
    %v2582 = vpop.permute.xlu0 %2581
    %2583 = vrot.lane.b32.xlu0 %v1286, 16
    %v2584 = vpop.permute.xlu0 %2583
    %2585 = vrot.lane.b32.xlu0 %v1289, 16
    %v2586 = vpop.permute.xlu0 %2585
    %2587 = vrot.lane.b32.xlu0 %v1291, 16
    %v2588 = vpop.permute.xlu0 %2587
    %v2605 = vpack.c.bf16 %v1254, %v1254
    %v2606 = vpack.c.bf16 %v1256, %v1256
    %v2607 = vpack.c.bf16 %v1259, %v1259
    %v2608 = vpack.c.bf16 %v1261, %v1261
    %v2609 = vpack.c.bf16 %v1264, %v1264
    %v2610 = vpack.c.bf16 %v1266, %v1266
    %v2611 = vpack.c.bf16 %v1269, %v1269
    %v2612 = vpack.c.bf16 %v1271, %v1271
    %v2613 = vpack.c.bf16 %v1274, %v1274
    %v2614 = vpack.c.bf16 %v1276, %v1276
    %v2615 = vpack.c.bf16 %v1279, %v1279
    %v2616 = vpack.c.bf16 %v1281, %v1281
    %v2617 = vpack.c.bf16 %v1284, %v1284
    %v2618 = vpack.c.bf16 %v1286, %v1286
    %v2619 = vpack.c.bf16 %v1289, %v1289
    %v2620 = vpack.c.bf16 %v1291, %v1291
    %v2621 = vpack.c.bf16 %v2270, %v2270
    %v2622 = vpack.c.bf16 %v2272, %v2272
    %v2623 = vpack.c.bf16 %v2274, %v2274
    %v2624 = vpack.c.bf16 %v2276, %v2276
    %v2625 = vpack.c.bf16 %v2278, %v2278
    %v2626 = vpack.c.bf16 %v2280, %v2280
    %v2627 = vpack.c.bf16 %v2282, %v2282
    %v2628 = vpack.c.bf16 %v2284, %v2284
    %v2629 = vpack.c.bf16 %v2286, %v2286
    %v2630 = vpack.c.bf16 %v2288, %v2288
    %v2631 = vpack.c.bf16 %v2290, %v2290
    %v2632 = vpack.c.bf16 %v2292, %v2292
    %v2633 = vpack.c.bf16 %v2294, %v2294
    %v2634 = vpack.c.bf16 %v2296, %v2296
    %v2635 = vpack.c.bf16 %v2298, %v2298
    %v2636 = vpack.c.bf16 %v2300, %v2300
    %v2637 = vpack.c.bf16 %v2318, %v2318
    %v2638 = vpack.c.bf16 %v2320, %v2320
    %v2639 = vpack.c.bf16 %v2322, %v2322
    %v2640 = vpack.c.bf16 %v2324, %v2324
    %v2641 = vpack.c.bf16 %v2326, %v2326
    %v2642 = vpack.c.bf16 %v2328, %v2328
    %v2643 = vpack.c.bf16 %v2330, %v2330
    %v2644 = vpack.c.bf16 %v2332, %v2332
    %v2645 = vpack.c.bf16 %v2334, %v2334
    %v2646 = vpack.c.bf16 %v2336, %v2336
    %v2647 = vpack.c.bf16 %v2338, %v2338
    %v2648 = vpack.c.bf16 %v2340, %v2340
    %v2649 = vpack.c.bf16 %v2342, %v2342
    %v2650 = vpack.c.bf16 %v2344, %v2344
    %v2651 = vpack.c.bf16 %v2346, %v2346
    %v2652 = vpack.c.bf16 %v2348, %v2348
    %v2653 = vpack.c.bf16 %v2366, %v2366
    %v2654 = vpack.c.bf16 %v2368, %v2368
    %v2655 = vpack.c.bf16 %v2370, %v2370
    %v2656 = vpack.c.bf16 %v2372, %v2372
    %v2657 = vpack.c.bf16 %v2374, %v2374
    %v2658 = vpack.c.bf16 %v2376, %v2376
    %v2659 = vpack.c.bf16 %v2378, %v2378
    %v2660 = vpack.c.bf16 %v2380, %v2380
    %v2661 = vpack.c.bf16 %v2382, %v2382
    %v2662 = vpack.c.bf16 %v2384, %v2384
    %v2663 = vpack.c.bf16 %v2386, %v2386
    %v2664 = vpack.c.bf16 %v2388, %v2388
    %v2665 = vpack.c.bf16 %v2390, %v2390
    %v2666 = vpack.c.bf16 %v2392, %v2392
    %v2667 = vpack.c.bf16 %v2394, %v2394
    %v2668 = vpack.c.bf16 %v2396, %v2396
    %v2669 = vpack.c.bf16 %v2414, %v2414
    %v2670 = vpack.c.bf16 %v2416, %v2416
    %v2671 = vpack.c.bf16 %v2418, %v2418
    %v2672 = vpack.c.bf16 %v2420, %v2420
    %v2673 = vpack.c.bf16 %v2422, %v2422
    %v2674 = vpack.c.bf16 %v2424, %v2424
    %v2675 = vpack.c.bf16 %v2426, %v2426
    %v2676 = vpack.c.bf16 %v2428, %v2428
    %v2677 = vpack.c.bf16 %v2430, %v2430
    %v2678 = vpack.c.bf16 %v2432, %v2432
    %v2679 = vpack.c.bf16 %v2434, %v2434
    %v2680 = vpack.c.bf16 %v2436, %v2436
    %v2681 = vpack.c.bf16 %v2438, %v2438
    %v2682 = vpack.c.bf16 %v2440, %v2440
    %v2683 = vpack.c.bf16 %v2442, %v2442
    %v2684 = vpack.c.bf16 %v2444, %v2444
    %v2685 = vpack.c.bf16 %v2462, %v2462
    %v2686 = vpack.c.bf16 %v2464, %v2464
    %v2687 = vpack.c.bf16 %v2466, %v2466
    %v2688 = vpack.c.bf16 %v2468, %v2468
    %v2689 = vpack.c.bf16 %v2470, %v2470
    %v2690 = vpack.c.bf16 %v2472, %v2472
    %v2691 = vpack.c.bf16 %v2474, %v2474
    %v2692 = vpack.c.bf16 %v2476, %v2476
    %v2693 = vpack.c.bf16 %v2478, %v2478
    %v2694 = vpack.c.bf16 %v2480, %v2480
    %v2695 = vpack.c.bf16 %v2482, %v2482
    %v2696 = vpack.c.bf16 %v2484, %v2484
    %v2697 = vpack.c.bf16 %v2486, %v2486
    %v2698 = vpack.c.bf16 %v2488, %v2488
    %v2699 = vpack.c.bf16 %v2490, %v2490
    %v2700 = vpack.c.bf16 %v2492, %v2492
    %v2701 = vpack.c.bf16 %v2510, %v2510
    %v2702 = vpack.c.bf16 %v2512, %v2512
    %v2703 = vpack.c.bf16 %v2514, %v2514
    %v2704 = vpack.c.bf16 %v2516, %v2516
    %v2705 = vpack.c.bf16 %v2518, %v2518
    %v2706 = vpack.c.bf16 %v2520, %v2520
    %v2707 = vpack.c.bf16 %v2522, %v2522
    %v2708 = vpack.c.bf16 %v2524, %v2524
    %v2709 = vpack.c.bf16 %v2526, %v2526
    %v2710 = vpack.c.bf16 %v2528, %v2528
    %v2711 = vpack.c.bf16 %v2530, %v2530
    %v2712 = vpack.c.bf16 %v2532, %v2532
    %v2713 = vpack.c.bf16 %v2534, %v2534
    %v2714 = vpack.c.bf16 %v2536, %v2536
    %v2715 = vpack.c.bf16 %v2538, %v2538
    %v2716 = vpack.c.bf16 %v2540, %v2540
    %v2717 = vpack.c.bf16 %v2558, %v2558
    %v2718 = vpack.c.bf16 %v2560, %v2560
    %v2719 = vpack.c.bf16 %v2562, %v2562
    %v2720 = vpack.c.bf16 %v2564, %v2564
    %v2721 = vpack.c.bf16 %v2566, %v2566
    %v2722 = vpack.c.bf16 %v2568, %v2568
    %v2723 = vpack.c.bf16 %v2570, %v2570
    %v2724 = vpack.c.bf16 %v2572, %v2572
    %v2725 = vpack.c.bf16 %v2574, %v2574
    %v2726 = vpack.c.bf16 %v2576, %v2576
    %v2727 = vpack.c.bf16 %v2578, %v2578
    %v2728 = vpack.c.bf16 %v2580, %v2580
    %v2729 = vpack.c.bf16 %v2582, %v2582
    %v2730 = vpack.c.bf16 %v2584, %v2584
    %v2731 = vpack.c.bf16 %v2586, %v2586
    %v2732 = vpack.c.bf16 %v2588, %v2588
    %v2735 = vunpack.c.l.b16 %v1645
    %v2736 = vunpack.c.l.b16 %v1646
    %v2737 = vpack.c.b16 %v2736, %v2735
    %v2740 = vunpack.c.l.b16 %v2125
    %v2741 = vunpack.c.l.b16 %v2126
    %v2742 = vpack.c.b16 %v2741, %v2740
    %vm2743 = vcmask 130048
    %v2745 = vsel %vm2743, %v2737, 0
    %v2748 = vsel %vm2743, %v2742, 0
    %2750 = vmatpush.bf16.xpose.msra.mxu0 0
    %2751 = vmatpush.bf16.xpose.msra.mxu0 0
    %2752 = vmatpush.bf16.xpose.msra.mxu0 0
    %2753 = vmatpush.bf16.xpose.msra.mxu0 0
    %2754 = vmatpush.bf16.xpose.msra.mxu0 0
    %2755 = vmatpush.bf16.xpose.msra.mxu0 0
    %2756 = vmatpush.bf16.xpose.msra.mxu0 0
    %2757 = vmatpush.bf16.xpose.msra.mxu0 %v2748
    %2758 = vmatmul.bf16.gmra.mxu0 %v2745
    %v2759 = vpop.f32.mrf.mxu0
    %v2760 = vadd.f32 0.0, %v2759
    %v2761 = vpop.f32.mrf.mxu0
    %v2762 = vadd.f32 0.0, %v2761
    %2763 = vdwg.mxu0
    %v2766 = vunpack.c.l.b16 %v1647
    %v2767 = vunpack.c.l.b16 %v1648
    %v2768 = vpack.c.b16 %v2767, %v2766
    %v2771 = vunpack.c.l.b16 %v2127
    %v2772 = vunpack.c.l.b16 %v2128
    %v2773 = vpack.c.b16 %v2772, %v2771
    %v2775 = vsel %vm2743, %v2768, 0
    %v2778 = vsel %vm2743, %v2773, 0
    %2780 = vmatpush.bf16.xpose.msra.mxu0 0
    %2781 = vmatpush.bf16.xpose.msra.mxu0 0
    %2782 = vmatpush.bf16.xpose.msra.mxu0 0
    %2783 = vmatpush.bf16.xpose.msra.mxu0 0
    %2784 = vmatpush.bf16.xpose.msra.mxu0 0
    %2785 = vmatpush.bf16.xpose.msra.mxu0 0
    %2786 = vmatpush.bf16.xpose.msra.mxu0 0
    %2787 = vmatpush.bf16.xpose.msra.mxu0 %v2778
    %2788 = vmatmul.bf16.gmra.mxu0 %v2775
    %v2789 = vpop.f32.mrf.mxu0
    %v2790 = vadd.f32 0.0, %v2789
    %v2791 = vpop.f32.mrf.mxu0
    %v2792 = vadd.f32 0.0, %v2791
    %2793 = vdwg.mxu0
    %v2796 = vunpack.c.l.b16 %v1649
    %v2797 = vunpack.c.l.b16 %v1650
    %v2798 = vpack.c.b16 %v2797, %v2796
    %v2801 = vunpack.c.l.b16 %v2129
    %v2802 = vunpack.c.l.b16 %v2130
    %v2803 = vpack.c.b16 %v2802, %v2801
    %v2805 = vsel %vm2743, %v2798, 0
    %v2808 = vsel %vm2743, %v2803, 0
    %2810 = vmatpush.bf16.xpose.msra.mxu0 0
    %2811 = vmatpush.bf16.xpose.msra.mxu0 0
    %2812 = vmatpush.bf16.xpose.msra.mxu0 0
    %2813 = vmatpush.bf16.xpose.msra.mxu0 0
    %2814 = vmatpush.bf16.xpose.msra.mxu0 0
    %2815 = vmatpush.bf16.xpose.msra.mxu0 0
    %2816 = vmatpush.bf16.xpose.msra.mxu0 0
    %2817 = vmatpush.bf16.xpose.msra.mxu0 %v2808
    %2818 = vmatmul.bf16.gmra.mxu0 %v2805
    %v2819 = vpop.f32.mrf.mxu0
    %v2820 = vadd.f32 0.0, %v2819
    %v2821 = vpop.f32.mrf.mxu0
    %v2822 = vadd.f32 0.0, %v2821
    %2823 = vdwg.mxu0
    %v2826 = vunpack.c.l.b16 %v1651
    %v2827 = vunpack.c.l.b16 %v1652
    %v2828 = vpack.c.b16 %v2827, %v2826
    %v2831 = vunpack.c.l.b16 %v2131
    %v2832 = vunpack.c.l.b16 %v2132
    %v2833 = vpack.c.b16 %v2832, %v2831
    %v2835 = vsel %vm2743, %v2828, 0
    %v2838 = vsel %vm2743, %v2833, 0
    %2840 = vmatpush.bf16.xpose.msra.mxu0 0
    %2841 = vmatpush.bf16.xpose.msra.mxu0 0
    %2842 = vmatpush.bf16.xpose.msra.mxu0 0
    %2843 = vmatpush.bf16.xpose.msra.mxu0 0
    %2844 = vmatpush.bf16.xpose.msra.mxu0 0
    %2845 = vmatpush.bf16.xpose.msra.mxu0 0
    %2846 = vmatpush.bf16.xpose.msra.mxu0 0
    %2847 = vmatpush.bf16.xpose.msra.mxu0 %v2838
    %2848 = vmatmul.bf16.gmra.mxu0 %v2835
    %v2849 = vpop.f32.mrf.mxu0
    %v2850 = vadd.f32 0.0, %v2849
    %v2851 = vpop.f32.mrf.mxu0
    %v2852 = vadd.f32 0.0, %v2851
    %2853 = vdwg.mxu0
    %v2856 = vunpack.c.l.b16 %v1653
    %v2857 = vunpack.c.l.b16 %v1654
    %v2858 = vpack.c.b16 %v2857, %v2856
    %v2861 = vunpack.c.l.b16 %v2133
    %v2862 = vunpack.c.l.b16 %v2134
    %v2863 = vpack.c.b16 %v2862, %v2861
    %v2865 = vsel %vm2743, %v2858, 0
    %v2868 = vsel %vm2743, %v2863, 0
    %2870 = vmatpush.bf16.xpose.msra.mxu0 0
    %2871 = vmatpush.bf16.xpose.msra.mxu0 0
    %2872 = vmatpush.bf16.xpose.msra.mxu0 0
    %2873 = vmatpush.bf16.xpose.msra.mxu0 0
    %2874 = vmatpush.bf16.xpose.msra.mxu0 0
    %2875 = vmatpush.bf16.xpose.msra.mxu0 0
    %2876 = vmatpush.bf16.xpose.msra.mxu0 0
    %2877 = vmatpush.bf16.xpose.msra.mxu0 %v2868
    %2878 = vmatmul.bf16.gmra.mxu0 %v2865
    %v2879 = vpop.f32.mrf.mxu0
    %v2880 = vadd.f32 0.0, %v2879
    %v2881 = vpop.f32.mrf.mxu0
    %v2882 = vadd.f32 0.0, %v2881
    %2883 = vdwg.mxu0
    %v2886 = vunpack.c.l.b16 %v1655
    %v2887 = vunpack.c.l.b16 %v1656
    %v2888 = vpack.c.b16 %v2887, %v2886
    %v2891 = vunpack.c.l.b16 %v2135
    %v2892 = vunpack.c.l.b16 %v2136
    %v2893 = vpack.c.b16 %v2892, %v2891
    %v2895 = vsel %vm2743, %v2888, 0
    %v2898 = vsel %vm2743, %v2893, 0
    %2900 = vmatpush.bf16.xpose.msra.mxu0 0
    %2901 = vmatpush.bf16.xpose.msra.mxu0 0
    %2902 = vmatpush.bf16.xpose.msra.mxu0 0
    %2903 = vmatpush.bf16.xpose.msra.mxu0 0
    %2904 = vmatpush.bf16.xpose.msra.mxu0 0
    %2905 = vmatpush.bf16.xpose.msra.mxu0 0
    %2906 = vmatpush.bf16.xpose.msra.mxu0 0
    %2907 = vmatpush.bf16.xpose.msra.mxu0 %v2898
    %2908 = vmatmul.bf16.gmra.mxu0 %v2895
    %v2909 = vpop.f32.mrf.mxu0
    %v2910 = vadd.f32 0.0, %v2909
    %v2911 = vpop.f32.mrf.mxu0
    %v2912 = vadd.f32 0.0, %v2911
    %2913 = vdwg.mxu0
    %v2916 = vunpack.c.l.b16 %v1657
    %v2917 = vunpack.c.l.b16 %v1658
    %v2918 = vpack.c.b16 %v2917, %v2916
    %v2921 = vunpack.c.l.b16 %v2137
    %v2922 = vunpack.c.l.b16 %v2138
    %v2923 = vpack.c.b16 %v2922, %v2921
    %v2925 = vsel %vm2743, %v2918, 0
    %v2928 = vsel %vm2743, %v2923, 0
    %2930 = vmatpush.bf16.xpose.msra.mxu0 0
    %2931 = vmatpush.bf16.xpose.msra.mxu0 0
    %2932 = vmatpush.bf16.xpose.msra.mxu0 0
    %2933 = vmatpush.bf16.xpose.msra.mxu0 0
    %2934 = vmatpush.bf16.xpose.msra.mxu0 0
    %2935 = vmatpush.bf16.xpose.msra.mxu0 0
    %2936 = vmatpush.bf16.xpose.msra.mxu0 0
    %2937 = vmatpush.bf16.xpose.msra.mxu0 %v2928
    %2938 = vmatmul.bf16.gmra.mxu0 %v2925
    %v2939 = vpop.f32.mrf.mxu0
    %v2940 = vadd.f32 0.0, %v2939
    %v2941 = vpop.f32.mrf.mxu0
    %v2942 = vadd.f32 0.0, %v2941
    %2943 = vdwg.mxu0
    %v2946 = vunpack.c.l.b16 %v1659
    %v2947 = vunpack.c.l.b16 %v1660
    %v2948 = vpack.c.b16 %v2947, %v2946
    %v2951 = vunpack.c.l.b16 %v2139
    %v2952 = vunpack.c.l.b16 %v2140
    %v2953 = vpack.c.b16 %v2952, %v2951
    %v2955 = vsel %vm2743, %v2948, 0
    %v2958 = vsel %vm2743, %v2953, 0
    %2960 = vmatpush.bf16.xpose.msra.mxu0 0
    %2961 = vmatpush.bf16.xpose.msra.mxu0 0
    %2962 = vmatpush.bf16.xpose.msra.mxu0 0
    %2963 = vmatpush.bf16.xpose.msra.mxu0 0
    %2964 = vmatpush.bf16.xpose.msra.mxu0 0
    %2965 = vmatpush.bf16.xpose.msra.mxu0 0
    %2966 = vmatpush.bf16.xpose.msra.mxu0 0
    %2967 = vmatpush.bf16.xpose.msra.mxu0 %v2958
    %2968 = vmatmul.bf16.gmra.mxu0 %v2955
    %v2969 = vpop.f32.mrf.mxu0
    %v2970 = vadd.f32 0.0, %v2969
    %v2971 = vpop.f32.mrf.mxu0
    %v2972 = vadd.f32 0.0, %v2971
    %2973 = vdwg.mxu0
    %v2976 = vunpack.c.l.b16 %v1661
    %v2977 = vunpack.c.l.b16 %v1662
    %v2978 = vpack.c.b16 %v2977, %v2976
    %v2981 = vunpack.c.l.b16 %v2141
    %v2982 = vunpack.c.l.b16 %v2142
    %v2983 = vpack.c.b16 %v2982, %v2981
    %v2985 = vsel %vm2743, %v2978, 0
    %v2988 = vsel %vm2743, %v2983, 0
    %2990 = vmatpush.bf16.xpose.msra.mxu0 0
    %2991 = vmatpush.bf16.xpose.msra.mxu0 0
    %2992 = vmatpush.bf16.xpose.msra.mxu0 0
    %2993 = vmatpush.bf16.xpose.msra.mxu0 0
    %2994 = vmatpush.bf16.xpose.msra.mxu0 0
    %2995 = vmatpush.bf16.xpose.msra.mxu0 0
    %2996 = vmatpush.bf16.xpose.msra.mxu0 0
    %2997 = vmatpush.bf16.xpose.msra.mxu0 %v2988
    %2998 = vmatmul.bf16.gmra.mxu0 %v2985
    %v2999 = vpop.f32.mrf.mxu0
    %v3000 = vadd.f32 0.0, %v2999
    %v3001 = vpop.f32.mrf.mxu0
    %v3002 = vadd.f32 0.0, %v3001
    %3003 = vdwg.mxu0
    %v3006 = vunpack.c.l.b16 %v1663
    %v3007 = vunpack.c.l.b16 %v1664
    %v3008 = vpack.c.b16 %v3007, %v3006
    %v3011 = vunpack.c.l.b16 %v2143
    %v3012 = vunpack.c.l.b16 %v2144
    %v3013 = vpack.c.b16 %v3012, %v3011
    %v3015 = vsel %vm2743, %v3008, 0
    %v3018 = vsel %vm2743, %v3013, 0
    %3020 = vmatpush.bf16.xpose.msra.mxu0 0
    %3021 = vmatpush.bf16.xpose.msra.mxu0 0
    %3022 = vmatpush.bf16.xpose.msra.mxu0 0
    %3023 = vmatpush.bf16.xpose.msra.mxu0 0
    %3024 = vmatpush.bf16.xpose.msra.mxu0 0
    %3025 = vmatpush.bf16.xpose.msra.mxu0 0
    %3026 = vmatpush.bf16.xpose.msra.mxu0 0
    %3027 = vmatpush.bf16.xpose.msra.mxu0 %v3018
    %3028 = vmatmul.bf16.gmra.mxu0 %v3015
    %v3029 = vpop.f32.mrf.mxu0
    %v3030 = vadd.f32 0.0, %v3029
    %v3031 = vpop.f32.mrf.mxu0
    %v3032 = vadd.f32 0.0, %v3031
    %3033 = vdwg.mxu0
    %v3036 = vunpack.c.l.b16 %v1665
    %v3037 = vunpack.c.l.b16 %v1666
    %v3038 = vpack.c.b16 %v3037, %v3036
    %v3041 = vunpack.c.l.b16 %v2145
    %v3042 = vunpack.c.l.b16 %v2146
    %v3043 = vpack.c.b16 %v3042, %v3041
    %v3045 = vsel %vm2743, %v3038, 0
    %v3048 = vsel %vm2743, %v3043, 0
    %3050 = vmatpush.bf16.xpose.msra.mxu0 0
    %3051 = vmatpush.bf16.xpose.msra.mxu0 0
    %3052 = vmatpush.bf16.xpose.msra.mxu0 0
    %3053 = vmatpush.bf16.xpose.msra.mxu0 0
    %3054 = vmatpush.bf16.xpose.msra.mxu0 0
    %3055 = vmatpush.bf16.xpose.msra.mxu0 0
    %3056 = vmatpush.bf16.xpose.msra.mxu0 0
    %3057 = vmatpush.bf16.xpose.msra.mxu0 %v3048
    %3058 = vmatmul.bf16.gmra.mxu0 %v3045
    %v3059 = vpop.f32.mrf.mxu0
    %v3060 = vadd.f32 0.0, %v3059
    %v3061 = vpop.f32.mrf.mxu0
    %v3062 = vadd.f32 0.0, %v3061
    %3063 = vdwg.mxu0
    %v3066 = vunpack.c.l.b16 %v1667
    %v3067 = vunpack.c.l.b16 %v1668
    %v3068 = vpack.c.b16 %v3067, %v3066
    %v3071 = vunpack.c.l.b16 %v2147
    %v3072 = vunpack.c.l.b16 %v2148
    %v3073 = vpack.c.b16 %v3072, %v3071
    %v3075 = vsel %vm2743, %v3068, 0
    %v3078 = vsel %vm2743, %v3073, 0
    %3080 = vmatpush.bf16.xpose.msra.mxu0 0
    %3081 = vmatpush.bf16.xpose.msra.mxu0 0
    %3082 = vmatpush.bf16.xpose.msra.mxu0 0
    %3083 = vmatpush.bf16.xpose.msra.mxu0 0
    %3084 = vmatpush.bf16.xpose.msra.mxu0 0
    %3085 = vmatpush.bf16.xpose.msra.mxu0 0
    %3086 = vmatpush.bf16.xpose.msra.mxu0 0
    %3087 = vmatpush.bf16.xpose.msra.mxu0 %v3078
    %3088 = vmatmul.bf16.gmra.mxu0 %v3075
    %v3089 = vpop.f32.mrf.mxu0
    %v3090 = vadd.f32 0.0, %v3089
    %v3091 = vpop.f32.mrf.mxu0
    %v3092 = vadd.f32 0.0, %v3091
    %3093 = vdwg.mxu0
    %v3096 = vunpack.c.l.b16 %v1669
    %v3097 = vunpack.c.l.b16 %v1670
    %v3098 = vpack.c.b16 %v3097, %v3096
    %v3101 = vunpack.c.l.b16 %v2149
    %v3102 = vunpack.c.l.b16 %v2150
    %v3103 = vpack.c.b16 %v3102, %v3101
    %v3105 = vsel %vm2743, %v3098, 0
    %v3108 = vsel %vm2743, %v3103, 0
    %3110 = vmatpush.bf16.xpose.msra.mxu0 0
    %3111 = vmatpush.bf16.xpose.msra.mxu0 0
    %3112 = vmatpush.bf16.xpose.msra.mxu0 0
    %3113 = vmatpush.bf16.xpose.msra.mxu0 0
    %3114 = vmatpush.bf16.xpose.msra.mxu0 0
    %3115 = vmatpush.bf16.xpose.msra.mxu0 0
    %3116 = vmatpush.bf16.xpose.msra.mxu0 0
    %3117 = vmatpush.bf16.xpose.msra.mxu0 %v3108
    %3118 = vmatmul.bf16.gmra.mxu0 %v3105
    %v3119 = vpop.f32.mrf.mxu0
    %v3120 = vadd.f32 0.0, %v3119
    %v3121 = vpop.f32.mrf.mxu0
    %v3122 = vadd.f32 0.0, %v3121
    %3123 = vdwg.mxu0
    %v3126 = vunpack.c.l.b16 %v1671
    %v3127 = vunpack.c.l.b16 %v1672
    %v3128 = vpack.c.b16 %v3127, %v3126
    %v3131 = vunpack.c.l.b16 %v2151
    %v3132 = vunpack.c.l.b16 %v2152
    %v3133 = vpack.c.b16 %v3132, %v3131
    %v3135 = vsel %vm2743, %v3128, 0
    %v3138 = vsel %vm2743, %v3133, 0
    %3140 = vmatpush.bf16.xpose.msra.mxu0 0
    %3141 = vmatpush.bf16.xpose.msra.mxu0 0
    %3142 = vmatpush.bf16.xpose.msra.mxu0 0
    %3143 = vmatpush.bf16.xpose.msra.mxu0 0
    %3144 = vmatpush.bf16.xpose.msra.mxu0 0
    %3145 = vmatpush.bf16.xpose.msra.mxu0 0
    %3146 = vmatpush.bf16.xpose.msra.mxu0 0
    %3147 = vmatpush.bf16.xpose.msra.mxu0 %v3138
    %3148 = vmatmul.bf16.gmra.mxu0 %v3135
    %v3149 = vpop.f32.mrf.mxu0
    %v3150 = vadd.f32 0.0, %v3149
    %v3151 = vpop.f32.mrf.mxu0
    %v3152 = vadd.f32 0.0, %v3151
    %3153 = vdwg.mxu0
    %v3156 = vunpack.c.l.b16 %v1673
    %v3157 = vunpack.c.l.b16 %v1674
    %v3158 = vpack.c.b16 %v3157, %v3156
    %v3161 = vunpack.c.l.b16 %v2153
    %v3162 = vunpack.c.l.b16 %v2154
    %v3163 = vpack.c.b16 %v3162, %v3161
    %v3165 = vsel %vm2743, %v3158, 0
    %v3168 = vsel %vm2743, %v3163, 0
    %3170 = vmatpush.bf16.xpose.msra.mxu0 0
    %3171 = vmatpush.bf16.xpose.msra.mxu0 0
    %3172 = vmatpush.bf16.xpose.msra.mxu0 0
    %3173 = vmatpush.bf16.xpose.msra.mxu0 0
    %3174 = vmatpush.bf16.xpose.msra.mxu0 0
    %3175 = vmatpush.bf16.xpose.msra.mxu0 0
    %3176 = vmatpush.bf16.xpose.msra.mxu0 0
    %3177 = vmatpush.bf16.xpose.msra.mxu0 %v3168
    %3178 = vmatmul.bf16.gmra.mxu0 %v3165
    %v3179 = vpop.f32.mrf.mxu0
    %v3180 = vadd.f32 0.0, %v3179
    %v3181 = vpop.f32.mrf.mxu0
    %v3182 = vadd.f32 0.0, %v3181
    %3183 = vdwg.mxu0
    %v3186 = vunpack.c.l.b16 %v1675
    %v3187 = vunpack.c.l.b16 %v1676
    %v3188 = vpack.c.b16 %v3187, %v3186
    %v3191 = vunpack.c.l.b16 %v2155
    %v3192 = vunpack.c.l.b16 %v2156
    %v3193 = vpack.c.b16 %v3192, %v3191
    %v3195 = vsel %vm2743, %v3188, 0
    %v3198 = vsel %vm2743, %v3193, 0
    %3200 = vmatpush.bf16.xpose.msra.mxu0 0
    %3201 = vmatpush.bf16.xpose.msra.mxu0 0
    %3202 = vmatpush.bf16.xpose.msra.mxu0 0
    %3203 = vmatpush.bf16.xpose.msra.mxu0 0
    %3204 = vmatpush.bf16.xpose.msra.mxu0 0
    %3205 = vmatpush.bf16.xpose.msra.mxu0 0
    %3206 = vmatpush.bf16.xpose.msra.mxu0 0
    %3207 = vmatpush.bf16.xpose.msra.mxu0 %v3198
    %3208 = vmatmul.bf16.gmra.mxu0 %v3195
    %v3209 = vpop.f32.mrf.mxu0
    %v3210 = vadd.f32 0.0, %v3209
    %v3211 = vpop.f32.mrf.mxu0
    %v3212 = vadd.f32 0.0, %v3211
    %3213 = vdwg.mxu0
    %v3216 = vunpack.c.l.b16 %v1677
    %v3217 = vunpack.c.l.b16 %v1678
    %v3218 = vpack.c.b16 %v3217, %v3216
    %v3221 = vunpack.c.l.b16 %v2157
    %v3222 = vunpack.c.l.b16 %v2158
    %v3223 = vpack.c.b16 %v3222, %v3221
    %v3225 = vsel %vm2743, %v3218, 0
    %v3228 = vsel %vm2743, %v3223, 0
    %3230 = vmatpush.bf16.xpose.msra.mxu0 0
    %3231 = vmatpush.bf16.xpose.msra.mxu0 0
    %3232 = vmatpush.bf16.xpose.msra.mxu0 0
    %3233 = vmatpush.bf16.xpose.msra.mxu0 0
    %3234 = vmatpush.bf16.xpose.msra.mxu0 0
    %3235 = vmatpush.bf16.xpose.msra.mxu0 0
    %3236 = vmatpush.bf16.xpose.msra.mxu0 0
    %3237 = vmatpush.bf16.xpose.msra.mxu0 %v3228
    %3238 = vmatmul.bf16.gmra.mxu0 %v3225
    %v3239 = vpop.f32.mrf.mxu0
    %v3240 = vadd.f32 0.0, %v3239
    %v3241 = vpop.f32.mrf.mxu0
    %v3242 = vadd.f32 0.0, %v3241
    %3243 = vdwg.mxu0
    %v3246 = vunpack.c.l.b16 %v1679
    %v3247 = vunpack.c.l.b16 %v1680
    %v3248 = vpack.c.b16 %v3247, %v3246
    %v3251 = vunpack.c.l.b16 %v2159
    %v3252 = vunpack.c.l.b16 %v2160
    %v3253 = vpack.c.b16 %v3252, %v3251
    %v3255 = vsel %vm2743, %v3248, 0
    %v3258 = vsel %vm2743, %v3253, 0
    %3260 = vmatpush.bf16.xpose.msra.mxu0 0
    %3261 = vmatpush.bf16.xpose.msra.mxu0 0
    %3262 = vmatpush.bf16.xpose.msra.mxu0 0
    %3263 = vmatpush.bf16.xpose.msra.mxu0 0
    %3264 = vmatpush.bf16.xpose.msra.mxu0 0
    %3265 = vmatpush.bf16.xpose.msra.mxu0 0
    %3266 = vmatpush.bf16.xpose.msra.mxu0 0
    %3267 = vmatpush.bf16.xpose.msra.mxu0 %v3258
    %3268 = vmatmul.bf16.gmra.mxu0 %v3255
    %v3269 = vpop.f32.mrf.mxu0
    %v3270 = vadd.f32 0.0, %v3269
    %v3271 = vpop.f32.mrf.mxu0
    %v3272 = vadd.f32 0.0, %v3271
    %3273 = vdwg.mxu0
    %v3276 = vunpack.c.l.b16 %v1681
    %v3277 = vunpack.c.l.b16 %v1682
    %v3278 = vpack.c.b16 %v3277, %v3276
    %v3281 = vunpack.c.l.b16 %v2161
    %v3282 = vunpack.c.l.b16 %v2162
    %v3283 = vpack.c.b16 %v3282, %v3281
    %v3285 = vsel %vm2743, %v3278, 0
    %v3288 = vsel %vm2743, %v3283, 0
    %3290 = vmatpush.bf16.xpose.msra.mxu0 0
    %3291 = vmatpush.bf16.xpose.msra.mxu0 0
    %3292 = vmatpush.bf16.xpose.msra.mxu0 0
    %3293 = vmatpush.bf16.xpose.msra.mxu0 0
    %3294 = vmatpush.bf16.xpose.msra.mxu0 0
    %3295 = vmatpush.bf16.xpose.msra.mxu0 0
    %3296 = vmatpush.bf16.xpose.msra.mxu0 0
    %3297 = vmatpush.bf16.xpose.msra.mxu0 %v3288
    %3298 = vmatmul.bf16.gmra.mxu0 %v3285
    %v3299 = vpop.f32.mrf.mxu0
    %v3300 = vadd.f32 0.0, %v3299
    %v3301 = vpop.f32.mrf.mxu0
    %v3302 = vadd.f32 0.0, %v3301
    %3303 = vdwg.mxu0
    %v3306 = vunpack.c.l.b16 %v1683
    %v3307 = vunpack.c.l.b16 %v1684
    %v3308 = vpack.c.b16 %v3307, %v3306
    %v3311 = vunpack.c.l.b16 %v2163
    %v3312 = vunpack.c.l.b16 %v2164
    %v3313 = vpack.c.b16 %v3312, %v3311
    %v3315 = vsel %vm2743, %v3308, 0
    %v3318 = vsel %vm2743, %v3313, 0
    %3320 = vmatpush.bf16.xpose.msra.mxu0 0
    %3321 = vmatpush.bf16.xpose.msra.mxu0 0
    %3322 = vmatpush.bf16.xpose.msra.mxu0 0
    %3323 = vmatpush.bf16.xpose.msra.mxu0 0
    %3324 = vmatpush.bf16.xpose.msra.mxu0 0
    %3325 = vmatpush.bf16.xpose.msra.mxu0 0
    %3326 = vmatpush.bf16.xpose.msra.mxu0 0
    %3327 = vmatpush.bf16.xpose.msra.mxu0 %v3318
    %3328 = vmatmul.bf16.gmra.mxu0 %v3315
    %v3329 = vpop.f32.mrf.mxu0
    %v3330 = vadd.f32 0.0, %v3329
    %v3331 = vpop.f32.mrf.mxu0
    %v3332 = vadd.f32 0.0, %v3331
    %3333 = vdwg.mxu0
    %v3336 = vunpack.c.l.b16 %v1685
    %v3337 = vunpack.c.l.b16 %v1686
    %v3338 = vpack.c.b16 %v3337, %v3336
    %v3341 = vunpack.c.l.b16 %v2165
    %v3342 = vunpack.c.l.b16 %v2166
    %v3343 = vpack.c.b16 %v3342, %v3341
    %v3345 = vsel %vm2743, %v3338, 0
    %v3348 = vsel %vm2743, %v3343, 0
    %3350 = vmatpush.bf16.xpose.msra.mxu0 0
    %3351 = vmatpush.bf16.xpose.msra.mxu0 0
    %3352 = vmatpush.bf16.xpose.msra.mxu0 0
    %3353 = vmatpush.bf16.xpose.msra.mxu0 0
    %3354 = vmatpush.bf16.xpose.msra.mxu0 0
    %3355 = vmatpush.bf16.xpose.msra.mxu0 0
    %3356 = vmatpush.bf16.xpose.msra.mxu0 0
    %3357 = vmatpush.bf16.xpose.msra.mxu0 %v3348
    %3358 = vmatmul.bf16.gmra.mxu0 %v3345
    %v3359 = vpop.f32.mrf.mxu0
    %v3360 = vadd.f32 0.0, %v3359
    %v3361 = vpop.f32.mrf.mxu0
    %v3362 = vadd.f32 0.0, %v3361
    %3363 = vdwg.mxu0
    %v3366 = vunpack.c.l.b16 %v1687
    %v3367 = vunpack.c.l.b16 %v1688
    %v3368 = vpack.c.b16 %v3367, %v3366
    %v3371 = vunpack.c.l.b16 %v2167
    %v3372 = vunpack.c.l.b16 %v2168
    %v3373 = vpack.c.b16 %v3372, %v3371
    %v3375 = vsel %vm2743, %v3368, 0
    %v3378 = vsel %vm2743, %v3373, 0
    %3380 = vmatpush.bf16.xpose.msra.mxu0 0
    %3381 = vmatpush.bf16.xpose.msra.mxu0 0
    %3382 = vmatpush.bf16.xpose.msra.mxu0 0
    %3383 = vmatpush.bf16.xpose.msra.mxu0 0
    %3384 = vmatpush.bf16.xpose.msra.mxu0 0
    %3385 = vmatpush.bf16.xpose.msra.mxu0 0
    %3386 = vmatpush.bf16.xpose.msra.mxu0 0
    %3387 = vmatpush.bf16.xpose.msra.mxu0 %v3378
    %3388 = vmatmul.bf16.gmra.mxu0 %v3375
    %v3389 = vpop.f32.mrf.mxu0
    %v3390 = vadd.f32 0.0, %v3389
    %v3391 = vpop.f32.mrf.mxu0
    %v3392 = vadd.f32 0.0, %v3391
    %3393 = vdwg.mxu0
    %v3396 = vunpack.c.l.b16 %v1689
    %v3397 = vunpack.c.l.b16 %v1690
    %v3398 = vpack.c.b16 %v3397, %v3396
    %v3401 = vunpack.c.l.b16 %v2169
    %v3402 = vunpack.c.l.b16 %v2170
    %v3403 = vpack.c.b16 %v3402, %v3401
    %v3405 = vsel %vm2743, %v3398, 0
    %v3408 = vsel %vm2743, %v3403, 0
    %3410 = vmatpush.bf16.xpose.msra.mxu0 0
    %3411 = vmatpush.bf16.xpose.msra.mxu0 0
    %3412 = vmatpush.bf16.xpose.msra.mxu0 0
    %3413 = vmatpush.bf16.xpose.msra.mxu0 0
    %3414 = vmatpush.bf16.xpose.msra.mxu0 0
    %3415 = vmatpush.bf16.xpose.msra.mxu0 0
    %3416 = vmatpush.bf16.xpose.msra.mxu0 0
    %3417 = vmatpush.bf16.xpose.msra.mxu0 %v3408
    %3418 = vmatmul.bf16.gmra.mxu0 %v3405
    %v3419 = vpop.f32.mrf.mxu0
    %v3420 = vadd.f32 0.0, %v3419
    %v3421 = vpop.f32.mrf.mxu0
    %v3422 = vadd.f32 0.0, %v3421
    %3423 = vdwg.mxu0
    %v3426 = vunpack.c.l.b16 %v1691
    %v3427 = vunpack.c.l.b16 %v1692
    %v3428 = vpack.c.b16 %v3427, %v3426
    %v3431 = vunpack.c.l.b16 %v2171
    %v3432 = vunpack.c.l.b16 %v2172
    %v3433 = vpack.c.b16 %v3432, %v3431
    %v3435 = vsel %vm2743, %v3428, 0
    %v3438 = vsel %vm2743, %v3433, 0
    %3440 = vmatpush.bf16.xpose.msra.mxu0 0
    %3441 = vmatpush.bf16.xpose.msra.mxu0 0
    %3442 = vmatpush.bf16.xpose.msra.mxu0 0
    %3443 = vmatpush.bf16.xpose.msra.mxu0 0
    %3444 = vmatpush.bf16.xpose.msra.mxu0 0
    %3445 = vmatpush.bf16.xpose.msra.mxu0 0
    %3446 = vmatpush.bf16.xpose.msra.mxu0 0
    %3447 = vmatpush.bf16.xpose.msra.mxu0 %v3438
    %3448 = vmatmul.bf16.gmra.mxu0 %v3435
    %v3449 = vpop.f32.mrf.mxu0
    %v3450 = vadd.f32 0.0, %v3449
    %v3451 = vpop.f32.mrf.mxu0
    %v3452 = vadd.f32 0.0, %v3451
    %3453 = vdwg.mxu0
    %v3456 = vunpack.c.l.b16 %v1693
    %v3457 = vunpack.c.l.b16 %v1694
    %v3458 = vpack.c.b16 %v3457, %v3456
    %v3461 = vunpack.c.l.b16 %v2173
    %v3462 = vunpack.c.l.b16 %v2174
    %v3463 = vpack.c.b16 %v3462, %v3461
    %v3465 = vsel %vm2743, %v3458, 0
    %v3468 = vsel %vm2743, %v3463, 0
    %3470 = vmatpush.bf16.xpose.msra.mxu0 0
    %3471 = vmatpush.bf16.xpose.msra.mxu0 0
    %3472 = vmatpush.bf16.xpose.msra.mxu0 0
    %3473 = vmatpush.bf16.xpose.msra.mxu0 0
    %3474 = vmatpush.bf16.xpose.msra.mxu0 0
    %3475 = vmatpush.bf16.xpose.msra.mxu0 0
    %3476 = vmatpush.bf16.xpose.msra.mxu0 0
    %3477 = vmatpush.bf16.xpose.msra.mxu0 %v3468
    %3478 = vmatmul.bf16.gmra.mxu0 %v3465
    %v3479 = vpop.f32.mrf.mxu0
    %v3480 = vadd.f32 0.0, %v3479
    %v3481 = vpop.f32.mrf.mxu0
    %v3482 = vadd.f32 0.0, %v3481
    %3483 = vdwg.mxu0
    %v3486 = vunpack.c.l.b16 %v1695
    %v3487 = vunpack.c.l.b16 %v1696
    %v3488 = vpack.c.b16 %v3487, %v3486
    %v3491 = vunpack.c.l.b16 %v2175
    %v3492 = vunpack.c.l.b16 %v2176
    %v3493 = vpack.c.b16 %v3492, %v3491
    %v3495 = vsel %vm2743, %v3488, 0
    %v3498 = vsel %vm2743, %v3493, 0
    %3500 = vmatpush.bf16.xpose.msra.mxu0 0
    %3501 = vmatpush.bf16.xpose.msra.mxu0 0
    %3502 = vmatpush.bf16.xpose.msra.mxu0 0
    %3503 = vmatpush.bf16.xpose.msra.mxu0 0
    %3504 = vmatpush.bf16.xpose.msra.mxu0 0
    %3505 = vmatpush.bf16.xpose.msra.mxu0 0
    %3506 = vmatpush.bf16.xpose.msra.mxu0 0
    %3507 = vmatpush.bf16.xpose.msra.mxu0 %v3498
    %3508 = vmatmul.bf16.gmra.mxu0 %v3495
    %v3509 = vpop.f32.mrf.mxu0
    %v3510 = vadd.f32 0.0, %v3509
    %v3511 = vpop.f32.mrf.mxu0
    %v3512 = vadd.f32 0.0, %v3511
    %3513 = vdwg.mxu0
    %v3516 = vunpack.c.l.b16 %v1697
    %v3517 = vunpack.c.l.b16 %v1698
    %v3518 = vpack.c.b16 %v3517, %v3516
    %v3521 = vunpack.c.l.b16 %v2177
    %v3522 = vunpack.c.l.b16 %v2178
    %v3523 = vpack.c.b16 %v3522, %v3521
    %v3525 = vsel %vm2743, %v3518, 0
    %v3528 = vsel %vm2743, %v3523, 0
    %3530 = vmatpush.bf16.xpose.msra.mxu0 0
    %3531 = vmatpush.bf16.xpose.msra.mxu0 0
    %3532 = vmatpush.bf16.xpose.msra.mxu0 0
    %3533 = vmatpush.bf16.xpose.msra.mxu0 0
    %3534 = vmatpush.bf16.xpose.msra.mxu0 0
    %3535 = vmatpush.bf16.xpose.msra.mxu0 0
    %3536 = vmatpush.bf16.xpose.msra.mxu0 0
    %3537 = vmatpush.bf16.xpose.msra.mxu0 %v3528
    %3538 = vmatmul.bf16.gmra.mxu0 %v3525
    %v3539 = vpop.f32.mrf.mxu0
    %v3540 = vadd.f32 0.0, %v3539
    %v3541 = vpop.f32.mrf.mxu0
    %v3542 = vadd.f32 0.0, %v3541
    %3543 = vdwg.mxu0
    %v3546 = vunpack.c.l.b16 %v1699
    %v3547 = vunpack.c.l.b16 %v1700
    %v3548 = vpack.c.b16 %v3547, %v3546
    %v3551 = vunpack.c.l.b16 %v2179
    %v3552 = vunpack.c.l.b16 %v2180
    %v3553 = vpack.c.b16 %v3552, %v3551
    %v3555 = vsel %vm2743, %v3548, 0
    %v3558 = vsel %vm2743, %v3553, 0
    %3560 = vmatpush.bf16.xpose.msra.mxu0 0
    %3561 = vmatpush.bf16.xpose.msra.mxu0 0
    %3562 = vmatpush.bf16.xpose.msra.mxu0 0
    %3563 = vmatpush.bf16.xpose.msra.mxu0 0
    %3564 = vmatpush.bf16.xpose.msra.mxu0 0
    %3565 = vmatpush.bf16.xpose.msra.mxu0 0
    %3566 = vmatpush.bf16.xpose.msra.mxu0 0
    %3567 = vmatpush.bf16.xpose.msra.mxu0 %v3558
    %3568 = vmatmul.bf16.gmra.mxu0 %v3555
    %v3569 = vpop.f32.mrf.mxu0
    %v3570 = vadd.f32 0.0, %v3569
    %v3571 = vpop.f32.mrf.mxu0
    %v3572 = vadd.f32 0.0, %v3571
    %3573 = vdwg.mxu0
    %v3576 = vunpack.c.l.b16 %v1701
    %v3577 = vunpack.c.l.b16 %v1702
    %v3578 = vpack.c.b16 %v3577, %v3576
    %v3581 = vunpack.c.l.b16 %v2181
    %v3582 = vunpack.c.l.b16 %v2182
    %v3583 = vpack.c.b16 %v3582, %v3581
    %v3585 = vsel %vm2743, %v3578, 0
    %v3588 = vsel %vm2743, %v3583, 0
    %3590 = vmatpush.bf16.xpose.msra.mxu0 0
    %3591 = vmatpush.bf16.xpose.msra.mxu0 0
    %3592 = vmatpush.bf16.xpose.msra.mxu0 0
    %3593 = vmatpush.bf16.xpose.msra.mxu0 0
    %3594 = vmatpush.bf16.xpose.msra.mxu0 0
    %3595 = vmatpush.bf16.xpose.msra.mxu0 0
    %3596 = vmatpush.bf16.xpose.msra.mxu0 0
    %3597 = vmatpush.bf16.xpose.msra.mxu0 %v3588
    %3598 = vmatmul.bf16.gmra.mxu0 %v3585
    %v3599 = vpop.f32.mrf.mxu0
    %v3600 = vadd.f32 0.0, %v3599
    %v3601 = vpop.f32.mrf.mxu0
    %v3602 = vadd.f32 0.0, %v3601
    %3603 = vdwg.mxu0
    %v3606 = vunpack.c.l.b16 %v1703
    %v3607 = vunpack.c.l.b16 %v1704
    %v3608 = vpack.c.b16 %v3607, %v3606
    %v3611 = vunpack.c.l.b16 %v2183
    %v3612 = vunpack.c.l.b16 %v2184
    %v3613 = vpack.c.b16 %v3612, %v3611
    %v3615 = vsel %vm2743, %v3608, 0
    %v3618 = vsel %vm2743, %v3613, 0
    %3620 = vmatpush.bf16.xpose.msra.mxu0 0
    %3621 = vmatpush.bf16.xpose.msra.mxu0 0
    %3622 = vmatpush.bf16.xpose.msra.mxu0 0
    %3623 = vmatpush.bf16.xpose.msra.mxu0 0
    %3624 = vmatpush.bf16.xpose.msra.mxu0 0
    %3625 = vmatpush.bf16.xpose.msra.mxu0 0
    %3626 = vmatpush.bf16.xpose.msra.mxu0 0
    %3627 = vmatpush.bf16.xpose.msra.mxu0 %v3618
    %3628 = vmatmul.bf16.gmra.mxu0 %v3615
    %v3629 = vpop.f32.mrf.mxu0
    %v3630 = vadd.f32 0.0, %v3629
    %v3631 = vpop.f32.mrf.mxu0
    %v3632 = vadd.f32 0.0, %v3631
    %3633 = vdwg.mxu0
    %v3636 = vunpack.c.l.b16 %v1705
    %v3637 = vunpack.c.l.b16 %v1706
    %v3638 = vpack.c.b16 %v3637, %v3636
    %v3641 = vunpack.c.l.b16 %v2185
    %v3642 = vunpack.c.l.b16 %v2186
    %v3643 = vpack.c.b16 %v3642, %v3641
    %v3645 = vsel %vm2743, %v3638, 0
    %v3648 = vsel %vm2743, %v3643, 0
    %3650 = vmatpush.bf16.xpose.msra.mxu0 0
    %3651 = vmatpush.bf16.xpose.msra.mxu0 0
    %3652 = vmatpush.bf16.xpose.msra.mxu0 0
    %3653 = vmatpush.bf16.xpose.msra.mxu0 0
    %3654 = vmatpush.bf16.xpose.msra.mxu0 0
    %3655 = vmatpush.bf16.xpose.msra.mxu0 0
    %3656 = vmatpush.bf16.xpose.msra.mxu0 0
    %3657 = vmatpush.bf16.xpose.msra.mxu0 %v3648
    %3658 = vmatmul.bf16.gmra.mxu0 %v3645
    %v3659 = vpop.f32.mrf.mxu0
    %v3660 = vadd.f32 0.0, %v3659
    %v3661 = vpop.f32.mrf.mxu0
    %v3662 = vadd.f32 0.0, %v3661
    %3663 = vdwg.mxu0
    %v3666 = vunpack.c.l.b16 %v1707
    %v3667 = vunpack.c.l.b16 %v1708
    %v3668 = vpack.c.b16 %v3667, %v3666
    %v3671 = vunpack.c.l.b16 %v2187
    %v3672 = vunpack.c.l.b16 %v2188
    %v3673 = vpack.c.b16 %v3672, %v3671
    %v3675 = vsel %vm2743, %v3668, 0
    %v3678 = vsel %vm2743, %v3673, 0
    %3680 = vmatpush.bf16.xpose.msra.mxu0 0
    %3681 = vmatpush.bf16.xpose.msra.mxu0 0
    %3682 = vmatpush.bf16.xpose.msra.mxu0 0
    %3683 = vmatpush.bf16.xpose.msra.mxu0 0
    %3684 = vmatpush.bf16.xpose.msra.mxu0 0
    %3685 = vmatpush.bf16.xpose.msra.mxu0 0
    %3686 = vmatpush.bf16.xpose.msra.mxu0 0
    %3687 = vmatpush.bf16.xpose.msra.mxu0 %v3678
    %3688 = vmatmul.bf16.gmra.mxu0 %v3675
    %v3689 = vpop.f32.mrf.mxu0
    %v3690 = vadd.f32 0.0, %v3689
    %v3691 = vpop.f32.mrf.mxu0
    %v3692 = vadd.f32 0.0, %v3691
    %3693 = vdwg.mxu0
    %v3696 = vunpack.c.l.b16 %v1709
    %v3697 = vunpack.c.l.b16 %v1710
    %v3698 = vpack.c.b16 %v3697, %v3696
    %v3701 = vunpack.c.l.b16 %v2189
    %v3702 = vunpack.c.l.b16 %v2190
    %v3703 = vpack.c.b16 %v3702, %v3701
    %v3705 = vsel %vm2743, %v3698, 0
    %v3708 = vsel %vm2743, %v3703, 0
    %3710 = vmatpush.bf16.xpose.msra.mxu0 0
    %3711 = vmatpush.bf16.xpose.msra.mxu0 0
    %3712 = vmatpush.bf16.xpose.msra.mxu0 0
    %3713 = vmatpush.bf16.xpose.msra.mxu0 0
    %3714 = vmatpush.bf16.xpose.msra.mxu0 0
    %3715 = vmatpush.bf16.xpose.msra.mxu0 0
    %3716 = vmatpush.bf16.xpose.msra.mxu0 0
    %3717 = vmatpush.bf16.xpose.msra.mxu0 %v3708
    %3718 = vmatmul.bf16.gmra.mxu0 %v3705
    %v3719 = vpop.f32.mrf.mxu0
    %v3720 = vadd.f32 0.0, %v3719
    %v3721 = vpop.f32.mrf.mxu0
    %v3722 = vadd.f32 0.0, %v3721
    %3723 = vdwg.mxu0
    %v3726 = vunpack.c.l.b16 %v1711
    %v3727 = vunpack.c.l.b16 %v1712
    %v3728 = vpack.c.b16 %v3727, %v3726
    %v3731 = vunpack.c.l.b16 %v2191
    %v3732 = vunpack.c.l.b16 %v2192
    %v3733 = vpack.c.b16 %v3732, %v3731
    %v3735 = vsel %vm2743, %v3728, 0
    %v3738 = vsel %vm2743, %v3733, 0
    %3740 = vmatpush.bf16.xpose.msra.mxu0 0
    %3741 = vmatpush.bf16.xpose.msra.mxu0 0
    %3742 = vmatpush.bf16.xpose.msra.mxu0 0
    %3743 = vmatpush.bf16.xpose.msra.mxu0 0
    %3744 = vmatpush.bf16.xpose.msra.mxu0 0
    %3745 = vmatpush.bf16.xpose.msra.mxu0 0
    %3746 = vmatpush.bf16.xpose.msra.mxu0 0
    %3747 = vmatpush.bf16.xpose.msra.mxu0 %v3738
    %3748 = vmatmul.bf16.gmra.mxu0 %v3735
    %v3749 = vpop.f32.mrf.mxu0
    %v3750 = vadd.f32 0.0, %v3749
    %v3751 = vpop.f32.mrf.mxu0
    %v3752 = vadd.f32 0.0, %v3751
    %3753 = vdwg.mxu0
    %v3756 = vunpack.c.l.b16 %v1713
    %v3757 = vunpack.c.l.b16 %v1714
    %v3758 = vpack.c.b16 %v3757, %v3756
    %v3761 = vunpack.c.l.b16 %v2193
    %v3762 = vunpack.c.l.b16 %v2194
    %v3763 = vpack.c.b16 %v3762, %v3761
    %v3765 = vsel %vm2743, %v3758, 0
    %v3768 = vsel %vm2743, %v3763, 0
    %3770 = vmatpush.bf16.xpose.msra.mxu0 0
    %3771 = vmatpush.bf16.xpose.msra.mxu0 0
    %3772 = vmatpush.bf16.xpose.msra.mxu0 0
    %3773 = vmatpush.bf16.xpose.msra.mxu0 0
    %3774 = vmatpush.bf16.xpose.msra.mxu0 0
    %3775 = vmatpush.bf16.xpose.msra.mxu0 0
    %3776 = vmatpush.bf16.xpose.msra.mxu0 0
    %3777 = vmatpush.bf16.xpose.msra.mxu0 %v3768
    %3778 = vmatmul.bf16.gmra.mxu0 %v3765
    %v3779 = vpop.f32.mrf.mxu0
    %v3780 = vadd.f32 0.0, %v3779
    %v3781 = vpop.f32.mrf.mxu0
    %v3782 = vadd.f32 0.0, %v3781
    %3783 = vdwg.mxu0
    %v3786 = vunpack.c.l.b16 %v1715
    %v3787 = vunpack.c.l.b16 %v1716
    %v3788 = vpack.c.b16 %v3787, %v3786
    %v3791 = vunpack.c.l.b16 %v2195
    %v3792 = vunpack.c.l.b16 %v2196
    %v3793 = vpack.c.b16 %v3792, %v3791
    %v3795 = vsel %vm2743, %v3788, 0
    %v3798 = vsel %vm2743, %v3793, 0
    %3800 = vmatpush.bf16.xpose.msra.mxu0 0
    %3801 = vmatpush.bf16.xpose.msra.mxu0 0
    %3802 = vmatpush.bf16.xpose.msra.mxu0 0
    %3803 = vmatpush.bf16.xpose.msra.mxu0 0
    %3804 = vmatpush.bf16.xpose.msra.mxu0 0
    %3805 = vmatpush.bf16.xpose.msra.mxu0 0
    %3806 = vmatpush.bf16.xpose.msra.mxu0 0
    %3807 = vmatpush.bf16.xpose.msra.mxu0 %v3798
    %3808 = vmatmul.bf16.gmra.mxu0 %v3795
    %v3809 = vpop.f32.mrf.mxu0
    %v3810 = vadd.f32 0.0, %v3809
    %v3811 = vpop.f32.mrf.mxu0
    %v3812 = vadd.f32 0.0, %v3811
    %3813 = vdwg.mxu0
    %v3816 = vunpack.c.l.b16 %v1717
    %v3817 = vunpack.c.l.b16 %v1718
    %v3818 = vpack.c.b16 %v3817, %v3816
    %v3821 = vunpack.c.l.b16 %v2197
    %v3822 = vunpack.c.l.b16 %v2198
    %v3823 = vpack.c.b16 %v3822, %v3821
    %v3825 = vsel %vm2743, %v3818, 0
    %v3828 = vsel %vm2743, %v3823, 0
    %3830 = vmatpush.bf16.xpose.msra.mxu0 0
    %3831 = vmatpush.bf16.xpose.msra.mxu0 0
    %3832 = vmatpush.bf16.xpose.msra.mxu0 0
    %3833 = vmatpush.bf16.xpose.msra.mxu0 0
    %3834 = vmatpush.bf16.xpose.msra.mxu0 0
    %3835 = vmatpush.bf16.xpose.msra.mxu0 0
    %3836 = vmatpush.bf16.xpose.msra.mxu0 0
    %3837 = vmatpush.bf16.xpose.msra.mxu0 %v3828
    %3838 = vmatmul.bf16.gmra.mxu0 %v3825
    %v3839 = vpop.f32.mrf.mxu0
    %v3840 = vadd.f32 0.0, %v3839
    %v3841 = vpop.f32.mrf.mxu0
    %v3842 = vadd.f32 0.0, %v3841
    %3843 = vdwg.mxu0
    %v3846 = vunpack.c.l.b16 %v1719
    %v3847 = vunpack.c.l.b16 %v1720
    %v3848 = vpack.c.b16 %v3847, %v3846
    %v3851 = vunpack.c.l.b16 %v2199
    %v3852 = vunpack.c.l.b16 %v2200
    %v3853 = vpack.c.b16 %v3852, %v3851
    %v3855 = vsel %vm2743, %v3848, 0
    %v3858 = vsel %vm2743, %v3853, 0
    %3860 = vmatpush.bf16.xpose.msra.mxu0 0
    %3861 = vmatpush.bf16.xpose.msra.mxu0 0
    %3862 = vmatpush.bf16.xpose.msra.mxu0 0
    %3863 = vmatpush.bf16.xpose.msra.mxu0 0
    %3864 = vmatpush.bf16.xpose.msra.mxu0 0
    %3865 = vmatpush.bf16.xpose.msra.mxu0 0
    %3866 = vmatpush.bf16.xpose.msra.mxu0 0
    %3867 = vmatpush.bf16.xpose.msra.mxu0 %v3858
    %3868 = vmatmul.bf16.gmra.mxu0 %v3855
    %v3869 = vpop.f32.mrf.mxu0
    %v3870 = vadd.f32 0.0, %v3869
    %v3871 = vpop.f32.mrf.mxu0
    %v3872 = vadd.f32 0.0, %v3871
    %3873 = vdwg.mxu0
    %v3876 = vunpack.c.l.b16 %v1721
    %v3877 = vunpack.c.l.b16 %v1722
    %v3878 = vpack.c.b16 %v3877, %v3876
    %v3881 = vunpack.c.l.b16 %v2201
    %v3882 = vunpack.c.l.b16 %v2202
    %v3883 = vpack.c.b16 %v3882, %v3881
    %v3885 = vsel %vm2743, %v3878, 0
    %v3888 = vsel %vm2743, %v3883, 0
    %3890 = vmatpush.bf16.xpose.msra.mxu0 0
    %3891 = vmatpush.bf16.xpose.msra.mxu0 0
    %3892 = vmatpush.bf16.xpose.msra.mxu0 0
    %3893 = vmatpush.bf16.xpose.msra.mxu0 0
    %3894 = vmatpush.bf16.xpose.msra.mxu0 0
    %3895 = vmatpush.bf16.xpose.msra.mxu0 0
    %3896 = vmatpush.bf16.xpose.msra.mxu0 0
    %3897 = vmatpush.bf16.xpose.msra.mxu0 %v3888
    %3898 = vmatmul.bf16.gmra.mxu0 %v3885
    %v3899 = vpop.f32.mrf.mxu0
    %v3900 = vadd.f32 0.0, %v3899
    %v3901 = vpop.f32.mrf.mxu0
    %v3902 = vadd.f32 0.0, %v3901
    %3903 = vdwg.mxu0
    %v3906 = vunpack.c.l.b16 %v1723
    %v3907 = vunpack.c.l.b16 %v1724
    %v3908 = vpack.c.b16 %v3907, %v3906
    %v3911 = vunpack.c.l.b16 %v2203
    %v3912 = vunpack.c.l.b16 %v2204
    %v3913 = vpack.c.b16 %v3912, %v3911
    %v3915 = vsel %vm2743, %v3908, 0
    %v3918 = vsel %vm2743, %v3913, 0
    %3920 = vmatpush.bf16.xpose.msra.mxu0 0
    %3921 = vmatpush.bf16.xpose.msra.mxu0 0
    %3922 = vmatpush.bf16.xpose.msra.mxu0 0
    %3923 = vmatpush.bf16.xpose.msra.mxu0 0
    %3924 = vmatpush.bf16.xpose.msra.mxu0 0
    %3925 = vmatpush.bf16.xpose.msra.mxu0 0
    %3926 = vmatpush.bf16.xpose.msra.mxu0 0
    %3927 = vmatpush.bf16.xpose.msra.mxu0 %v3918
    %3928 = vmatmul.bf16.gmra.mxu0 %v3915
    %v3929 = vpop.f32.mrf.mxu0
    %v3930 = vadd.f32 0.0, %v3929
    %v3931 = vpop.f32.mrf.mxu0
    %v3932 = vadd.f32 0.0, %v3931
    %3933 = vdwg.mxu0
    %v3936 = vunpack.c.l.b16 %v1725
    %v3937 = vunpack.c.l.b16 %v1726
    %v3938 = vpack.c.b16 %v3937, %v3936
    %v3941 = vunpack.c.l.b16 %v2205
    %v3942 = vunpack.c.l.b16 %v2206
    %v3943 = vpack.c.b16 %v3942, %v3941
    %v3945 = vsel %vm2743, %v3938, 0
    %v3948 = vsel %vm2743, %v3943, 0
    %3950 = vmatpush.bf16.xpose.msra.mxu0 0
    %3951 = vmatpush.bf16.xpose.msra.mxu0 0
    %3952 = vmatpush.bf16.xpose.msra.mxu0 0
    %3953 = vmatpush.bf16.xpose.msra.mxu0 0
    %3954 = vmatpush.bf16.xpose.msra.mxu0 0
    %3955 = vmatpush.bf16.xpose.msra.mxu0 0
    %3956 = vmatpush.bf16.xpose.msra.mxu0 0
    %3957 = vmatpush.bf16.xpose.msra.mxu0 %v3948
    %3958 = vmatmul.bf16.gmra.mxu0 %v3945
    %v3959 = vpop.f32.mrf.mxu0
    %v3960 = vadd.f32 0.0, %v3959
    %v3961 = vpop.f32.mrf.mxu0
    %v3962 = vadd.f32 0.0, %v3961
    %3963 = vdwg.mxu0
    %v3966 = vunpack.c.l.b16 %v1727
    %v3967 = vunpack.c.l.b16 %v1728
    %v3968 = vpack.c.b16 %v3967, %v3966
    %v3971 = vunpack.c.l.b16 %v2207
    %v3972 = vunpack.c.l.b16 %v2208
    %v3973 = vpack.c.b16 %v3972, %v3971
    %v3975 = vsel %vm2743, %v3968, 0
    %v3978 = vsel %vm2743, %v3973, 0
    %3980 = vmatpush.bf16.xpose.msra.mxu0 0
    %3981 = vmatpush.bf16.xpose.msra.mxu0 0
    %3982 = vmatpush.bf16.xpose.msra.mxu0 0
    %3983 = vmatpush.bf16.xpose.msra.mxu0 0
    %3984 = vmatpush.bf16.xpose.msra.mxu0 0
    %3985 = vmatpush.bf16.xpose.msra.mxu0 0
    %3986 = vmatpush.bf16.xpose.msra.mxu0 0
    %3987 = vmatpush.bf16.xpose.msra.mxu0 %v3978
    %3988 = vmatmul.bf16.gmra.mxu0 %v3975
    %v3989 = vpop.f32.mrf.mxu0
    %v3990 = vadd.f32 0.0, %v3989
    %v3991 = vpop.f32.mrf.mxu0
    %v3992 = vadd.f32 0.0, %v3991
    %3993 = vdwg.mxu0
    %v3996 = vunpack.c.l.b16 %v1729
    %v3997 = vunpack.c.l.b16 %v1730
    %v3998 = vpack.c.b16 %v3997, %v3996
    %v4001 = vunpack.c.l.b16 %v2209
    %v4002 = vunpack.c.l.b16 %v2210
    %v4003 = vpack.c.b16 %v4002, %v4001
    %v4005 = vsel %vm2743, %v3998, 0
    %v4008 = vsel %vm2743, %v4003, 0
    %4010 = vmatpush.bf16.xpose.msra.mxu0 0
    %4011 = vmatpush.bf16.xpose.msra.mxu0 0
    %4012 = vmatpush.bf16.xpose.msra.mxu0 0
    %4013 = vmatpush.bf16.xpose.msra.mxu0 0
    %4014 = vmatpush.bf16.xpose.msra.mxu0 0
    %4015 = vmatpush.bf16.xpose.msra.mxu0 0
    %4016 = vmatpush.bf16.xpose.msra.mxu0 0
    %4017 = vmatpush.bf16.xpose.msra.mxu0 %v4008
    %4018 = vmatmul.bf16.gmra.mxu0 %v4005
    %v4019 = vpop.f32.mrf.mxu0
    %v4020 = vadd.f32 0.0, %v4019
    %v4021 = vpop.f32.mrf.mxu0
    %v4022 = vadd.f32 0.0, %v4021
    %4023 = vdwg.mxu0
    %v4026 = vunpack.c.l.b16 %v1731
    %v4027 = vunpack.c.l.b16 %v1732
    %v4028 = vpack.c.b16 %v4027, %v4026
    %v4031 = vunpack.c.l.b16 %v2211
    %v4032 = vunpack.c.l.b16 %v2212
    %v4033 = vpack.c.b16 %v4032, %v4031
    %v4035 = vsel %vm2743, %v4028, 0
    %v4038 = vsel %vm2743, %v4033, 0
    %4040 = vmatpush.bf16.xpose.msra.mxu0 0
    %4041 = vmatpush.bf16.xpose.msra.mxu0 0
    %4042 = vmatpush.bf16.xpose.msra.mxu0 0
    %4043 = vmatpush.bf16.xpose.msra.mxu0 0
    %4044 = vmatpush.bf16.xpose.msra.mxu0 0
    %4045 = vmatpush.bf16.xpose.msra.mxu0 0
    %4046 = vmatpush.bf16.xpose.msra.mxu0 0
    %4047 = vmatpush.bf16.xpose.msra.mxu0 %v4038
    %4048 = vmatmul.bf16.gmra.mxu0 %v4035
    %v4049 = vpop.f32.mrf.mxu0
    %v4050 = vadd.f32 0.0, %v4049
    %v4051 = vpop.f32.mrf.mxu0
    %v4052 = vadd.f32 0.0, %v4051
    %4053 = vdwg.mxu0
    %v4056 = vunpack.c.l.b16 %v1733
    %v4057 = vunpack.c.l.b16 %v1734
    %v4058 = vpack.c.b16 %v4057, %v4056
    %v4061 = vunpack.c.l.b16 %v2213
    %v4062 = vunpack.c.l.b16 %v2214
    %v4063 = vpack.c.b16 %v4062, %v4061
    %v4065 = vsel %vm2743, %v4058, 0
    %v4068 = vsel %vm2743, %v4063, 0
    %4070 = vmatpush.bf16.xpose.msra.mxu0 0
    %4071 = vmatpush.bf16.xpose.msra.mxu0 0
    %4072 = vmatpush.bf16.xpose.msra.mxu0 0
    %4073 = vmatpush.bf16.xpose.msra.mxu0 0
    %4074 = vmatpush.bf16.xpose.msra.mxu0 0
    %4075 = vmatpush.bf16.xpose.msra.mxu0 0
    %4076 = vmatpush.bf16.xpose.msra.mxu0 0
    %4077 = vmatpush.bf16.xpose.msra.mxu0 %v4068
    %4078 = vmatmul.bf16.gmra.mxu0 %v4065
    %v4079 = vpop.f32.mrf.mxu0
    %v4080 = vadd.f32 0.0, %v4079
    %v4081 = vpop.f32.mrf.mxu0
    %v4082 = vadd.f32 0.0, %v4081
    %4083 = vdwg.mxu0
    %v4086 = vunpack.c.l.b16 %v1735
    %v4087 = vunpack.c.l.b16 %v1736
    %v4088 = vpack.c.b16 %v4087, %v4086
    %v4091 = vunpack.c.l.b16 %v2215
    %v4092 = vunpack.c.l.b16 %v2216
    %v4093 = vpack.c.b16 %v4092, %v4091
    %v4095 = vsel %vm2743, %v4088, 0
    %v4098 = vsel %vm2743, %v4093, 0
    %4100 = vmatpush.bf16.xpose.msra.mxu0 0
    %4101 = vmatpush.bf16.xpose.msra.mxu0 0
    %4102 = vmatpush.bf16.xpose.msra.mxu0 0
    %4103 = vmatpush.bf16.xpose.msra.mxu0 0
    %4104 = vmatpush.bf16.xpose.msra.mxu0 0
    %4105 = vmatpush.bf16.xpose.msra.mxu0 0
    %4106 = vmatpush.bf16.xpose.msra.mxu0 0
    %4107 = vmatpush.bf16.xpose.msra.mxu0 %v4098
    %4108 = vmatmul.bf16.gmra.mxu0 %v4095
    %v4109 = vpop.f32.mrf.mxu0
    %v4110 = vadd.f32 0.0, %v4109
    %v4111 = vpop.f32.mrf.mxu0
    %v4112 = vadd.f32 0.0, %v4111
    %4113 = vdwg.mxu0
    %v4116 = vunpack.c.l.b16 %v1737
    %v4117 = vunpack.c.l.b16 %v1738
    %v4118 = vpack.c.b16 %v4117, %v4116
    %v4121 = vunpack.c.l.b16 %v2217
    %v4122 = vunpack.c.l.b16 %v2218
    %v4123 = vpack.c.b16 %v4122, %v4121
    %v4125 = vsel %vm2743, %v4118, 0
    %v4128 = vsel %vm2743, %v4123, 0
    %4130 = vmatpush.bf16.xpose.msra.mxu0 0
    %4131 = vmatpush.bf16.xpose.msra.mxu0 0
    %4132 = vmatpush.bf16.xpose.msra.mxu0 0
    %4133 = vmatpush.bf16.xpose.msra.mxu0 0
    %4134 = vmatpush.bf16.xpose.msra.mxu0 0
    %4135 = vmatpush.bf16.xpose.msra.mxu0 0
    %4136 = vmatpush.bf16.xpose.msra.mxu0 0
    %4137 = vmatpush.bf16.xpose.msra.mxu0 %v4128
    %4138 = vmatmul.bf16.gmra.mxu0 %v4125
    %v4139 = vpop.f32.mrf.mxu0
    %v4140 = vadd.f32 0.0, %v4139
    %v4141 = vpop.f32.mrf.mxu0
    %v4142 = vadd.f32 0.0, %v4141
    %4143 = vdwg.mxu0
    %v4146 = vunpack.c.l.b16 %v1739
    %v4147 = vunpack.c.l.b16 %v1740
    %v4148 = vpack.c.b16 %v4147, %v4146
    %v4151 = vunpack.c.l.b16 %v2219
    %v4152 = vunpack.c.l.b16 %v2220
    %v4153 = vpack.c.b16 %v4152, %v4151
    %v4155 = vsel %vm2743, %v4148, 0
    %v4158 = vsel %vm2743, %v4153, 0
    %4160 = vmatpush.bf16.xpose.msra.mxu0 0
    %4161 = vmatpush.bf16.xpose.msra.mxu0 0
    %4162 = vmatpush.bf16.xpose.msra.mxu0 0
    %4163 = vmatpush.bf16.xpose.msra.mxu0 0
    %4164 = vmatpush.bf16.xpose.msra.mxu0 0
    %4165 = vmatpush.bf16.xpose.msra.mxu0 0
    %4166 = vmatpush.bf16.xpose.msra.mxu0 0
    %4167 = vmatpush.bf16.xpose.msra.mxu0 %v4158
    %4168 = vmatmul.bf16.gmra.mxu0 %v4155
    %v4169 = vpop.f32.mrf.mxu0
    %v4170 = vadd.f32 0.0, %v4169
    %v4171 = vpop.f32.mrf.mxu0
    %v4172 = vadd.f32 0.0, %v4171
    %4173 = vdwg.mxu0
    %v4176 = vunpack.c.l.b16 %v1741
    %v4177 = vunpack.c.l.b16 %v1742
    %v4178 = vpack.c.b16 %v4177, %v4176
    %v4181 = vunpack.c.l.b16 %v2221
    %v4182 = vunpack.c.l.b16 %v2222
    %v4183 = vpack.c.b16 %v4182, %v4181
    %v4185 = vsel %vm2743, %v4178, 0
    %v4188 = vsel %vm2743, %v4183, 0
    %4190 = vmatpush.bf16.xpose.msra.mxu0 0
    %4191 = vmatpush.bf16.xpose.msra.mxu0 0
    %4192 = vmatpush.bf16.xpose.msra.mxu0 0
    %4193 = vmatpush.bf16.xpose.msra.mxu0 0
    %4194 = vmatpush.bf16.xpose.msra.mxu0 0
    %4195 = vmatpush.bf16.xpose.msra.mxu0 0
    %4196 = vmatpush.bf16.xpose.msra.mxu0 0
    %4197 = vmatpush.bf16.xpose.msra.mxu0 %v4188
    %4198 = vmatmul.bf16.gmra.mxu0 %v4185
    %v4199 = vpop.f32.mrf.mxu0
    %v4200 = vadd.f32 0.0, %v4199
    %v4201 = vpop.f32.mrf.mxu0
    %v4202 = vadd.f32 0.0, %v4201
    %4203 = vdwg.mxu0
    %v4206 = vunpack.c.l.b16 %v1743
    %v4207 = vunpack.c.l.b16 %v1744
    %v4208 = vpack.c.b16 %v4207, %v4206
    %v4211 = vunpack.c.l.b16 %v2223
    %v4212 = vunpack.c.l.b16 %v2224
    %v4213 = vpack.c.b16 %v4212, %v4211
    %v4215 = vsel %vm2743, %v4208, 0
    %v4218 = vsel %vm2743, %v4213, 0
    %4220 = vmatpush.bf16.xpose.msra.mxu0 0
    %4221 = vmatpush.bf16.xpose.msra.mxu0 0
    %4222 = vmatpush.bf16.xpose.msra.mxu0 0
    %4223 = vmatpush.bf16.xpose.msra.mxu0 0
    %4224 = vmatpush.bf16.xpose.msra.mxu0 0
    %4225 = vmatpush.bf16.xpose.msra.mxu0 0
    %4226 = vmatpush.bf16.xpose.msra.mxu0 0
    %4227 = vmatpush.bf16.xpose.msra.mxu0 %v4218
    %4228 = vmatmul.bf16.gmra.mxu0 %v4215
    %v4229 = vpop.f32.mrf.mxu0
    %v4230 = vadd.f32 0.0, %v4229
    %v4231 = vpop.f32.mrf.mxu0
    %v4232 = vadd.f32 0.0, %v4231
    %4233 = vdwg.mxu0
    %v4236 = vunpack.c.l.b16 %v1745
    %v4237 = vunpack.c.l.b16 %v1746
    %v4238 = vpack.c.b16 %v4237, %v4236
    %v4241 = vunpack.c.l.b16 %v2225
    %v4242 = vunpack.c.l.b16 %v2226
    %v4243 = vpack.c.b16 %v4242, %v4241
    %v4245 = vsel %vm2743, %v4238, 0
    %v4248 = vsel %vm2743, %v4243, 0
    %4250 = vmatpush.bf16.xpose.msra.mxu0 0
    %4251 = vmatpush.bf16.xpose.msra.mxu0 0
    %4252 = vmatpush.bf16.xpose.msra.mxu0 0
    %4253 = vmatpush.bf16.xpose.msra.mxu0 0
    %4254 = vmatpush.bf16.xpose.msra.mxu0 0
    %4255 = vmatpush.bf16.xpose.msra.mxu0 0
    %4256 = vmatpush.bf16.xpose.msra.mxu0 0
    %4257 = vmatpush.bf16.xpose.msra.mxu0 %v4248
    %4258 = vmatmul.bf16.gmra.mxu0 %v4245
    %v4259 = vpop.f32.mrf.mxu0
    %v4260 = vadd.f32 0.0, %v4259
    %v4261 = vpop.f32.mrf.mxu0
    %v4262 = vadd.f32 0.0, %v4261
    %4263 = vdwg.mxu0
    %v4266 = vunpack.c.l.b16 %v1747
    %v4267 = vunpack.c.l.b16 %v1748
    %v4268 = vpack.c.b16 %v4267, %v4266
    %v4271 = vunpack.c.l.b16 %v2227
    %v4272 = vunpack.c.l.b16 %v2228
    %v4273 = vpack.c.b16 %v4272, %v4271
    %v4275 = vsel %vm2743, %v4268, 0
    %v4278 = vsel %vm2743, %v4273, 0
    %4280 = vmatpush.bf16.xpose.msra.mxu0 0
    %4281 = vmatpush.bf16.xpose.msra.mxu0 0
    %4282 = vmatpush.bf16.xpose.msra.mxu0 0
    %4283 = vmatpush.bf16.xpose.msra.mxu0 0
    %4284 = vmatpush.bf16.xpose.msra.mxu0 0
    %4285 = vmatpush.bf16.xpose.msra.mxu0 0
    %4286 = vmatpush.bf16.xpose.msra.mxu0 0
    %4287 = vmatpush.bf16.xpose.msra.mxu0 %v4278
    %4288 = vmatmul.bf16.gmra.mxu0 %v4275
    %v4289 = vpop.f32.mrf.mxu0
    %v4290 = vadd.f32 0.0, %v4289
    %v4291 = vpop.f32.mrf.mxu0
    %v4292 = vadd.f32 0.0, %v4291
    %4293 = vdwg.mxu0
    %v4296 = vunpack.c.l.b16 %v1749
    %v4297 = vunpack.c.l.b16 %v1750
    %v4298 = vpack.c.b16 %v4297, %v4296
    %v4301 = vunpack.c.l.b16 %v2229
    %v4302 = vunpack.c.l.b16 %v2230
    %v4303 = vpack.c.b16 %v4302, %v4301
    %v4305 = vsel %vm2743, %v4298, 0
    %v4308 = vsel %vm2743, %v4303, 0
    %4310 = vmatpush.bf16.xpose.msra.mxu0 0
    %4311 = vmatpush.bf16.xpose.msra.mxu0 0
    %4312 = vmatpush.bf16.xpose.msra.mxu0 0
    %4313 = vmatpush.bf16.xpose.msra.mxu0 0
    %4314 = vmatpush.bf16.xpose.msra.mxu0 0
    %4315 = vmatpush.bf16.xpose.msra.mxu0 0
    %4316 = vmatpush.bf16.xpose.msra.mxu0 0
    %4317 = vmatpush.bf16.xpose.msra.mxu0 %v4308
    %4318 = vmatmul.bf16.gmra.mxu0 %v4305
    %v4319 = vpop.f32.mrf.mxu0
    %v4320 = vadd.f32 0.0, %v4319
    %v4321 = vpop.f32.mrf.mxu0
    %v4322 = vadd.f32 0.0, %v4321
    %4323 = vdwg.mxu0
    %v4326 = vunpack.c.l.b16 %v1751
    %v4327 = vunpack.c.l.b16 %v1752
    %v4328 = vpack.c.b16 %v4327, %v4326
    %v4331 = vunpack.c.l.b16 %v2231
    %v4332 = vunpack.c.l.b16 %v2232
    %v4333 = vpack.c.b16 %v4332, %v4331
    %v4335 = vsel %vm2743, %v4328, 0
    %v4338 = vsel %vm2743, %v4333, 0
    %4340 = vmatpush.bf16.xpose.msra.mxu0 0
    %4341 = vmatpush.bf16.xpose.msra.mxu0 0
    %4342 = vmatpush.bf16.xpose.msra.mxu0 0
    %4343 = vmatpush.bf16.xpose.msra.mxu0 0
    %4344 = vmatpush.bf16.xpose.msra.mxu0 0
    %4345 = vmatpush.bf16.xpose.msra.mxu0 0
    %4346 = vmatpush.bf16.xpose.msra.mxu0 0
    %4347 = vmatpush.bf16.xpose.msra.mxu0 %v4338
    %4348 = vmatmul.bf16.gmra.mxu0 %v4335
    %v4349 = vpop.f32.mrf.mxu0
    %v4350 = vadd.f32 0.0, %v4349
    %v4351 = vpop.f32.mrf.mxu0
    %v4352 = vadd.f32 0.0, %v4351
    %4353 = vdwg.mxu0
    %v4356 = vunpack.c.l.b16 %v1753
    %v4357 = vunpack.c.l.b16 %v1754
    %v4358 = vpack.c.b16 %v4357, %v4356
    %v4361 = vunpack.c.l.b16 %v2233
    %v4362 = vunpack.c.l.b16 %v2234
    %v4363 = vpack.c.b16 %v4362, %v4361
    %v4365 = vsel %vm2743, %v4358, 0
    %v4368 = vsel %vm2743, %v4363, 0
    %4370 = vmatpush.bf16.xpose.msra.mxu0 0
    %4371 = vmatpush.bf16.xpose.msra.mxu0 0
    %4372 = vmatpush.bf16.xpose.msra.mxu0 0
    %4373 = vmatpush.bf16.xpose.msra.mxu0 0
    %4374 = vmatpush.bf16.xpose.msra.mxu0 0
    %4375 = vmatpush.bf16.xpose.msra.mxu0 0
    %4376 = vmatpush.bf16.xpose.msra.mxu0 0
    %4377 = vmatpush.bf16.xpose.msra.mxu0 %v4368
    %4378 = vmatmul.bf16.gmra.mxu0 %v4365
    %v4379 = vpop.f32.mrf.mxu0
    %v4380 = vadd.f32 0.0, %v4379
    %v4381 = vpop.f32.mrf.mxu0
    %v4382 = vadd.f32 0.0, %v4381
    %4383 = vdwg.mxu0
    %v4386 = vunpack.c.l.b16 %v1755
    %v4387 = vunpack.c.l.b16 %v1756
    %v4388 = vpack.c.b16 %v4387, %v4386
    %v4391 = vunpack.c.l.b16 %v2235
    %v4392 = vunpack.c.l.b16 %v2236
    %v4393 = vpack.c.b16 %v4392, %v4391
    %v4395 = vsel %vm2743, %v4388, 0
    %v4398 = vsel %vm2743, %v4393, 0
    %4400 = vmatpush.bf16.xpose.msra.mxu0 0
    %4401 = vmatpush.bf16.xpose.msra.mxu0 0
    %4402 = vmatpush.bf16.xpose.msra.mxu0 0
    %4403 = vmatpush.bf16.xpose.msra.mxu0 0
    %4404 = vmatpush.bf16.xpose.msra.mxu0 0
    %4405 = vmatpush.bf16.xpose.msra.mxu0 0
    %4406 = vmatpush.bf16.xpose.msra.mxu0 0
    %4407 = vmatpush.bf16.xpose.msra.mxu0 %v4398
    %4408 = vmatmul.bf16.gmra.mxu0 %v4395
    %v4409 = vpop.f32.mrf.mxu0
    %v4410 = vadd.f32 0.0, %v4409
    %v4411 = vpop.f32.mrf.mxu0
    %v4412 = vadd.f32 0.0, %v4411
    %4413 = vdwg.mxu0
    %v4416 = vunpack.c.l.b16 %v1757
    %v4417 = vunpack.c.l.b16 %v1758
    %v4418 = vpack.c.b16 %v4417, %v4416
    %v4421 = vunpack.c.l.b16 %v2237
    %v4422 = vunpack.c.l.b16 %v2238
    %v4423 = vpack.c.b16 %v4422, %v4421
    %v4425 = vsel %vm2743, %v4418, 0
    %v4428 = vsel %vm2743, %v4423, 0
    %4430 = vmatpush.bf16.xpose.msra.mxu0 0
    %4431 = vmatpush.bf16.xpose.msra.mxu0 0
    %4432 = vmatpush.bf16.xpose.msra.mxu0 0
    %4433 = vmatpush.bf16.xpose.msra.mxu0 0
    %4434 = vmatpush.bf16.xpose.msra.mxu0 0
    %4435 = vmatpush.bf16.xpose.msra.mxu0 0
    %4436 = vmatpush.bf16.xpose.msra.mxu0 0
    %4437 = vmatpush.bf16.xpose.msra.mxu0 %v4428
    %4438 = vmatmul.bf16.gmra.mxu0 %v4425
    %v4439 = vpop.f32.mrf.mxu0
    %v4440 = vadd.f32 0.0, %v4439
    %v4441 = vpop.f32.mrf.mxu0
    %v4442 = vadd.f32 0.0, %v4441
    %4443 = vdwg.mxu0
    %v4446 = vunpack.c.l.b16 %v1759
    %v4447 = vunpack.c.l.b16 %v1760
    %v4448 = vpack.c.b16 %v4447, %v4446
    %v4451 = vunpack.c.l.b16 %v2239
    %v4452 = vunpack.c.l.b16 %v2240
    %v4453 = vpack.c.b16 %v4452, %v4451
    %v4455 = vsel %vm2743, %v4448, 0
    %v4458 = vsel %vm2743, %v4453, 0
    %4460 = vmatpush.bf16.xpose.msra.mxu0 0
    %4461 = vmatpush.bf16.xpose.msra.mxu0 0
    %4462 = vmatpush.bf16.xpose.msra.mxu0 0
    %4463 = vmatpush.bf16.xpose.msra.mxu0 0
    %4464 = vmatpush.bf16.xpose.msra.mxu0 0
    %4465 = vmatpush.bf16.xpose.msra.mxu0 0
    %4466 = vmatpush.bf16.xpose.msra.mxu0 0
    %4467 = vmatpush.bf16.xpose.msra.mxu0 %v4458
    %4468 = vmatmul.bf16.gmra.mxu0 %v4455
    %v4469 = vpop.f32.mrf.mxu0
    %v4470 = vadd.f32 0.0, %v4469
    %v4471 = vpop.f32.mrf.mxu0
    %v4472 = vadd.f32 0.0, %v4471
    %4473 = vdwg.mxu0
    %v4476 = vunpack.c.l.b16 %v1761
    %v4477 = vunpack.c.l.b16 %v1762
    %v4478 = vpack.c.b16 %v4477, %v4476
    %v4481 = vunpack.c.l.b16 %v2241
    %v4482 = vunpack.c.l.b16 %v2242
    %v4483 = vpack.c.b16 %v4482, %v4481
    %v4485 = vsel %vm2743, %v4478, 0
    %v4488 = vsel %vm2743, %v4483, 0
    %4490 = vmatpush.bf16.xpose.msra.mxu0 0
    %4491 = vmatpush.bf16.xpose.msra.mxu0 0
    %4492 = vmatpush.bf16.xpose.msra.mxu0 0
    %4493 = vmatpush.bf16.xpose.msra.mxu0 0
    %4494 = vmatpush.bf16.xpose.msra.mxu0 0
    %4495 = vmatpush.bf16.xpose.msra.mxu0 0
    %4496 = vmatpush.bf16.xpose.msra.mxu0 0
    %4497 = vmatpush.bf16.xpose.msra.mxu0 %v4488
    %4498 = vmatmul.bf16.gmra.mxu0 %v4485
    %v4499 = vpop.f32.mrf.mxu0
    %v4500 = vadd.f32 0.0, %v4499
    %v4501 = vpop.f32.mrf.mxu0
    %v4502 = vadd.f32 0.0, %v4501
    %4503 = vdwg.mxu0
    %v4506 = vunpack.c.l.b16 %v1763
    %v4507 = vunpack.c.l.b16 %v1764
    %v4508 = vpack.c.b16 %v4507, %v4506
    %v4511 = vunpack.c.l.b16 %v2243
    %v4512 = vunpack.c.l.b16 %v2244
    %v4513 = vpack.c.b16 %v4512, %v4511
    %v4515 = vsel %vm2743, %v4508, 0
    %v4518 = vsel %vm2743, %v4513, 0
    %4520 = vmatpush.bf16.xpose.msra.mxu0 0
    %4521 = vmatpush.bf16.xpose.msra.mxu0 0
    %4522 = vmatpush.bf16.xpose.msra.mxu0 0
    %4523 = vmatpush.bf16.xpose.msra.mxu0 0
    %4524 = vmatpush.bf16.xpose.msra.mxu0 0
    %4525 = vmatpush.bf16.xpose.msra.mxu0 0
    %4526 = vmatpush.bf16.xpose.msra.mxu0 0
    %4527 = vmatpush.bf16.xpose.msra.mxu0 %v4518
    %4528 = vmatmul.bf16.gmra.mxu0 %v4515
    %v4529 = vpop.f32.mrf.mxu0
    %v4530 = vadd.f32 0.0, %v4529
    %v4531 = vpop.f32.mrf.mxu0
    %v4532 = vadd.f32 0.0, %v4531
    %4533 = vdwg.mxu0
    %v4536 = vunpack.c.l.b16 %v1765
    %v4537 = vunpack.c.l.b16 %v1766
    %v4538 = vpack.c.b16 %v4537, %v4536
    %v4541 = vunpack.c.l.b16 %v2245
    %v4542 = vunpack.c.l.b16 %v2246
    %v4543 = vpack.c.b16 %v4542, %v4541
    %v4545 = vsel %vm2743, %v4538, 0
    %v4548 = vsel %vm2743, %v4543, 0
    %4550 = vmatpush.bf16.xpose.msra.mxu0 0
    %4551 = vmatpush.bf16.xpose.msra.mxu0 0
    %4552 = vmatpush.bf16.xpose.msra.mxu0 0
    %4553 = vmatpush.bf16.xpose.msra.mxu0 0
    %4554 = vmatpush.bf16.xpose.msra.mxu0 0
    %4555 = vmatpush.bf16.xpose.msra.mxu0 0
    %4556 = vmatpush.bf16.xpose.msra.mxu0 0
    %4557 = vmatpush.bf16.xpose.msra.mxu0 %v4548
    %4558 = vmatmul.bf16.gmra.mxu0 %v4545
    %v4559 = vpop.f32.mrf.mxu0
    %v4560 = vadd.f32 0.0, %v4559
    %v4561 = vpop.f32.mrf.mxu0
    %v4562 = vadd.f32 0.0, %v4561
    %4563 = vdwg.mxu0
    %v4566 = vunpack.c.l.b16 %v1767
    %v4567 = vunpack.c.l.b16 %v1768
    %v4568 = vpack.c.b16 %v4567, %v4566
    %v4571 = vunpack.c.l.b16 %v2247
    %v4572 = vunpack.c.l.b16 %v2248
    %v4573 = vpack.c.b16 %v4572, %v4571
    %v4575 = vsel %vm2743, %v4568, 0
    %v4578 = vsel %vm2743, %v4573, 0
    %4580 = vmatpush.bf16.xpose.msra.mxu0 0
    %4581 = vmatpush.bf16.xpose.msra.mxu0 0
    %4582 = vmatpush.bf16.xpose.msra.mxu0 0
    %4583 = vmatpush.bf16.xpose.msra.mxu0 0
    %4584 = vmatpush.bf16.xpose.msra.mxu0 0
    %4585 = vmatpush.bf16.xpose.msra.mxu0 0
    %4586 = vmatpush.bf16.xpose.msra.mxu0 0
    %4587 = vmatpush.bf16.xpose.msra.mxu0 %v4578
    %4588 = vmatmul.bf16.gmra.mxu0 %v4575
    %v4589 = vpop.f32.mrf.mxu0
    %v4590 = vadd.f32 0.0, %v4589
    %v4591 = vpop.f32.mrf.mxu0
    %v4592 = vadd.f32 0.0, %v4591
    %4593 = vdwg.mxu0
    %v4596 = vunpack.c.l.b16 %v1769
    %v4597 = vunpack.c.l.b16 %v1770
    %v4598 = vpack.c.b16 %v4597, %v4596
    %v4601 = vunpack.c.l.b16 %v2249
    %v4602 = vunpack.c.l.b16 %v2250
    %v4603 = vpack.c.b16 %v4602, %v4601
    %v4605 = vsel %vm2743, %v4598, 0
    %v4608 = vsel %vm2743, %v4603, 0
    %4610 = vmatpush.bf16.xpose.msra.mxu0 0
    %4611 = vmatpush.bf16.xpose.msra.mxu0 0
    %4612 = vmatpush.bf16.xpose.msra.mxu0 0
    %4613 = vmatpush.bf16.xpose.msra.mxu0 0
    %4614 = vmatpush.bf16.xpose.msra.mxu0 0
    %4615 = vmatpush.bf16.xpose.msra.mxu0 0
    %4616 = vmatpush.bf16.xpose.msra.mxu0 0
    %4617 = vmatpush.bf16.xpose.msra.mxu0 %v4608
    %4618 = vmatmul.bf16.gmra.mxu0 %v4605
    %v4619 = vpop.f32.mrf.mxu0
    %v4620 = vadd.f32 0.0, %v4619
    %v4621 = vpop.f32.mrf.mxu0
    %v4622 = vadd.f32 0.0, %v4621
    %4623 = vdwg.mxu0
    %v4626 = vunpack.c.l.b16 %v1771
    %v4627 = vunpack.c.l.b16 %v1772
    %v4628 = vpack.c.b16 %v4627, %v4626
    %v4631 = vunpack.c.l.b16 %v2251
    %v4632 = vunpack.c.l.b16 %v2252
    %v4633 = vpack.c.b16 %v4632, %v4631
    %v4635 = vsel %vm2743, %v4628, 0
    %v4638 = vsel %vm2743, %v4633, 0
    %4640 = vmatpush.bf16.xpose.msra.mxu0 0
    %4641 = vmatpush.bf16.xpose.msra.mxu0 0
    %4642 = vmatpush.bf16.xpose.msra.mxu0 0
    %4643 = vmatpush.bf16.xpose.msra.mxu0 0
    %4644 = vmatpush.bf16.xpose.msra.mxu0 0
    %4645 = vmatpush.bf16.xpose.msra.mxu0 0
    %4646 = vmatpush.bf16.xpose.msra.mxu0 0
    %4647 = vmatpush.bf16.xpose.msra.mxu0 %v4638
    %4648 = vmatmul.bf16.gmra.mxu0 %v4635
    %v4649 = vpop.f32.mrf.mxu0
    %v4650 = vadd.f32 0.0, %v4649
    %v4651 = vpop.f32.mrf.mxu0
    %v4652 = vadd.f32 0.0, %v4651
    %4653 = vdwg.mxu0
    %v4654 = vsel %vm2743, %v2760, -inf
    %4655 = vmax.xlane.f32.xlu0 %v4654
    %v4656 = vpop.xlane.xlu0 %4655
    %v4657 = vsel %vm2743, %v2762, -inf
    %4658 = vmax.xlane.f32.xlu0 %v4657
    %v4659 = vpop.xlane.xlu0 %4658
    %v4660 = vsel %vm2743, %v2790, -inf
    %4661 = vmax.xlane.f32.xlu0 %v4660
    %v4662 = vpop.xlane.xlu0 %4661
    %v4663 = vsel %vm2743, %v2792, -inf
    %4664 = vmax.xlane.f32.xlu0 %v4663
    %v4665 = vpop.xlane.xlu0 %4664
    %v4666 = vsel %vm2743, %v2820, -inf
    %4667 = vmax.xlane.f32.xlu0 %v4666
    %v4668 = vpop.xlane.xlu0 %4667
    %v4669 = vsel %vm2743, %v2822, -inf
    %4670 = vmax.xlane.f32.xlu0 %v4669
    %v4671 = vpop.xlane.xlu0 %4670
    %v4672 = vsel %vm2743, %v2850, -inf
    %4673 = vmax.xlane.f32.xlu0 %v4672
    %v4674 = vpop.xlane.xlu0 %4673
    %v4675 = vsel %vm2743, %v2852, -inf
    %4676 = vmax.xlane.f32.xlu0 %v4675
    %v4677 = vpop.xlane.xlu0 %4676
    %v4678 = vsel %vm2743, %v2880, -inf
    %4679 = vmax.xlane.f32.xlu0 %v4678
    %v4680 = vpop.xlane.xlu0 %4679
    %v4681 = vsel %vm2743, %v2882, -inf
    %4682 = vmax.xlane.f32.xlu0 %v4681
    %v4683 = vpop.xlane.xlu0 %4682
    %v4684 = vsel %vm2743, %v2910, -inf
    %4685 = vmax.xlane.f32.xlu0 %v4684
    %v4686 = vpop.xlane.xlu0 %4685
    %v4687 = vsel %vm2743, %v2912, -inf
    %4688 = vmax.xlane.f32.xlu0 %v4687
    %v4689 = vpop.xlane.xlu0 %4688
    %v4690 = vsel %vm2743, %v2940, -inf
    %4691 = vmax.xlane.f32.xlu0 %v4690
    %v4692 = vpop.xlane.xlu0 %4691
    %v4693 = vsel %vm2743, %v2942, -inf
    %4694 = vmax.xlane.f32.xlu0 %v4693
    %v4695 = vpop.xlane.xlu0 %4694
    %v4696 = vsel %vm2743, %v2970, -inf
    %4697 = vmax.xlane.f32.xlu0 %v4696
    %v4698 = vpop.xlane.xlu0 %4697
    %v4699 = vsel %vm2743, %v2972, -inf
    %4700 = vmax.xlane.f32.xlu0 %v4699
    %v4701 = vpop.xlane.xlu0 %4700
    %v4702 = vsel %vm2743, %v3000, -inf
    %4703 = vmax.xlane.f32.xlu0 %v4702
    %v4704 = vpop.xlane.xlu0 %4703
    %v4705 = vsel %vm2743, %v3002, -inf
    %4706 = vmax.xlane.f32.xlu0 %v4705
    %v4707 = vpop.xlane.xlu0 %4706
    %v4708 = vsel %vm2743, %v3030, -inf
    %4709 = vmax.xlane.f32.xlu0 %v4708
    %v4710 = vpop.xlane.xlu0 %4709
    %v4711 = vsel %vm2743, %v3032, -inf
    %4712 = vmax.xlane.f32.xlu0 %v4711
    %v4713 = vpop.xlane.xlu0 %4712
    %v4714 = vsel %vm2743, %v3060, -inf
    %4715 = vmax.xlane.f32.xlu0 %v4714
    %v4716 = vpop.xlane.xlu0 %4715
    %v4717 = vsel %vm2743, %v3062, -inf
    %4718 = vmax.xlane.f32.xlu0 %v4717
    %v4719 = vpop.xlane.xlu0 %4718
    %v4720 = vsel %vm2743, %v3090, -inf
    %4721 = vmax.xlane.f32.xlu0 %v4720
    %v4722 = vpop.xlane.xlu0 %4721
    %v4723 = vsel %vm2743, %v3092, -inf
    %4724 = vmax.xlane.f32.xlu0 %v4723
    %v4725 = vpop.xlane.xlu0 %4724
    %v4726 = vsel %vm2743, %v3120, -inf
    %4727 = vmax.xlane.f32.xlu0 %v4726
    %v4728 = vpop.xlane.xlu0 %4727
    %v4729 = vsel %vm2743, %v3122, -inf
    %4730 = vmax.xlane.f32.xlu0 %v4729
    %v4731 = vpop.xlane.xlu0 %4730
    %v4732 = vsel %vm2743, %v3150, -inf
    %4733 = vmax.xlane.f32.xlu0 %v4732
    %v4734 = vpop.xlane.xlu0 %4733
    %v4735 = vsel %vm2743, %v3152, -inf
    %4736 = vmax.xlane.f32.xlu0 %v4735
    %v4737 = vpop.xlane.xlu0 %4736
    %v4738 = vsel %vm2743, %v3180, -inf
    %4739 = vmax.xlane.f32.xlu0 %v4738
    %v4740 = vpop.xlane.xlu0 %4739
    %v4741 = vsel %vm2743, %v3182, -inf
    %4742 = vmax.xlane.f32.xlu0 %v4741
    %v4743 = vpop.xlane.xlu0 %4742
    %v4744 = vsel %vm2743, %v3210, -inf
    %4745 = vmax.xlane.f32.xlu0 %v4744
    %v4746 = vpop.xlane.xlu0 %4745
    %v4747 = vsel %vm2743, %v3212, -inf
    %4748 = vmax.xlane.f32.xlu0 %v4747
    %v4749 = vpop.xlane.xlu0 %4748
    %v4750 = vsel %vm2743, %v3240, -inf
    %4751 = vmax.xlane.f32.xlu0 %v4750
    %v4752 = vpop.xlane.xlu0 %4751
    %v4753 = vsel %vm2743, %v3242, -inf
    %4754 = vmax.xlane.f32.xlu0 %v4753
    %v4755 = vpop.xlane.xlu0 %4754
    %v4756 = vsel %vm2743, %v3270, -inf
    %4757 = vmax.xlane.f32.xlu0 %v4756
    %v4758 = vpop.xlane.xlu0 %4757
    %v4759 = vsel %vm2743, %v3272, -inf
    %4760 = vmax.xlane.f32.xlu0 %v4759
    %v4761 = vpop.xlane.xlu0 %4760
    %v4762 = vsel %vm2743, %v3300, -inf
    %4763 = vmax.xlane.f32.xlu0 %v4762
    %v4764 = vpop.xlane.xlu0 %4763
    %v4765 = vsel %vm2743, %v3302, -inf
    %4766 = vmax.xlane.f32.xlu0 %v4765
    %v4767 = vpop.xlane.xlu0 %4766
    %v4768 = vsel %vm2743, %v3330, -inf
    %4769 = vmax.xlane.f32.xlu0 %v4768
    %v4770 = vpop.xlane.xlu0 %4769
    %v4771 = vsel %vm2743, %v3332, -inf
    %4772 = vmax.xlane.f32.xlu0 %v4771
    %v4773 = vpop.xlane.xlu0 %4772
    %v4774 = vsel %vm2743, %v3360, -inf
    %4775 = vmax.xlane.f32.xlu0 %v4774
    %v4776 = vpop.xlane.xlu0 %4775
    %v4777 = vsel %vm2743, %v3362, -inf
    %4778 = vmax.xlane.f32.xlu0 %v4777
    %v4779 = vpop.xlane.xlu0 %4778
    %v4780 = vsel %vm2743, %v3390, -inf
    %4781 = vmax.xlane.f32.xlu0 %v4780
    %v4782 = vpop.xlane.xlu0 %4781
    %v4783 = vsel %vm2743, %v3392, -inf
    %4784 = vmax.xlane.f32.xlu0 %v4783
    %v4785 = vpop.xlane.xlu0 %4784
    %v4786 = vsel %vm2743, %v3420, -inf
    %4787 = vmax.xlane.f32.xlu0 %v4786
    %v4788 = vpop.xlane.xlu0 %4787
    %v4789 = vsel %vm2743, %v3422, -inf
    %4790 = vmax.xlane.f32.xlu0 %v4789
    %v4791 = vpop.xlane.xlu0 %4790
    %v4792 = vsel %vm2743, %v3450, -inf
    %4793 = vmax.xlane.f32.xlu0 %v4792
    %v4794 = vpop.xlane.xlu0 %4793
    %v4795 = vsel %vm2743, %v3452, -inf
    %4796 = vmax.xlane.f32.xlu0 %v4795
    %v4797 = vpop.xlane.xlu0 %4796
    %v4798 = vsel %vm2743, %v3480, -inf
    %4799 = vmax.xlane.f32.xlu0 %v4798
    %v4800 = vpop.xlane.xlu0 %4799
    %v4801 = vsel %vm2743, %v3482, -inf
    %4802 = vmax.xlane.f32.xlu0 %v4801
    %v4803 = vpop.xlane.xlu0 %4802
    %v4804 = vsel %vm2743, %v3510, -inf
    %4805 = vmax.xlane.f32.xlu0 %v4804
    %v4806 = vpop.xlane.xlu0 %4805
    %v4807 = vsel %vm2743, %v3512, -inf
    %4808 = vmax.xlane.f32.xlu0 %v4807
    %v4809 = vpop.xlane.xlu0 %4808
    %v4810 = vsel %vm2743, %v3540, -inf
    %4811 = vmax.xlane.f32.xlu0 %v4810
    %v4812 = vpop.xlane.xlu0 %4811
    %v4813 = vsel %vm2743, %v3542, -inf
    %4814 = vmax.xlane.f32.xlu0 %v4813
    %v4815 = vpop.xlane.xlu0 %4814
    %v4816 = vsel %vm2743, %v3570, -inf
    %4817 = vmax.xlane.f32.xlu0 %v4816
    %v4818 = vpop.xlane.xlu0 %4817
    %v4819 = vsel %vm2743, %v3572, -inf
    %4820 = vmax.xlane.f32.xlu0 %v4819
    %v4821 = vpop.xlane.xlu0 %4820
    %v4822 = vsel %vm2743, %v3600, -inf
    %4823 = vmax.xlane.f32.xlu0 %v4822
    %v4824 = vpop.xlane.xlu0 %4823
    %v4825 = vsel %vm2743, %v3602, -inf
    %4826 = vmax.xlane.f32.xlu0 %v4825
    %v4827 = vpop.xlane.xlu0 %4826
    %v4828 = vsel %vm2743, %v3630, -inf
    %4829 = vmax.xlane.f32.xlu0 %v4828
    %v4830 = vpop.xlane.xlu0 %4829
    %v4831 = vsel %vm2743, %v3632, -inf
    %4832 = vmax.xlane.f32.xlu0 %v4831
    %v4833 = vpop.xlane.xlu0 %4832
    %v4834 = vsel %vm2743, %v3660, -inf
    %4835 = vmax.xlane.f32.xlu0 %v4834
    %v4836 = vpop.xlane.xlu0 %4835
    %v4837 = vsel %vm2743, %v3662, -inf
    %4838 = vmax.xlane.f32.xlu0 %v4837
    %v4839 = vpop.xlane.xlu0 %4838
    %v4840 = vsel %vm2743, %v3690, -inf
    %4841 = vmax.xlane.f32.xlu0 %v4840
    %v4842 = vpop.xlane.xlu0 %4841
    %v4843 = vsel %vm2743, %v3692, -inf
    %4844 = vmax.xlane.f32.xlu0 %v4843
    %v4845 = vpop.xlane.xlu0 %4844
    %v4846 = vsel %vm2743, %v3720, -inf
    %4847 = vmax.xlane.f32.xlu0 %v4846
    %v4848 = vpop.xlane.xlu0 %4847
    %v4849 = vsel %vm2743, %v3722, -inf
    %4850 = vmax.xlane.f32.xlu0 %v4849
    %v4851 = vpop.xlane.xlu0 %4850
    %v4852 = vsel %vm2743, %v3750, -inf
    %4853 = vmax.xlane.f32.xlu0 %v4852
    %v4854 = vpop.xlane.xlu0 %4853
    %v4855 = vsel %vm2743, %v3752, -inf
    %4856 = vmax.xlane.f32.xlu0 %v4855
    %v4857 = vpop.xlane.xlu0 %4856
    %v4858 = vsel %vm2743, %v3780, -inf
    %4859 = vmax.xlane.f32.xlu0 %v4858
    %v4860 = vpop.xlane.xlu0 %4859
    %v4861 = vsel %vm2743, %v3782, -inf
    %4862 = vmax.xlane.f32.xlu0 %v4861
    %v4863 = vpop.xlane.xlu0 %4862
    %v4864 = vsel %vm2743, %v3810, -inf
    %4865 = vmax.xlane.f32.xlu0 %v4864
    %v4866 = vpop.xlane.xlu0 %4865
    %v4867 = vsel %vm2743, %v3812, -inf
    %4868 = vmax.xlane.f32.xlu0 %v4867
    %v4869 = vpop.xlane.xlu0 %4868
    %v4870 = vsel %vm2743, %v3840, -inf
    %4871 = vmax.xlane.f32.xlu0 %v4870
    %v4872 = vpop.xlane.xlu0 %4871
    %v4873 = vsel %vm2743, %v3842, -inf
    %4874 = vmax.xlane.f32.xlu0 %v4873
    %v4875 = vpop.xlane.xlu0 %4874
    %v4876 = vsel %vm2743, %v3870, -inf
    %4877 = vmax.xlane.f32.xlu0 %v4876
    %v4878 = vpop.xlane.xlu0 %4877
    %v4879 = vsel %vm2743, %v3872, -inf
    %4880 = vmax.xlane.f32.xlu0 %v4879
    %v4881 = vpop.xlane.xlu0 %4880
    %v4882 = vsel %vm2743, %v3900, -inf
    %4883 = vmax.xlane.f32.xlu0 %v4882
    %v4884 = vpop.xlane.xlu0 %4883
    %v4885 = vsel %vm2743, %v3902, -inf
    %4886 = vmax.xlane.f32.xlu0 %v4885
    %v4887 = vpop.xlane.xlu0 %4886
    %v4888 = vsel %vm2743, %v3930, -inf
    %4889 = vmax.xlane.f32.xlu0 %v4888
    %v4890 = vpop.xlane.xlu0 %4889
    %v4891 = vsel %vm2743, %v3932, -inf
    %4892 = vmax.xlane.f32.xlu0 %v4891
    %v4893 = vpop.xlane.xlu0 %4892
    %v4894 = vsel %vm2743, %v3960, -inf
    %4895 = vmax.xlane.f32.xlu0 %v4894
    %v4896 = vpop.xlane.xlu0 %4895
    %v4897 = vsel %vm2743, %v3962, -inf
    %4898 = vmax.xlane.f32.xlu0 %v4897
    %v4899 = vpop.xlane.xlu0 %4898
    %v4900 = vsel %vm2743, %v3990, -inf
    %4901 = vmax.xlane.f32.xlu0 %v4900
    %v4902 = vpop.xlane.xlu0 %4901
    %v4903 = vsel %vm2743, %v3992, -inf
    %4904 = vmax.xlane.f32.xlu0 %v4903
    %v4905 = vpop.xlane.xlu0 %4904
    %v4906 = vsel %vm2743, %v4020, -inf
    %4907 = vmax.xlane.f32.xlu0 %v4906
    %v4908 = vpop.xlane.xlu0 %4907
    %v4909 = vsel %vm2743, %v4022, -inf
    %4910 = vmax.xlane.f32.xlu0 %v4909
    %v4911 = vpop.xlane.xlu0 %4910
    %v4912 = vsel %vm2743, %v4050, -inf
    %4913 = vmax.xlane.f32.xlu0 %v4912
    %v4914 = vpop.xlane.xlu0 %4913
    %v4915 = vsel %vm2743, %v4052, -inf
    %4916 = vmax.xlane.f32.xlu0 %v4915
    %v4917 = vpop.xlane.xlu0 %4916
    %v4918 = vsel %vm2743, %v4080, -inf
    %4919 = vmax.xlane.f32.xlu0 %v4918
    %v4920 = vpop.xlane.xlu0 %4919
    %v4921 = vsel %vm2743, %v4082, -inf
    %4922 = vmax.xlane.f32.xlu0 %v4921
    %v4923 = vpop.xlane.xlu0 %4922
    %v4924 = vsel %vm2743, %v4110, -inf
    %4925 = vmax.xlane.f32.xlu0 %v4924
    %v4926 = vpop.xlane.xlu0 %4925
    %v4927 = vsel %vm2743, %v4112, -inf
    %4928 = vmax.xlane.f32.xlu0 %v4927
    %v4929 = vpop.xlane.xlu0 %4928
    %v4930 = vsel %vm2743, %v4140, -inf
    %4931 = vmax.xlane.f32.xlu0 %v4930
    %v4932 = vpop.xlane.xlu0 %4931
    %v4933 = vsel %vm2743, %v4142, -inf
    %4934 = vmax.xlane.f32.xlu0 %v4933
    %v4935 = vpop.xlane.xlu0 %4934
    %v4936 = vsel %vm2743, %v4170, -inf
    %4937 = vmax.xlane.f32.xlu0 %v4936
    %v4938 = vpop.xlane.xlu0 %4937
    %v4939 = vsel %vm2743, %v4172, -inf
    %4940 = vmax.xlane.f32.xlu0 %v4939
    %v4941 = vpop.xlane.xlu0 %4940
    %v4942 = vsel %vm2743, %v4200, -inf
    %4943 = vmax.xlane.f32.xlu0 %v4942
    %v4944 = vpop.xlane.xlu0 %4943
    %v4945 = vsel %vm2743, %v4202, -inf
    %4946 = vmax.xlane.f32.xlu0 %v4945
    %v4947 = vpop.xlane.xlu0 %4946
    %v4948 = vsel %vm2743, %v4230, -inf
    %4949 = vmax.xlane.f32.xlu0 %v4948
    %v4950 = vpop.xlane.xlu0 %4949
    %v4951 = vsel %vm2743, %v4232, -inf
    %4952 = vmax.xlane.f32.xlu0 %v4951
    %v4953 = vpop.xlane.xlu0 %4952
    %v4954 = vsel %vm2743, %v4260, -inf
    %4955 = vmax.xlane.f32.xlu0 %v4954
    %v4956 = vpop.xlane.xlu0 %4955
    %v4957 = vsel %vm2743, %v4262, -inf
    %4958 = vmax.xlane.f32.xlu0 %v4957
    %v4959 = vpop.xlane.xlu0 %4958
    %v4960 = vsel %vm2743, %v4290, -inf
    %4961 = vmax.xlane.f32.xlu0 %v4960
    %v4962 = vpop.xlane.xlu0 %4961
    %v4963 = vsel %vm2743, %v4292, -inf
    %4964 = vmax.xlane.f32.xlu0 %v4963
    %v4965 = vpop.xlane.xlu0 %4964
    %v4966 = vsel %vm2743, %v4320, -inf
    %4967 = vmax.xlane.f32.xlu0 %v4966
    %v4968 = vpop.xlane.xlu0 %4967
    %v4969 = vsel %vm2743, %v4322, -inf
    %4970 = vmax.xlane.f32.xlu0 %v4969
    %v4971 = vpop.xlane.xlu0 %4970
    %v4972 = vsel %vm2743, %v4350, -inf
    %4973 = vmax.xlane.f32.xlu0 %v4972
    %v4974 = vpop.xlane.xlu0 %4973
    %v4975 = vsel %vm2743, %v4352, -inf
    %4976 = vmax.xlane.f32.xlu0 %v4975
    %v4977 = vpop.xlane.xlu0 %4976
    %v4978 = vsel %vm2743, %v4380, -inf
    %4979 = vmax.xlane.f32.xlu0 %v4978
    %v4980 = vpop.xlane.xlu0 %4979
    %v4981 = vsel %vm2743, %v4382, -inf
    %4982 = vmax.xlane.f32.xlu0 %v4981
    %v4983 = vpop.xlane.xlu0 %4982
    %v4984 = vsel %vm2743, %v4410, -inf
    %4985 = vmax.xlane.f32.xlu0 %v4984
    %v4986 = vpop.xlane.xlu0 %4985
    %v4987 = vsel %vm2743, %v4412, -inf
    %4988 = vmax.xlane.f32.xlu0 %v4987
    %v4989 = vpop.xlane.xlu0 %4988
    %v4990 = vsel %vm2743, %v4440, -inf
    %4991 = vmax.xlane.f32.xlu0 %v4990
    %v4992 = vpop.xlane.xlu0 %4991
    %v4993 = vsel %vm2743, %v4442, -inf
    %4994 = vmax.xlane.f32.xlu0 %v4993
    %v4995 = vpop.xlane.xlu0 %4994
    %v4996 = vsel %vm2743, %v4470, -inf
    %4997 = vmax.xlane.f32.xlu0 %v4996
    %v4998 = vpop.xlane.xlu0 %4997
    %v4999 = vsel %vm2743, %v4472, -inf
    %5000 = vmax.xlane.f32.xlu0 %v4999
    %v5001 = vpop.xlane.xlu0 %5000
    %v5002 = vsel %vm2743, %v4500, -inf
    %5003 = vmax.xlane.f32.xlu0 %v5002
    %v5004 = vpop.xlane.xlu0 %5003
    %v5005 = vsel %vm2743, %v4502, -inf
    %5006 = vmax.xlane.f32.xlu0 %v5005
    %v5007 = vpop.xlane.xlu0 %5006
    %v5008 = vsel %vm2743, %v4530, -inf
    %5009 = vmax.xlane.f32.xlu0 %v5008
    %v5010 = vpop.xlane.xlu0 %5009
    %v5011 = vsel %vm2743, %v4532, -inf
    %5012 = vmax.xlane.f32.xlu0 %v5011
    %v5013 = vpop.xlane.xlu0 %5012
    %v5014 = vsel %vm2743, %v4560, -inf
    %5015 = vmax.xlane.f32.xlu0 %v5014
    %v5016 = vpop.xlane.xlu0 %5015
    %v5017 = vsel %vm2743, %v4562, -inf
    %5018 = vmax.xlane.f32.xlu0 %v5017
    %v5019 = vpop.xlane.xlu0 %5018
    %v5020 = vsel %vm2743, %v4590, -inf
    %5021 = vmax.xlane.f32.xlu0 %v5020
    %v5022 = vpop.xlane.xlu0 %5021
    %v5023 = vsel %vm2743, %v4592, -inf
    %5024 = vmax.xlane.f32.xlu0 %v5023
    %v5025 = vpop.xlane.xlu0 %5024
    %v5026 = vsel %vm2743, %v4620, -inf
    %5027 = vmax.xlane.f32.xlu0 %v5026
    %v5028 = vpop.xlane.xlu0 %5027
    %v5029 = vsel %vm2743, %v4622, -inf
    %5030 = vmax.xlane.f32.xlu0 %v5029
    %v5031 = vpop.xlane.xlu0 %5030
    %v5032 = vsel %vm2743, %v4650, -inf
    %5033 = vmax.xlane.f32.xlu0 %v5032
    %v5034 = vpop.xlane.xlu0 %5033
    %v5035 = vsel %vm2743, %v4652, -inf
    %5036 = vmax.xlane.f32.xlu0 %v5035
    %v5037 = vpop.xlane.xlu0 %5036
    %v5038 = vsub.f32 %v2760, %v4656
    %v5039 = vsub.f32 %v2762, %v4659
    %v5040 = vsub.f32 %v2790, %v4662
    %v5041 = vsub.f32 %v2792, %v4665
    %v5042 = vsub.f32 %v2820, %v4668
    %v5043 = vsub.f32 %v2822, %v4671
    %v5044 = vsub.f32 %v2850, %v4674
    %v5045 = vsub.f32 %v2852, %v4677
    %v5046 = vsub.f32 %v2880, %v4680
    %v5047 = vsub.f32 %v2882, %v4683
    %v5048 = vsub.f32 %v2910, %v4686
    %v5049 = vsub.f32 %v2912, %v4689
    %v5050 = vsub.f32 %v2940, %v4692
    %v5051 = vsub.f32 %v2942, %v4695
    %v5052 = vsub.f32 %v2970, %v4698
    %v5053 = vsub.f32 %v2972, %v4701
    %v5054 = vsub.f32 %v3000, %v4704
    %v5055 = vsub.f32 %v3002, %v4707
    %v5056 = vsub.f32 %v3030, %v4710
    %v5057 = vsub.f32 %v3032, %v4713
    %v5058 = vsub.f32 %v3060, %v4716
    %v5059 = vsub.f32 %v3062, %v4719
    %v5060 = vsub.f32 %v3090, %v4722
    %v5061 = vsub.f32 %v3092, %v4725
    %v5062 = vsub.f32 %v3120, %v4728
    %v5063 = vsub.f32 %v3122, %v4731
    %v5064 = vsub.f32 %v3150, %v4734
    %v5065 = vsub.f32 %v3152, %v4737
    %v5066 = vsub.f32 %v3180, %v4740
    %v5067 = vsub.f32 %v3182, %v4743
    %v5068 = vsub.f32 %v3210, %v4746
    %v5069 = vsub.f32 %v3212, %v4749
    %v5070 = vsub.f32 %v3240, %v4752
    %v5071 = vsub.f32 %v3242, %v4755
    %v5072 = vsub.f32 %v3270, %v4758
    %v5073 = vsub.f32 %v3272, %v4761
    %v5074 = vsub.f32 %v3300, %v4764
    %v5075 = vsub.f32 %v3302, %v4767
    %v5076 = vsub.f32 %v3330, %v4770
    %v5077 = vsub.f32 %v3332, %v4773
    %v5078 = vsub.f32 %v3360, %v4776
    %v5079 = vsub.f32 %v3362, %v4779
    %v5080 = vsub.f32 %v3390, %v4782
    %v5081 = vsub.f32 %v3392, %v4785
    %v5082 = vsub.f32 %v3420, %v4788
    %v5083 = vsub.f32 %v3422, %v4791
    %v5084 = vsub.f32 %v3450, %v4794
    %v5085 = vsub.f32 %v3452, %v4797
    %v5086 = vsub.f32 %v3480, %v4800
    %v5087 = vsub.f32 %v3482, %v4803
    %v5088 = vsub.f32 %v3510, %v4806
    %v5089 = vsub.f32 %v3512, %v4809
    %v5090 = vsub.f32 %v3540, %v4812
    %v5091 = vsub.f32 %v3542, %v4815
    %v5092 = vsub.f32 %v3570, %v4818
    %v5093 = vsub.f32 %v3572, %v4821
    %v5094 = vsub.f32 %v3600, %v4824
    %v5095 = vsub.f32 %v3602, %v4827
    %v5096 = vsub.f32 %v3630, %v4830
    %v5097 = vsub.f32 %v3632, %v4833
    %v5098 = vsub.f32 %v3660, %v4836
    %v5099 = vsub.f32 %v3662, %v4839
    %v5100 = vsub.f32 %v3690, %v4842
    %v5101 = vsub.f32 %v3692, %v4845
    %v5102 = vsub.f32 %v3720, %v4848
    %v5103 = vsub.f32 %v3722, %v4851
    %v5104 = vsub.f32 %v3750, %v4854
    %v5105 = vsub.f32 %v3752, %v4857
    %v5106 = vsub.f32 %v3780, %v4860
    %v5107 = vsub.f32 %v3782, %v4863
    %v5108 = vsub.f32 %v3810, %v4866
    %v5109 = vsub.f32 %v3812, %v4869
    %v5110 = vsub.f32 %v3840, %v4872
    %v5111 = vsub.f32 %v3842, %v4875
    %v5112 = vsub.f32 %v3870, %v4878
    %v5113 = vsub.f32 %v3872, %v4881
    %v5114 = vsub.f32 %v3900, %v4884
    %v5115 = vsub.f32 %v3902, %v4887
    %v5116 = vsub.f32 %v3930, %v4890
    %v5117 = vsub.f32 %v3932, %v4893
    %v5118 = vsub.f32 %v3960, %v4896
    %v5119 = vsub.f32 %v3962, %v4899
    %v5120 = vsub.f32 %v3990, %v4902
    %v5121 = vsub.f32 %v3992, %v4905
    %v5122 = vsub.f32 %v4020, %v4908
    %v5123 = vsub.f32 %v4022, %v4911
    %v5124 = vsub.f32 %v4050, %v4914
    %v5125 = vsub.f32 %v4052, %v4917
    %v5126 = vsub.f32 %v4080, %v4920
    %v5127 = vsub.f32 %v4082, %v4923
    %v5128 = vsub.f32 %v4110, %v4926
    %v5129 = vsub.f32 %v4112, %v4929
    %v5130 = vsub.f32 %v4140, %v4932
    %v5131 = vsub.f32 %v4142, %v4935
    %v5132 = vsub.f32 %v4170, %v4938
    %v5133 = vsub.f32 %v4172, %v4941
    %v5134 = vsub.f32 %v4200, %v4944
    %v5135 = vsub.f32 %v4202, %v4947
    %v5136 = vsub.f32 %v4230, %v4950
    %v5137 = vsub.f32 %v4232, %v4953
    %v5138 = vsub.f32 %v4260, %v4956
    %v5139 = vsub.f32 %v4262, %v4959
    %v5140 = vsub.f32 %v4290, %v4962
    %v5141 = vsub.f32 %v4292, %v4965
    %v5142 = vsub.f32 %v4320, %v4968
    %v5143 = vsub.f32 %v4322, %v4971
    %v5144 = vsub.f32 %v4350, %v4974
    %v5145 = vsub.f32 %v4352, %v4977
    %v5146 = vsub.f32 %v4380, %v4980
    %v5147 = vsub.f32 %v4382, %v4983
    %v5148 = vsub.f32 %v4410, %v4986
    %v5149 = vsub.f32 %v4412, %v4989
    %v5150 = vsub.f32 %v4440, %v4992
    %v5151 = vsub.f32 %v4442, %v4995
    %v5152 = vsub.f32 %v4470, %v4998
    %v5153 = vsub.f32 %v4472, %v5001
    %v5154 = vsub.f32 %v4500, %v5004
    %v5155 = vsub.f32 %v4502, %v5007
    %v5156 = vsub.f32 %v4530, %v5010
    %v5157 = vsub.f32 %v4532, %v5013
    %v5158 = vsub.f32 %v4560, %v5016
    %v5159 = vsub.f32 %v4562, %v5019
    %v5160 = vsub.f32 %v4590, %v5022
    %v5161 = vsub.f32 %v4592, %v5025
    %v5162 = vsub.f32 %v4620, %v5028
    %v5163 = vsub.f32 %v4622, %v5031
    %v5164 = vsub.f32 %v4650, %v5034
    %v5165 = vsub.f32 %v4652, %v5037
    %v5166 = vmul.f32 %v5038, 1.442695
    %v5167 = vpow.pop %v5166
    %v5168 = vmul.f32 %v5039, 1.442695
    %v5169 = vpow.pop %v5168
    %v5170 = vmul.f32 %v5040, 1.442695
    %v5171 = vpow.pop %v5170
    %v5172 = vmul.f32 %v5041, 1.442695
    %v5173 = vpow.pop %v5172
    %v5174 = vmul.f32 %v5042, 1.442695
    %v5175 = vpow.pop %v5174
    %v5176 = vmul.f32 %v5043, 1.442695
    %v5177 = vpow.pop %v5176
    %v5178 = vmul.f32 %v5044, 1.442695
    %v5179 = vpow.pop %v5178
    %v5180 = vmul.f32 %v5045, 1.442695
    %v5181 = vpow.pop %v5180
    %v5182 = vmul.f32 %v5046, 1.442695
    %v5183 = vpow.pop %v5182
    %v5184 = vmul.f32 %v5047, 1.442695
    %v5185 = vpow.pop %v5184
    %v5186 = vmul.f32 %v5048, 1.442695
    %v5187 = vpow.pop %v5186
    %v5188 = vmul.f32 %v5049, 1.442695
    %v5189 = vpow.pop %v5188
    %v5190 = vmul.f32 %v5050, 1.442695
    %v5191 = vpow.pop %v5190
    %v5192 = vmul.f32 %v5051, 1.442695
    %v5193 = vpow.pop %v5192
    %v5194 = vmul.f32 %v5052, 1.442695
    %v5195 = vpow.pop %v5194
    %v5196 = vmul.f32 %v5053, 1.442695
    %v5197 = vpow.pop %v5196
    %v5198 = vmul.f32 %v5054, 1.442695
    %v5199 = vpow.pop %v5198
    %v5200 = vmul.f32 %v5055, 1.442695
    %v5201 = vpow.pop %v5200
    %v5202 = vmul.f32 %v5056, 1.442695
    %v5203 = vpow.pop %v5202
    %v5204 = vmul.f32 %v5057, 1.442695
    %v5205 = vpow.pop %v5204
    %v5206 = vmul.f32 %v5058, 1.442695
    %v5207 = vpow.pop %v5206
    %v5208 = vmul.f32 %v5059, 1.442695
    %v5209 = vpow.pop %v5208
    %v5210 = vmul.f32 %v5060, 1.442695
    %v5211 = vpow.pop %v5210
    %v5212 = vmul.f32 %v5061, 1.442695
    %v5213 = vpow.pop %v5212
    %v5214 = vmul.f32 %v5062, 1.442695
    %v5215 = vpow.pop %v5214
    %v5216 = vmul.f32 %v5063, 1.442695
    %v5217 = vpow.pop %v5216
    %v5218 = vmul.f32 %v5064, 1.442695
    %v5219 = vpow.pop %v5218
    %v5220 = vmul.f32 %v5065, 1.442695
    %v5221 = vpow.pop %v5220
    %v5222 = vmul.f32 %v5066, 1.442695
    %v5223 = vpow.pop %v5222
    %v5224 = vmul.f32 %v5067, 1.442695
    %v5225 = vpow.pop %v5224
    %v5226 = vmul.f32 %v5068, 1.442695
    %v5227 = vpow.pop %v5226
    %v5228 = vmul.f32 %v5069, 1.442695
    %v5229 = vpow.pop %v5228
    %v5230 = vmul.f32 %v5070, 1.442695
    %v5231 = vpow.pop %v5230
    %v5232 = vmul.f32 %v5071, 1.442695
    %v5233 = vpow.pop %v5232
    %v5234 = vmul.f32 %v5072, 1.442695
    %v5235 = vpow.pop %v5234
    %v5236 = vmul.f32 %v5073, 1.442695
    %v5237 = vpow.pop %v5236
    %v5238 = vmul.f32 %v5074, 1.442695
    %v5239 = vpow.pop %v5238
    %v5240 = vmul.f32 %v5075, 1.442695
    %v5241 = vpow.pop %v5240
    %v5242 = vmul.f32 %v5076, 1.442695
    %v5243 = vpow.pop %v5242
    %v5244 = vmul.f32 %v5077, 1.442695
    %v5245 = vpow.pop %v5244
    %v5246 = vmul.f32 %v5078, 1.442695
    %v5247 = vpow.pop %v5246
    %v5248 = vmul.f32 %v5079, 1.442695
    %v5249 = vpow.pop %v5248
    %v5250 = vmul.f32 %v5080, 1.442695
    %v5251 = vpow.pop %v5250
    %v5252 = vmul.f32 %v5081, 1.442695
    %v5253 = vpow.pop %v5252
    %v5254 = vmul.f32 %v5082, 1.442695
    %v5255 = vpow.pop %v5254
    %v5256 = vmul.f32 %v5083, 1.442695
    %v5257 = vpow.pop %v5256
    %v5258 = vmul.f32 %v5084, 1.442695
    %v5259 = vpow.pop %v5258
    %v5260 = vmul.f32 %v5085, 1.442695
    %v5261 = vpow.pop %v5260
    %v5262 = vmul.f32 %v5086, 1.442695
    %v5263 = vpow.pop %v5262
    %v5264 = vmul.f32 %v5087, 1.442695
    %v5265 = vpow.pop %v5264
    %v5266 = vmul.f32 %v5088, 1.442695
    %v5267 = vpow.pop %v5266
    %v5268 = vmul.f32 %v5089, 1.442695
    %v5269 = vpow.pop %v5268
    %v5270 = vmul.f32 %v5090, 1.442695
    %v5271 = vpow.pop %v5270
    %v5272 = vmul.f32 %v5091, 1.442695
    %v5273 = vpow.pop %v5272
    %v5274 = vmul.f32 %v5092, 1.442695
    %v5275 = vpow.pop %v5274
    %v5276 = vmul.f32 %v5093, 1.442695
    %v5277 = vpow.pop %v5276
    %v5278 = vmul.f32 %v5094, 1.442695
    %v5279 = vpow.pop %v5278
    %v5280 = vmul.f32 %v5095, 1.442695
    %v5281 = vpow.pop %v5280
    %v5282 = vmul.f32 %v5096, 1.442695
    %v5283 = vpow.pop %v5282
    %v5284 = vmul.f32 %v5097, 1.442695
    %v5285 = vpow.pop %v5284
    %v5286 = vmul.f32 %v5098, 1.442695
    %v5287 = vpow.pop %v5286
    %v5288 = vmul.f32 %v5099, 1.442695
    %v5289 = vpow.pop %v5288
    %v5290 = vmul.f32 %v5100, 1.442695
    %v5291 = vpow.pop %v5290
    %v5292 = vmul.f32 %v5101, 1.442695
    %v5293 = vpow.pop %v5292
    %v5294 = vmul.f32 %v5102, 1.442695
    %v5295 = vpow.pop %v5294
    %v5296 = vmul.f32 %v5103, 1.442695
    %v5297 = vpow.pop %v5296
    %v5298 = vmul.f32 %v5104, 1.442695
    %v5299 = vpow.pop %v5298
    %v5300 = vmul.f32 %v5105, 1.442695
    %v5301 = vpow.pop %v5300
    %v5302 = vmul.f32 %v5106, 1.442695
    %v5303 = vpow.pop %v5302
    %v5304 = vmul.f32 %v5107, 1.442695
    %v5305 = vpow.pop %v5304
    %v5306 = vmul.f32 %v5108, 1.442695
    %v5307 = vpow.pop %v5306
    %v5308 = vmul.f32 %v5109, 1.442695
    %v5309 = vpow.pop %v5308
    %v5310 = vmul.f32 %v5110, 1.442695
    %v5311 = vpow.pop %v5310
    %v5312 = vmul.f32 %v5111, 1.442695
    %v5313 = vpow.pop %v5312
    %v5314 = vmul.f32 %v5112, 1.442695
    %v5315 = vpow.pop %v5314
    %v5316 = vmul.f32 %v5113, 1.442695
    %v5317 = vpow.pop %v5316
    %v5318 = vmul.f32 %v5114, 1.442695
    %v5319 = vpow.pop %v5318
    %v5320 = vmul.f32 %v5115, 1.442695
    %v5321 = vpow.pop %v5320
    %v5322 = vmul.f32 %v5116, 1.442695
    %v5323 = vpow.pop %v5322
    %v5324 = vmul.f32 %v5117, 1.442695
    %v5325 = vpow.pop %v5324
    %v5326 = vmul.f32 %v5118, 1.442695
    %v5327 = vpow.pop %v5326
    %v5328 = vmul.f32 %v5119, 1.442695
    %v5329 = vpow.pop %v5328
    %v5330 = vmul.f32 %v5120, 1.442695
    %v5331 = vpow.pop %v5330
    %v5332 = vmul.f32 %v5121, 1.442695
    %v5333 = vpow.pop %v5332
    %v5334 = vmul.f32 %v5122, 1.442695
    %v5335 = vpow.pop %v5334
    %v5336 = vmul.f32 %v5123, 1.442695
    %v5337 = vpow.pop %v5336
    %v5338 = vmul.f32 %v5124, 1.442695
    %v5339 = vpow.pop %v5338
    %v5340 = vmul.f32 %v5125, 1.442695
    %v5341 = vpow.pop %v5340
    %v5342 = vmul.f32 %v5126, 1.442695
    %v5343 = vpow.pop %v5342
    %v5344 = vmul.f32 %v5127, 1.442695
    %v5345 = vpow.pop %v5344
    %v5346 = vmul.f32 %v5128, 1.442695
    %v5347 = vpow.pop %v5346
    %v5348 = vmul.f32 %v5129, 1.442695
    %v5349 = vpow.pop %v5348
    %v5350 = vmul.f32 %v5130, 1.442695
    %v5351 = vpow.pop %v5350
    %v5352 = vmul.f32 %v5131, 1.442695
    %v5353 = vpow.pop %v5352
    %v5354 = vmul.f32 %v5132, 1.442695
    %v5355 = vpow.pop %v5354
    %v5356 = vmul.f32 %v5133, 1.442695
    %v5357 = vpow.pop %v5356
    %v5358 = vmul.f32 %v5134, 1.442695
    %v5359 = vpow.pop %v5358
    %v5360 = vmul.f32 %v5135, 1.442695
    %v5361 = vpow.pop %v5360
    %v5362 = vmul.f32 %v5136, 1.442695
    %v5363 = vpow.pop %v5362
    %v5364 = vmul.f32 %v5137, 1.442695
    %v5365 = vpow.pop %v5364
    %v5366 = vmul.f32 %v5138, 1.442695
    %v5367 = vpow.pop %v5366
    %v5368 = vmul.f32 %v5139, 1.442695
    %v5369 = vpow.pop %v5368
    %v5370 = vmul.f32 %v5140, 1.442695
    %v5371 = vpow.pop %v5370
    %v5372 = vmul.f32 %v5141, 1.442695
    %v5373 = vpow.pop %v5372
    %v5374 = vmul.f32 %v5142, 1.442695
    %v5375 = vpow.pop %v5374
    %v5376 = vmul.f32 %v5143, 1.442695
    %v5377 = vpow.pop %v5376
    %v5378 = vmul.f32 %v5144, 1.442695
    %v5379 = vpow.pop %v5378
    %v5380 = vmul.f32 %v5145, 1.442695
    %v5381 = vpow.pop %v5380
    %v5382 = vmul.f32 %v5146, 1.442695
    %v5383 = vpow.pop %v5382
    %v5384 = vmul.f32 %v5147, 1.442695
    %v5385 = vpow.pop %v5384
    %v5386 = vmul.f32 %v5148, 1.442695
    %v5387 = vpow.pop %v5386
    %v5388 = vmul.f32 %v5149, 1.442695
    %v5389 = vpow.pop %v5388
    %v5390 = vmul.f32 %v5150, 1.442695
    %v5391 = vpow.pop %v5390
    %v5392 = vmul.f32 %v5151, 1.442695
    %v5393 = vpow.pop %v5392
    %v5394 = vmul.f32 %v5152, 1.442695
    %v5395 = vpow.pop %v5394
    %v5396 = vmul.f32 %v5153, 1.442695
    %v5397 = vpow.pop %v5396
    %v5398 = vmul.f32 %v5154, 1.442695
    %v5399 = vpow.pop %v5398
    %v5400 = vmul.f32 %v5155, 1.442695
    %v5401 = vpow.pop %v5400
    %v5402 = vmul.f32 %v5156, 1.442695
    %v5403 = vpow.pop %v5402
    %v5404 = vmul.f32 %v5157, 1.442695
    %v5405 = vpow.pop %v5404
    %v5406 = vmul.f32 %v5158, 1.442695
    %v5407 = vpow.pop %v5406
    %v5408 = vmul.f32 %v5159, 1.442695
    %v5409 = vpow.pop %v5408
    %v5410 = vmul.f32 %v5160, 1.442695
    %v5411 = vpow.pop %v5410
    %v5412 = vmul.f32 %v5161, 1.442695
    %v5413 = vpow.pop %v5412
    %v5414 = vmul.f32 %v5162, 1.442695
    %v5415 = vpow.pop %v5414
    %v5416 = vmul.f32 %v5163, 1.442695
    %v5417 = vpow.pop %v5416
    %v5418 = vmul.f32 %v5164, 1.442695
    %v5419 = vpow.pop %v5418
    %v5420 = vmul.f32 %v5165, 1.442695
    %v5421 = vpow.pop %v5420
    %v5422 = vsel %vm2743, %v5167, 0.0
    %5423 = vadd.xlane.f32.xlu0 %v5422
    %v5424 = vpop.xlane.xlu0 %5423
    %v5425 = vsel %vm2743, %v5169, 0.0
    %5426 = vadd.xlane.f32.xlu0 %v5425
    %v5427 = vpop.xlane.xlu0 %5426
    %v5428 = vsel %vm2743, %v5171, 0.0
    %5429 = vadd.xlane.f32.xlu0 %v5428
    %v5430 = vpop.xlane.xlu0 %5429
    %v5431 = vsel %vm2743, %v5173, 0.0
    %5432 = vadd.xlane.f32.xlu0 %v5431
    %v5433 = vpop.xlane.xlu0 %5432
    %v5434 = vsel %vm2743, %v5175, 0.0
    %5435 = vadd.xlane.f32.xlu0 %v5434
    %v5436 = vpop.xlane.xlu0 %5435
    %v5437 = vsel %vm2743, %v5177, 0.0
    %5438 = vadd.xlane.f32.xlu0 %v5437
    %v5439 = vpop.xlane.xlu0 %5438
    %v5440 = vsel %vm2743, %v5179, 0.0
    %5441 = vadd.xlane.f32.xlu0 %v5440
    %v5442 = vpop.xlane.xlu0 %5441
    %v5443 = vsel %vm2743, %v5181, 0.0
    %5444 = vadd.xlane.f32.xlu0 %v5443
    %v5445 = vpop.xlane.xlu0 %5444
    %v5446 = vsel %vm2743, %v5183, 0.0
    %5447 = vadd.xlane.f32.xlu0 %v5446
    %v5448 = vpop.xlane.xlu0 %5447
    %v5449 = vsel %vm2743, %v5185, 0.0
    %5450 = vadd.xlane.f32.xlu0 %v5449
    %v5451 = vpop.xlane.xlu0 %5450
    %v5452 = vsel %vm2743, %v5187, 0.0
    %5453 = vadd.xlane.f32.xlu0 %v5452
    %v5454 = vpop.xlane.xlu0 %5453
    %v5455 = vsel %vm2743, %v5189, 0.0
    %5456 = vadd.xlane.f32.xlu0 %v5455
    %v5457 = vpop.xlane.xlu0 %5456
    %v5458 = vsel %vm2743, %v5191, 0.0
    %5459 = vadd.xlane.f32.xlu0 %v5458
    %v5460 = vpop.xlane.xlu0 %5459
    %v5461 = vsel %vm2743, %v5193, 0.0
    %5462 = vadd.xlane.f32.xlu0 %v5461
    %v5463 = vpop.xlane.xlu0 %5462
    %v5464 = vsel %vm2743, %v5195, 0.0
    %5465 = vadd.xlane.f32.xlu0 %v5464
    %v5466 = vpop.xlane.xlu0 %5465
    %v5467 = vsel %vm2743, %v5197, 0.0
    %5468 = vadd.xlane.f32.xlu0 %v5467
    %v5469 = vpop.xlane.xlu0 %5468
    %v5470 = vsel %vm2743, %v5199, 0.0
    %5471 = vadd.xlane.f32.xlu0 %v5470
    %v5472 = vpop.xlane.xlu0 %5471
    %v5473 = vsel %vm2743, %v5201, 0.0
    %5474 = vadd.xlane.f32.xlu0 %v5473
    %v5475 = vpop.xlane.xlu0 %5474
    %v5476 = vsel %vm2743, %v5203, 0.0
    %5477 = vadd.xlane.f32.xlu0 %v5476
    %v5478 = vpop.xlane.xlu0 %5477
    %v5479 = vsel %vm2743, %v5205, 0.0
    %5480 = vadd.xlane.f32.xlu0 %v5479
    %v5481 = vpop.xlane.xlu0 %5480
    %v5482 = vsel %vm2743, %v5207, 0.0
    %5483 = vadd.xlane.f32.xlu0 %v5482
    %v5484 = vpop.xlane.xlu0 %5483
    %v5485 = vsel %vm2743, %v5209, 0.0
    %5486 = vadd.xlane.f32.xlu0 %v5485
    %v5487 = vpop.xlane.xlu0 %5486
    %v5488 = vsel %vm2743, %v5211, 0.0
    %5489 = vadd.xlane.f32.xlu0 %v5488
    %v5490 = vpop.xlane.xlu0 %5489
    %v5491 = vsel %vm2743, %v5213, 0.0
    %5492 = vadd.xlane.f32.xlu0 %v5491
    %v5493 = vpop.xlane.xlu0 %5492
    %v5494 = vsel %vm2743, %v5215, 0.0
    %5495 = vadd.xlane.f32.xlu0 %v5494
    %v5496 = vpop.xlane.xlu0 %5495
    %v5497 = vsel %vm2743, %v5217, 0.0
    %5498 = vadd.xlane.f32.xlu0 %v5497
    %v5499 = vpop.xlane.xlu0 %5498
    %v5500 = vsel %vm2743, %v5219, 0.0
    %5501 = vadd.xlane.f32.xlu0 %v5500
    %v5502 = vpop.xlane.xlu0 %5501
    %v5503 = vsel %vm2743, %v5221, 0.0
    %5504 = vadd.xlane.f32.xlu0 %v5503
    %v5505 = vpop.xlane.xlu0 %5504
    %v5506 = vsel %vm2743, %v5223, 0.0
    %5507 = vadd.xlane.f32.xlu0 %v5506
    %v5508 = vpop.xlane.xlu0 %5507
    %v5509 = vsel %vm2743, %v5225, 0.0
    %5510 = vadd.xlane.f32.xlu0 %v5509
    %v5511 = vpop.xlane.xlu0 %5510
    %v5512 = vsel %vm2743, %v5227, 0.0
    %5513 = vadd.xlane.f32.xlu0 %v5512
    %v5514 = vpop.xlane.xlu0 %5513
    %v5515 = vsel %vm2743, %v5229, 0.0
    %5516 = vadd.xlane.f32.xlu0 %v5515
    %v5517 = vpop.xlane.xlu0 %5516
    %v5518 = vsel %vm2743, %v5231, 0.0
    %5519 = vadd.xlane.f32.xlu0 %v5518
    %v5520 = vpop.xlane.xlu0 %5519
    %v5521 = vsel %vm2743, %v5233, 0.0
    %5522 = vadd.xlane.f32.xlu0 %v5521
    %v5523 = vpop.xlane.xlu0 %5522
    %v5524 = vsel %vm2743, %v5235, 0.0
    %5525 = vadd.xlane.f32.xlu0 %v5524
    %v5526 = vpop.xlane.xlu0 %5525
    %v5527 = vsel %vm2743, %v5237, 0.0
    %5528 = vadd.xlane.f32.xlu0 %v5527
    %v5529 = vpop.xlane.xlu0 %5528
    %v5530 = vsel %vm2743, %v5239, 0.0
    %5531 = vadd.xlane.f32.xlu0 %v5530
    %v5532 = vpop.xlane.xlu0 %5531
    %v5533 = vsel %vm2743, %v5241, 0.0
    %5534 = vadd.xlane.f32.xlu0 %v5533
    %v5535 = vpop.xlane.xlu0 %5534
    %v5536 = vsel %vm2743, %v5243, 0.0
    %5537 = vadd.xlane.f32.xlu0 %v5536
    %v5538 = vpop.xlane.xlu0 %5537
    %v5539 = vsel %vm2743, %v5245, 0.0
    %5540 = vadd.xlane.f32.xlu0 %v5539
    %v5541 = vpop.xlane.xlu0 %5540
    %v5542 = vsel %vm2743, %v5247, 0.0
    %5543 = vadd.xlane.f32.xlu0 %v5542
    %v5544 = vpop.xlane.xlu0 %5543
    %v5545 = vsel %vm2743, %v5249, 0.0
    %5546 = vadd.xlane.f32.xlu0 %v5545
    %v5547 = vpop.xlane.xlu0 %5546
    %v5548 = vsel %vm2743, %v5251, 0.0
    %5549 = vadd.xlane.f32.xlu0 %v5548
    %v5550 = vpop.xlane.xlu0 %5549
    %v5551 = vsel %vm2743, %v5253, 0.0
    %5552 = vadd.xlane.f32.xlu0 %v5551
    %v5553 = vpop.xlane.xlu0 %5552
    %v5554 = vsel %vm2743, %v5255, 0.0
    %5555 = vadd.xlane.f32.xlu0 %v5554
    %v5556 = vpop.xlane.xlu0 %5555
    %v5557 = vsel %vm2743, %v5257, 0.0
    %5558 = vadd.xlane.f32.xlu0 %v5557
    %v5559 = vpop.xlane.xlu0 %5558
    %v5560 = vsel %vm2743, %v5259, 0.0
    %5561 = vadd.xlane.f32.xlu0 %v5560
    %v5562 = vpop.xlane.xlu0 %5561
    %v5563 = vsel %vm2743, %v5261, 0.0
    %5564 = vadd.xlane.f32.xlu0 %v5563
    %v5565 = vpop.xlane.xlu0 %5564
    %v5566 = vsel %vm2743, %v5263, 0.0
    %5567 = vadd.xlane.f32.xlu0 %v5566
    %v5568 = vpop.xlane.xlu0 %5567
    %v5569 = vsel %vm2743, %v5265, 0.0
    %5570 = vadd.xlane.f32.xlu0 %v5569
    %v5571 = vpop.xlane.xlu0 %5570
    %v5572 = vsel %vm2743, %v5267, 0.0
    %5573 = vadd.xlane.f32.xlu0 %v5572
    %v5574 = vpop.xlane.xlu0 %5573
    %v5575 = vsel %vm2743, %v5269, 0.0
    %5576 = vadd.xlane.f32.xlu0 %v5575
    %v5577 = vpop.xlane.xlu0 %5576
    %v5578 = vsel %vm2743, %v5271, 0.0
    %5579 = vadd.xlane.f32.xlu0 %v5578
    %v5580 = vpop.xlane.xlu0 %5579
    %v5581 = vsel %vm2743, %v5273, 0.0
    %5582 = vadd.xlane.f32.xlu0 %v5581
    %v5583 = vpop.xlane.xlu0 %5582
    %v5584 = vsel %vm2743, %v5275, 0.0
    %5585 = vadd.xlane.f32.xlu0 %v5584
    %v5586 = vpop.xlane.xlu0 %5585
    %v5587 = vsel %vm2743, %v5277, 0.0
    %5588 = vadd.xlane.f32.xlu0 %v5587
    %v5589 = vpop.xlane.xlu0 %5588
    %v5590 = vsel %vm2743, %v5279, 0.0
    %5591 = vadd.xlane.f32.xlu0 %v5590
    %v5592 = vpop.xlane.xlu0 %5591
    %v5593 = vsel %vm2743, %v5281, 0.0
    %5594 = vadd.xlane.f32.xlu0 %v5593
    %v5595 = vpop.xlane.xlu0 %5594
    %v5596 = vsel %vm2743, %v5283, 0.0
    %5597 = vadd.xlane.f32.xlu0 %v5596
    %v5598 = vpop.xlane.xlu0 %5597
    %v5599 = vsel %vm2743, %v5285, 0.0
    %5600 = vadd.xlane.f32.xlu0 %v5599
    %v5601 = vpop.xlane.xlu0 %5600
    %v5602 = vsel %vm2743, %v5287, 0.0
    %5603 = vadd.xlane.f32.xlu0 %v5602
    %v5604 = vpop.xlane.xlu0 %5603
    %v5605 = vsel %vm2743, %v5289, 0.0
    %5606 = vadd.xlane.f32.xlu0 %v5605
    %v5607 = vpop.xlane.xlu0 %5606
    %v5608 = vsel %vm2743, %v5291, 0.0
    %5609 = vadd.xlane.f32.xlu0 %v5608
    %v5610 = vpop.xlane.xlu0 %5609
    %v5611 = vsel %vm2743, %v5293, 0.0
    %5612 = vadd.xlane.f32.xlu0 %v5611
    %v5613 = vpop.xlane.xlu0 %5612
    %v5614 = vsel %vm2743, %v5295, 0.0
    %5615 = vadd.xlane.f32.xlu0 %v5614
    %v5616 = vpop.xlane.xlu0 %5615
    %v5617 = vsel %vm2743, %v5297, 0.0
    %5618 = vadd.xlane.f32.xlu0 %v5617
    %v5619 = vpop.xlane.xlu0 %5618
    %v5620 = vsel %vm2743, %v5299, 0.0
    %5621 = vadd.xlane.f32.xlu0 %v5620
    %v5622 = vpop.xlane.xlu0 %5621
    %v5623 = vsel %vm2743, %v5301, 0.0
    %5624 = vadd.xlane.f32.xlu0 %v5623
    %v5625 = vpop.xlane.xlu0 %5624
    %v5626 = vsel %vm2743, %v5303, 0.0
    %5627 = vadd.xlane.f32.xlu0 %v5626
    %v5628 = vpop.xlane.xlu0 %5627
    %v5629 = vsel %vm2743, %v5305, 0.0
    %5630 = vadd.xlane.f32.xlu0 %v5629
    %v5631 = vpop.xlane.xlu0 %5630
    %v5632 = vsel %vm2743, %v5307, 0.0
    %5633 = vadd.xlane.f32.xlu0 %v5632
    %v5634 = vpop.xlane.xlu0 %5633
    %v5635 = vsel %vm2743, %v5309, 0.0
    %5636 = vadd.xlane.f32.xlu0 %v5635
    %v5637 = vpop.xlane.xlu0 %5636
    %v5638 = vsel %vm2743, %v5311, 0.0
    %5639 = vadd.xlane.f32.xlu0 %v5638
    %v5640 = vpop.xlane.xlu0 %5639
    %v5641 = vsel %vm2743, %v5313, 0.0
    %5642 = vadd.xlane.f32.xlu0 %v5641
    %v5643 = vpop.xlane.xlu0 %5642
    %v5644 = vsel %vm2743, %v5315, 0.0
    %5645 = vadd.xlane.f32.xlu0 %v5644
    %v5646 = vpop.xlane.xlu0 %5645
    %v5647 = vsel %vm2743, %v5317, 0.0
    %5648 = vadd.xlane.f32.xlu0 %v5647
    %v5649 = vpop.xlane.xlu0 %5648
    %v5650 = vsel %vm2743, %v5319, 0.0
    %5651 = vadd.xlane.f32.xlu0 %v5650
    %v5652 = vpop.xlane.xlu0 %5651
    %v5653 = vsel %vm2743, %v5321, 0.0
    %5654 = vadd.xlane.f32.xlu0 %v5653
    %v5655 = vpop.xlane.xlu0 %5654
    %v5656 = vsel %vm2743, %v5323, 0.0
    %5657 = vadd.xlane.f32.xlu0 %v5656
    %v5658 = vpop.xlane.xlu0 %5657
    %v5659 = vsel %vm2743, %v5325, 0.0
    %5660 = vadd.xlane.f32.xlu0 %v5659
    %v5661 = vpop.xlane.xlu0 %5660
    %v5662 = vsel %vm2743, %v5327, 0.0
    %5663 = vadd.xlane.f32.xlu0 %v5662
    %v5664 = vpop.xlane.xlu0 %5663
    %v5665 = vsel %vm2743, %v5329, 0.0
    %5666 = vadd.xlane.f32.xlu0 %v5665
    %v5667 = vpop.xlane.xlu0 %5666
    %v5668 = vsel %vm2743, %v5331, 0.0
    %5669 = vadd.xlane.f32.xlu0 %v5668
    %v5670 = vpop.xlane.xlu0 %5669
    %v5671 = vsel %vm2743, %v5333, 0.0
    %5672 = vadd.xlane.f32.xlu0 %v5671
    %v5673 = vpop.xlane.xlu0 %5672
    %v5674 = vsel %vm2743, %v5335, 0.0
    %5675 = vadd.xlane.f32.xlu0 %v5674
    %v5676 = vpop.xlane.xlu0 %5675
    %v5677 = vsel %vm2743, %v5337, 0.0
    %5678 = vadd.xlane.f32.xlu0 %v5677
    %v5679 = vpop.xlane.xlu0 %5678
    %v5680 = vsel %vm2743, %v5339, 0.0
    %5681 = vadd.xlane.f32.xlu0 %v5680
    %v5682 = vpop.xlane.xlu0 %5681
    %v5683 = vsel %vm2743, %v5341, 0.0
    %5684 = vadd.xlane.f32.xlu0 %v5683
    %v5685 = vpop.xlane.xlu0 %5684
    %v5686 = vsel %vm2743, %v5343, 0.0
    %5687 = vadd.xlane.f32.xlu0 %v5686
    %v5688 = vpop.xlane.xlu0 %5687
    %v5689 = vsel %vm2743, %v5345, 0.0
    %5690 = vadd.xlane.f32.xlu0 %v5689
    %v5691 = vpop.xlane.xlu0 %5690
    %v5692 = vsel %vm2743, %v5347, 0.0
    %5693 = vadd.xlane.f32.xlu0 %v5692
    %v5694 = vpop.xlane.xlu0 %5693
    %v5695 = vsel %vm2743, %v5349, 0.0
    %5696 = vadd.xlane.f32.xlu0 %v5695
    %v5697 = vpop.xlane.xlu0 %5696
    %v5698 = vsel %vm2743, %v5351, 0.0
    %5699 = vadd.xlane.f32.xlu0 %v5698
    %v5700 = vpop.xlane.xlu0 %5699
    %v5701 = vsel %vm2743, %v5353, 0.0
    %5702 = vadd.xlane.f32.xlu0 %v5701
    %v5703 = vpop.xlane.xlu0 %5702
    %v5704 = vsel %vm2743, %v5355, 0.0
    %5705 = vadd.xlane.f32.xlu0 %v5704
    %v5706 = vpop.xlane.xlu0 %5705
    %v5707 = vsel %vm2743, %v5357, 0.0
    %5708 = vadd.xlane.f32.xlu0 %v5707
    %v5709 = vpop.xlane.xlu0 %5708
    %v5710 = vsel %vm2743, %v5359, 0.0
    %5711 = vadd.xlane.f32.xlu0 %v5710
    %v5712 = vpop.xlane.xlu0 %5711
    %v5713 = vsel %vm2743, %v5361, 0.0
    %5714 = vadd.xlane.f32.xlu0 %v5713
    %v5715 = vpop.xlane.xlu0 %5714
    %v5716 = vsel %vm2743, %v5363, 0.0
    %5717 = vadd.xlane.f32.xlu0 %v5716
    %v5718 = vpop.xlane.xlu0 %5717
    %v5719 = vsel %vm2743, %v5365, 0.0
    %5720 = vadd.xlane.f32.xlu0 %v5719
    %v5721 = vpop.xlane.xlu0 %5720
    %v5722 = vsel %vm2743, %v5367, 0.0
    %5723 = vadd.xlane.f32.xlu0 %v5722
    %v5724 = vpop.xlane.xlu0 %5723
    %v5725 = vsel %vm2743, %v5369, 0.0
    %5726 = vadd.xlane.f32.xlu0 %v5725
    %v5727 = vpop.xlane.xlu0 %5726
    %v5728 = vsel %vm2743, %v5371, 0.0
    %5729 = vadd.xlane.f32.xlu0 %v5728
    %v5730 = vpop.xlane.xlu0 %5729
    %v5731 = vsel %vm2743, %v5373, 0.0
    %5732 = vadd.xlane.f32.xlu0 %v5731
    %v5733 = vpop.xlane.xlu0 %5732
    %v5734 = vsel %vm2743, %v5375, 0.0
    %5735 = vadd.xlane.f32.xlu0 %v5734
    %v5736 = vpop.xlane.xlu0 %5735
    %v5737 = vsel %vm2743, %v5377, 0.0
    %5738 = vadd.xlane.f32.xlu0 %v5737
    %v5739 = vpop.xlane.xlu0 %5738
    %v5740 = vsel %vm2743, %v5379, 0.0
    %5741 = vadd.xlane.f32.xlu0 %v5740
    %v5742 = vpop.xlane.xlu0 %5741
    %v5743 = vsel %vm2743, %v5381, 0.0
    %5744 = vadd.xlane.f32.xlu0 %v5743
    %v5745 = vpop.xlane.xlu0 %5744
    %v5746 = vsel %vm2743, %v5383, 0.0
    %5747 = vadd.xlane.f32.xlu0 %v5746
    %v5748 = vpop.xlane.xlu0 %5747
    %v5749 = vsel %vm2743, %v5385, 0.0
    %5750 = vadd.xlane.f32.xlu0 %v5749
    %v5751 = vpop.xlane.xlu0 %5750
    %v5752 = vsel %vm2743, %v5387, 0.0
    %5753 = vadd.xlane.f32.xlu0 %v5752
    %v5754 = vpop.xlane.xlu0 %5753
    %v5755 = vsel %vm2743, %v5389, 0.0
    %5756 = vadd.xlane.f32.xlu0 %v5755
    %v5757 = vpop.xlane.xlu0 %5756
    %v5758 = vsel %vm2743, %v5391, 0.0
    %5759 = vadd.xlane.f32.xlu0 %v5758
    %v5760 = vpop.xlane.xlu0 %5759
    %v5761 = vsel %vm2743, %v5393, 0.0
    %5762 = vadd.xlane.f32.xlu0 %v5761
    %v5763 = vpop.xlane.xlu0 %5762
    %v5764 = vsel %vm2743, %v5395, 0.0
    %5765 = vadd.xlane.f32.xlu0 %v5764
    %v5766 = vpop.xlane.xlu0 %5765
    %v5767 = vsel %vm2743, %v5397, 0.0
    %5768 = vadd.xlane.f32.xlu0 %v5767
    %v5769 = vpop.xlane.xlu0 %5768
    %v5770 = vsel %vm2743, %v5399, 0.0
    %5771 = vadd.xlane.f32.xlu0 %v5770
    %v5772 = vpop.xlane.xlu0 %5771
    %v5773 = vsel %vm2743, %v5401, 0.0
    %5774 = vadd.xlane.f32.xlu0 %v5773
    %v5775 = vpop.xlane.xlu0 %5774
    %v5776 = vsel %vm2743, %v5403, 0.0
    %5777 = vadd.xlane.f32.xlu0 %v5776
    %v5778 = vpop.xlane.xlu0 %5777
    %v5779 = vsel %vm2743, %v5405, 0.0
    %5780 = vadd.xlane.f32.xlu0 %v5779
    %v5781 = vpop.xlane.xlu0 %5780
    %v5782 = vsel %vm2743, %v5407, 0.0
    %5783 = vadd.xlane.f32.xlu0 %v5782
    %v5784 = vpop.xlane.xlu0 %5783
    %v5785 = vsel %vm2743, %v5409, 0.0
    %5786 = vadd.xlane.f32.xlu0 %v5785
    %v5787 = vpop.xlane.xlu0 %5786
    %v5788 = vsel %vm2743, %v5411, 0.0
    %5789 = vadd.xlane.f32.xlu0 %v5788
    %v5790 = vpop.xlane.xlu0 %5789
    %v5791 = vsel %vm2743, %v5413, 0.0
    %5792 = vadd.xlane.f32.xlu0 %v5791
    %v5793 = vpop.xlane.xlu0 %5792
    %v5794 = vsel %vm2743, %v5415, 0.0
    %5795 = vadd.xlane.f32.xlu0 %v5794
    %v5796 = vpop.xlane.xlu0 %5795
    %v5797 = vsel %vm2743, %v5417, 0.0
    %5798 = vadd.xlane.f32.xlu0 %v5797
    %v5799 = vpop.xlane.xlu0 %5798
    %v5800 = vsel %vm2743, %v5419, 0.0
    %5801 = vadd.xlane.f32.xlu0 %v5800
    %v5802 = vpop.xlane.xlu0 %5801
    %v5803 = vsel %vm2743, %v5421, 0.0
    %5804 = vadd.xlane.f32.xlu0 %v5803
    %v5805 = vpop.xlane.xlu0 %5804
    %v5806 = vrcp.pop %v5424
    %v5807 = vrcp.pop %v5427
    %v5808 = vrcp.pop %v5430
    %v5809 = vrcp.pop %v5433
    %v5810 = vrcp.pop %v5436
    %v5811 = vrcp.pop %v5439
    %v5812 = vrcp.pop %v5442
    %v5813 = vrcp.pop %v5445
    %v5814 = vrcp.pop %v5448
    %v5815 = vrcp.pop %v5451
    %v5816 = vrcp.pop %v5454
    %v5817 = vrcp.pop %v5457
    %v5818 = vrcp.pop %v5460
    %v5819 = vrcp.pop %v5463
    %v5820 = vrcp.pop %v5466
    %v5821 = vrcp.pop %v5469
    %v5822 = vrcp.pop %v5472
    %v5823 = vrcp.pop %v5475
    %v5824 = vrcp.pop %v5478
    %v5825 = vrcp.pop %v5481
    %v5826 = vrcp.pop %v5484
    %v5827 = vrcp.pop %v5487
    %v5828 = vrcp.pop %v5490
    %v5829 = vrcp.pop %v5493
    %v5830 = vrcp.pop %v5496
    %v5831 = vrcp.pop %v5499
    %v5832 = vrcp.pop %v5502
    %v5833 = vrcp.pop %v5505
    %v5834 = vrcp.pop %v5508
    %v5835 = vrcp.pop %v5511
    %v5836 = vrcp.pop %v5514
    %v5837 = vrcp.pop %v5517
    %v5838 = vrcp.pop %v5520
    %v5839 = vrcp.pop %v5523
    %v5840 = vrcp.pop %v5526
    %v5841 = vrcp.pop %v5529
    %v5842 = vrcp.pop %v5532
    %v5843 = vrcp.pop %v5535
    %v5844 = vrcp.pop %v5538
    %v5845 = vrcp.pop %v5541
    %v5846 = vrcp.pop %v5544
    %v5847 = vrcp.pop %v5547
    %v5848 = vrcp.pop %v5550
    %v5849 = vrcp.pop %v5553
    %v5850 = vrcp.pop %v5556
    %v5851 = vrcp.pop %v5559
    %v5852 = vrcp.pop %v5562
    %v5853 = vrcp.pop %v5565
    %v5854 = vrcp.pop %v5568
    %v5855 = vrcp.pop %v5571
    %v5856 = vrcp.pop %v5574
    %v5857 = vrcp.pop %v5577
    %v5858 = vrcp.pop %v5580
    %v5859 = vrcp.pop %v5583
    %v5860 = vrcp.pop %v5586
    %v5861 = vrcp.pop %v5589
    %v5862 = vrcp.pop %v5592
    %v5863 = vrcp.pop %v5595
    %v5864 = vrcp.pop %v5598
    %v5865 = vrcp.pop %v5601
    %v5866 = vrcp.pop %v5604
    %v5867 = vrcp.pop %v5607
    %v5868 = vrcp.pop %v5610
    %v5869 = vrcp.pop %v5613
    %v5870 = vrcp.pop %v5616
    %v5871 = vrcp.pop %v5619
    %v5872 = vrcp.pop %v5622
    %v5873 = vrcp.pop %v5625
    %v5874 = vrcp.pop %v5628
    %v5875 = vrcp.pop %v5631
    %v5876 = vrcp.pop %v5634
    %v5877 = vrcp.pop %v5637
    %v5878 = vrcp.pop %v5640
    %v5879 = vrcp.pop %v5643
    %v5880 = vrcp.pop %v5646
    %v5881 = vrcp.pop %v5649
    %v5882 = vrcp.pop %v5652
    %v5883 = vrcp.pop %v5655
    %v5884 = vrcp.pop %v5658
    %v5885 = vrcp.pop %v5661
    %v5886 = vrcp.pop %v5664
    %v5887 = vrcp.pop %v5667
    %v5888 = vrcp.pop %v5670
    %v5889 = vrcp.pop %v5673
    %v5890 = vrcp.pop %v5676
    %v5891 = vrcp.pop %v5679
    %v5892 = vrcp.pop %v5682
    %v5893 = vrcp.pop %v5685
    %v5894 = vrcp.pop %v5688
    %v5895 = vrcp.pop %v5691
    %v5896 = vrcp.pop %v5694
    %v5897 = vrcp.pop %v5697
    %v5898 = vrcp.pop %v5700
    %v5899 = vrcp.pop %v5703
    %v5900 = vrcp.pop %v5706
    %v5901 = vrcp.pop %v5709
    %v5902 = vrcp.pop %v5712
    %v5903 = vrcp.pop %v5715
    %v5904 = vrcp.pop %v5718
    %v5905 = vrcp.pop %v5721
    %v5906 = vrcp.pop %v5724
    %v5907 = vrcp.pop %v5727
    %v5908 = vrcp.pop %v5730
    %v5909 = vrcp.pop %v5733
    %v5910 = vrcp.pop %v5736
    %v5911 = vrcp.pop %v5739
    %v5912 = vrcp.pop %v5742
    %v5913 = vrcp.pop %v5745
    %v5914 = vrcp.pop %v5748
    %v5915 = vrcp.pop %v5751
    %v5916 = vrcp.pop %v5754
    %v5917 = vrcp.pop %v5757
    %v5918 = vrcp.pop %v5760
    %v5919 = vrcp.pop %v5763
    %v5920 = vrcp.pop %v5766
    %v5921 = vrcp.pop %v5769
    %v5922 = vrcp.pop %v5772
    %v5923 = vrcp.pop %v5775
    %v5924 = vrcp.pop %v5778
    %v5925 = vrcp.pop %v5781
    %v5926 = vrcp.pop %v5784
    %v5927 = vrcp.pop %v5787
    %v5928 = vrcp.pop %v5790
    %v5929 = vrcp.pop %v5793
    %v5930 = vrcp.pop %v5796
    %v5931 = vrcp.pop %v5799
    %v5932 = vrcp.pop %v5802
    %v5933 = vrcp.pop %v5805
    %v5934 = vmul.f32 %v5167, %v5806
    %v5935 = vmul.f32 %v5169, %v5807
    %v5936 = vmul.f32 %v5171, %v5808
    %v5937 = vmul.f32 %v5173, %v5809
    %v5938 = vmul.f32 %v5175, %v5810
    %v5939 = vmul.f32 %v5177, %v5811
    %v5940 = vmul.f32 %v5179, %v5812
    %v5941 = vmul.f32 %v5181, %v5813
    %v5942 = vmul.f32 %v5183, %v5814
    %v5943 = vmul.f32 %v5185, %v5815
    %v5944 = vmul.f32 %v5187, %v5816
    %v5945 = vmul.f32 %v5189, %v5817
    %v5946 = vmul.f32 %v5191, %v5818
    %v5947 = vmul.f32 %v5193, %v5819
    %v5948 = vmul.f32 %v5195, %v5820
    %v5949 = vmul.f32 %v5197, %v5821
    %v5950 = vmul.f32 %v5199, %v5822
    %v5951 = vmul.f32 %v5201, %v5823
    %v5952 = vmul.f32 %v5203, %v5824
    %v5953 = vmul.f32 %v5205, %v5825
    %v5954 = vmul.f32 %v5207, %v5826
    %v5955 = vmul.f32 %v5209, %v5827
    %v5956 = vmul.f32 %v5211, %v5828
    %v5957 = vmul.f32 %v5213, %v5829
    %v5958 = vmul.f32 %v5215, %v5830
    %v5959 = vmul.f32 %v5217, %v5831
    %v5960 = vmul.f32 %v5219, %v5832
    %v5961 = vmul.f32 %v5221, %v5833
    %v5962 = vmul.f32 %v5223, %v5834
    %v5963 = vmul.f32 %v5225, %v5835
    %v5964 = vmul.f32 %v5227, %v5836
    %v5965 = vmul.f32 %v5229, %v5837
    %v5966 = vmul.f32 %v5231, %v5838
    %v5967 = vmul.f32 %v5233, %v5839
    %v5968 = vmul.f32 %v5235, %v5840
    %v5969 = vmul.f32 %v5237, %v5841
    %v5970 = vmul.f32 %v5239, %v5842
    %v5971 = vmul.f32 %v5241, %v5843
    %v5972 = vmul.f32 %v5243, %v5844
    %v5973 = vmul.f32 %v5245, %v5845
    %v5974 = vmul.f32 %v5247, %v5846
    %v5975 = vmul.f32 %v5249, %v5847
    %v5976 = vmul.f32 %v5251, %v5848
    %v5977 = vmul.f32 %v5253, %v5849
    %v5978 = vmul.f32 %v5255, %v5850
    %v5979 = vmul.f32 %v5257, %v5851
    %v5980 = vmul.f32 %v5259, %v5852
    %v5981 = vmul.f32 %v5261, %v5853
    %v5982 = vmul.f32 %v5263, %v5854
    %v5983 = vmul.f32 %v5265, %v5855
    %v5984 = vmul.f32 %v5267, %v5856
    %v5985 = vmul.f32 %v5269, %v5857
    %v5986 = vmul.f32 %v5271, %v5858
    %v5987 = vmul.f32 %v5273, %v5859
    %v5988 = vmul.f32 %v5275, %v5860
    %v5989 = vmul.f32 %v5277, %v5861
    %v5990 = vmul.f32 %v5279, %v5862
    %v5991 = vmul.f32 %v5281, %v5863
    %v5992 = vmul.f32 %v5283, %v5864
    %v5993 = vmul.f32 %v5285, %v5865
    %v5994 = vmul.f32 %v5287, %v5866
    %v5995 = vmul.f32 %v5289, %v5867
    %v5996 = vmul.f32 %v5291, %v5868
    %v5997 = vmul.f32 %v5293, %v5869
    %v5998 = vmul.f32 %v5295, %v5870
    %v5999 = vmul.f32 %v5297, %v5871
    %v6000 = vmul.f32 %v5299, %v5872
    %v6001 = vmul.f32 %v5301, %v5873
    %v6002 = vmul.f32 %v5303, %v5874
    %v6003 = vmul.f32 %v5305, %v5875
    %v6004 = vmul.f32 %v5307, %v5876
    %v6005 = vmul.f32 %v5309, %v5877
    %v6006 = vmul.f32 %v5311, %v5878
    %v6007 = vmul.f32 %v5313, %v5879
    %v6008 = vmul.f32 %v5315, %v5880
    %v6009 = vmul.f32 %v5317, %v5881
    %v6010 = vmul.f32 %v5319, %v5882
    %v6011 = vmul.f32 %v5321, %v5883
    %v6012 = vmul.f32 %v5323, %v5884
    %v6013 = vmul.f32 %v5325, %v5885
    %v6014 = vmul.f32 %v5327, %v5886
    %v6015 = vmul.f32 %v5329, %v5887
    %v6016 = vmul.f32 %v5331, %v5888
    %v6017 = vmul.f32 %v5333, %v5889
    %v6018 = vmul.f32 %v5335, %v5890
    %v6019 = vmul.f32 %v5337, %v5891
    %v6020 = vmul.f32 %v5339, %v5892
    %v6021 = vmul.f32 %v5341, %v5893
    %v6022 = vmul.f32 %v5343, %v5894
    %v6023 = vmul.f32 %v5345, %v5895
    %v6024 = vmul.f32 %v5347, %v5896
    %v6025 = vmul.f32 %v5349, %v5897
    %v6026 = vmul.f32 %v5351, %v5898
    %v6027 = vmul.f32 %v5353, %v5899
    %v6028 = vmul.f32 %v5355, %v5900
    %v6029 = vmul.f32 %v5357, %v5901
    %v6030 = vmul.f32 %v5359, %v5902
    %v6031 = vmul.f32 %v5361, %v5903
    %v6032 = vmul.f32 %v5363, %v5904
    %v6033 = vmul.f32 %v5365, %v5905
    %v6034 = vmul.f32 %v5367, %v5906
    %v6035 = vmul.f32 %v5369, %v5907
    %v6036 = vmul.f32 %v5371, %v5908
    %v6037 = vmul.f32 %v5373, %v5909
    %v6038 = vmul.f32 %v5375, %v5910
    %v6039 = vmul.f32 %v5377, %v5911
    %v6040 = vmul.f32 %v5379, %v5912
    %v6041 = vmul.f32 %v5381, %v5913
    %v6042 = vmul.f32 %v5383, %v5914
    %v6043 = vmul.f32 %v5385, %v5915
    %v6044 = vmul.f32 %v5387, %v5916
    %v6045 = vmul.f32 %v5389, %v5917
    %v6046 = vmul.f32 %v5391, %v5918
    %v6047 = vmul.f32 %v5393, %v5919
    %v6048 = vmul.f32 %v5395, %v5920
    %v6049 = vmul.f32 %v5397, %v5921
    %v6050 = vmul.f32 %v5399, %v5922
    %v6051 = vmul.f32 %v5401, %v5923
    %v6052 = vmul.f32 %v5403, %v5924
    %v6053 = vmul.f32 %v5405, %v5925
    %v6054 = vmul.f32 %v5407, %v5926
    %v6055 = vmul.f32 %v5409, %v5927
    %v6056 = vmul.f32 %v5411, %v5928
    %v6057 = vmul.f32 %v5413, %v5929
    %v6058 = vmul.f32 %v5415, %v5930
    %v6059 = vmul.f32 %v5417, %v5931
    %v6060 = vmul.f32 %v5419, %v5932
    %v6061 = vmul.f32 %v5421, %v5933
    %v6062 = vpack.c.bf16 %v5934, %v5934
    %v6063 = vpack.c.bf16 %v5935, %v5935
    %v6064 = vpack.c.bf16 %v5936, %v5936
    %v6065 = vpack.c.bf16 %v5937, %v5937
    %v6066 = vpack.c.bf16 %v5938, %v5938
    %v6067 = vpack.c.bf16 %v5939, %v5939
    %v6068 = vpack.c.bf16 %v5940, %v5940
    %v6069 = vpack.c.bf16 %v5941, %v5941
    %v6070 = vpack.c.bf16 %v5942, %v5942
    %v6071 = vpack.c.bf16 %v5943, %v5943
    %v6072 = vpack.c.bf16 %v5944, %v5944
    %v6073 = vpack.c.bf16 %v5945, %v5945
    %v6074 = vpack.c.bf16 %v5946, %v5946
    %v6075 = vpack.c.bf16 %v5947, %v5947
    %v6076 = vpack.c.bf16 %v5948, %v5948
    %v6077 = vpack.c.bf16 %v5949, %v5949
    %v6078 = vpack.c.bf16 %v5950, %v5950
    %v6079 = vpack.c.bf16 %v5951, %v5951
    %v6080 = vpack.c.bf16 %v5952, %v5952
    %v6081 = vpack.c.bf16 %v5953, %v5953
    %v6082 = vpack.c.bf16 %v5954, %v5954
    %v6083 = vpack.c.bf16 %v5955, %v5955
    %v6084 = vpack.c.bf16 %v5956, %v5956
    %v6085 = vpack.c.bf16 %v5957, %v5957
    %v6086 = vpack.c.bf16 %v5958, %v5958
    %v6087 = vpack.c.bf16 %v5959, %v5959
    %v6088 = vpack.c.bf16 %v5960, %v5960
    %v6089 = vpack.c.bf16 %v5961, %v5961
    %v6090 = vpack.c.bf16 %v5962, %v5962
    %v6091 = vpack.c.bf16 %v5963, %v5963
    %v6092 = vpack.c.bf16 %v5964, %v5964
    %v6093 = vpack.c.bf16 %v5965, %v5965
    %v6094 = vpack.c.bf16 %v5966, %v5966
    %v6095 = vpack.c.bf16 %v5967, %v5967
    %v6096 = vpack.c.bf16 %v5968, %v5968
    %v6097 = vpack.c.bf16 %v5969, %v5969
    %v6098 = vpack.c.bf16 %v5970, %v5970
    %v6099 = vpack.c.bf16 %v5971, %v5971
    %v6100 = vpack.c.bf16 %v5972, %v5972
    %v6101 = vpack.c.bf16 %v5973, %v5973
    %v6102 = vpack.c.bf16 %v5974, %v5974
    %v6103 = vpack.c.bf16 %v5975, %v5975
    %v6104 = vpack.c.bf16 %v5976, %v5976
    %v6105 = vpack.c.bf16 %v5977, %v5977
    %v6106 = vpack.c.bf16 %v5978, %v5978
    %v6107 = vpack.c.bf16 %v5979, %v5979
    %v6108 = vpack.c.bf16 %v5980, %v5980
    %v6109 = vpack.c.bf16 %v5981, %v5981
    %v6110 = vpack.c.bf16 %v5982, %v5982
    %v6111 = vpack.c.bf16 %v5983, %v5983
    %v6112 = vpack.c.bf16 %v5984, %v5984
    %v6113 = vpack.c.bf16 %v5985, %v5985
    %v6114 = vpack.c.bf16 %v5986, %v5986
    %v6115 = vpack.c.bf16 %v5987, %v5987
    %v6116 = vpack.c.bf16 %v5988, %v5988
    %v6117 = vpack.c.bf16 %v5989, %v5989
    %v6118 = vpack.c.bf16 %v5990, %v5990
    %v6119 = vpack.c.bf16 %v5991, %v5991
    %v6120 = vpack.c.bf16 %v5992, %v5992
    %v6121 = vpack.c.bf16 %v5993, %v5993
    %v6122 = vpack.c.bf16 %v5994, %v5994
    %v6123 = vpack.c.bf16 %v5995, %v5995
    %v6124 = vpack.c.bf16 %v5996, %v5996
    %v6125 = vpack.c.bf16 %v5997, %v5997
    %v6126 = vpack.c.bf16 %v5998, %v5998
    %v6127 = vpack.c.bf16 %v5999, %v5999
    %v6128 = vpack.c.bf16 %v6000, %v6000
    %v6129 = vpack.c.bf16 %v6001, %v6001
    %v6130 = vpack.c.bf16 %v6002, %v6002
    %v6131 = vpack.c.bf16 %v6003, %v6003
    %v6132 = vpack.c.bf16 %v6004, %v6004
    %v6133 = vpack.c.bf16 %v6005, %v6005
    %v6134 = vpack.c.bf16 %v6006, %v6006
    %v6135 = vpack.c.bf16 %v6007, %v6007
    %v6136 = vpack.c.bf16 %v6008, %v6008
    %v6137 = vpack.c.bf16 %v6009, %v6009
    %v6138 = vpack.c.bf16 %v6010, %v6010
    %v6139 = vpack.c.bf16 %v6011, %v6011
    %v6140 = vpack.c.bf16 %v6012, %v6012
    %v6141 = vpack.c.bf16 %v6013, %v6013
    %v6142 = vpack.c.bf16 %v6014, %v6014
    %v6143 = vpack.c.bf16 %v6015, %v6015
    %v6144 = vpack.c.bf16 %v6016, %v6016
    %v6145 = vpack.c.bf16 %v6017, %v6017
    %v6146 = vpack.c.bf16 %v6018, %v6018
    %v6147 = vpack.c.bf16 %v6019, %v6019
    %v6148 = vpack.c.bf16 %v6020, %v6020
    %v6149 = vpack.c.bf16 %v6021, %v6021
    %v6150 = vpack.c.bf16 %v6022, %v6022
    %v6151 = vpack.c.bf16 %v6023, %v6023
    %v6152 = vpack.c.bf16 %v6024, %v6024
    %v6153 = vpack.c.bf16 %v6025, %v6025
    %v6154 = vpack.c.bf16 %v6026, %v6026
    %v6155 = vpack.c.bf16 %v6027, %v6027
    %v6156 = vpack.c.bf16 %v6028, %v6028
    %v6157 = vpack.c.bf16 %v6029, %v6029
    %v6158 = vpack.c.bf16 %v6030, %v6030
    %v6159 = vpack.c.bf16 %v6031, %v6031
    %v6160 = vpack.c.bf16 %v6032, %v6032
    %v6161 = vpack.c.bf16 %v6033, %v6033
    %v6162 = vpack.c.bf16 %v6034, %v6034
    %v6163 = vpack.c.bf16 %v6035, %v6035
    %v6164 = vpack.c.bf16 %v6036, %v6036
    %v6165 = vpack.c.bf16 %v6037, %v6037
    %v6166 = vpack.c.bf16 %v6038, %v6038
    %v6167 = vpack.c.bf16 %v6039, %v6039
    %v6168 = vpack.c.bf16 %v6040, %v6040
    %v6169 = vpack.c.bf16 %v6041, %v6041
    %v6170 = vpack.c.bf16 %v6042, %v6042
    %v6171 = vpack.c.bf16 %v6043, %v6043
    %v6172 = vpack.c.bf16 %v6044, %v6044
    %v6173 = vpack.c.bf16 %v6045, %v6045
    %v6174 = vpack.c.bf16 %v6046, %v6046
    %v6175 = vpack.c.bf16 %v6047, %v6047
    %v6176 = vpack.c.bf16 %v6048, %v6048
    %v6177 = vpack.c.bf16 %v6049, %v6049
    %v6178 = vpack.c.bf16 %v6050, %v6050
    %v6179 = vpack.c.bf16 %v6051, %v6051
    %v6180 = vpack.c.bf16 %v6052, %v6052
    %v6181 = vpack.c.bf16 %v6053, %v6053
    %v6182 = vpack.c.bf16 %v6054, %v6054
    %v6183 = vpack.c.bf16 %v6055, %v6055
    %v6184 = vpack.c.bf16 %v6056, %v6056
    %v6185 = vpack.c.bf16 %v6057, %v6057
    %v6186 = vpack.c.bf16 %v6058, %v6058
    %v6187 = vpack.c.bf16 %v6059, %v6059
    %v6188 = vpack.c.bf16 %v6060, %v6060
    %v6189 = vpack.c.bf16 %v6061, %v6061
    %v6192 = vunpack.c.l.b16 %v6062
    %v6193 = vunpack.c.l.b16 %v6063
    %v6194 = vpack.c.b16 %v6193, %v6192
    %v6197 = vunpack.c.l.b16 %v2605
    %v6198 = vunpack.c.l.b16 %v2606
    %v6199 = vpack.c.b16 %v6198, %v6197
    %v6202 = vsel %vm2743, %v6194, 0
    %6204 = vmatpush.bf16.msra.mxu0 0
    %6205 = vmatpush.bf16.msra.mxu0 0
    %6206 = vmatpush.bf16.msra.mxu0 0
    %6207 = vmatpush.bf16.msra.mxu0 0
    %6208 = vmatpush.bf16.msra.mxu0 0
    %6209 = vmatpush.bf16.msra.mxu0 0
    %6210 = vmatpush.bf16.msra.mxu0 0
    %6211 = vmatpush.bf16.msra.mxu0 %v6199
    %6212 = vmatmul.bf16.gmra.mxu0 %v6202
    %v6213 = vpop.f32.mrf.mxu0
    %v6214 = vadd.f32 0.0, %v6213
    %v6215 = vpop.f32.mrf.mxu0
    %v6216 = vadd.f32 0.0, %v6215
    %6217 = vdwg.mxu0
    %v6220 = vunpack.c.l.b16 %v6064
    %v6221 = vunpack.c.l.b16 %v6065
    %v6222 = vpack.c.b16 %v6221, %v6220
    %v6225 = vunpack.c.l.b16 %v2607
    %v6226 = vunpack.c.l.b16 %v2608
    %v6227 = vpack.c.b16 %v6226, %v6225
    %v6230 = vsel %vm2743, %v6222, 0
    %6232 = vmatpush.bf16.msra.mxu0 0
    %6233 = vmatpush.bf16.msra.mxu0 0
    %6234 = vmatpush.bf16.msra.mxu0 0
    %6235 = vmatpush.bf16.msra.mxu0 0
    %6236 = vmatpush.bf16.msra.mxu0 0
    %6237 = vmatpush.bf16.msra.mxu0 0
    %6238 = vmatpush.bf16.msra.mxu0 0
    %6239 = vmatpush.bf16.msra.mxu0 %v6227
    %6240 = vmatmul.bf16.gmra.mxu0 %v6230
    %v6241 = vpop.f32.mrf.mxu0
    %v6242 = vadd.f32 0.0, %v6241
    %v6243 = vpop.f32.mrf.mxu0
    %v6244 = vadd.f32 0.0, %v6243
    %6245 = vdwg.mxu0
    %v6248 = vunpack.c.l.b16 %v6066
    %v6249 = vunpack.c.l.b16 %v6067
    %v6250 = vpack.c.b16 %v6249, %v6248
    %v6253 = vunpack.c.l.b16 %v2609
    %v6254 = vunpack.c.l.b16 %v2610
    %v6255 = vpack.c.b16 %v6254, %v6253
    %v6258 = vsel %vm2743, %v6250, 0
    %6260 = vmatpush.bf16.msra.mxu0 0
    %6261 = vmatpush.bf16.msra.mxu0 0
    %6262 = vmatpush.bf16.msra.mxu0 0
    %6263 = vmatpush.bf16.msra.mxu0 0
    %6264 = vmatpush.bf16.msra.mxu0 0
    %6265 = vmatpush.bf16.msra.mxu0 0
    %6266 = vmatpush.bf16.msra.mxu0 0
    %6267 = vmatpush.bf16.msra.mxu0 %v6255
    %6268 = vmatmul.bf16.gmra.mxu0 %v6258
    %v6269 = vpop.f32.mrf.mxu0
    %v6270 = vadd.f32 0.0, %v6269
    %v6271 = vpop.f32.mrf.mxu0
    %v6272 = vadd.f32 0.0, %v6271
    %6273 = vdwg.mxu0
    %v6276 = vunpack.c.l.b16 %v6068
    %v6277 = vunpack.c.l.b16 %v6069
    %v6278 = vpack.c.b16 %v6277, %v6276
    %v6281 = vunpack.c.l.b16 %v2611
    %v6282 = vunpack.c.l.b16 %v2612
    %v6283 = vpack.c.b16 %v6282, %v6281
    %v6286 = vsel %vm2743, %v6278, 0
    %6288 = vmatpush.bf16.msra.mxu0 0
    %6289 = vmatpush.bf16.msra.mxu0 0
    %6290 = vmatpush.bf16.msra.mxu0 0
    %6291 = vmatpush.bf16.msra.mxu0 0
    %6292 = vmatpush.bf16.msra.mxu0 0
    %6293 = vmatpush.bf16.msra.mxu0 0
    %6294 = vmatpush.bf16.msra.mxu0 0
    %6295 = vmatpush.bf16.msra.mxu0 %v6283
    %6296 = vmatmul.bf16.gmra.mxu0 %v6286
    %v6297 = vpop.f32.mrf.mxu0
    %v6298 = vadd.f32 0.0, %v6297
    %v6299 = vpop.f32.mrf.mxu0
    %v6300 = vadd.f32 0.0, %v6299
    %6301 = vdwg.mxu0
    %v6304 = vunpack.c.l.b16 %v6070
    %v6305 = vunpack.c.l.b16 %v6071
    %v6306 = vpack.c.b16 %v6305, %v6304
    %v6309 = vunpack.c.l.b16 %v2613
    %v6310 = vunpack.c.l.b16 %v2614
    %v6311 = vpack.c.b16 %v6310, %v6309
    %v6314 = vsel %vm2743, %v6306, 0
    %6316 = vmatpush.bf16.msra.mxu0 0
    %6317 = vmatpush.bf16.msra.mxu0 0
    %6318 = vmatpush.bf16.msra.mxu0 0
    %6319 = vmatpush.bf16.msra.mxu0 0
    %6320 = vmatpush.bf16.msra.mxu0 0
    %6321 = vmatpush.bf16.msra.mxu0 0
    %6322 = vmatpush.bf16.msra.mxu0 0
    %6323 = vmatpush.bf16.msra.mxu0 %v6311
    %6324 = vmatmul.bf16.gmra.mxu0 %v6314
    %v6325 = vpop.f32.mrf.mxu0
    %v6326 = vadd.f32 0.0, %v6325
    %v6327 = vpop.f32.mrf.mxu0
    %v6328 = vadd.f32 0.0, %v6327
    %6329 = vdwg.mxu0
    %v6332 = vunpack.c.l.b16 %v6072
    %v6333 = vunpack.c.l.b16 %v6073
    %v6334 = vpack.c.b16 %v6333, %v6332
    %v6337 = vunpack.c.l.b16 %v2615
    %v6338 = vunpack.c.l.b16 %v2616
    %v6339 = vpack.c.b16 %v6338, %v6337
    %v6342 = vsel %vm2743, %v6334, 0
    %6344 = vmatpush.bf16.msra.mxu0 0
    %6345 = vmatpush.bf16.msra.mxu0 0
    %6346 = vmatpush.bf16.msra.mxu0 0
    %6347 = vmatpush.bf16.msra.mxu0 0
    %6348 = vmatpush.bf16.msra.mxu0 0
    %6349 = vmatpush.bf16.msra.mxu0 0
    %6350 = vmatpush.bf16.msra.mxu0 0
    %6351 = vmatpush.bf16.msra.mxu0 %v6339
    %6352 = vmatmul.bf16.gmra.mxu0 %v6342
    %v6353 = vpop.f32.mrf.mxu0
    %v6354 = vadd.f32 0.0, %v6353
    %v6355 = vpop.f32.mrf.mxu0
    %v6356 = vadd.f32 0.0, %v6355
    %6357 = vdwg.mxu0
    %v6360 = vunpack.c.l.b16 %v6074
    %v6361 = vunpack.c.l.b16 %v6075
    %v6362 = vpack.c.b16 %v6361, %v6360
    %v6365 = vunpack.c.l.b16 %v2617
    %v6366 = vunpack.c.l.b16 %v2618
    %v6367 = vpack.c.b16 %v6366, %v6365
    %v6370 = vsel %vm2743, %v6362, 0
    %6372 = vmatpush.bf16.msra.mxu0 0
    %6373 = vmatpush.bf16.msra.mxu0 0
    %6374 = vmatpush.bf16.msra.mxu0 0
    %6375 = vmatpush.bf16.msra.mxu0 0
    %6376 = vmatpush.bf16.msra.mxu0 0
    %6377 = vmatpush.bf16.msra.mxu0 0
    %6378 = vmatpush.bf16.msra.mxu0 0
    %6379 = vmatpush.bf16.msra.mxu0 %v6367
    %6380 = vmatmul.bf16.gmra.mxu0 %v6370
    %v6381 = vpop.f32.mrf.mxu0
    %v6382 = vadd.f32 0.0, %v6381
    %v6383 = vpop.f32.mrf.mxu0
    %v6384 = vadd.f32 0.0, %v6383
    %6385 = vdwg.mxu0
    %v6388 = vunpack.c.l.b16 %v6076
    %v6389 = vunpack.c.l.b16 %v6077
    %v6390 = vpack.c.b16 %v6389, %v6388
    %v6393 = vunpack.c.l.b16 %v2619
    %v6394 = vunpack.c.l.b16 %v2620
    %v6395 = vpack.c.b16 %v6394, %v6393
    %v6398 = vsel %vm2743, %v6390, 0
    %6400 = vmatpush.bf16.msra.mxu0 0
    %6401 = vmatpush.bf16.msra.mxu0 0
    %6402 = vmatpush.bf16.msra.mxu0 0
    %6403 = vmatpush.bf16.msra.mxu0 0
    %6404 = vmatpush.bf16.msra.mxu0 0
    %6405 = vmatpush.bf16.msra.mxu0 0
    %6406 = vmatpush.bf16.msra.mxu0 0
    %6407 = vmatpush.bf16.msra.mxu0 %v6395
    %6408 = vmatmul.bf16.gmra.mxu0 %v6398
    %v6409 = vpop.f32.mrf.mxu0
    %v6410 = vadd.f32 0.0, %v6409
    %v6411 = vpop.f32.mrf.mxu0
    %v6412 = vadd.f32 0.0, %v6411
    %6413 = vdwg.mxu0
    %v6416 = vunpack.c.l.b16 %v6078
    %v6417 = vunpack.c.l.b16 %v6079
    %v6418 = vpack.c.b16 %v6417, %v6416
    %v6421 = vunpack.c.l.b16 %v2621
    %v6422 = vunpack.c.l.b16 %v2622
    %v6423 = vpack.c.b16 %v6422, %v6421
    %v6426 = vsel %vm2743, %v6418, 0
    %6428 = vmatpush.bf16.msra.mxu0 0
    %6429 = vmatpush.bf16.msra.mxu0 0
    %6430 = vmatpush.bf16.msra.mxu0 0
    %6431 = vmatpush.bf16.msra.mxu0 0
    %6432 = vmatpush.bf16.msra.mxu0 0
    %6433 = vmatpush.bf16.msra.mxu0 0
    %6434 = vmatpush.bf16.msra.mxu0 0
    %6435 = vmatpush.bf16.msra.mxu0 %v6423
    %6436 = vmatmul.bf16.gmra.mxu0 %v6426
    %v6437 = vpop.f32.mrf.mxu0
    %v6438 = vadd.f32 0.0, %v6437
    %v6439 = vpop.f32.mrf.mxu0
    %v6440 = vadd.f32 0.0, %v6439
    %6441 = vdwg.mxu0
    %v6444 = vunpack.c.l.b16 %v6080
    %v6445 = vunpack.c.l.b16 %v6081
    %v6446 = vpack.c.b16 %v6445, %v6444
    %v6449 = vunpack.c.l.b16 %v2623
    %v6450 = vunpack.c.l.b16 %v2624
    %v6451 = vpack.c.b16 %v6450, %v6449
    %v6454 = vsel %vm2743, %v6446, 0
    %6456 = vmatpush.bf16.msra.mxu0 0
    %6457 = vmatpush.bf16.msra.mxu0 0
    %6458 = vmatpush.bf16.msra.mxu0 0
    %6459 = vmatpush.bf16.msra.mxu0 0
    %6460 = vmatpush.bf16.msra.mxu0 0
    %6461 = vmatpush.bf16.msra.mxu0 0
    %6462 = vmatpush.bf16.msra.mxu0 0
    %6463 = vmatpush.bf16.msra.mxu0 %v6451
    %6464 = vmatmul.bf16.gmra.mxu0 %v6454
    %v6465 = vpop.f32.mrf.mxu0
    %v6466 = vadd.f32 0.0, %v6465
    %v6467 = vpop.f32.mrf.mxu0
    %v6468 = vadd.f32 0.0, %v6467
    %6469 = vdwg.mxu0
    %v6472 = vunpack.c.l.b16 %v6082
    %v6473 = vunpack.c.l.b16 %v6083
    %v6474 = vpack.c.b16 %v6473, %v6472
    %v6477 = vunpack.c.l.b16 %v2625
    %v6478 = vunpack.c.l.b16 %v2626
    %v6479 = vpack.c.b16 %v6478, %v6477
    %v6482 = vsel %vm2743, %v6474, 0
    %6484 = vmatpush.bf16.msra.mxu0 0
    %6485 = vmatpush.bf16.msra.mxu0 0
    %6486 = vmatpush.bf16.msra.mxu0 0
    %6487 = vmatpush.bf16.msra.mxu0 0
    %6488 = vmatpush.bf16.msra.mxu0 0
    %6489 = vmatpush.bf16.msra.mxu0 0
    %6490 = vmatpush.bf16.msra.mxu0 0
    %6491 = vmatpush.bf16.msra.mxu0 %v6479
    %6492 = vmatmul.bf16.gmra.mxu0 %v6482
    %v6493 = vpop.f32.mrf.mxu0
    %v6494 = vadd.f32 0.0, %v6493
    %v6495 = vpop.f32.mrf.mxu0
    %v6496 = vadd.f32 0.0, %v6495
    %6497 = vdwg.mxu0
    %v6500 = vunpack.c.l.b16 %v6084
    %v6501 = vunpack.c.l.b16 %v6085
    %v6502 = vpack.c.b16 %v6501, %v6500
    %v6505 = vunpack.c.l.b16 %v2627
    %v6506 = vunpack.c.l.b16 %v2628
    %v6507 = vpack.c.b16 %v6506, %v6505
    %v6510 = vsel %vm2743, %v6502, 0
    %6512 = vmatpush.bf16.msra.mxu0 0
    %6513 = vmatpush.bf16.msra.mxu0 0
    %6514 = vmatpush.bf16.msra.mxu0 0
    %6515 = vmatpush.bf16.msra.mxu0 0
    %6516 = vmatpush.bf16.msra.mxu0 0
    %6517 = vmatpush.bf16.msra.mxu0 0
    %6518 = vmatpush.bf16.msra.mxu0 0
    %6519 = vmatpush.bf16.msra.mxu0 %v6507
    %6520 = vmatmul.bf16.gmra.mxu0 %v6510
    %v6521 = vpop.f32.mrf.mxu0
    %v6522 = vadd.f32 0.0, %v6521
    %v6523 = vpop.f32.mrf.mxu0
    %v6524 = vadd.f32 0.0, %v6523
    %6525 = vdwg.mxu0
    %v6528 = vunpack.c.l.b16 %v6086
    %v6529 = vunpack.c.l.b16 %v6087
    %v6530 = vpack.c.b16 %v6529, %v6528
    %v6533 = vunpack.c.l.b16 %v2629
    %v6534 = vunpack.c.l.b16 %v2630
    %v6535 = vpack.c.b16 %v6534, %v6533
    %v6538 = vsel %vm2743, %v6530, 0
    %6540 = vmatpush.bf16.msra.mxu0 0
    %6541 = vmatpush.bf16.msra.mxu0 0
    %6542 = vmatpush.bf16.msra.mxu0 0
    %6543 = vmatpush.bf16.msra.mxu0 0
    %6544 = vmatpush.bf16.msra.mxu0 0
    %6545 = vmatpush.bf16.msra.mxu0 0
    %6546 = vmatpush.bf16.msra.mxu0 0
    %6547 = vmatpush.bf16.msra.mxu0 %v6535
    %6548 = vmatmul.bf16.gmra.mxu0 %v6538
    %v6549 = vpop.f32.mrf.mxu0
    %v6550 = vadd.f32 0.0, %v6549
    %v6551 = vpop.f32.mrf.mxu0
    %v6552 = vadd.f32 0.0, %v6551
    %6553 = vdwg.mxu0
    %v6556 = vunpack.c.l.b16 %v6088
    %v6557 = vunpack.c.l.b16 %v6089
    %v6558 = vpack.c.b16 %v6557, %v6556
    %v6561 = vunpack.c.l.b16 %v2631
    %v6562 = vunpack.c.l.b16 %v2632
    %v6563 = vpack.c.b16 %v6562, %v6561
    %v6566 = vsel %vm2743, %v6558, 0
    %6568 = vmatpush.bf16.msra.mxu0 0
    %6569 = vmatpush.bf16.msra.mxu0 0
    %6570 = vmatpush.bf16.msra.mxu0 0
    %6571 = vmatpush.bf16.msra.mxu0 0
    %6572 = vmatpush.bf16.msra.mxu0 0
    %6573 = vmatpush.bf16.msra.mxu0 0
    %6574 = vmatpush.bf16.msra.mxu0 0
    %6575 = vmatpush.bf16.msra.mxu0 %v6563
    %6576 = vmatmul.bf16.gmra.mxu0 %v6566
    %v6577 = vpop.f32.mrf.mxu0
    %v6578 = vadd.f32 0.0, %v6577
    %v6579 = vpop.f32.mrf.mxu0
    %v6580 = vadd.f32 0.0, %v6579
    %6581 = vdwg.mxu0
    %v6584 = vunpack.c.l.b16 %v6090
    %v6585 = vunpack.c.l.b16 %v6091
    %v6586 = vpack.c.b16 %v6585, %v6584
    %v6589 = vunpack.c.l.b16 %v2633
    %v6590 = vunpack.c.l.b16 %v2634
    %v6591 = vpack.c.b16 %v6590, %v6589
    %v6594 = vsel %vm2743, %v6586, 0
    %6596 = vmatpush.bf16.msra.mxu0 0
    %6597 = vmatpush.bf16.msra.mxu0 0
    %6598 = vmatpush.bf16.msra.mxu0 0
    %6599 = vmatpush.bf16.msra.mxu0 0
    %6600 = vmatpush.bf16.msra.mxu0 0
    %6601 = vmatpush.bf16.msra.mxu0 0
    %6602 = vmatpush.bf16.msra.mxu0 0
    %6603 = vmatpush.bf16.msra.mxu0 %v6591
    %6604 = vmatmul.bf16.gmra.mxu0 %v6594
    %v6605 = vpop.f32.mrf.mxu0
    %v6606 = vadd.f32 0.0, %v6605
    %v6607 = vpop.f32.mrf.mxu0
    %v6608 = vadd.f32 0.0, %v6607
    %6609 = vdwg.mxu0
    %v6612 = vunpack.c.l.b16 %v6092
    %v6613 = vunpack.c.l.b16 %v6093
    %v6614 = vpack.c.b16 %v6613, %v6612
    %v6617 = vunpack.c.l.b16 %v2635
    %v6618 = vunpack.c.l.b16 %v2636
    %v6619 = vpack.c.b16 %v6618, %v6617
    %v6622 = vsel %vm2743, %v6614, 0
    %6624 = vmatpush.bf16.msra.mxu0 0
    %6625 = vmatpush.bf16.msra.mxu0 0
    %6626 = vmatpush.bf16.msra.mxu0 0
    %6627 = vmatpush.bf16.msra.mxu0 0
    %6628 = vmatpush.bf16.msra.mxu0 0
    %6629 = vmatpush.bf16.msra.mxu0 0
    %6630 = vmatpush.bf16.msra.mxu0 0
    %6631 = vmatpush.bf16.msra.mxu0 %v6619
    %6632 = vmatmul.bf16.gmra.mxu0 %v6622
    %v6633 = vpop.f32.mrf.mxu0
    %v6634 = vadd.f32 0.0, %v6633
    %v6635 = vpop.f32.mrf.mxu0
    %v6636 = vadd.f32 0.0, %v6635
    %6637 = vdwg.mxu0
    %v6640 = vunpack.c.l.b16 %v6094
    %v6641 = vunpack.c.l.b16 %v6095
    %v6642 = vpack.c.b16 %v6641, %v6640
    %v6645 = vunpack.c.l.b16 %v2637
    %v6646 = vunpack.c.l.b16 %v2638
    %v6647 = vpack.c.b16 %v6646, %v6645
    %v6650 = vsel %vm2743, %v6642, 0
    %6652 = vmatpush.bf16.msra.mxu0 0
    %6653 = vmatpush.bf16.msra.mxu0 0
    %6654 = vmatpush.bf16.msra.mxu0 0
    %6655 = vmatpush.bf16.msra.mxu0 0
    %6656 = vmatpush.bf16.msra.mxu0 0
    %6657 = vmatpush.bf16.msra.mxu0 0
    %6658 = vmatpush.bf16.msra.mxu0 0
    %6659 = vmatpush.bf16.msra.mxu0 %v6647
    %6660 = vmatmul.bf16.gmra.mxu0 %v6650
    %v6661 = vpop.f32.mrf.mxu0
    %v6662 = vadd.f32 0.0, %v6661
    %v6663 = vpop.f32.mrf.mxu0
    %v6664 = vadd.f32 0.0, %v6663
    %6665 = vdwg.mxu0
    %v6668 = vunpack.c.l.b16 %v6096
    %v6669 = vunpack.c.l.b16 %v6097
    %v6670 = vpack.c.b16 %v6669, %v6668
    %v6673 = vunpack.c.l.b16 %v2639
    %v6674 = vunpack.c.l.b16 %v2640
    %v6675 = vpack.c.b16 %v6674, %v6673
    %v6678 = vsel %vm2743, %v6670, 0
    %6680 = vmatpush.bf16.msra.mxu0 0
    %6681 = vmatpush.bf16.msra.mxu0 0
    %6682 = vmatpush.bf16.msra.mxu0 0
    %6683 = vmatpush.bf16.msra.mxu0 0
    %6684 = vmatpush.bf16.msra.mxu0 0
    %6685 = vmatpush.bf16.msra.mxu0 0
    %6686 = vmatpush.bf16.msra.mxu0 0
    %6687 = vmatpush.bf16.msra.mxu0 %v6675
    %6688 = vmatmul.bf16.gmra.mxu0 %v6678
    %v6689 = vpop.f32.mrf.mxu0
    %v6690 = vadd.f32 0.0, %v6689
    %v6691 = vpop.f32.mrf.mxu0
    %v6692 = vadd.f32 0.0, %v6691
    %6693 = vdwg.mxu0
    %v6696 = vunpack.c.l.b16 %v6098
    %v6697 = vunpack.c.l.b16 %v6099
    %v6698 = vpack.c.b16 %v6697, %v6696
    %v6701 = vunpack.c.l.b16 %v2641
    %v6702 = vunpack.c.l.b16 %v2642
    %v6703 = vpack.c.b16 %v6702, %v6701
    %v6706 = vsel %vm2743, %v6698, 0
    %6708 = vmatpush.bf16.msra.mxu0 0
    %6709 = vmatpush.bf16.msra.mxu0 0
    %6710 = vmatpush.bf16.msra.mxu0 0
    %6711 = vmatpush.bf16.msra.mxu0 0
    %6712 = vmatpush.bf16.msra.mxu0 0
    %6713 = vmatpush.bf16.msra.mxu0 0
    %6714 = vmatpush.bf16.msra.mxu0 0
    %6715 = vmatpush.bf16.msra.mxu0 %v6703
    %6716 = vmatmul.bf16.gmra.mxu0 %v6706
    %v6717 = vpop.f32.mrf.mxu0
    %v6718 = vadd.f32 0.0, %v6717
    %v6719 = vpop.f32.mrf.mxu0
    %v6720 = vadd.f32 0.0, %v6719
    %6721 = vdwg.mxu0
    %v6724 = vunpack.c.l.b16 %v6100
    %v6725 = vunpack.c.l.b16 %v6101
    %v6726 = vpack.c.b16 %v6725, %v6724
    %v6729 = vunpack.c.l.b16 %v2643
    %v6730 = vunpack.c.l.b16 %v2644
    %v6731 = vpack.c.b16 %v6730, %v6729
    %v6734 = vsel %vm2743, %v6726, 0
    %6736 = vmatpush.bf16.msra.mxu0 0
    %6737 = vmatpush.bf16.msra.mxu0 0
    %6738 = vmatpush.bf16.msra.mxu0 0
    %6739 = vmatpush.bf16.msra.mxu0 0
    %6740 = vmatpush.bf16.msra.mxu0 0
    %6741 = vmatpush.bf16.msra.mxu0 0
    %6742 = vmatpush.bf16.msra.mxu0 0
    %6743 = vmatpush.bf16.msra.mxu0 %v6731
    %6744 = vmatmul.bf16.gmra.mxu0 %v6734
    %v6745 = vpop.f32.mrf.mxu0
    %v6746 = vadd.f32 0.0, %v6745
    %v6747 = vpop.f32.mrf.mxu0
    %v6748 = vadd.f32 0.0, %v6747
    %6749 = vdwg.mxu0
    %v6752 = vunpack.c.l.b16 %v6102
    %v6753 = vunpack.c.l.b16 %v6103
    %v6754 = vpack.c.b16 %v6753, %v6752
    %v6757 = vunpack.c.l.b16 %v2645
    %v6758 = vunpack.c.l.b16 %v2646
    %v6759 = vpack.c.b16 %v6758, %v6757
    %v6762 = vsel %vm2743, %v6754, 0
    %6764 = vmatpush.bf16.msra.mxu0 0
    %6765 = vmatpush.bf16.msra.mxu0 0
    %6766 = vmatpush.bf16.msra.mxu0 0
    %6767 = vmatpush.bf16.msra.mxu0 0
    %6768 = vmatpush.bf16.msra.mxu0 0
    %6769 = vmatpush.bf16.msra.mxu0 0
    %6770 = vmatpush.bf16.msra.mxu0 0
    %6771 = vmatpush.bf16.msra.mxu0 %v6759
    %6772 = vmatmul.bf16.gmra.mxu0 %v6762
    %v6773 = vpop.f32.mrf.mxu0
    %v6774 = vadd.f32 0.0, %v6773
    %v6775 = vpop.f32.mrf.mxu0
    %v6776 = vadd.f32 0.0, %v6775
    %6777 = vdwg.mxu0
    %v6780 = vunpack.c.l.b16 %v6104
    %v6781 = vunpack.c.l.b16 %v6105
    %v6782 = vpack.c.b16 %v6781, %v6780
    %v6785 = vunpack.c.l.b16 %v2647
    %v6786 = vunpack.c.l.b16 %v2648
    %v6787 = vpack.c.b16 %v6786, %v6785
    %v6790 = vsel %vm2743, %v6782, 0
    %6792 = vmatpush.bf16.msra.mxu0 0
    %6793 = vmatpush.bf16.msra.mxu0 0
    %6794 = vmatpush.bf16.msra.mxu0 0
    %6795 = vmatpush.bf16.msra.mxu0 0
    %6796 = vmatpush.bf16.msra.mxu0 0
    %6797 = vmatpush.bf16.msra.mxu0 0
    %6798 = vmatpush.bf16.msra.mxu0 0
    %6799 = vmatpush.bf16.msra.mxu0 %v6787
    %6800 = vmatmul.bf16.gmra.mxu0 %v6790
    %v6801 = vpop.f32.mrf.mxu0
    %v6802 = vadd.f32 0.0, %v6801
    %v6803 = vpop.f32.mrf.mxu0
    %v6804 = vadd.f32 0.0, %v6803
    %6805 = vdwg.mxu0
    %v6808 = vunpack.c.l.b16 %v6106
    %v6809 = vunpack.c.l.b16 %v6107
    %v6810 = vpack.c.b16 %v6809, %v6808
    %v6813 = vunpack.c.l.b16 %v2649
    %v6814 = vunpack.c.l.b16 %v2650
    %v6815 = vpack.c.b16 %v6814, %v6813
    %v6818 = vsel %vm2743, %v6810, 0
    %6820 = vmatpush.bf16.msra.mxu0 0
    %6821 = vmatpush.bf16.msra.mxu0 0
    %6822 = vmatpush.bf16.msra.mxu0 0
    %6823 = vmatpush.bf16.msra.mxu0 0
    %6824 = vmatpush.bf16.msra.mxu0 0
    %6825 = vmatpush.bf16.msra.mxu0 0
    %6826 = vmatpush.bf16.msra.mxu0 0
    %6827 = vmatpush.bf16.msra.mxu0 %v6815
    %6828 = vmatmul.bf16.gmra.mxu0 %v6818
    %v6829 = vpop.f32.mrf.mxu0
    %v6830 = vadd.f32 0.0, %v6829
    %v6831 = vpop.f32.mrf.mxu0
    %v6832 = vadd.f32 0.0, %v6831
    %6833 = vdwg.mxu0
    %v6836 = vunpack.c.l.b16 %v6108
    %v6837 = vunpack.c.l.b16 %v6109
    %v6838 = vpack.c.b16 %v6837, %v6836
    %v6841 = vunpack.c.l.b16 %v2651
    %v6842 = vunpack.c.l.b16 %v2652
    %v6843 = vpack.c.b16 %v6842, %v6841
    %v6846 = vsel %vm2743, %v6838, 0
    %6848 = vmatpush.bf16.msra.mxu0 0
    %6849 = vmatpush.bf16.msra.mxu0 0
    %6850 = vmatpush.bf16.msra.mxu0 0
    %6851 = vmatpush.bf16.msra.mxu0 0
    %6852 = vmatpush.bf16.msra.mxu0 0
    %6853 = vmatpush.bf16.msra.mxu0 0
    %6854 = vmatpush.bf16.msra.mxu0 0
    %6855 = vmatpush.bf16.msra.mxu0 %v6843
    %6856 = vmatmul.bf16.gmra.mxu0 %v6846
    %v6857 = vpop.f32.mrf.mxu0
    %v6858 = vadd.f32 0.0, %v6857
    %v6859 = vpop.f32.mrf.mxu0
    %v6860 = vadd.f32 0.0, %v6859
    %6861 = vdwg.mxu0
    %v6864 = vunpack.c.l.b16 %v6110
    %v6865 = vunpack.c.l.b16 %v6111
    %v6866 = vpack.c.b16 %v6865, %v6864
    %v6869 = vunpack.c.l.b16 %v2653
    %v6870 = vunpack.c.l.b16 %v2654
    %v6871 = vpack.c.b16 %v6870, %v6869
    %v6874 = vsel %vm2743, %v6866, 0
    %6876 = vmatpush.bf16.msra.mxu0 0
    %6877 = vmatpush.bf16.msra.mxu0 0
    %6878 = vmatpush.bf16.msra.mxu0 0
    %6879 = vmatpush.bf16.msra.mxu0 0
    %6880 = vmatpush.bf16.msra.mxu0 0
    %6881 = vmatpush.bf16.msra.mxu0 0
    %6882 = vmatpush.bf16.msra.mxu0 0
    %6883 = vmatpush.bf16.msra.mxu0 %v6871
    %6884 = vmatmul.bf16.gmra.mxu0 %v6874
    %v6885 = vpop.f32.mrf.mxu0
    %v6886 = vadd.f32 0.0, %v6885
    %v6887 = vpop.f32.mrf.mxu0
    %v6888 = vadd.f32 0.0, %v6887
    %6889 = vdwg.mxu0
    %v6892 = vunpack.c.l.b16 %v6112
    %v6893 = vunpack.c.l.b16 %v6113
    %v6894 = vpack.c.b16 %v6893, %v6892
    %v6897 = vunpack.c.l.b16 %v2655
    %v6898 = vunpack.c.l.b16 %v2656
    %v6899 = vpack.c.b16 %v6898, %v6897
    %v6902 = vsel %vm2743, %v6894, 0
    %6904 = vmatpush.bf16.msra.mxu0 0
    %6905 = vmatpush.bf16.msra.mxu0 0
    %6906 = vmatpush.bf16.msra.mxu0 0
    %6907 = vmatpush.bf16.msra.mxu0 0
    %6908 = vmatpush.bf16.msra.mxu0 0
    %6909 = vmatpush.bf16.msra.mxu0 0
    %6910 = vmatpush.bf16.msra.mxu0 0
    %6911 = vmatpush.bf16.msra.mxu0 %v6899
    %6912 = vmatmul.bf16.gmra.mxu0 %v6902
    %v6913 = vpop.f32.mrf.mxu0
    %v6914 = vadd.f32 0.0, %v6913
    %v6915 = vpop.f32.mrf.mxu0
    %v6916 = vadd.f32 0.0, %v6915
    %6917 = vdwg.mxu0
    %v6920 = vunpack.c.l.b16 %v6114
    %v6921 = vunpack.c.l.b16 %v6115
    %v6922 = vpack.c.b16 %v6921, %v6920
    %v6925 = vunpack.c.l.b16 %v2657
    %v6926 = vunpack.c.l.b16 %v2658
    %v6927 = vpack.c.b16 %v6926, %v6925
    %v6930 = vsel %vm2743, %v6922, 0
    %6932 = vmatpush.bf16.msra.mxu0 0
    %6933 = vmatpush.bf16.msra.mxu0 0
    %6934 = vmatpush.bf16.msra.mxu0 0
    %6935 = vmatpush.bf16.msra.mxu0 0
    %6936 = vmatpush.bf16.msra.mxu0 0
    %6937 = vmatpush.bf16.msra.mxu0 0
    %6938 = vmatpush.bf16.msra.mxu0 0
    %6939 = vmatpush.bf16.msra.mxu0 %v6927
    %6940 = vmatmul.bf16.gmra.mxu0 %v6930
    %v6941 = vpop.f32.mrf.mxu0
    %v6942 = vadd.f32 0.0, %v6941
    %v6943 = vpop.f32.mrf.mxu0
    %v6944 = vadd.f32 0.0, %v6943
    %6945 = vdwg.mxu0
    %v6948 = vunpack.c.l.b16 %v6116
    %v6949 = vunpack.c.l.b16 %v6117
    %v6950 = vpack.c.b16 %v6949, %v6948
    %v6953 = vunpack.c.l.b16 %v2659
    %v6954 = vunpack.c.l.b16 %v2660
    %v6955 = vpack.c.b16 %v6954, %v6953
    %v6958 = vsel %vm2743, %v6950, 0
    %6960 = vmatpush.bf16.msra.mxu0 0
    %6961 = vmatpush.bf16.msra.mxu0 0
    %6962 = vmatpush.bf16.msra.mxu0 0
    %6963 = vmatpush.bf16.msra.mxu0 0
    %6964 = vmatpush.bf16.msra.mxu0 0
    %6965 = vmatpush.bf16.msra.mxu0 0
    %6966 = vmatpush.bf16.msra.mxu0 0
    %6967 = vmatpush.bf16.msra.mxu0 %v6955
    %6968 = vmatmul.bf16.gmra.mxu0 %v6958
    %v6969 = vpop.f32.mrf.mxu0
    %v6970 = vadd.f32 0.0, %v6969
    %v6971 = vpop.f32.mrf.mxu0
    %v6972 = vadd.f32 0.0, %v6971
    %6973 = vdwg.mxu0
    %v6976 = vunpack.c.l.b16 %v6118
    %v6977 = vunpack.c.l.b16 %v6119
    %v6978 = vpack.c.b16 %v6977, %v6976
    %v6981 = vunpack.c.l.b16 %v2661
    %v6982 = vunpack.c.l.b16 %v2662
    %v6983 = vpack.c.b16 %v6982, %v6981
    %v6986 = vsel %vm2743, %v6978, 0
    %6988 = vmatpush.bf16.msra.mxu0 0
    %6989 = vmatpush.bf16.msra.mxu0 0
    %6990 = vmatpush.bf16.msra.mxu0 0
    %6991 = vmatpush.bf16.msra.mxu0 0
    %6992 = vmatpush.bf16.msra.mxu0 0
    %6993 = vmatpush.bf16.msra.mxu0 0
    %6994 = vmatpush.bf16.msra.mxu0 0
    %6995 = vmatpush.bf16.msra.mxu0 %v6983
    %6996 = vmatmul.bf16.gmra.mxu0 %v6986
    %v6997 = vpop.f32.mrf.mxu0
    %v6998 = vadd.f32 0.0, %v6997
    %v6999 = vpop.f32.mrf.mxu0
    %v7000 = vadd.f32 0.0, %v6999
    %7001 = vdwg.mxu0
    %v7004 = vunpack.c.l.b16 %v6120
    %v7005 = vunpack.c.l.b16 %v6121
    %v7006 = vpack.c.b16 %v7005, %v7004
    %v7009 = vunpack.c.l.b16 %v2663
    %v7010 = vunpack.c.l.b16 %v2664
    %v7011 = vpack.c.b16 %v7010, %v7009
    %v7014 = vsel %vm2743, %v7006, 0
    %7016 = vmatpush.bf16.msra.mxu0 0
    %7017 = vmatpush.bf16.msra.mxu0 0
    %7018 = vmatpush.bf16.msra.mxu0 0
    %7019 = vmatpush.bf16.msra.mxu0 0
    %7020 = vmatpush.bf16.msra.mxu0 0
    %7021 = vmatpush.bf16.msra.mxu0 0
    %7022 = vmatpush.bf16.msra.mxu0 0
    %7023 = vmatpush.bf16.msra.mxu0 %v7011
    %7024 = vmatmul.bf16.gmra.mxu0 %v7014
    %v7025 = vpop.f32.mrf.mxu0
    %v7026 = vadd.f32 0.0, %v7025
    %v7027 = vpop.f32.mrf.mxu0
    %v7028 = vadd.f32 0.0, %v7027
    %7029 = vdwg.mxu0
    %v7032 = vunpack.c.l.b16 %v6122
    %v7033 = vunpack.c.l.b16 %v6123
    %v7034 = vpack.c.b16 %v7033, %v7032
    %v7037 = vunpack.c.l.b16 %v2665
    %v7038 = vunpack.c.l.b16 %v2666
    %v7039 = vpack.c.b16 %v7038, %v7037
    %v7042 = vsel %vm2743, %v7034, 0
    %7044 = vmatpush.bf16.msra.mxu0 0
    %7045 = vmatpush.bf16.msra.mxu0 0
    %7046 = vmatpush.bf16.msra.mxu0 0
    %7047 = vmatpush.bf16.msra.mxu0 0
    %7048 = vmatpush.bf16.msra.mxu0 0
    %7049 = vmatpush.bf16.msra.mxu0 0
    %7050 = vmatpush.bf16.msra.mxu0 0
    %7051 = vmatpush.bf16.msra.mxu0 %v7039
    %7052 = vmatmul.bf16.gmra.mxu0 %v7042
    %v7053 = vpop.f32.mrf.mxu0
    %v7054 = vadd.f32 0.0, %v7053
    %v7055 = vpop.f32.mrf.mxu0
    %v7056 = vadd.f32 0.0, %v7055
    %7057 = vdwg.mxu0
    %v7060 = vunpack.c.l.b16 %v6124
    %v7061 = vunpack.c.l.b16 %v6125
    %v7062 = vpack.c.b16 %v7061, %v7060
    %v7065 = vunpack.c.l.b16 %v2667
    %v7066 = vunpack.c.l.b16 %v2668
    %v7067 = vpack.c.b16 %v7066, %v7065
    %v7070 = vsel %vm2743, %v7062, 0
    %7072 = vmatpush.bf16.msra.mxu0 0
    %7073 = vmatpush.bf16.msra.mxu0 0
    %7074 = vmatpush.bf16.msra.mxu0 0
    %7075 = vmatpush.bf16.msra.mxu0 0
    %7076 = vmatpush.bf16.msra.mxu0 0
    %7077 = vmatpush.bf16.msra.mxu0 0
    %7078 = vmatpush.bf16.msra.mxu0 0
    %7079 = vmatpush.bf16.msra.mxu0 %v7067
    %7080 = vmatmul.bf16.gmra.mxu0 %v7070
    %v7081 = vpop.f32.mrf.mxu0
    %v7082 = vadd.f32 0.0, %v7081
    %v7083 = vpop.f32.mrf.mxu0
    %v7084 = vadd.f32 0.0, %v7083
    %7085 = vdwg.mxu0
    %v7088 = vunpack.c.l.b16 %v6126
    %v7089 = vunpack.c.l.b16 %v6127
    %v7090 = vpack.c.b16 %v7089, %v7088
    %v7093 = vunpack.c.l.b16 %v2669
    %v7094 = vunpack.c.l.b16 %v2670
    %v7095 = vpack.c.b16 %v7094, %v7093
    %v7098 = vsel %vm2743, %v7090, 0
    %7100 = vmatpush.bf16.msra.mxu0 0
    %7101 = vmatpush.bf16.msra.mxu0 0
    %7102 = vmatpush.bf16.msra.mxu0 0
    %7103 = vmatpush.bf16.msra.mxu0 0
    %7104 = vmatpush.bf16.msra.mxu0 0
    %7105 = vmatpush.bf16.msra.mxu0 0
    %7106 = vmatpush.bf16.msra.mxu0 0
    %7107 = vmatpush.bf16.msra.mxu0 %v7095
    %7108 = vmatmul.bf16.gmra.mxu0 %v7098
    %v7109 = vpop.f32.mrf.mxu0
    %v7110 = vadd.f32 0.0, %v7109
    %v7111 = vpop.f32.mrf.mxu0
    %v7112 = vadd.f32 0.0, %v7111
    %7113 = vdwg.mxu0
    %v7116 = vunpack.c.l.b16 %v6128
    %v7117 = vunpack.c.l.b16 %v6129
    %v7118 = vpack.c.b16 %v7117, %v7116
    %v7121 = vunpack.c.l.b16 %v2671
    %v7122 = vunpack.c.l.b16 %v2672
    %v7123 = vpack.c.b16 %v7122, %v7121
    %v7126 = vsel %vm2743, %v7118, 0
    %7128 = vmatpush.bf16.msra.mxu0 0
    %7129 = vmatpush.bf16.msra.mxu0 0
    %7130 = vmatpush.bf16.msra.mxu0 0
    %7131 = vmatpush.bf16.msra.mxu0 0
    %7132 = vmatpush.bf16.msra.mxu0 0
    %7133 = vmatpush.bf16.msra.mxu0 0
    %7134 = vmatpush.bf16.msra.mxu0 0
    %7135 = vmatpush.bf16.msra.mxu0 %v7123
    %7136 = vmatmul.bf16.gmra.mxu0 %v7126
    %v7137 = vpop.f32.mrf.mxu0
    %v7138 = vadd.f32 0.0, %v7137
    %v7139 = vpop.f32.mrf.mxu0
    %v7140 = vadd.f32 0.0, %v7139
    %7141 = vdwg.mxu0
    %v7144 = vunpack.c.l.b16 %v6130
    %v7145 = vunpack.c.l.b16 %v6131
    %v7146 = vpack.c.b16 %v7145, %v7144
    %v7149 = vunpack.c.l.b16 %v2673
    %v7150 = vunpack.c.l.b16 %v2674
    %v7151 = vpack.c.b16 %v7150, %v7149
    %v7154 = vsel %vm2743, %v7146, 0
    %7156 = vmatpush.bf16.msra.mxu0 0
    %7157 = vmatpush.bf16.msra.mxu0 0
    %7158 = vmatpush.bf16.msra.mxu0 0
    %7159 = vmatpush.bf16.msra.mxu0 0
    %7160 = vmatpush.bf16.msra.mxu0 0
    %7161 = vmatpush.bf16.msra.mxu0 0
    %7162 = vmatpush.bf16.msra.mxu0 0
    %7163 = vmatpush.bf16.msra.mxu0 %v7151
    %7164 = vmatmul.bf16.gmra.mxu0 %v7154
    %v7165 = vpop.f32.mrf.mxu0
    %v7166 = vadd.f32 0.0, %v7165
    %v7167 = vpop.f32.mrf.mxu0
    %v7168 = vadd.f32 0.0, %v7167
    %7169 = vdwg.mxu0
    %v7172 = vunpack.c.l.b16 %v6132
    %v7173 = vunpack.c.l.b16 %v6133
    %v7174 = vpack.c.b16 %v7173, %v7172
    %v7177 = vunpack.c.l.b16 %v2675
    %v7178 = vunpack.c.l.b16 %v2676
    %v7179 = vpack.c.b16 %v7178, %v7177
    %v7182 = vsel %vm2743, %v7174, 0
    %7184 = vmatpush.bf16.msra.mxu0 0
    %7185 = vmatpush.bf16.msra.mxu0 0
    %7186 = vmatpush.bf16.msra.mxu0 0
    %7187 = vmatpush.bf16.msra.mxu0 0
    %7188 = vmatpush.bf16.msra.mxu0 0
    %7189 = vmatpush.bf16.msra.mxu0 0
    %7190 = vmatpush.bf16.msra.mxu0 0
    %7191 = vmatpush.bf16.msra.mxu0 %v7179
    %7192 = vmatmul.bf16.gmra.mxu0 %v7182
    %v7193 = vpop.f32.mrf.mxu0
    %v7194 = vadd.f32 0.0, %v7193
    %v7195 = vpop.f32.mrf.mxu0
    %v7196 = vadd.f32 0.0, %v7195
    %7197 = vdwg.mxu0
    %v7200 = vunpack.c.l.b16 %v6134
    %v7201 = vunpack.c.l.b16 %v6135
    %v7202 = vpack.c.b16 %v7201, %v7200
    %v7205 = vunpack.c.l.b16 %v2677
    %v7206 = vunpack.c.l.b16 %v2678
    %v7207 = vpack.c.b16 %v7206, %v7205
    %v7210 = vsel %vm2743, %v7202, 0
    %7212 = vmatpush.bf16.msra.mxu0 0
    %7213 = vmatpush.bf16.msra.mxu0 0
    %7214 = vmatpush.bf16.msra.mxu0 0
    %7215 = vmatpush.bf16.msra.mxu0 0
    %7216 = vmatpush.bf16.msra.mxu0 0
    %7217 = vmatpush.bf16.msra.mxu0 0
    %7218 = vmatpush.bf16.msra.mxu0 0
    %7219 = vmatpush.bf16.msra.mxu0 %v7207
    %7220 = vmatmul.bf16.gmra.mxu0 %v7210
    %v7221 = vpop.f32.mrf.mxu0
    %v7222 = vadd.f32 0.0, %v7221
    %v7223 = vpop.f32.mrf.mxu0
    %v7224 = vadd.f32 0.0, %v7223
    %7225 = vdwg.mxu0
    %v7228 = vunpack.c.l.b16 %v6136
    %v7229 = vunpack.c.l.b16 %v6137
    %v7230 = vpack.c.b16 %v7229, %v7228
    %v7233 = vunpack.c.l.b16 %v2679
    %v7234 = vunpack.c.l.b16 %v2680
    %v7235 = vpack.c.b16 %v7234, %v7233
    %v7238 = vsel %vm2743, %v7230, 0
    %7240 = vmatpush.bf16.msra.mxu0 0
    %7241 = vmatpush.bf16.msra.mxu0 0
    %7242 = vmatpush.bf16.msra.mxu0 0
    %7243 = vmatpush.bf16.msra.mxu0 0
    %7244 = vmatpush.bf16.msra.mxu0 0
    %7245 = vmatpush.bf16.msra.mxu0 0
    %7246 = vmatpush.bf16.msra.mxu0 0
    %7247 = vmatpush.bf16.msra.mxu0 %v7235
    %7248 = vmatmul.bf16.gmra.mxu0 %v7238
    %v7249 = vpop.f32.mrf.mxu0
    %v7250 = vadd.f32 0.0, %v7249
    %v7251 = vpop.f32.mrf.mxu0
    %v7252 = vadd.f32 0.0, %v7251
    %7253 = vdwg.mxu0
    %v7256 = vunpack.c.l.b16 %v6138
    %v7257 = vunpack.c.l.b16 %v6139
    %v7258 = vpack.c.b16 %v7257, %v7256
    %v7261 = vunpack.c.l.b16 %v2681
    %v7262 = vunpack.c.l.b16 %v2682
    %v7263 = vpack.c.b16 %v7262, %v7261
    %v7266 = vsel %vm2743, %v7258, 0
    %7268 = vmatpush.bf16.msra.mxu0 0
    %7269 = vmatpush.bf16.msra.mxu0 0
    %7270 = vmatpush.bf16.msra.mxu0 0
    %7271 = vmatpush.bf16.msra.mxu0 0
    %7272 = vmatpush.bf16.msra.mxu0 0
    %7273 = vmatpush.bf16.msra.mxu0 0
    %7274 = vmatpush.bf16.msra.mxu0 0
    %7275 = vmatpush.bf16.msra.mxu0 %v7263
    %7276 = vmatmul.bf16.gmra.mxu0 %v7266
    %v7277 = vpop.f32.mrf.mxu0
    %v7278 = vadd.f32 0.0, %v7277
    %v7279 = vpop.f32.mrf.mxu0
    %v7280 = vadd.f32 0.0, %v7279
    %7281 = vdwg.mxu0
    %v7284 = vunpack.c.l.b16 %v6140
    %v7285 = vunpack.c.l.b16 %v6141
    %v7286 = vpack.c.b16 %v7285, %v7284
    %v7289 = vunpack.c.l.b16 %v2683
    %v7290 = vunpack.c.l.b16 %v2684
    %v7291 = vpack.c.b16 %v7290, %v7289
    %v7294 = vsel %vm2743, %v7286, 0
    %7296 = vmatpush.bf16.msra.mxu0 0
    %7297 = vmatpush.bf16.msra.mxu0 0
    %7298 = vmatpush.bf16.msra.mxu0 0
    %7299 = vmatpush.bf16.msra.mxu0 0
    %7300 = vmatpush.bf16.msra.mxu0 0
    %7301 = vmatpush.bf16.msra.mxu0 0
    %7302 = vmatpush.bf16.msra.mxu0 0
    %7303 = vmatpush.bf16.msra.mxu0 %v7291
    %7304 = vmatmul.bf16.gmra.mxu0 %v7294
    %v7305 = vpop.f32.mrf.mxu0
    %v7306 = vadd.f32 0.0, %v7305
    %v7307 = vpop.f32.mrf.mxu0
    %v7308 = vadd.f32 0.0, %v7307
    %7309 = vdwg.mxu0
    %v7312 = vunpack.c.l.b16 %v6142
    %v7313 = vunpack.c.l.b16 %v6143
    %v7314 = vpack.c.b16 %v7313, %v7312
    %v7317 = vunpack.c.l.b16 %v2685
    %v7318 = vunpack.c.l.b16 %v2686
    %v7319 = vpack.c.b16 %v7318, %v7317
    %v7322 = vsel %vm2743, %v7314, 0
    %7324 = vmatpush.bf16.msra.mxu0 0
    %7325 = vmatpush.bf16.msra.mxu0 0
    %7326 = vmatpush.bf16.msra.mxu0 0
    %7327 = vmatpush.bf16.msra.mxu0 0
    %7328 = vmatpush.bf16.msra.mxu0 0
    %7329 = vmatpush.bf16.msra.mxu0 0
    %7330 = vmatpush.bf16.msra.mxu0 0
    %7331 = vmatpush.bf16.msra.mxu0 %v7319
    %7332 = vmatmul.bf16.gmra.mxu0 %v7322
    %v7333 = vpop.f32.mrf.mxu0
    %v7334 = vadd.f32 0.0, %v7333
    %v7335 = vpop.f32.mrf.mxu0
    %v7336 = vadd.f32 0.0, %v7335
    %7337 = vdwg.mxu0
    %v7340 = vunpack.c.l.b16 %v6144
    %v7341 = vunpack.c.l.b16 %v6145
    %v7342 = vpack.c.b16 %v7341, %v7340
    %v7345 = vunpack.c.l.b16 %v2687
    %v7346 = vunpack.c.l.b16 %v2688
    %v7347 = vpack.c.b16 %v7346, %v7345
    %v7350 = vsel %vm2743, %v7342, 0
    %7352 = vmatpush.bf16.msra.mxu0 0
    %7353 = vmatpush.bf16.msra.mxu0 0
    %7354 = vmatpush.bf16.msra.mxu0 0
    %7355 = vmatpush.bf16.msra.mxu0 0
    %7356 = vmatpush.bf16.msra.mxu0 0
    %7357 = vmatpush.bf16.msra.mxu0 0
    %7358 = vmatpush.bf16.msra.mxu0 0
    %7359 = vmatpush.bf16.msra.mxu0 %v7347
    %7360 = vmatmul.bf16.gmra.mxu0 %v7350
    %v7361 = vpop.f32.mrf.mxu0
    %v7362 = vadd.f32 0.0, %v7361
    %v7363 = vpop.f32.mrf.mxu0
    %v7364 = vadd.f32 0.0, %v7363
    %7365 = vdwg.mxu0
    %v7368 = vunpack.c.l.b16 %v6146
    %v7369 = vunpack.c.l.b16 %v6147
    %v7370 = vpack.c.b16 %v7369, %v7368
    %v7373 = vunpack.c.l.b16 %v2689
    %v7374 = vunpack.c.l.b16 %v2690
    %v7375 = vpack.c.b16 %v7374, %v7373
    %v7378 = vsel %vm2743, %v7370, 0
    %7380 = vmatpush.bf16.msra.mxu0 0
    %7381 = vmatpush.bf16.msra.mxu0 0
    %7382 = vmatpush.bf16.msra.mxu0 0
    %7383 = vmatpush.bf16.msra.mxu0 0
    %7384 = vmatpush.bf16.msra.mxu0 0
    %7385 = vmatpush.bf16.msra.mxu0 0
    %7386 = vmatpush.bf16.msra.mxu0 0
    %7387 = vmatpush.bf16.msra.mxu0 %v7375
    %7388 = vmatmul.bf16.gmra.mxu0 %v7378
    %v7389 = vpop.f32.mrf.mxu0
    %v7390 = vadd.f32 0.0, %v7389
    %v7391 = vpop.f32.mrf.mxu0
    %v7392 = vadd.f32 0.0, %v7391
    %7393 = vdwg.mxu0
    %v7396 = vunpack.c.l.b16 %v6148
    %v7397 = vunpack.c.l.b16 %v6149
    %v7398 = vpack.c.b16 %v7397, %v7396
    %v7401 = vunpack.c.l.b16 %v2691
    %v7402 = vunpack.c.l.b16 %v2692
    %v7403 = vpack.c.b16 %v7402, %v7401
    %v7406 = vsel %vm2743, %v7398, 0
    %7408 = vmatpush.bf16.msra.mxu0 0
    %7409 = vmatpush.bf16.msra.mxu0 0
    %7410 = vmatpush.bf16.msra.mxu0 0
    %7411 = vmatpush.bf16.msra.mxu0 0
    %7412 = vmatpush.bf16.msra.mxu0 0
    %7413 = vmatpush.bf16.msra.mxu0 0
    %7414 = vmatpush.bf16.msra.mxu0 0
    %7415 = vmatpush.bf16.msra.mxu0 %v7403
    %7416 = vmatmul.bf16.gmra.mxu0 %v7406
    %v7417 = vpop.f32.mrf.mxu0
    %v7418 = vadd.f32 0.0, %v7417
    %v7419 = vpop.f32.mrf.mxu0
    %v7420 = vadd.f32 0.0, %v7419
    %7421 = vdwg.mxu0
    %v7424 = vunpack.c.l.b16 %v6150
    %v7425 = vunpack.c.l.b16 %v6151
    %v7426 = vpack.c.b16 %v7425, %v7424
    %v7429 = vunpack.c.l.b16 %v2693
    %v7430 = vunpack.c.l.b16 %v2694
    %v7431 = vpack.c.b16 %v7430, %v7429
    %v7434 = vsel %vm2743, %v7426, 0
    %7436 = vmatpush.bf16.msra.mxu0 0
    %7437 = vmatpush.bf16.msra.mxu0 0
    %7438 = vmatpush.bf16.msra.mxu0 0
    %7439 = vmatpush.bf16.msra.mxu0 0
    %7440 = vmatpush.bf16.msra.mxu0 0
    %7441 = vmatpush.bf16.msra.mxu0 0
    %7442 = vmatpush.bf16.msra.mxu0 0
    %7443 = vmatpush.bf16.msra.mxu0 %v7431
    %7444 = vmatmul.bf16.gmra.mxu0 %v7434
    %v7445 = vpop.f32.mrf.mxu0
    %v7446 = vadd.f32 0.0, %v7445
    %v7447 = vpop.f32.mrf.mxu0
    %v7448 = vadd.f32 0.0, %v7447
    %7449 = vdwg.mxu0
    %v7452 = vunpack.c.l.b16 %v6152
    %v7453 = vunpack.c.l.b16 %v6153
    %v7454 = vpack.c.b16 %v7453, %v7452
    %v7457 = vunpack.c.l.b16 %v2695
    %v7458 = vunpack.c.l.b16 %v2696
    %v7459 = vpack.c.b16 %v7458, %v7457
    %v7462 = vsel %vm2743, %v7454, 0
    %7464 = vmatpush.bf16.msra.mxu0 0
    %7465 = vmatpush.bf16.msra.mxu0 0
    %7466 = vmatpush.bf16.msra.mxu0 0
    %7467 = vmatpush.bf16.msra.mxu0 0
    %7468 = vmatpush.bf16.msra.mxu0 0
    %7469 = vmatpush.bf16.msra.mxu0 0
    %7470 = vmatpush.bf16.msra.mxu0 0
    %7471 = vmatpush.bf16.msra.mxu0 %v7459
    %7472 = vmatmul.bf16.gmra.mxu0 %v7462
    %v7473 = vpop.f32.mrf.mxu0
    %v7474 = vadd.f32 0.0, %v7473
    %v7475 = vpop.f32.mrf.mxu0
    %v7476 = vadd.f32 0.0, %v7475
    %7477 = vdwg.mxu0
    %v7480 = vunpack.c.l.b16 %v6154
    %v7481 = vunpack.c.l.b16 %v6155
    %v7482 = vpack.c.b16 %v7481, %v7480
    %v7485 = vunpack.c.l.b16 %v2697
    %v7486 = vunpack.c.l.b16 %v2698
    %v7487 = vpack.c.b16 %v7486, %v7485
    %v7490 = vsel %vm2743, %v7482, 0
    %7492 = vmatpush.bf16.msra.mxu0 0
    %7493 = vmatpush.bf16.msra.mxu0 0
    %7494 = vmatpush.bf16.msra.mxu0 0
    %7495 = vmatpush.bf16.msra.mxu0 0
    %7496 = vmatpush.bf16.msra.mxu0 0
    %7497 = vmatpush.bf16.msra.mxu0 0
    %7498 = vmatpush.bf16.msra.mxu0 0
    %7499 = vmatpush.bf16.msra.mxu0 %v7487
    %7500 = vmatmul.bf16.gmra.mxu0 %v7490
    %v7501 = vpop.f32.mrf.mxu0
    %v7502 = vadd.f32 0.0, %v7501
    %v7503 = vpop.f32.mrf.mxu0
    %v7504 = vadd.f32 0.0, %v7503
    %7505 = vdwg.mxu0
    %v7508 = vunpack.c.l.b16 %v6156
    %v7509 = vunpack.c.l.b16 %v6157
    %v7510 = vpack.c.b16 %v7509, %v7508
    %v7513 = vunpack.c.l.b16 %v2699
    %v7514 = vunpack.c.l.b16 %v2700
    %v7515 = vpack.c.b16 %v7514, %v7513
    %v7518 = vsel %vm2743, %v7510, 0
    %7520 = vmatpush.bf16.msra.mxu0 0
    %7521 = vmatpush.bf16.msra.mxu0 0
    %7522 = vmatpush.bf16.msra.mxu0 0
    %7523 = vmatpush.bf16.msra.mxu0 0
    %7524 = vmatpush.bf16.msra.mxu0 0
    %7525 = vmatpush.bf16.msra.mxu0 0
    %7526 = vmatpush.bf16.msra.mxu0 0
    %7527 = vmatpush.bf16.msra.mxu0 %v7515
    %7528 = vmatmul.bf16.gmra.mxu0 %v7518
    %v7529 = vpop.f32.mrf.mxu0
    %v7530 = vadd.f32 0.0, %v7529
    %v7531 = vpop.f32.mrf.mxu0
    %v7532 = vadd.f32 0.0, %v7531
    %7533 = vdwg.mxu0
    %v7536 = vunpack.c.l.b16 %v6158
    %v7537 = vunpack.c.l.b16 %v6159
    %v7538 = vpack.c.b16 %v7537, %v7536
    %v7541 = vunpack.c.l.b16 %v2701
    %v7542 = vunpack.c.l.b16 %v2702
    %v7543 = vpack.c.b16 %v7542, %v7541
    %v7546 = vsel %vm2743, %v7538, 0
    %7548 = vmatpush.bf16.msra.mxu0 0
    %7549 = vmatpush.bf16.msra.mxu0 0
    %7550 = vmatpush.bf16.msra.mxu0 0
    %7551 = vmatpush.bf16.msra.mxu0 0
    %7552 = vmatpush.bf16.msra.mxu0 0
    %7553 = vmatpush.bf16.msra.mxu0 0
    %7554 = vmatpush.bf16.msra.mxu0 0
    %7555 = vmatpush.bf16.msra.mxu0 %v7543
    %7556 = vmatmul.bf16.gmra.mxu0 %v7546
    %v7557 = vpop.f32.mrf.mxu0
    %v7558 = vadd.f32 0.0, %v7557
    %v7559 = vpop.f32.mrf.mxu0
    %v7560 = vadd.f32 0.0, %v7559
    %7561 = vdwg.mxu0
    %v7564 = vunpack.c.l.b16 %v6160
    %v7565 = vunpack.c.l.b16 %v6161
    %v7566 = vpack.c.b16 %v7565, %v7564
    %v7569 = vunpack.c.l.b16 %v2703
    %v7570 = vunpack.c.l.b16 %v2704
    %v7571 = vpack.c.b16 %v7570, %v7569
    %v7574 = vsel %vm2743, %v7566, 0
    %7576 = vmatpush.bf16.msra.mxu0 0
    %7577 = vmatpush.bf16.msra.mxu0 0
    %7578 = vmatpush.bf16.msra.mxu0 0
    %7579 = vmatpush.bf16.msra.mxu0 0
    %7580 = vmatpush.bf16.msra.mxu0 0
    %7581 = vmatpush.bf16.msra.mxu0 0
    %7582 = vmatpush.bf16.msra.mxu0 0
    %7583 = vmatpush.bf16.msra.mxu0 %v7571
    %7584 = vmatmul.bf16.gmra.mxu0 %v7574
    %v7585 = vpop.f32.mrf.mxu0
    %v7586 = vadd.f32 0.0, %v7585
    %v7587 = vpop.f32.mrf.mxu0
    %v7588 = vadd.f32 0.0, %v7587
    %7589 = vdwg.mxu0
    %v7592 = vunpack.c.l.b16 %v6162
    %v7593 = vunpack.c.l.b16 %v6163
    %v7594 = vpack.c.b16 %v7593, %v7592
    %v7597 = vunpack.c.l.b16 %v2705
    %v7598 = vunpack.c.l.b16 %v2706
    %v7599 = vpack.c.b16 %v7598, %v7597
    %v7602 = vsel %vm2743, %v7594, 0
    %7604 = vmatpush.bf16.msra.mxu0 0
    %7605 = vmatpush.bf16.msra.mxu0 0
    %7606 = vmatpush.bf16.msra.mxu0 0
    %7607 = vmatpush.bf16.msra.mxu0 0
    %7608 = vmatpush.bf16.msra.mxu0 0
    %7609 = vmatpush.bf16.msra.mxu0 0
    %7610 = vmatpush.bf16.msra.mxu0 0
    %7611 = vmatpush.bf16.msra.mxu0 %v7599
    %7612 = vmatmul.bf16.gmra.mxu0 %v7602
    %v7613 = vpop.f32.mrf.mxu0
    %v7614 = vadd.f32 0.0, %v7613
    %v7615 = vpop.f32.mrf.mxu0
    %v7616 = vadd.f32 0.0, %v7615
    %7617 = vdwg.mxu0
    %v7620 = vunpack.c.l.b16 %v6164
    %v7621 = vunpack.c.l.b16 %v6165
    %v7622 = vpack.c.b16 %v7621, %v7620
    %v7625 = vunpack.c.l.b16 %v2707
    %v7626 = vunpack.c.l.b16 %v2708
    %v7627 = vpack.c.b16 %v7626, %v7625
    %v7630 = vsel %vm2743, %v7622, 0
    %7632 = vmatpush.bf16.msra.mxu0 0
    %7633 = vmatpush.bf16.msra.mxu0 0
    %7634 = vmatpush.bf16.msra.mxu0 0
    %7635 = vmatpush.bf16.msra.mxu0 0
    %7636 = vmatpush.bf16.msra.mxu0 0
    %7637 = vmatpush.bf16.msra.mxu0 0
    %7638 = vmatpush.bf16.msra.mxu0 0
    %7639 = vmatpush.bf16.msra.mxu0 %v7627
    %7640 = vmatmul.bf16.gmra.mxu0 %v7630
    %v7641 = vpop.f32.mrf.mxu0
    %v7642 = vadd.f32 0.0, %v7641
    %v7643 = vpop.f32.mrf.mxu0
    %v7644 = vadd.f32 0.0, %v7643
    %7645 = vdwg.mxu0
    %v7648 = vunpack.c.l.b16 %v6166
    %v7649 = vunpack.c.l.b16 %v6167
    %v7650 = vpack.c.b16 %v7649, %v7648
    %v7653 = vunpack.c.l.b16 %v2709
    %v7654 = vunpack.c.l.b16 %v2710
    %v7655 = vpack.c.b16 %v7654, %v7653
    %v7658 = vsel %vm2743, %v7650, 0
    %7660 = vmatpush.bf16.msra.mxu0 0
    %7661 = vmatpush.bf16.msra.mxu0 0
    %7662 = vmatpush.bf16.msra.mxu0 0
    %7663 = vmatpush.bf16.msra.mxu0 0
    %7664 = vmatpush.bf16.msra.mxu0 0
    %7665 = vmatpush.bf16.msra.mxu0 0
    %7666 = vmatpush.bf16.msra.mxu0 0
    %7667 = vmatpush.bf16.msra.mxu0 %v7655
    %7668 = vmatmul.bf16.gmra.mxu0 %v7658
    %v7669 = vpop.f32.mrf.mxu0
    %v7670 = vadd.f32 0.0, %v7669
    %v7671 = vpop.f32.mrf.mxu0
    %v7672 = vadd.f32 0.0, %v7671
    %7673 = vdwg.mxu0
    %v7676 = vunpack.c.l.b16 %v6168
    %v7677 = vunpack.c.l.b16 %v6169
    %v7678 = vpack.c.b16 %v7677, %v7676
    %v7681 = vunpack.c.l.b16 %v2711
    %v7682 = vunpack.c.l.b16 %v2712
    %v7683 = vpack.c.b16 %v7682, %v7681
    %v7686 = vsel %vm2743, %v7678, 0
    %7688 = vmatpush.bf16.msra.mxu0 0
    %7689 = vmatpush.bf16.msra.mxu0 0
    %7690 = vmatpush.bf16.msra.mxu0 0
    %7691 = vmatpush.bf16.msra.mxu0 0
    %7692 = vmatpush.bf16.msra.mxu0 0
    %7693 = vmatpush.bf16.msra.mxu0 0
    %7694 = vmatpush.bf16.msra.mxu0 0
    %7695 = vmatpush.bf16.msra.mxu0 %v7683
    %7696 = vmatmul.bf16.gmra.mxu0 %v7686
    %v7697 = vpop.f32.mrf.mxu0
    %v7698 = vadd.f32 0.0, %v7697
    %v7699 = vpop.f32.mrf.mxu0
    %v7700 = vadd.f32 0.0, %v7699
    %7701 = vdwg.mxu0
    %v7704 = vunpack.c.l.b16 %v6170
    %v7705 = vunpack.c.l.b16 %v6171
    %v7706 = vpack.c.b16 %v7705, %v7704
    %v7709 = vunpack.c.l.b16 %v2713
    %v7710 = vunpack.c.l.b16 %v2714
    %v7711 = vpack.c.b16 %v7710, %v7709
    %v7714 = vsel %vm2743, %v7706, 0
    %7716 = vmatpush.bf16.msra.mxu0 0
    %7717 = vmatpush.bf16.msra.mxu0 0
    %7718 = vmatpush.bf16.msra.mxu0 0
    %7719 = vmatpush.bf16.msra.mxu0 0
    %7720 = vmatpush.bf16.msra.mxu0 0
    %7721 = vmatpush.bf16.msra.mxu0 0
    %7722 = vmatpush.bf16.msra.mxu0 0
    %7723 = vmatpush.bf16.msra.mxu0 %v7711
    %7724 = vmatmul.bf16.gmra.mxu0 %v7714
    %v7725 = vpop.f32.mrf.mxu0
    %v7726 = vadd.f32 0.0, %v7725
    %v7727 = vpop.f32.mrf.mxu0
    %v7728 = vadd.f32 0.0, %v7727
    %7729 = vdwg.mxu0
    %v7732 = vunpack.c.l.b16 %v6172
    %v7733 = vunpack.c.l.b16 %v6173
    %v7734 = vpack.c.b16 %v7733, %v7732
    %v7737 = vunpack.c.l.b16 %v2715
    %v7738 = vunpack.c.l.b16 %v2716
    %v7739 = vpack.c.b16 %v7738, %v7737
    %v7742 = vsel %vm2743, %v7734, 0
    %7744 = vmatpush.bf16.msra.mxu0 0
    %7745 = vmatpush.bf16.msra.mxu0 0
    %7746 = vmatpush.bf16.msra.mxu0 0
    %7747 = vmatpush.bf16.msra.mxu0 0
    %7748 = vmatpush.bf16.msra.mxu0 0
    %7749 = vmatpush.bf16.msra.mxu0 0
    %7750 = vmatpush.bf16.msra.mxu0 0
    %7751 = vmatpush.bf16.msra.mxu0 %v7739
    %7752 = vmatmul.bf16.gmra.mxu0 %v7742
    %v7753 = vpop.f32.mrf.mxu0
    %v7754 = vadd.f32 0.0, %v7753
    %v7755 = vpop.f32.mrf.mxu0
    %v7756 = vadd.f32 0.0, %v7755
    %7757 = vdwg.mxu0
    %v7760 = vunpack.c.l.b16 %v6174
    %v7761 = vunpack.c.l.b16 %v6175
    %v7762 = vpack.c.b16 %v7761, %v7760
    %v7765 = vunpack.c.l.b16 %v2717
    %v7766 = vunpack.c.l.b16 %v2718
    %v7767 = vpack.c.b16 %v7766, %v7765
    %v7770 = vsel %vm2743, %v7762, 0
    %7772 = vmatpush.bf16.msra.mxu0 0
    %7773 = vmatpush.bf16.msra.mxu0 0
    %7774 = vmatpush.bf16.msra.mxu0 0
    %7775 = vmatpush.bf16.msra.mxu0 0
    %7776 = vmatpush.bf16.msra.mxu0 0
    %7777 = vmatpush.bf16.msra.mxu0 0
    %7778 = vmatpush.bf16.msra.mxu0 0
    %7779 = vmatpush.bf16.msra.mxu0 %v7767
    %7780 = vmatmul.bf16.gmra.mxu0 %v7770
    %v7781 = vpop.f32.mrf.mxu0
    %v7782 = vadd.f32 0.0, %v7781
    %v7783 = vpop.f32.mrf.mxu0
    %v7784 = vadd.f32 0.0, %v7783
    %7785 = vdwg.mxu0
    %v7788 = vunpack.c.l.b16 %v6176
    %v7789 = vunpack.c.l.b16 %v6177
    %v7790 = vpack.c.b16 %v7789, %v7788
    %v7793 = vunpack.c.l.b16 %v2719
    %v7794 = vunpack.c.l.b16 %v2720
    %v7795 = vpack.c.b16 %v7794, %v7793
    %v7798 = vsel %vm2743, %v7790, 0
    %7800 = vmatpush.bf16.msra.mxu0 0
    %7801 = vmatpush.bf16.msra.mxu0 0
    %7802 = vmatpush.bf16.msra.mxu0 0
    %7803 = vmatpush.bf16.msra.mxu0 0
    %7804 = vmatpush.bf16.msra.mxu0 0
    %7805 = vmatpush.bf16.msra.mxu0 0
    %7806 = vmatpush.bf16.msra.mxu0 0
    %7807 = vmatpush.bf16.msra.mxu0 %v7795
    %7808 = vmatmul.bf16.gmra.mxu0 %v7798
    %v7809 = vpop.f32.mrf.mxu0
    %v7810 = vadd.f32 0.0, %v7809
    %v7811 = vpop.f32.mrf.mxu0
    %v7812 = vadd.f32 0.0, %v7811
    %7813 = vdwg.mxu0
    %v7816 = vunpack.c.l.b16 %v6178
    %v7817 = vunpack.c.l.b16 %v6179
    %v7818 = vpack.c.b16 %v7817, %v7816
    %v7821 = vunpack.c.l.b16 %v2721
    %v7822 = vunpack.c.l.b16 %v2722
    %v7823 = vpack.c.b16 %v7822, %v7821
    %v7826 = vsel %vm2743, %v7818, 0
    %7828 = vmatpush.bf16.msra.mxu0 0
    %7829 = vmatpush.bf16.msra.mxu0 0
    %7830 = vmatpush.bf16.msra.mxu0 0
    %7831 = vmatpush.bf16.msra.mxu0 0
    %7832 = vmatpush.bf16.msra.mxu0 0
    %7833 = vmatpush.bf16.msra.mxu0 0
    %7834 = vmatpush.bf16.msra.mxu0 0
    %7835 = vmatpush.bf16.msra.mxu0 %v7823
    %7836 = vmatmul.bf16.gmra.mxu0 %v7826
    %v7837 = vpop.f32.mrf.mxu0
    %v7838 = vadd.f32 0.0, %v7837
    %v7839 = vpop.f32.mrf.mxu0
    %v7840 = vadd.f32 0.0, %v7839
    %7841 = vdwg.mxu0
    %v7844 = vunpack.c.l.b16 %v6180
    %v7845 = vunpack.c.l.b16 %v6181
    %v7846 = vpack.c.b16 %v7845, %v7844
    %v7849 = vunpack.c.l.b16 %v2723
    %v7850 = vunpack.c.l.b16 %v2724
    %v7851 = vpack.c.b16 %v7850, %v7849
    %v7854 = vsel %vm2743, %v7846, 0
    %7856 = vmatpush.bf16.msra.mxu0 0
    %7857 = vmatpush.bf16.msra.mxu0 0
    %7858 = vmatpush.bf16.msra.mxu0 0
    %7859 = vmatpush.bf16.msra.mxu0 0
    %7860 = vmatpush.bf16.msra.mxu0 0
    %7861 = vmatpush.bf16.msra.mxu0 0
    %7862 = vmatpush.bf16.msra.mxu0 0
    %7863 = vmatpush.bf16.msra.mxu0 %v7851
    %7864 = vmatmul.bf16.gmra.mxu0 %v7854
    %v7865 = vpop.f32.mrf.mxu0
    %v7866 = vadd.f32 0.0, %v7865
    %v7867 = vpop.f32.mrf.mxu0
    %v7868 = vadd.f32 0.0, %v7867
    %7869 = vdwg.mxu0
    %v7872 = vunpack.c.l.b16 %v6182
    %v7873 = vunpack.c.l.b16 %v6183
    %v7874 = vpack.c.b16 %v7873, %v7872
    %v7877 = vunpack.c.l.b16 %v2725
    %v7878 = vunpack.c.l.b16 %v2726
    %v7879 = vpack.c.b16 %v7878, %v7877
    %v7882 = vsel %vm2743, %v7874, 0
    %7884 = vmatpush.bf16.msra.mxu0 0
    %7885 = vmatpush.bf16.msra.mxu0 0
    %7886 = vmatpush.bf16.msra.mxu0 0
    %7887 = vmatpush.bf16.msra.mxu0 0
    %7888 = vmatpush.bf16.msra.mxu0 0
    %7889 = vmatpush.bf16.msra.mxu0 0
    %7890 = vmatpush.bf16.msra.mxu0 0
    %7891 = vmatpush.bf16.msra.mxu0 %v7879
    %7892 = vmatmul.bf16.gmra.mxu0 %v7882
    %v7893 = vpop.f32.mrf.mxu0
    %v7894 = vadd.f32 0.0, %v7893
    %v7895 = vpop.f32.mrf.mxu0
    %v7896 = vadd.f32 0.0, %v7895
    %7897 = vdwg.mxu0
    %v7900 = vunpack.c.l.b16 %v6184
    %v7901 = vunpack.c.l.b16 %v6185
    %v7902 = vpack.c.b16 %v7901, %v7900
    %v7905 = vunpack.c.l.b16 %v2727
    %v7906 = vunpack.c.l.b16 %v2728
    %v7907 = vpack.c.b16 %v7906, %v7905
    %v7910 = vsel %vm2743, %v7902, 0
    %7912 = vmatpush.bf16.msra.mxu0 0
    %7913 = vmatpush.bf16.msra.mxu0 0
    %7914 = vmatpush.bf16.msra.mxu0 0
    %7915 = vmatpush.bf16.msra.mxu0 0
    %7916 = vmatpush.bf16.msra.mxu0 0
    %7917 = vmatpush.bf16.msra.mxu0 0
    %7918 = vmatpush.bf16.msra.mxu0 0
    %7919 = vmatpush.bf16.msra.mxu0 %v7907
    %7920 = vmatmul.bf16.gmra.mxu0 %v7910
    %v7921 = vpop.f32.mrf.mxu0
    %v7922 = vadd.f32 0.0, %v7921
    %v7923 = vpop.f32.mrf.mxu0
    %v7924 = vadd.f32 0.0, %v7923
    %7925 = vdwg.mxu0
    %v7928 = vunpack.c.l.b16 %v6186
    %v7929 = vunpack.c.l.b16 %v6187
    %v7930 = vpack.c.b16 %v7929, %v7928
    %v7933 = vunpack.c.l.b16 %v2729
    %v7934 = vunpack.c.l.b16 %v2730
    %v7935 = vpack.c.b16 %v7934, %v7933
    %v7938 = vsel %vm2743, %v7930, 0
    %7940 = vmatpush.bf16.msra.mxu0 0
    %7941 = vmatpush.bf16.msra.mxu0 0
    %7942 = vmatpush.bf16.msra.mxu0 0
    %7943 = vmatpush.bf16.msra.mxu0 0
    %7944 = vmatpush.bf16.msra.mxu0 0
    %7945 = vmatpush.bf16.msra.mxu0 0
    %7946 = vmatpush.bf16.msra.mxu0 0
    %7947 = vmatpush.bf16.msra.mxu0 %v7935
    %7948 = vmatmul.bf16.gmra.mxu0 %v7938
    %v7949 = vpop.f32.mrf.mxu0
    %v7950 = vadd.f32 0.0, %v7949
    %v7951 = vpop.f32.mrf.mxu0
    %v7952 = vadd.f32 0.0, %v7951
    %7953 = vdwg.mxu0
    %v7956 = vunpack.c.l.b16 %v6188
    %v7957 = vunpack.c.l.b16 %v6189
    %v7958 = vpack.c.b16 %v7957, %v7956
    %v7961 = vunpack.c.l.b16 %v2731
    %v7962 = vunpack.c.l.b16 %v2732
    %v7963 = vpack.c.b16 %v7962, %v7961
    %v7966 = vsel %vm2743, %v7958, 0
    %7968 = vmatpush.bf16.msra.mxu0 0
    %7969 = vmatpush.bf16.msra.mxu0 0
    %7970 = vmatpush.bf16.msra.mxu0 0
    %7971 = vmatpush.bf16.msra.mxu0 0
    %7972 = vmatpush.bf16.msra.mxu0 0
    %7973 = vmatpush.bf16.msra.mxu0 0
    %7974 = vmatpush.bf16.msra.mxu0 0
    %7975 = vmatpush.bf16.msra.mxu0 %v7963
    %7976 = vmatmul.bf16.gmra.mxu0 %v7966
    %v7977 = vpop.f32.mrf.mxu0
    %v7978 = vadd.f32 0.0, %v7977
    %v7979 = vpop.f32.mrf.mxu0
    %v7980 = vadd.f32 0.0, %v7979
    %7981 = vdwg.mxu0
    %7998 = vrot.lane.b32.xlu0 %v6438, 16
    %v7999 = vpop.permute.xlu0 %7998
    %8000 = vrot.lane.b32.xlu0 %v6440, 16
    %v8001 = vpop.permute.xlu0 %8000
    %8002 = vrot.lane.b32.xlu0 %v6466, 16
    %v8003 = vpop.permute.xlu0 %8002
    %8004 = vrot.lane.b32.xlu0 %v6468, 16
    %v8005 = vpop.permute.xlu0 %8004
    %8006 = vrot.lane.b32.xlu0 %v6494, 16
    %v8007 = vpop.permute.xlu0 %8006
    %8008 = vrot.lane.b32.xlu0 %v6496, 16
    %v8009 = vpop.permute.xlu0 %8008
    %8010 = vrot.lane.b32.xlu0 %v6522, 16
    %v8011 = vpop.permute.xlu0 %8010
    %8012 = vrot.lane.b32.xlu0 %v6524, 16
    %v8013 = vpop.permute.xlu0 %8012
    %8014 = vrot.lane.b32.xlu0 %v6550, 16
    %v8015 = vpop.permute.xlu0 %8014
    %8016 = vrot.lane.b32.xlu0 %v6552, 16
    %v8017 = vpop.permute.xlu0 %8016
    %8018 = vrot.lane.b32.xlu0 %v6578, 16
    %v8019 = vpop.permute.xlu0 %8018
    %8020 = vrot.lane.b32.xlu0 %v6580, 16
    %v8021 = vpop.permute.xlu0 %8020
    %8022 = vrot.lane.b32.xlu0 %v6606, 16
    %v8023 = vpop.permute.xlu0 %8022
    %8024 = vrot.lane.b32.xlu0 %v6608, 16
    %v8025 = vpop.permute.xlu0 %8024
    %8026 = vrot.lane.b32.xlu0 %v6634, 16
    %v8027 = vpop.permute.xlu0 %8026
    %8028 = vrot.lane.b32.xlu0 %v6636, 16
    %v8029 = vpop.permute.xlu0 %8028
    %8062 = vrot.lane.b32.xlu0 %v6662, 32
    %v8063 = vpop.permute.xlu0 %8062
    %8064 = vrot.lane.b32.xlu0 %v6664, 32
    %v8065 = vpop.permute.xlu0 %8064
    %8066 = vrot.lane.b32.xlu0 %v6690, 32
    %v8067 = vpop.permute.xlu0 %8066
    %8068 = vrot.lane.b32.xlu0 %v6692, 32
    %v8069 = vpop.permute.xlu0 %8068
    %8070 = vrot.lane.b32.xlu0 %v6718, 32
    %v8071 = vpop.permute.xlu0 %8070
    %8072 = vrot.lane.b32.xlu0 %v6720, 32
    %v8073 = vpop.permute.xlu0 %8072
    %8074 = vrot.lane.b32.xlu0 %v6746, 32
    %v8075 = vpop.permute.xlu0 %8074
    %8076 = vrot.lane.b32.xlu0 %v6748, 32
    %v8077 = vpop.permute.xlu0 %8076
    %8078 = vrot.lane.b32.xlu0 %v6774, 32
    %v8079 = vpop.permute.xlu0 %8078
    %8080 = vrot.lane.b32.xlu0 %v6776, 32
    %v8081 = vpop.permute.xlu0 %8080
    %8082 = vrot.lane.b32.xlu0 %v6802, 32
    %v8083 = vpop.permute.xlu0 %8082
    %8084 = vrot.lane.b32.xlu0 %v6804, 32
    %v8085 = vpop.permute.xlu0 %8084
    %8086 = vrot.lane.b32.xlu0 %v6830, 32
    %v8087 = vpop.permute.xlu0 %8086
    %8088 = vrot.lane.b32.xlu0 %v6832, 32
    %v8089 = vpop.permute.xlu0 %8088
    %8090 = vrot.lane.b32.xlu0 %v6858, 32
    %v8091 = vpop.permute.xlu0 %8090
    %8092 = vrot.lane.b32.xlu0 %v6860, 32
    %v8093 = vpop.permute.xlu0 %8092
    %8126 = vrot.lane.b32.xlu0 %v6886, 48
    %v8127 = vpop.permute.xlu0 %8126
    %8128 = vrot.lane.b32.xlu0 %v6888, 48
    %v8129 = vpop.permute.xlu0 %8128
    %8130 = vrot.lane.b32.xlu0 %v6914, 48
    %v8131 = vpop.permute.xlu0 %8130
    %8132 = vrot.lane.b32.xlu0 %v6916, 48
    %v8133 = vpop.permute.xlu0 %8132
    %8134 = vrot.lane.b32.xlu0 %v6942, 48
    %v8135 = vpop.permute.xlu0 %8134
    %8136 = vrot.lane.b32.xlu0 %v6944, 48
    %v8137 = vpop.permute.xlu0 %8136
    %8138 = vrot.lane.b32.xlu0 %v6970, 48
    %v8139 = vpop.permute.xlu0 %8138
    %8140 = vrot.lane.b32.xlu0 %v6972, 48
    %v8141 = vpop.permute.xlu0 %8140
    %8142 = vrot.lane.b32.xlu0 %v6998, 48
    %v8143 = vpop.permute.xlu0 %8142
    %8144 = vrot.lane.b32.xlu0 %v7000, 48
    %v8145 = vpop.permute.xlu0 %8144
    %8146 = vrot.lane.b32.xlu0 %v7026, 48
    %v8147 = vpop.permute.xlu0 %8146
    %8148 = vrot.lane.b32.xlu0 %v7028, 48
    %v8149 = vpop.permute.xlu0 %8148
    %8150 = vrot.lane.b32.xlu0 %v7054, 48
    %v8151 = vpop.permute.xlu0 %8150
    %8152 = vrot.lane.b32.xlu0 %v7056, 48
    %v8153 = vpop.permute.xlu0 %8152
    %8154 = vrot.lane.b32.xlu0 %v7082, 48
    %v8155 = vpop.permute.xlu0 %8154
    %8156 = vrot.lane.b32.xlu0 %v7084, 48
    %v8157 = vpop.permute.xlu0 %8156
    %8190 = vrot.lane.b32.xlu0 %v7110, 64
    %v8191 = vpop.permute.xlu0 %8190
    %8192 = vrot.lane.b32.xlu0 %v7112, 64
    %v8193 = vpop.permute.xlu0 %8192
    %8194 = vrot.lane.b32.xlu0 %v7138, 64
    %v8195 = vpop.permute.xlu0 %8194
    %8196 = vrot.lane.b32.xlu0 %v7140, 64
    %v8197 = vpop.permute.xlu0 %8196
    %8198 = vrot.lane.b32.xlu0 %v7166, 64
    %v8199 = vpop.permute.xlu0 %8198
    %8200 = vrot.lane.b32.xlu0 %v7168, 64
    %v8201 = vpop.permute.xlu0 %8200
    %8202 = vrot.lane.b32.xlu0 %v7194, 64
    %v8203 = vpop.permute.xlu0 %8202
    %8204 = vrot.lane.b32.xlu0 %v7196, 64
    %v8205 = vpop.permute.xlu0 %8204
    %8206 = vrot.lane.b32.xlu0 %v7222, 64
    %v8207 = vpop.permute.xlu0 %8206
    %8208 = vrot.lane.b32.xlu0 %v7224, 64
    %v8209 = vpop.permute.xlu0 %8208
    %8210 = vrot.lane.b32.xlu0 %v7250, 64
    %v8211 = vpop.permute.xlu0 %8210
    %8212 = vrot.lane.b32.xlu0 %v7252, 64
    %v8213 = vpop.permute.xlu0 %8212
    %8214 = vrot.lane.b32.xlu0 %v7278, 64
    %v8215 = vpop.permute.xlu0 %8214
    %8216 = vrot.lane.b32.xlu0 %v7280, 64
    %v8217 = vpop.permute.xlu0 %8216
    %8218 = vrot.lane.b32.xlu0 %v7306, 64
    %v8219 = vpop.permute.xlu0 %8218
    %8220 = vrot.lane.b32.xlu0 %v7308, 64
    %v8221 = vpop.permute.xlu0 %8220
    %8254 = vrot.lane.b32.xlu0 %v7334, 80
    %v8255 = vpop.permute.xlu0 %8254
    %8256 = vrot.lane.b32.xlu0 %v7336, 80
    %v8257 = vpop.permute.xlu0 %8256
    %8258 = vrot.lane.b32.xlu0 %v7362, 80
    %v8259 = vpop.permute.xlu0 %8258
    %8260 = vrot.lane.b32.xlu0 %v7364, 80
    %v8261 = vpop.permute.xlu0 %8260
    %8262 = vrot.lane.b32.xlu0 %v7390, 80
    %v8263 = vpop.permute.xlu0 %8262
    %8264 = vrot.lane.b32.xlu0 %v7392, 80
    %v8265 = vpop.permute.xlu0 %8264
    %8266 = vrot.lane.b32.xlu0 %v7418, 80
    %v8267 = vpop.permute.xlu0 %8266
    %8268 = vrot.lane.b32.xlu0 %v7420, 80
    %v8269 = vpop.permute.xlu0 %8268
    %8270 = vrot.lane.b32.xlu0 %v7446, 80
    %v8271 = vpop.permute.xlu0 %8270
    %8272 = vrot.lane.b32.xlu0 %v7448, 80
    %v8273 = vpop.permute.xlu0 %8272
    %8274 = vrot.lane.b32.xlu0 %v7474, 80
    %v8275 = vpop.permute.xlu0 %8274
    %8276 = vrot.lane.b32.xlu0 %v7476, 80
    %v8277 = vpop.permute.xlu0 %8276
    %8278 = vrot.lane.b32.xlu0 %v7502, 80
    %v8279 = vpop.permute.xlu0 %8278
    %8280 = vrot.lane.b32.xlu0 %v7504, 80
    %v8281 = vpop.permute.xlu0 %8280
    %8282 = vrot.lane.b32.xlu0 %v7530, 80
    %v8283 = vpop.permute.xlu0 %8282
    %8284 = vrot.lane.b32.xlu0 %v7532, 80
    %v8285 = vpop.permute.xlu0 %8284
    %8318 = vrot.lane.b32.xlu0 %v7558, 96
    %v8319 = vpop.permute.xlu0 %8318
    %8320 = vrot.lane.b32.xlu0 %v7560, 96
    %v8321 = vpop.permute.xlu0 %8320
    %8322 = vrot.lane.b32.xlu0 %v7586, 96
    %v8323 = vpop.permute.xlu0 %8322
    %8324 = vrot.lane.b32.xlu0 %v7588, 96
    %v8325 = vpop.permute.xlu0 %8324
    %8326 = vrot.lane.b32.xlu0 %v7614, 96
    %v8327 = vpop.permute.xlu0 %8326
    %8328 = vrot.lane.b32.xlu0 %v7616, 96
    %v8329 = vpop.permute.xlu0 %8328
    %8330 = vrot.lane.b32.xlu0 %v7642, 96
    %v8331 = vpop.permute.xlu0 %8330
    %8332 = vrot.lane.b32.xlu0 %v7644, 96
    %v8333 = vpop.permute.xlu0 %8332
    %8334 = vrot.lane.b32.xlu0 %v7670, 96
    %v8335 = vpop.permute.xlu0 %8334
    %8336 = vrot.lane.b32.xlu0 %v7672, 96
    %v8337 = vpop.permute.xlu0 %8336
    %8338 = vrot.lane.b32.xlu0 %v7698, 96
    %v8339 = vpop.permute.xlu0 %8338
    %8340 = vrot.lane.b32.xlu0 %v7700, 96
    %v8341 = vpop.permute.xlu0 %8340
    %8342 = vrot.lane.b32.xlu0 %v7726, 96
    %v8343 = vpop.permute.xlu0 %8342
    %8344 = vrot.lane.b32.xlu0 %v7728, 96
    %v8345 = vpop.permute.xlu0 %8344
    %8346 = vrot.lane.b32.xlu0 %v7754, 96
    %v8347 = vpop.permute.xlu0 %8346
    %8348 = vrot.lane.b32.xlu0 %v7756, 96
    %v8349 = vpop.permute.xlu0 %8348
    %8382 = vrot.lane.b32.xlu0 %v7782, 112
    %v8383 = vpop.permute.xlu0 %8382
    %8384 = vrot.lane.b32.xlu0 %v7784, 112
    %v8385 = vpop.permute.xlu0 %8384
    %8386 = vrot.lane.b32.xlu0 %v7810, 112
    %v8387 = vpop.permute.xlu0 %8386
    %8388 = vrot.lane.b32.xlu0 %v7812, 112
    %v8389 = vpop.permute.xlu0 %8388
    %8390 = vrot.lane.b32.xlu0 %v7838, 112
    %v8391 = vpop.permute.xlu0 %8390
    %8392 = vrot.lane.b32.xlu0 %v7840, 112
    %v8393 = vpop.permute.xlu0 %8392
    %8394 = vrot.lane.b32.xlu0 %v7866, 112
    %v8395 = vpop.permute.xlu0 %8394
    %8396 = vrot.lane.b32.xlu0 %v7868, 112
    %v8397 = vpop.permute.xlu0 %8396
    %8398 = vrot.lane.b32.xlu0 %v7894, 112
    %v8399 = vpop.permute.xlu0 %8398
    %8400 = vrot.lane.b32.xlu0 %v7896, 112
    %v8401 = vpop.permute.xlu0 %8400
    %8402 = vrot.lane.b32.xlu0 %v7922, 112
    %v8403 = vpop.permute.xlu0 %8402
    %8404 = vrot.lane.b32.xlu0 %v7924, 112
    %v8405 = vpop.permute.xlu0 %8404
    %8406 = vrot.lane.b32.xlu0 %v7950, 112
    %v8407 = vpop.permute.xlu0 %8406
    %8408 = vrot.lane.b32.xlu0 %v7952, 112
    %v8409 = vpop.permute.xlu0 %8408
    %8410 = vrot.lane.b32.xlu0 %v7978, 112
    %v8411 = vpop.permute.xlu0 %8410
    %8412 = vrot.lane.b32.xlu0 %v7980, 112
    %v8413 = vpop.permute.xlu0 %8412
    %v8430 = vsel %vm2743, %v6214, %v7999
    %v8431 = vsel %vm2743, %v6216, %v8001
    %v8432 = vsel %vm2743, %v6242, %v8003
    %v8433 = vsel %vm2743, %v6244, %v8005
    %v8434 = vsel %vm2743, %v6270, %v8007
    %v8435 = vsel %vm2743, %v6272, %v8009
    %v8436 = vsel %vm2743, %v6298, %v8011
    %v8437 = vsel %vm2743, %v6300, %v8013
    %v8438 = vsel %vm2743, %v6326, %v8015
    %v8439 = vsel %vm2743, %v6328, %v8017
    %v8440 = vsel %vm2743, %v6354, %v8019
    %v8441 = vsel %vm2743, %v6356, %v8021
    %v8442 = vsel %vm2743, %v6382, %v8023
    %v8443 = vsel %vm2743, %v6384, %v8025
    %v8444 = vsel %vm2743, %v6410, %v8027
    %v8445 = vsel %vm2743, %v6412, %v8029
    %vm8446 = vcmask 261120
    %v8447 = vsel %vm8446, %v8430, %v8063
    %v8448 = vsel %vm8446, %v8431, %v8065
    %v8449 = vsel %vm8446, %v8432, %v8067
    %v8450 = vsel %vm8446, %v8433, %v8069
    %v8451 = vsel %vm8446, %v8434, %v8071
    %v8452 = vsel %vm8446, %v8435, %v8073
    %v8453 = vsel %vm8446, %v8436, %v8075
    %v8454 = vsel %vm8446, %v8437, %v8077
    %v8455 = vsel %vm8446, %v8438, %v8079
    %v8456 = vsel %vm8446, %v8439, %v8081
    %v8457 = vsel %vm8446, %v8440, %v8083
    %v8458 = vsel %vm8446, %v8441, %v8085
    %v8459 = vsel %vm8446, %v8442, %v8087
    %v8460 = vsel %vm8446, %v8443, %v8089
    %v8461 = vsel %vm8446, %v8444, %v8091
    %v8462 = vsel %vm8446, %v8445, %v8093
    %vm8463 = vcmask 392192
    %v8464 = vsel %vm8463, %v8447, %v8127
    %v8465 = vsel %vm8463, %v8448, %v8129
    %v8466 = vsel %vm8463, %v8449, %v8131
    %v8467 = vsel %vm8463, %v8450, %v8133
    %v8468 = vsel %vm8463, %v8451, %v8135
    %v8469 = vsel %vm8463, %v8452, %v8137
    %v8470 = vsel %vm8463, %v8453, %v8139
    %v8471 = vsel %vm8463, %v8454, %v8141
    %v8472 = vsel %vm8463, %v8455, %v8143
    %v8473 = vsel %vm8463, %v8456, %v8145
    %v8474 = vsel %vm8463, %v8457, %v8147
    %v8475 = vsel %vm8463, %v8458, %v8149
    %v8476 = vsel %vm8463, %v8459, %v8151
    %v8477 = vsel %vm8463, %v8460, %v8153
    %v8478 = vsel %vm8463, %v8461, %v8155
    %v8479 = vsel %vm8463, %v8462, %v8157
    %vm8480 = vcmask 523264
    %v8481 = vsel %vm8480, %v8464, %v8191
    %v8482 = vsel %vm8480, %v8465, %v8193
    %v8483 = vsel %vm8480, %v8466, %v8195
    %v8484 = vsel %vm8480, %v8467, %v8197
    %v8485 = vsel %vm8480, %v8468, %v8199
    %v8486 = vsel %vm8480, %v8469, %v8201
    %v8487 = vsel %vm8480, %v8470, %v8203
    %v8488 = vsel %vm8480, %v8471, %v8205
    %v8489 = vsel %vm8480, %v8472, %v8207
    %v8490 = vsel %vm8480, %v8473, %v8209
    %v8491 = vsel %vm8480, %v8474, %v8211
    %v8492 = vsel %vm8480, %v8475, %v8213
    %v8493 = vsel %vm8480, %v8476, %v8215
    %v8494 = vsel %vm8480, %v8477, %v8217
    %v8495 = vsel %vm8480, %v8478, %v8219
    %v8496 = vsel %vm8480, %v8479, %v8221
    %vm8497 = vcmask 654336
    %v8498 = vsel %vm8497, %v8481, %v8255
    %v8499 = vsel %vm8497, %v8482, %v8257
    %v8500 = vsel %vm8497, %v8483, %v8259
    %v8501 = vsel %vm8497, %v8484, %v8261
    %v8502 = vsel %vm8497, %v8485, %v8263
    %v8503 = vsel %vm8497, %v8486, %v8265
    %v8504 = vsel %vm8497, %v8487, %v8267
    %v8505 = vsel %vm8497, %v8488, %v8269
    %v8506 = vsel %vm8497, %v8489, %v8271
    %v8507 = vsel %vm8497, %v8490, %v8273
    %v8508 = vsel %vm8497, %v8491, %v8275
    %v8509 = vsel %vm8497, %v8492, %v8277
    %v8510 = vsel %vm8497, %v8493, %v8279
    %v8511 = vsel %vm8497, %v8494, %v8281
    %v8512 = vsel %vm8497, %v8495, %v8283
    %v8513 = vsel %vm8497, %v8496, %v8285
    %vm8514 = vcmask 785408
    %v8515 = vsel %vm8514, %v8498, %v8319
    %v8516 = vsel %vm8514, %v8499, %v8321
    %v8517 = vsel %vm8514, %v8500, %v8323
    %v8518 = vsel %vm8514, %v8501, %v8325
    %v8519 = vsel %vm8514, %v8502, %v8327
    %v8520 = vsel %vm8514, %v8503, %v8329
    %v8521 = vsel %vm8514, %v8504, %v8331
    %v8522 = vsel %vm8514, %v8505, %v8333
    %v8523 = vsel %vm8514, %v8506, %v8335
    %v8524 = vsel %vm8514, %v8507, %v8337
    %v8525 = vsel %vm8514, %v8508, %v8339
    %v8526 = vsel %vm8514, %v8509, %v8341
    %v8527 = vsel %vm8514, %v8510, %v8343
    %v8528 = vsel %vm8514, %v8511, %v8345
    %v8529 = vsel %vm8514, %v8512, %v8347
    %v8530 = vsel %vm8514, %v8513, %v8349
    %vm8531 = vcmask 916480
    %v8532 = vsel %vm8531, %v8515, %v8383
    %v8533 = vsel %vm8531, %v8516, %v8385
    %v8534 = vsel %vm8531, %v8517, %v8387
    %v8535 = vsel %vm8531, %v8518, %v8389
    %v8536 = vsel %vm8531, %v8519, %v8391
    %v8537 = vsel %vm8531, %v8520, %v8393
    %v8538 = vsel %vm8531, %v8521, %v8395
    %v8539 = vsel %vm8531, %v8522, %v8397
    %v8540 = vsel %vm8531, %v8523, %v8399
    %v8541 = vsel %vm8531, %v8524, %v8401
    %v8542 = vsel %vm8531, %v8525, %v8403
    %v8543 = vsel %vm8531, %v8526, %v8405
    %v8544 = vsel %vm8531, %v8527, %v8407
    %v8545 = vsel %vm8531, %v8528, %v8409
    %v8546 = vsel %vm8531, %v8529, %v8411
    %v8547 = vsel %vm8531, %v8530, %v8413
    %v8548 = vpack.c.bf16 %v8533, %v8532
    %v8549 = vpack.c.bf16 %v8535, %v8534
    %v8550 = vpack.c.bf16 %v8537, %v8536
    %v8551 = vpack.c.bf16 %v8539, %v8538
    %v8552 = vpack.c.bf16 %v8541, %v8540
    %v8553 = vpack.c.bf16 %v8543, %v8542
    %v8554 = vpack.c.bf16 %v8545, %v8544
    %v8555 = vpack.c.bf16 %v8547, %v8546
    %v8556 = vld [vmem:[#allocation7] sm:$0xff]
    %v8557 = vld [vmem:[#allocation7 + $0x8] sm:$0xff]
    %v8558 = vld [vmem:[#allocation7 + $0x10] sm:$0xff]
    %v8559 = vld [vmem:[#allocation7 + $0x18] sm:$0xff]
    %v8560 = vld [vmem:[#allocation7 + $0x20] sm:$0xff]
    %v8561 = vld [vmem:[#allocation7 + $0x28] sm:$0xff]
    %v8562 = vld [vmem:[#allocation7 + $0x30] sm:$0xff]
    %v8563 = vld [vmem:[#allocation7 + $0x38] sm:$0xff]
    %v8564 = vld [vmem:[#allocation7 + $0x40] sm:$0xff]
    %v8565 = vld [vmem:[#allocation7 + $0x48] sm:$0xff]
    %v8566 = vld [vmem:[#allocation7 + $0x50] sm:$0xff]
    %v8567 = vld [vmem:[#allocation7 + $0x58] sm:$0xff]
    %v8568 = vld [vmem:[#allocation7 + $0x60] sm:$0xff]
    %v8569 = vld [vmem:[#allocation7 + $0x68] sm:$0xff]
    %v8570 = vld [vmem:[#allocation7 + $0x70] sm:$0xff]
    %v8571 = vld [vmem:[#allocation7 + $0x78] sm:$0xff]
    %v8572 = vperm.slane %v152, 2
    %v8573 = vperm.slane %v153, 2
    %v8590 = vunpack.c.l.b16 %v8556
    %v8591 = vunpack.c.h.b16 %v8556
    %v8592 = vunpack.c.l.b16 %v8557
    %v8593 = vunpack.c.h.b16 %v8557
    %v8594 = vunpack.c.l.b16 %v8558
    %v8595 = vunpack.c.h.b16 %v8558
    %v8596 = vunpack.c.l.b16 %v8559
    %v8597 = vunpack.c.h.b16 %v8559
    %v8598 = vunpack.c.l.b16 %v8560
    %v8599 = vunpack.c.h.b16 %v8560
    %v8600 = vunpack.c.l.b16 %v8561
    %v8601 = vunpack.c.h.b16 %v8561
    %v8602 = vunpack.c.l.b16 %v8562
    %v8603 = vunpack.c.h.b16 %v8562
    %v8604 = vunpack.c.l.b16 %v8563
    %v8605 = vunpack.c.h.b16 %v8563
    %v8606 = vunpack.c.l.b16 %v8564
    %v8607 = vunpack.c.h.b16 %v8564
    %v8608 = vunpack.c.l.b16 %v8565
    %v8609 = vunpack.c.h.b16 %v8565
    %v8610 = vunpack.c.l.b16 %v8566
    %v8611 = vunpack.c.h.b16 %v8566
    %v8612 = vunpack.c.l.b16 %v8567
    %v8613 = vunpack.c.h.b16 %v8567
    %v8614 = vunpack.c.l.b16 %v8568
    %v8615 = vunpack.c.h.b16 %v8568
    %v8616 = vunpack.c.l.b16 %v8569
    %v8617 = vunpack.c.h.b16 %v8569
    %v8618 = vunpack.c.l.b16 %v8570
    %v8619 = vunpack.c.h.b16 %v8570
    %v8620 = vunpack.c.l.b16 %v8571
    %v8621 = vunpack.c.h.b16 %v8571
    %v8622 = vpack.c.b16 %v8592, %v8590
    %v8623 = vpack.c.b16 %v8593, %v8591
    %v8624 = vpack.c.b16 %v8596, %v8594
    %v8625 = vpack.c.b16 %v8597, %v8595
    %v8626 = vpack.c.b16 %v8600, %v8598
    %v8627 = vpack.c.b16 %v8601, %v8599
    %v8628 = vpack.c.b16 %v8604, %v8602
    %v8629 = vpack.c.b16 %v8605, %v8603
    %v8630 = vpack.c.b16 %v8608, %v8606
    %v8631 = vpack.c.b16 %v8609, %v8607
    %v8632 = vpack.c.b16 %v8612, %v8610
    %v8633 = vpack.c.b16 %v8613, %v8611
    %v8634 = vpack.c.b16 %v8616, %v8614
    %v8635 = vpack.c.b16 %v8617, %v8615
    %v8636 = vpack.c.b16 %v8620, %v8618
    %v8637 = vpack.c.b16 %v8621, %v8619
    %8654 = vmatpush.bf16.msra.mxu0 %v8636
    %8655 = vmatpush.bf16.msra.mxu0 %v8634
    %8656 = vmatpush.bf16.msra.mxu0 %v8632
    %8657 = vmatpush.bf16.msra.mxu0 %v8630
    %8658 = vmatpush.bf16.msra.mxu0 %v8628
    %8659 = vmatpush.bf16.msra.mxu0 %v8626
    %8660 = vmatpush.bf16.msra.mxu0 %v8624
    %8661 = vmatpush.bf16.msra.mxu0 %v8622
    %8662 = vmatmul.bf16.gmra.mxu0 %v8548
    %v8663 = vpop.f32.mrf.mxu0
    %v8664 = vadd.f32 %v8572, %v8663
    %v8665 = vpop.f32.mrf.mxu0
    %v8666 = vadd.f32 %v8572, %v8665
    %8667 = vmatmul.bf16.gmra.mxu0 %v8549
    %v8668 = vpop.f32.mrf.mxu0
    %v8669 = vadd.f32 %v8572, %v8668
    %v8670 = vpop.f32.mrf.mxu0
    %v8671 = vadd.f32 %v8572, %v8670
    %8672 = vmatmul.bf16.gmra.mxu0 %v8550
    %v8673 = vpop.f32.mrf.mxu0
    %v8674 = vadd.f32 %v8572, %v8673
    %v8675 = vpop.f32.mrf.mxu0
    %v8676 = vadd.f32 %v8572, %v8675
    %8677 = vmatmul.bf16.gmra.mxu0 %v8551
    %v8678 = vpop.f32.mrf.mxu0
    %v8679 = vadd.f32 %v8572, %v8678
    %v8680 = vpop.f32.mrf.mxu0
    %v8681 = vadd.f32 %v8572, %v8680
    %8682 = vmatmul.bf16.gmra.mxu0 %v8552
    %v8683 = vpop.f32.mrf.mxu0
    %v8684 = vadd.f32 %v8572, %v8683
    %v8685 = vpop.f32.mrf.mxu0
    %v8686 = vadd.f32 %v8572, %v8685
    %8687 = vmatmul.bf16.gmra.mxu0 %v8553
    %v8688 = vpop.f32.mrf.mxu0
    %v8689 = vadd.f32 %v8572, %v8688
    %v8690 = vpop.f32.mrf.mxu0
    %v8691 = vadd.f32 %v8572, %v8690
    %8692 = vmatmul.bf16.gmra.mxu0 %v8554
    %v8693 = vpop.f32.mrf.mxu0
    %v8694 = vadd.f32 %v8572, %v8693
    %v8695 = vpop.f32.mrf.mxu0
    %v8696 = vadd.f32 %v8572, %v8695
    %8697 = vmatmul.bf16.gmra.mxu0 %v8555
    %v8698 = vpop.f32.mrf.mxu0
    %v8699 = vadd.f32 %v8572, %v8698
    %v8700 = vpop.f32.mrf.mxu0
    %v8701 = vadd.f32 %v8572, %v8700
    %8702 = vdwg.mxu0
    %8703 = vmatpush.bf16.msra.mxu0 %v8637
    %8704 = vmatpush.bf16.msra.mxu0 %v8635
    %8705 = vmatpush.bf16.msra.mxu0 %v8633
    %8706 = vmatpush.bf16.msra.mxu0 %v8631
    %8707 = vmatpush.bf16.msra.mxu0 %v8629
    %8708 = vmatpush.bf16.msra.mxu0 %v8627
    %8709 = vmatpush.bf16.msra.mxu0 %v8625
    %8710 = vmatpush.bf16.msra.mxu0 %v8623
    %8711 = vmatmul.bf16.gmra.mxu0 %v8548
    %v8712 = vpop.f32.mrf.mxu0
    %v8713 = vadd.f32 %v8573, %v8712
    %v8714 = vpop.f32.mrf.mxu0
    %v8715 = vadd.f32 %v8573, %v8714
    %8716 = vmatmul.bf16.gmra.mxu0 %v8549
    %v8717 = vpop.f32.mrf.mxu0
    %v8718 = vadd.f32 %v8573, %v8717
    %v8719 = vpop.f32.mrf.mxu0
    %v8720 = vadd.f32 %v8573, %v8719
    %8721 = vmatmul.bf16.gmra.mxu0 %v8550
    %v8722 = vpop.f32.mrf.mxu0
    %v8723 = vadd.f32 %v8573, %v8722
    %v8724 = vpop.f32.mrf.mxu0
    %v8725 = vadd.f32 %v8573, %v8724
    %8726 = vmatmul.bf16.gmra.mxu0 %v8551
    %v8727 = vpop.f32.mrf.mxu0
    %v8728 = vadd.f32 %v8573, %v8727
    %v8729 = vpop.f32.mrf.mxu0
    %v8730 = vadd.f32 %v8573, %v8729
    %8731 = vmatmul.bf16.gmra.mxu0 %v8552
    %v8732 = vpop.f32.mrf.mxu0
    %v8733 = vadd.f32 %v8573, %v8732
    %v8734 = vpop.f32.mrf.mxu0
    %v8735 = vadd.f32 %v8573, %v8734
    %8736 = vmatmul.bf16.gmra.mxu0 %v8553
    %v8737 = vpop.f32.mrf.mxu0
    %v8738 = vadd.f32 %v8573, %v8737
    %v8739 = vpop.f32.mrf.mxu0
    %v8740 = vadd.f32 %v8573, %v8739
    %8741 = vmatmul.bf16.gmra.mxu0 %v8554
    %v8742 = vpop.f32.mrf.mxu0
    %v8743 = vadd.f32 %v8573, %v8742
    %v8744 = vpop.f32.mrf.mxu0
    %v8745 = vadd.f32 %v8573, %v8744
    %8746 = vmatmul.bf16.gmra.mxu0 %v8555
    %v8747 = vpop.f32.mrf.mxu0
    %v8748 = vadd.f32 %v8573, %v8747
    %v8749 = vpop.f32.mrf.mxu0
    %v8750 = vadd.f32 %v8573, %v8749
    %8751 = vdwg.mxu0
    %v8752 = vadd.f32 %v120, %v8664
    %v8753 = vadd.f32 %v121, %v8713
    %v8754 = vadd.f32 %v122, %v8666
    %v8755 = vadd.f32 %v123, %v8715
    %v8756 = vadd.f32 %v124, %v8669
    %v8757 = vadd.f32 %v125, %v8718
    %v8758 = vadd.f32 %v126, %v8671
    %v8759 = vadd.f32 %v127, %v8720
    %v8760 = vadd.f32 %v128, %v8674
    %v8761 = vadd.f32 %v129, %v8723
    %v8762 = vadd.f32 %v130, %v8676
    %v8763 = vadd.f32 %v131, %v8725
    %v8764 = vadd.f32 %v132, %v8679
    %v8765 = vadd.f32 %v133, %v8728
    %v8766 = vadd.f32 %v134, %v8681
    %v8767 = vadd.f32 %v135, %v8730
    %v8768 = vadd.f32 %v136, %v8684
    %v8769 = vadd.f32 %v137, %v8733
    %v8770 = vadd.f32 %v138, %v8686
    %v8771 = vadd.f32 %v139, %v8735
    %v8772 = vadd.f32 %v140, %v8689
    %v8773 = vadd.f32 %v141, %v8738
    %v8774 = vadd.f32 %v142, %v8691
    %v8775 = vadd.f32 %v143, %v8740
    %v8776 = vadd.f32 %v144, %v8694
    %v8777 = vadd.f32 %v145, %v8743
    %v8778 = vadd.f32 %v146, %v8696
    %v8779 = vadd.f32 %v147, %v8745
    %v8780 = vadd.f32 %v148, %v8699
    %v8781 = vadd.f32 %v149, %v8748
    %v8782 = vadd.f32 %v150, %v8701
    %v8783 = vadd.f32 %v151, %v8750
    %v8784 = vadd.f32 %v8752, %v8753
    %8785 = vadd.xlane.f32.xlu0 %v8784
    %v8786 = vpop.xlane.xlu0 %8785
    %v8787 = vadd.f32 %v8754, %v8755
    %8788 = vadd.xlane.f32.xlu0 %v8787
    %v8789 = vpop.xlane.xlu0 %8788
    %v8790 = vadd.f32 %v8756, %v8757
    %8791 = vadd.xlane.f32.xlu0 %v8790
    %v8792 = vpop.xlane.xlu0 %8791
    %v8793 = vadd.f32 %v8758, %v8759
    %8794 = vadd.xlane.f32.xlu0 %v8793
    %v8795 = vpop.xlane.xlu0 %8794
    %v8796 = vadd.f32 %v8760, %v8761
    %8797 = vadd.xlane.f32.xlu0 %v8796
    %v8798 = vpop.xlane.xlu0 %8797
    %v8799 = vadd.f32 %v8762, %v8763
    %8800 = vadd.xlane.f32.xlu0 %v8799
    %v8801 = vpop.xlane.xlu0 %8800
    %v8802 = vadd.f32 %v8764, %v8765
    %8803 = vadd.xlane.f32.xlu0 %v8802
    %v8804 = vpop.xlane.xlu0 %8803
    %v8805 = vadd.f32 %v8766, %v8767
    %8806 = vadd.xlane.f32.xlu0 %v8805
    %v8807 = vpop.xlane.xlu0 %8806
    %v8808 = vadd.f32 %v8768, %v8769
    %8809 = vadd.xlane.f32.xlu0 %v8808
    %v8810 = vpop.xlane.xlu0 %8809
    %v8811 = vadd.f32 %v8770, %v8771
    %8812 = vadd.xlane.f32.xlu0 %v8811
    %v8813 = vpop.xlane.xlu0 %8812
    %v8814 = vadd.f32 %v8772, %v8773
    %8815 = vadd.xlane.f32.xlu0 %v8814
    %v8816 = vpop.xlane.xlu0 %8815
    %v8817 = vadd.f32 %v8774, %v8775
    %8818 = vadd.xlane.f32.xlu0 %v8817
    %v8819 = vpop.xlane.xlu0 %8818
    %v8820 = vadd.f32 %v8776, %v8777
    %8821 = vadd.xlane.f32.xlu0 %v8820
    %v8822 = vpop.xlane.xlu0 %8821
    %v8823 = vadd.f32 %v8778, %v8779
    %8824 = vadd.xlane.f32.xlu0 %v8823
    %v8825 = vpop.xlane.xlu0 %8824
    %v8826 = vadd.f32 %v8780, %v8781
    %8827 = vadd.xlane.f32.xlu0 %v8826
    %v8828 = vpop.xlane.xlu0 %8827
    %v8829 = vadd.f32 %v8782, %v8783
    %8830 = vadd.xlane.f32.xlu0 %v8829
    %v8831 = vpop.xlane.xlu0 %8830
    %v8832 = vmul.f32 %v8786, 0.0069444445
    %v8833 = vmul.f32 %v8789, 0.0069444445
    %v8834 = vmul.f32 %v8792, 0.0069444445
    %v8835 = vmul.f32 %v8795, 0.0069444445
    %v8836 = vmul.f32 %v8798, 0.0069444445
    %v8837 = vmul.f32 %v8801, 0.0069444445
    %v8838 = vmul.f32 %v8804, 0.0069444445
    %v8839 = vmul.f32 %v8807, 0.0069444445
    %v8840 = vmul.f32 %v8810, 0.0069444445
    %v8841 = vmul.f32 %v8813, 0.0069444445
    %v8842 = vmul.f32 %v8816, 0.0069444445
    %v8843 = vmul.f32 %v8819, 0.0069444445
    %v8844 = vmul.f32 %v8822, 0.0069444445
    %v8845 = vmul.f32 %v8825, 0.0069444445
    %v8846 = vmul.f32 %v8828, 0.0069444445
    %v8847 = vmul.f32 %v8831, 0.0069444445
    %v8848 = vsub.f32 %v8752, %v8832
    %v8849 = vsub.f32 %v8753, %v8832
    %v8850 = vsub.f32 %v8754, %v8833
    %v8851 = vsub.f32 %v8755, %v8833
    %v8852 = vsub.f32 %v8756, %v8834
    %v8853 = vsub.f32 %v8757, %v8834
    %v8854 = vsub.f32 %v8758, %v8835
    %v8855 = vsub.f32 %v8759, %v8835
    %v8856 = vsub.f32 %v8760, %v8836
    %v8857 = vsub.f32 %v8761, %v8836
    %v8858 = vsub.f32 %v8762, %v8837
    %v8859 = vsub.f32 %v8763, %v8837
    %v8860 = vsub.f32 %v8764, %v8838
    %v8861 = vsub.f32 %v8765, %v8838
    %v8862 = vsub.f32 %v8766, %v8839
    %v8863 = vsub.f32 %v8767, %v8839
    %v8864 = vsub.f32 %v8768, %v8840
    %v8865 = vsub.f32 %v8769, %v8840
    %v8866 = vsub.f32 %v8770, %v8841
    %v8867 = vsub.f32 %v8771, %v8841
    %v8868 = vsub.f32 %v8772, %v8842
    %v8869 = vsub.f32 %v8773, %v8842
    %v8870 = vsub.f32 %v8774, %v8843
    %v8871 = vsub.f32 %v8775, %v8843
    %v8872 = vsub.f32 %v8776, %v8844
    %v8873 = vsub.f32 %v8777, %v8844
    %v8874 = vsub.f32 %v8778, %v8845
    %v8875 = vsub.f32 %v8779, %v8845
    %v8876 = vsub.f32 %v8780, %v8846
    %v8877 = vsub.f32 %v8781, %v8846
    %v8878 = vsub.f32 %v8782, %v8847
    %v8879 = vsub.f32 %v8783, %v8847
    %v8880 = vmul.f32 %v8848, %v161
    %v8881 = vmul.f32 %v8849, %v162
    %v8882 = vmul.f32 %v8850, %v161
    %v8883 = vmul.f32 %v8851, %v162
    %v8884 = vmul.f32 %v8852, %v161
    %v8885 = vmul.f32 %v8853, %v162
    %v8886 = vmul.f32 %v8854, %v161
    %v8887 = vmul.f32 %v8855, %v162
    %v8888 = vmul.f32 %v8856, %v161
    %v8889 = vmul.f32 %v8857, %v162
    %v8890 = vmul.f32 %v8858, %v161
    %v8891 = vmul.f32 %v8859, %v162
    %v8892 = vmul.f32 %v8860, %v161
    %v8893 = vmul.f32 %v8861, %v162
    %v8894 = vmul.f32 %v8862, %v161
    %v8895 = vmul.f32 %v8863, %v162
    %v8896 = vmul.f32 %v8864, %v161
    %v8897 = vmul.f32 %v8865, %v162
    %v8898 = vmul.f32 %v8866, %v161
    %v8899 = vmul.f32 %v8867, %v162
    %v8900 = vmul.f32 %v8868, %v161
    %v8901 = vmul.f32 %v8869, %v162
    %v8902 = vmul.f32 %v8870, %v161
    %v8903 = vmul.f32 %v8871, %v162
    %v8904 = vmul.f32 %v8872, %v161
    %v8905 = vmul.f32 %v8873, %v162
    %v8906 = vmul.f32 %v8874, %v161
    %v8907 = vmul.f32 %v8875, %v162
    %v8908 = vmul.f32 %v8876, %v161
    %v8909 = vmul.f32 %v8877, %v162
    %v8910 = vmul.f32 %v8878, %v161
    %v8911 = vmul.f32 %v8879, %v162
    %v8912 = vmul.f32 %v8880, %v8880
    %v8913 = vmul.f32 %v8881, %v8881
    %v8914 = vmul.f32 %v8882, %v8882
    %v8915 = vmul.f32 %v8883, %v8883
    %v8916 = vmul.f32 %v8884, %v8884
    %v8917 = vmul.f32 %v8885, %v8885
    %v8918 = vmul.f32 %v8886, %v8886
    %v8919 = vmul.f32 %v8887, %v8887
    %v8920 = vmul.f32 %v8888, %v8888
    %v8921 = vmul.f32 %v8889, %v8889
    %v8922 = vmul.f32 %v8890, %v8890
    %v8923 = vmul.f32 %v8891, %v8891
    %v8924 = vmul.f32 %v8892, %v8892
    %v8925 = vmul.f32 %v8893, %v8893
    %v8926 = vmul.f32 %v8894, %v8894
    %v8927 = vmul.f32 %v8895, %v8895
    %v8928 = vmul.f32 %v8896, %v8896
    %v8929 = vmul.f32 %v8897, %v8897
    %v8930 = vmul.f32 %v8898, %v8898
    %v8931 = vmul.f32 %v8899, %v8899
    %v8932 = vmul.f32 %v8900, %v8900
    %v8933 = vmul.f32 %v8901, %v8901
    %v8934 = vmul.f32 %v8902, %v8902
    %v8935 = vmul.f32 %v8903, %v8903
    %v8936 = vmul.f32 %v8904, %v8904
    %v8937 = vmul.f32 %v8905, %v8905
    %v8938 = vmul.f32 %v8906, %v8906
    %v8939 = vmul.f32 %v8907, %v8907
    %v8940 = vmul.f32 %v8908, %v8908
    %v8941 = vmul.f32 %v8909, %v8909
    %v8942 = vmul.f32 %v8910, %v8910
    %v8943 = vmul.f32 %v8911, %v8911
    %v8944 = vadd.f32 %v8912, %v8913
    %8945 = vadd.xlane.f32.xlu0 %v8944
    %v8946 = vpop.xlane.xlu0 %8945
    %v8947 = vadd.f32 %v8914, %v8915
    %8948 = vadd.xlane.f32.xlu0 %v8947
    %v8949 = vpop.xlane.xlu0 %8948
    %v8950 = vadd.f32 %v8916, %v8917
    %8951 = vadd.xlane.f32.xlu0 %v8950
    %v8952 = vpop.xlane.xlu0 %8951
    %v8953 = vadd.f32 %v8918, %v8919
    %8954 = vadd.xlane.f32.xlu0 %v8953
    %v8955 = vpop.xlane.xlu0 %8954
    %v8956 = vadd.f32 %v8920, %v8921
    %8957 = vadd.xlane.f32.xlu0 %v8956
    %v8958 = vpop.xlane.xlu0 %8957
    %v8959 = vadd.f32 %v8922, %v8923
    %8960 = vadd.xlane.f32.xlu0 %v8959
    %v8961 = vpop.xlane.xlu0 %8960
    %v8962 = vadd.f32 %v8924, %v8925
    %8963 = vadd.xlane.f32.xlu0 %v8962
    %v8964 = vpop.xlane.xlu0 %8963
    %v8965 = vadd.f32 %v8926, %v8927
    %8966 = vadd.xlane.f32.xlu0 %v8965
    %v8967 = vpop.xlane.xlu0 %8966
    %v8968 = vadd.f32 %v8928, %v8929
    %8969 = vadd.xlane.f32.xlu0 %v8968
    %v8970 = vpop.xlane.xlu0 %8969
    %v8971 = vadd.f32 %v8930, %v8931
    %8972 = vadd.xlane.f32.xlu0 %v8971
    %v8973 = vpop.xlane.xlu0 %8972
    %v8974 = vadd.f32 %v8932, %v8933
    %8975 = vadd.xlane.f32.xlu0 %v8974
    %v8976 = vpop.xlane.xlu0 %8975
    %v8977 = vadd.f32 %v8934, %v8935
    %8978 = vadd.xlane.f32.xlu0 %v8977
    %v8979 = vpop.xlane.xlu0 %8978
    %v8980 = vadd.f32 %v8936, %v8937
    %8981 = vadd.xlane.f32.xlu0 %v8980
    %v8982 = vpop.xlane.xlu0 %8981
    %v8983 = vadd.f32 %v8938, %v8939
    %8984 = vadd.xlane.f32.xlu0 %v8983
    %v8985 = vpop.xlane.xlu0 %8984
    %v8986 = vadd.f32 %v8940, %v8941
    %8987 = vadd.xlane.f32.xlu0 %v8986
    %v8988 = vpop.xlane.xlu0 %8987
    %v8989 = vadd.f32 %v8942, %v8943
    %8990 = vadd.xlane.f32.xlu0 %v8989
    %v8991 = vpop.xlane.xlu0 %8990
    %v8992 = vmul.f32 %v8946, 0.0069444445
    %v8993 = vmul.f32 %v8949, 0.0069444445
    %v8994 = vmul.f32 %v8952, 0.0069444445
    %v8995 = vmul.f32 %v8955, 0.0069444445
    %v8996 = vmul.f32 %v8958, 0.0069444445
    %v8997 = vmul.f32 %v8961, 0.0069444445
    %v8998 = vmul.f32 %v8964, 0.0069444445
    %v8999 = vmul.f32 %v8967, 0.0069444445
    %v9000 = vmul.f32 %v8970, 0.0069444445
    %v9001 = vmul.f32 %v8973, 0.0069444445
    %v9002 = vmul.f32 %v8976, 0.0069444445
    %v9003 = vmul.f32 %v8979, 0.0069444445
    %v9004 = vmul.f32 %v8982, 0.0069444445
    %v9005 = vmul.f32 %v8985, 0.0069444445
    %v9006 = vmul.f32 %v8988, 0.0069444445
    %v9007 = vmul.f32 %v8991, 0.0069444445
    %v9008 = vadd.f32 %v8992, 1e-05
    %v9009 = vadd.f32 %v8993, 1e-05
    %v9010 = vadd.f32 %v8994, 1e-05
    %v9011 = vadd.f32 %v8995, 1e-05
    %v9012 = vadd.f32 %v8996, 1e-05
    %v9013 = vadd.f32 %v8997, 1e-05
    %v9014 = vadd.f32 %v8998, 1e-05
    %v9015 = vadd.f32 %v8999, 1e-05
    %v9016 = vadd.f32 %v9000, 1e-05
    %v9017 = vadd.f32 %v9001, 1e-05
    %v9018 = vadd.f32 %v9002, 1e-05
    %v9019 = vadd.f32 %v9003, 1e-05
    %v9020 = vadd.f32 %v9004, 1e-05
    %v9021 = vadd.f32 %v9005, 1e-05
    %v9022 = vadd.f32 %v9006, 1e-05
    %v9023 = vadd.f32 %v9007, 1e-05
    %v9024 = vrsqrt.pop %v9008
    %v9025 = vmul.f32 %v9024, %v9008
    %v9026 = vmul.f32 %v9025, %v9024
    %v9027 = vmul.f32 0.5, %v9026
    %v9028 = vsub.f32 1.5, %v9027
    %v9029 = vmul.f32 %v9024, %v9028
    %vm9030 = vweird.f32 %v9008
    %vm9031 = vweird.f32 %v9024
    %vm9032 = vmor %vm9030, %vm9031
    %v9033 = vsel %vm9032, %v9024, %v9029
    %v9034 = vrsqrt.pop %v9009
    %v9035 = vmul.f32 %v9034, %v9009
    %v9036 = vmul.f32 %v9035, %v9034
    %v9037 = vmul.f32 0.5, %v9036
    %v9038 = vsub.f32 1.5, %v9037
    %v9039 = vmul.f32 %v9034, %v9038
    %vm9040 = vweird.f32 %v9009
    %vm9041 = vweird.f32 %v9034
    %vm9042 = vmor %vm9040, %vm9041
    %v9043 = vsel %vm9042, %v9034, %v9039
    %v9044 = vrsqrt.pop %v9010
    %v9045 = vmul.f32 %v9044, %v9010
    %v9046 = vmul.f32 %v9045, %v9044
    %v9047 = vmul.f32 0.5, %v9046
    %v9048 = vsub.f32 1.5, %v9047
    %v9049 = vmul.f32 %v9044, %v9048
    %vm9050 = vweird.f32 %v9010
    %vm9051 = vweird.f32 %v9044
    %vm9052 = vmor %vm9050, %vm9051
    %v9053 = vsel %vm9052, %v9044, %v9049
    %v9054 = vrsqrt.pop %v9011
    %v9055 = vmul.f32 %v9054, %v9011
    %v9056 = vmul.f32 %v9055, %v9054
    %v9057 = vmul.f32 0.5, %v9056
    %v9058 = vsub.f32 1.5, %v9057
    %v9059 = vmul.f32 %v9054, %v9058
    %vm9060 = vweird.f32 %v9011
    %vm9061 = vweird.f32 %v9054
    %vm9062 = vmor %vm9060, %vm9061
    %v9063 = vsel %vm9062, %v9054, %v9059
    %v9064 = vrsqrt.pop %v9012
    %v9065 = vmul.f32 %v9064, %v9012
    %v9066 = vmul.f32 %v9065, %v9064
    %v9067 = vmul.f32 0.5, %v9066
    %v9068 = vsub.f32 1.5, %v9067
    %v9069 = vmul.f32 %v9064, %v9068
    %vm9070 = vweird.f32 %v9012
    %vm9071 = vweird.f32 %v9064
    %vm9072 = vmor %vm9070, %vm9071
    %v9073 = vsel %vm9072, %v9064, %v9069
    %v9074 = vrsqrt.pop %v9013
    %v9075 = vmul.f32 %v9074, %v9013
    %v9076 = vmul.f32 %v9075, %v9074
    %v9077 = vmul.f32 0.5, %v9076
    %v9078 = vsub.f32 1.5, %v9077
    %v9079 = vmul.f32 %v9074, %v9078
    %vm9080 = vweird.f32 %v9013
    %vm9081 = vweird.f32 %v9074
    %vm9082 = vmor %vm9080, %vm9081
    %v9083 = vsel %vm9082, %v9074, %v9079
    %v9084 = vrsqrt.pop %v9014
    %v9085 = vmul.f32 %v9084, %v9014
    %v9086 = vmul.f32 %v9085, %v9084
    %v9087 = vmul.f32 0.5, %v9086
    %v9088 = vsub.f32 1.5, %v9087
    %v9089 = vmul.f32 %v9084, %v9088
    %vm9090 = vweird.f32 %v9014
    %vm9091 = vweird.f32 %v9084
    %vm9092 = vmor %vm9090, %vm9091
    %v9093 = vsel %vm9092, %v9084, %v9089
    %v9094 = vrsqrt.pop %v9015
    %v9095 = vmul.f32 %v9094, %v9015
    %v9096 = vmul.f32 %v9095, %v9094
    %v9097 = vmul.f32 0.5, %v9096
    %v9098 = vsub.f32 1.5, %v9097
    %v9099 = vmul.f32 %v9094, %v9098
    %vm9100 = vweird.f32 %v9015
    %vm9101 = vweird.f32 %v9094
    %vm9102 = vmor %vm9100, %vm9101
    %v9103 = vsel %vm9102, %v9094, %v9099
    %v9104 = vrsqrt.pop %v9016
    %v9105 = vmul.f32 %v9104, %v9016
    %v9106 = vmul.f32 %v9105, %v9104
    %v9107 = vmul.f32 0.5, %v9106
    %v9108 = vsub.f32 1.5, %v9107
    %v9109 = vmul.f32 %v9104, %v9108
    %vm9110 = vweird.f32 %v9016
    %vm9111 = vweird.f32 %v9104
    %vm9112 = vmor %vm9110, %vm9111
    %v9113 = vsel %vm9112, %v9104, %v9109
    %v9114 = vrsqrt.pop %v9017
    %v9115 = vmul.f32 %v9114, %v9017
    %v9116 = vmul.f32 %v9115, %v9114
    %v9117 = vmul.f32 0.5, %v9116
    %v9118 = vsub.f32 1.5, %v9117
    %v9119 = vmul.f32 %v9114, %v9118
    %vm9120 = vweird.f32 %v9017
    %vm9121 = vweird.f32 %v9114
    %vm9122 = vmor %vm9120, %vm9121
    %v9123 = vsel %vm9122, %v9114, %v9119
    %v9124 = vrsqrt.pop %v9018
    %v9125 = vmul.f32 %v9124, %v9018
    %v9126 = vmul.f32 %v9125, %v9124
    %v9127 = vmul.f32 0.5, %v9126
    %v9128 = vsub.f32 1.5, %v9127
    %v9129 = vmul.f32 %v9124, %v9128
    %vm9130 = vweird.f32 %v9018
    %vm9131 = vweird.f32 %v9124
    %vm9132 = vmor %vm9130, %vm9131
    %v9133 = vsel %vm9132, %v9124, %v9129
    %v9134 = vrsqrt.pop %v9019
    %v9135 = vmul.f32 %v9134, %v9019
    %v9136 = vmul.f32 %v9135, %v9134
    %v9137 = vmul.f32 0.5, %v9136
    %v9138 = vsub.f32 1.5, %v9137
    %v9139 = vmul.f32 %v9134, %v9138
    %vm9140 = vweird.f32 %v9019
    %vm9141 = vweird.f32 %v9134
    %vm9142 = vmor %vm9140, %vm9141
    %v9143 = vsel %vm9142, %v9134, %v9139
    %v9144 = vrsqrt.pop %v9020
    %v9145 = vmul.f32 %v9144, %v9020
    %v9146 = vmul.f32 %v9145, %v9144
    %v9147 = vmul.f32 0.5, %v9146
    %v9148 = vsub.f32 1.5, %v9147
    %v9149 = vmul.f32 %v9144, %v9148
    %vm9150 = vweird.f32 %v9020
    %vm9151 = vweird.f32 %v9144
    %vm9152 = vmor %vm9150, %vm9151
    %v9153 = vsel %vm9152, %v9144, %v9149
    %v9154 = vrsqrt.pop %v9021
    %v9155 = vmul.f32 %v9154, %v9021
    %v9156 = vmul.f32 %v9155, %v9154
    %v9157 = vmul.f32 0.5, %v9156
    %v9158 = vsub.f32 1.5, %v9157
    %v9159 = vmul.f32 %v9154, %v9158
    %vm9160 = vweird.f32 %v9021
    %vm9161 = vweird.f32 %v9154
    %vm9162 = vmor %vm9160, %vm9161
    %v9163 = vsel %vm9162, %v9154, %v9159
    %v9164 = vrsqrt.pop %v9022
    %v9165 = vmul.f32 %v9164, %v9022
    %v9166 = vmul.f32 %v9165, %v9164
    %v9167 = vmul.f32 0.5, %v9166
    %v9168 = vsub.f32 1.5, %v9167
    %v9169 = vmul.f32 %v9164, %v9168
    %vm9170 = vweird.f32 %v9022
    %vm9171 = vweird.f32 %v9164
    %vm9172 = vmor %vm9170, %vm9171
    %v9173 = vsel %vm9172, %v9164, %v9169
    %v9174 = vrsqrt.pop %v9023
    %v9175 = vmul.f32 %v9174, %v9023
    %v9176 = vmul.f32 %v9175, %v9174
    %v9177 = vmul.f32 0.5, %v9176
    %v9178 = vsub.f32 1.5, %v9177
    %v9179 = vmul.f32 %v9174, %v9178
    %vm9180 = vweird.f32 %v9023
    %vm9181 = vweird.f32 %v9174
    %vm9182 = vmor %vm9180, %vm9181
    %v9183 = vsel %vm9182, %v9174, %v9179
    %v9184 = vmul.f32 %v8880, %v9033
    %v9185 = vmul.f32 %v8881, %v9033
    %v9186 = vmul.f32 %v8882, %v9043
    %v9187 = vmul.f32 %v8883, %v9043
    %v9188 = vmul.f32 %v8884, %v9053
    %v9189 = vmul.f32 %v8885, %v9053
    %v9190 = vmul.f32 %v8886, %v9063
    %v9191 = vmul.f32 %v8887, %v9063
    %v9192 = vmul.f32 %v8888, %v9073
    %v9193 = vmul.f32 %v8889, %v9073
    %v9194 = vmul.f32 %v8890, %v9083
    %v9195 = vmul.f32 %v8891, %v9083
    %v9196 = vmul.f32 %v8892, %v9093
    %v9197 = vmul.f32 %v8893, %v9093
    %v9198 = vmul.f32 %v8894, %v9103
    %v9199 = vmul.f32 %v8895, %v9103
    %v9200 = vmul.f32 %v8896, %v9113
    %v9201 = vmul.f32 %v8897, %v9113
    %v9202 = vmul.f32 %v8898, %v9123
    %v9203 = vmul.f32 %v8899, %v9123
    %v9204 = vmul.f32 %v8900, %v9133
    %v9205 = vmul.f32 %v8901, %v9133
    %v9206 = vmul.f32 %v8902, %v9143
    %v9207 = vmul.f32 %v8903, %v9143
    %v9208 = vmul.f32 %v8904, %v9153
    %v9209 = vmul.f32 %v8905, %v9153
    %v9210 = vmul.f32 %v8906, %v9163
    %v9211 = vmul.f32 %v8907, %v9163
    %v9212 = vmul.f32 %v8908, %v9173
    %v9213 = vmul.f32 %v8909, %v9173
    %v9214 = vmul.f32 %v8910, %v9183
    %v9215 = vmul.f32 %v8911, %v9183
    %v9216 = vperm.slane %v152, 3
    %v9217 = vperm.slane %v153, 3
    %v9218 = vmul.f32 %v9184, %v9216
    %v9219 = vmul.f32 %v9185, %v9217
    %v9220 = vmul.f32 %v9186, %v9216
    %v9221 = vmul.f32 %v9187, %v9217
    %v9222 = vmul.f32 %v9188, %v9216
    %v9223 = vmul.f32 %v9189, %v9217
    %v9224 = vmul.f32 %v9190, %v9216
    %v9225 = vmul.f32 %v9191, %v9217
    %v9226 = vmul.f32 %v9192, %v9216
    %v9227 = vmul.f32 %v9193, %v9217
    %v9228 = vmul.f32 %v9194, %v9216
    %v9229 = vmul.f32 %v9195, %v9217
    %v9230 = vmul.f32 %v9196, %v9216
    %v9231 = vmul.f32 %v9197, %v9217
    %v9232 = vmul.f32 %v9198, %v9216
    %v9233 = vmul.f32 %v9199, %v9217
    %v9234 = vmul.f32 %v9200, %v9216
    %v9235 = vmul.f32 %v9201, %v9217
    %v9236 = vmul.f32 %v9202, %v9216
    %v9237 = vmul.f32 %v9203, %v9217
    %v9238 = vmul.f32 %v9204, %v9216
    %v9239 = vmul.f32 %v9205, %v9217
    %v9240 = vmul.f32 %v9206, %v9216
    %v9241 = vmul.f32 %v9207, %v9217
    %v9242 = vmul.f32 %v9208, %v9216
    %v9243 = vmul.f32 %v9209, %v9217
    %v9244 = vmul.f32 %v9210, %v9216
    %v9245 = vmul.f32 %v9211, %v9217
    %v9246 = vmul.f32 %v9212, %v9216
    %v9247 = vmul.f32 %v9213, %v9217
    %v9248 = vmul.f32 %v9214, %v9216
    %v9249 = vmul.f32 %v9215, %v9217
    %v9250 = vperm.slane %v152, 4
    %v9251 = vperm.slane %v153, 4
    %v9252 = vadd.f32 %v9218, %v9250
    %v9253 = vadd.f32 %v9219, %v9251
    %v9254 = vadd.f32 %v9220, %v9250
    %v9255 = vadd.f32 %v9221, %v9251
    %v9256 = vadd.f32 %v9222, %v9250
    %v9257 = vadd.f32 %v9223, %v9251
    %v9258 = vadd.f32 %v9224, %v9250
    %v9259 = vadd.f32 %v9225, %v9251
    %v9260 = vadd.f32 %v9226, %v9250
    %v9261 = vadd.f32 %v9227, %v9251
    %v9262 = vadd.f32 %v9228, %v9250
    %v9263 = vadd.f32 %v9229, %v9251
    %v9264 = vadd.f32 %v9230, %v9250
    %v9265 = vadd.f32 %v9231, %v9251
    %v9266 = vadd.f32 %v9232, %v9250
    %v9267 = vadd.f32 %v9233, %v9251
    %v9268 = vadd.f32 %v9234, %v9250
    %v9269 = vadd.f32 %v9235, %v9251
    %v9270 = vadd.f32 %v9236, %v9250
    %v9271 = vadd.f32 %v9237, %v9251
    %v9272 = vadd.f32 %v9238, %v9250
    %v9273 = vadd.f32 %v9239, %v9251
    %v9274 = vadd.f32 %v9240, %v9250
    %v9275 = vadd.f32 %v9241, %v9251
    %v9276 = vadd.f32 %v9242, %v9250
    %v9277 = vadd.f32 %v9243, %v9251
    %v9278 = vadd.f32 %v9244, %v9250
    %v9279 = vadd.f32 %v9245, %v9251
    %v9280 = vadd.f32 %v9246, %v9250
    %v9281 = vadd.f32 %v9247, %v9251
    %v9282 = vadd.f32 %v9248, %v9250
    %v9283 = vadd.f32 %v9249, %v9251
    %v9284 = vpack.c.bf16 %v9254, %v9252
    %v9285 = vpack.c.bf16 %v9255, %v9253
    %v9286 = vpack.c.bf16 %v9258, %v9256
    %v9287 = vpack.c.bf16 %v9259, %v9257
    %v9288 = vpack.c.bf16 %v9262, %v9260
    %v9289 = vpack.c.bf16 %v9263, %v9261
    %v9290 = vpack.c.bf16 %v9266, %v9264
    %v9291 = vpack.c.bf16 %v9267, %v9265
    %v9292 = vpack.c.bf16 %v9270, %v9268
    %v9293 = vpack.c.bf16 %v9271, %v9269
    %v9294 = vpack.c.bf16 %v9274, %v9272
    %v9295 = vpack.c.bf16 %v9275, %v9273
    %v9296 = vpack.c.bf16 %v9278, %v9276
    %v9297 = vpack.c.bf16 %v9279, %v9277
    %v9298 = vpack.c.bf16 %v9282, %v9280
    %v9299 = vpack.c.bf16 %v9283, %v9281
    %v9300 = vld [vmem:[#allocation8] sm:$0xf]
    %v9301 = vld [vmem:[#allocation8 + $0x4] sm:$0xf]
    %v9302 = vld [vmem:[#allocation8 + $0x8] sm:$0xf]
    %v9303 = vld [vmem:[#allocation8 + $0xc] sm:$0xf]
    %v9304 = vld [vmem:[#allocation8 + $0x10] sm:$0xf]
    %v9305 = vld [vmem:[#allocation8 + $0x14] sm:$0xf]
    %v9306 = vld [vmem:[#allocation8 + $0x18] sm:$0xf]
    %v9307 = vld [vmem:[#allocation8 + $0x1c] sm:$0xf]
    %v9308 = vld [vmem:[#allocation8 + $0x20] sm:$0xf]
    %v9309 = vld [vmem:[#allocation8 + $0x24] sm:$0xf]
    %v9310 = vld [vmem:[#allocation8 + $0x28] sm:$0xf]
    %v9311 = vld [vmem:[#allocation8 + $0x2c] sm:$0xf]
    %v9312 = vld [vmem:[#allocation8 + $0x30] sm:$0xf]
    %v9313 = vld [vmem:[#allocation8 + $0x34] sm:$0xf]
    %v9314 = vld [vmem:[#allocation8 + $0x38] sm:$0xf]
    %v9315 = vld [vmem:[#allocation8 + $0x3c] sm:$0xf]
    %v9316 = vld [vmem:[#allocation8 + $0x40] sm:$0xf]
    %v9317 = vld [vmem:[#allocation8 + $0x44] sm:$0xf]
    %v9318 = vld [vmem:[#allocation8 + $0x48] sm:$0xf]
    %v9319 = vld [vmem:[#allocation8 + $0x4c] sm:$0xf]
    %v9320 = vld [vmem:[#allocation8 + $0x50] sm:$0xf]
    %v9321 = vld [vmem:[#allocation8 + $0x54] sm:$0xf]
    %v9322 = vld [vmem:[#allocation8 + $0x58] sm:$0xf]
    %v9323 = vld [vmem:[#allocation8 + $0x5c] sm:$0xf]
    %v9324 = vld [vmem:[#allocation8 + $0x60] sm:$0xf]
    %v9325 = vld [vmem:[#allocation8 + $0x64] sm:$0xf]
    %v9326 = vld [vmem:[#allocation8 + $0x68] sm:$0xf]
    %v9327 = vld [vmem:[#allocation8 + $0x6c] sm:$0xf]
    %v9328 = vld [vmem:[#allocation8 + $0x70] sm:$0xf]
    %v9329 = vld [vmem:[#allocation8 + $0x74] sm:$0xf]
    %v9330 = vld [vmem:[#allocation8 + $0x78] sm:$0xf]
    %v9331 = vld [vmem:[#allocation8 + $0x7c] sm:$0xf]
    %v9332 = vld [vmem:[%s6] sm:$0x1]
    %v9334 = vperm.slane %v9332, 0
    %v9368 = vunpack.c.l.b16 %v9300
    %v9369 = vunpack.c.l.b16 %v9301
    %v9370 = vunpack.c.l.b16 %v9302
    %v9371 = vunpack.c.l.b16 %v9303
    %v9372 = vunpack.c.l.b16 %v9304
    %v9373 = vunpack.c.l.b16 %v9305
    %v9374 = vunpack.c.l.b16 %v9306
    %v9375 = vunpack.c.l.b16 %v9307
    %v9376 = vunpack.c.l.b16 %v9308
    %v9377 = vunpack.c.l.b16 %v9309
    %v9378 = vunpack.c.l.b16 %v9310
    %v9379 = vunpack.c.l.b16 %v9311
    %v9380 = vunpack.c.l.b16 %v9312
    %v9381 = vunpack.c.l.b16 %v9313
    %v9382 = vunpack.c.l.b16 %v9314
    %v9383 = vunpack.c.l.b16 %v9315
    %v9384 = vunpack.c.l.b16 %v9316
    %v9385 = vunpack.c.l.b16 %v9317
    %v9386 = vunpack.c.l.b16 %v9318
    %v9387 = vunpack.c.l.b16 %v9319
    %v9388 = vunpack.c.l.b16 %v9320
    %v9389 = vunpack.c.l.b16 %v9321
    %v9390 = vunpack.c.l.b16 %v9322
    %v9391 = vunpack.c.l.b16 %v9323
    %v9392 = vunpack.c.l.b16 %v9324
    %v9393 = vunpack.c.l.b16 %v9325
    %v9394 = vunpack.c.l.b16 %v9326
    %v9395 = vunpack.c.l.b16 %v9327
    %v9396 = vunpack.c.l.b16 %v9328
    %v9397 = vunpack.c.l.b16 %v9329
    %v9398 = vunpack.c.l.b16 %v9330
    %v9399 = vunpack.c.l.b16 %v9331
    %v9400 = vpack.c.b16 %v9369, %v9368
    %v9401 = vpack.c.b16 %v9371, %v9370
    %v9402 = vpack.c.b16 %v9373, %v9372
    %v9403 = vpack.c.b16 %v9375, %v9374
    %v9404 = vpack.c.b16 %v9377, %v9376
    %v9405 = vpack.c.b16 %v9379, %v9378
    %v9406 = vpack.c.b16 %v9381, %v9380
    %v9407 = vpack.c.b16 %v9383, %v9382
    %v9408 = vpack.c.b16 %v9385, %v9384
    %v9409 = vpack.c.b16 %v9387, %v9386
    %v9410 = vpack.c.b16 %v9389, %v9388
    %v9411 = vpack.c.b16 %v9391, %v9390
    %v9412 = vpack.c.b16 %v9393, %v9392
    %v9413 = vpack.c.b16 %v9395, %v9394
    %v9414 = vpack.c.b16 %v9397, %v9396
    %v9415 = vpack.c.b16 %v9399, %v9398
    %9432 = vmatpush.bf16.msra.mxu0 %v9407
    %9433 = vmatpush.bf16.msra.mxu0 %v9406
    %9434 = vmatpush.bf16.msra.mxu0 %v9405
    %9435 = vmatpush.bf16.msra.mxu0 %v9404
    %9436 = vmatpush.bf16.msra.mxu0 %v9403
    %9437 = vmatpush.bf16.msra.mxu0 %v9402
    %9438 = vmatpush.bf16.msra.mxu0 %v9401
    %9439 = vmatpush.bf16.msra.mxu0 %v9400
    %9440 = vmatmul.bf16.gmra.mxu0 %v9284
    %v9441 = vpop.f32.mrf.mxu0
    %v9442 = vadd.f32 %v9334, %v9441
    %v9443 = vpop.f32.mrf.mxu0
    %v9444 = vadd.f32 %v9334, %v9443
    %9445 = vmatmul.bf16.gmra.mxu0 %v9286
    %v9446 = vpop.f32.mrf.mxu0
    %v9447 = vadd.f32 %v9334, %v9446
    %v9448 = vpop.f32.mrf.mxu0
    %v9449 = vadd.f32 %v9334, %v9448
    %9450 = vmatmul.bf16.gmra.mxu0 %v9288
    %v9451 = vpop.f32.mrf.mxu0
    %v9452 = vadd.f32 %v9334, %v9451
    %v9453 = vpop.f32.mrf.mxu0
    %v9454 = vadd.f32 %v9334, %v9453
    %9455 = vmatmul.bf16.gmra.mxu0 %v9290
    %v9456 = vpop.f32.mrf.mxu0
    %v9457 = vadd.f32 %v9334, %v9456
    %v9458 = vpop.f32.mrf.mxu0
    %v9459 = vadd.f32 %v9334, %v9458
    %9460 = vmatmul.bf16.gmra.mxu0 %v9292
    %v9461 = vpop.f32.mrf.mxu0
    %v9462 = vadd.f32 %v9334, %v9461
    %v9463 = vpop.f32.mrf.mxu0
    %v9464 = vadd.f32 %v9334, %v9463
    %9465 = vmatmul.bf16.gmra.mxu0 %v9294
    %v9466 = vpop.f32.mrf.mxu0
    %v9467 = vadd.f32 %v9334, %v9466
    %v9468 = vpop.f32.mrf.mxu0
    %v9469 = vadd.f32 %v9334, %v9468
    %9470 = vmatmul.bf16.gmra.mxu0 %v9296
    %v9471 = vpop.f32.mrf.mxu0
    %v9472 = vadd.f32 %v9334, %v9471
    %v9473 = vpop.f32.mrf.mxu0
    %v9474 = vadd.f32 %v9334, %v9473
    %9475 = vmatmul.bf16.gmra.mxu0 %v9298
    %v9476 = vpop.f32.mrf.mxu0
    %v9477 = vadd.f32 %v9334, %v9476
    %v9478 = vpop.f32.mrf.mxu0
    %v9479 = vadd.f32 %v9334, %v9478
    %9480 = vdwg.mxu0
    %9481 = vmatpush.bf16.msra.mxu0 %v9415
    %9482 = vmatpush.bf16.msra.mxu0 %v9414
    %9483 = vmatpush.bf16.msra.mxu0 %v9413
    %9484 = vmatpush.bf16.msra.mxu0 %v9412
    %9485 = vmatpush.bf16.msra.mxu0 %v9411
    %9486 = vmatpush.bf16.msra.mxu0 %v9410
    %9487 = vmatpush.bf16.msra.mxu0 %v9409
    %9488 = vmatpush.bf16.msra.mxu0 %v9408
    %9489 = vmatmul.bf16.gmra.mxu0 %v9285
    %v9490 = vpop.f32.mrf.mxu0
    %v9491 = vadd.f32 %v9442, %v9490
    %v9492 = vpop.f32.mrf.mxu0
    %v9493 = vadd.f32 %v9444, %v9492
    %9494 = vmatmul.bf16.gmra.mxu0 %v9287
    %v9495 = vpop.f32.mrf.mxu0
    %v9496 = vadd.f32 %v9447, %v9495
    %v9497 = vpop.f32.mrf.mxu0
    %v9498 = vadd.f32 %v9449, %v9497
    %9499 = vmatmul.bf16.gmra.mxu0 %v9289
    %v9500 = vpop.f32.mrf.mxu0
    %v9501 = vadd.f32 %v9452, %v9500
    %v9502 = vpop.f32.mrf.mxu0
    %v9503 = vadd.f32 %v9454, %v9502
    %9504 = vmatmul.bf16.gmra.mxu0 %v9291
    %v9505 = vpop.f32.mrf.mxu0
    %v9506 = vadd.f32 %v9457, %v9505
    %v9507 = vpop.f32.mrf.mxu0
    %v9508 = vadd.f32 %v9459, %v9507
    %9509 = vmatmul.bf16.gmra.mxu0 %v9293
    %v9510 = vpop.f32.mrf.mxu0
    %v9511 = vadd.f32 %v9462, %v9510
    %v9512 = vpop.f32.mrf.mxu0
    %v9513 = vadd.f32 %v9464, %v9512
    %9514 = vmatmul.bf16.gmra.mxu0 %v9295
    %v9515 = vpop.f32.mrf.mxu0
    %v9516 = vadd.f32 %v9467, %v9515
    %v9517 = vpop.f32.mrf.mxu0
    %v9518 = vadd.f32 %v9469, %v9517
    %9519 = vmatmul.bf16.gmra.mxu0 %v9297
    %v9520 = vpop.f32.mrf.mxu0
    %v9521 = vadd.f32 %v9472, %v9520
    %v9522 = vpop.f32.mrf.mxu0
    %v9523 = vadd.f32 %v9474, %v9522
    %9524 = vmatmul.bf16.gmra.mxu0 %v9299
    %v9525 = vpop.f32.mrf.mxu0
    %v9526 = vadd.f32 %v9477, %v9525
    %v9527 = vpop.f32.mrf.mxu0
    %v9528 = vadd.f32 %v9479, %v9527
    %9529 = vdwg.mxu0
    %v9530 = vmax.f32 %v9491, 0.0
    %v9531 = vmax.f32 %v9493, 0.0
    %v9532 = vmax.f32 %v9496, 0.0
    %v9533 = vmax.f32 %v9498, 0.0
    %v9534 = vmax.f32 %v9501, 0.0
    %v9535 = vmax.f32 %v9503, 0.0
    %v9536 = vmax.f32 %v9506, 0.0
    %v9537 = vmax.f32 %v9508, 0.0
    %v9538 = vmax.f32 %v9511, 0.0
    %v9539 = vmax.f32 %v9513, 0.0
    %v9540 = vmax.f32 %v9516, 0.0
    %v9541 = vmax.f32 %v9518, 0.0
    %v9542 = vmax.f32 %v9521, 0.0
    %v9543 = vmax.f32 %v9523, 0.0
    %v9544 = vmax.f32 %v9526, 0.0
    %v9545 = vmax.f32 %v9528, 0.0
    %v9546 = vpack.c.bf16 %v9531, %v9530
    %v9547 = vpack.c.bf16 %v9533, %v9532
    %v9548 = vpack.c.bf16 %v9535, %v9534
    %v9549 = vpack.c.bf16 %v9537, %v9536
    %v9550 = vpack.c.bf16 %v9539, %v9538
    %v9551 = vpack.c.bf16 %v9541, %v9540
    %v9552 = vpack.c.bf16 %v9543, %v9542
    %v9553 = vpack.c.bf16 %v9545, %v9544
    %v9554 = vld [vmem:[#allocation10] sm:$0xff]
    %v9555 = vld [vmem:[#allocation10 + $0x8] sm:$0xff]
    %v9556 = vld [vmem:[#allocation10 + $0x10] sm:$0xff]
    %v9557 = vld [vmem:[#allocation10 + $0x18] sm:$0xff]
    %v9558 = vld [vmem:[#allocation10 + $0x20] sm:$0xff]
    %v9559 = vld [vmem:[#allocation10 + $0x28] sm:$0xff]
    %v9560 = vld [vmem:[#allocation10 + $0x30] sm:$0xff]
    %v9561 = vld [vmem:[#allocation10 + $0x38] sm:$0xff]
    %v9562 = vld [vmem:[#allocation10 + $0x40] sm:$0xff]
    %v9563 = vld [vmem:[#allocation10 + $0x48] sm:$0xff]
    %v9564 = vld [vmem:[#allocation10 + $0x50] sm:$0xff]
    %v9565 = vld [vmem:[#allocation10 + $0x58] sm:$0xff]
    %v9566 = vld [vmem:[#allocation10 + $0x60] sm:$0xff]
    %v9567 = vld [vmem:[#allocation10 + $0x68] sm:$0xff]
    %v9568 = vld [vmem:[#allocation10 + $0x70] sm:$0xff]
    %v9569 = vld [vmem:[#allocation10 + $0x78] sm:$0xff]
    %v9570 = vperm.slane %v152, 5
    %v9571 = vperm.slane %v153, 5
    %v9588 = vunpack.c.l.b16 %v9554
    %v9589 = vunpack.c.h.b16 %v9554
    %v9590 = vunpack.c.l.b16 %v9555
    %v9591 = vunpack.c.h.b16 %v9555
    %v9592 = vunpack.c.l.b16 %v9556
    %v9593 = vunpack.c.h.b16 %v9556
    %v9594 = vunpack.c.l.b16 %v9557
    %v9595 = vunpack.c.h.b16 %v9557
    %v9596 = vunpack.c.l.b16 %v9558
    %v9597 = vunpack.c.h.b16 %v9558
    %v9598 = vunpack.c.l.b16 %v9559
    %v9599 = vunpack.c.h.b16 %v9559
    %v9600 = vunpack.c.l.b16 %v9560
    %v9601 = vunpack.c.h.b16 %v9560
    %v9602 = vunpack.c.l.b16 %v9561
    %v9603 = vunpack.c.h.b16 %v9561
    %v9604 = vunpack.c.l.b16 %v9562
    %v9605 = vunpack.c.h.b16 %v9562
    %v9606 = vunpack.c.l.b16 %v9563
    %v9607 = vunpack.c.h.b16 %v9563
    %v9608 = vunpack.c.l.b16 %v9564
    %v9609 = vunpack.c.h.b16 %v9564
    %v9610 = vunpack.c.l.b16 %v9565
    %v9611 = vunpack.c.h.b16 %v9565
    %v9612 = vunpack.c.l.b16 %v9566
    %v9613 = vunpack.c.h.b16 %v9566
    %v9614 = vunpack.c.l.b16 %v9567
    %v9615 = vunpack.c.h.b16 %v9567
    %v9616 = vunpack.c.l.b16 %v9568
    %v9617 = vunpack.c.h.b16 %v9568
    %v9618 = vunpack.c.l.b16 %v9569
    %v9619 = vunpack.c.h.b16 %v9569
    %v9620 = vpack.c.b16 %v9590, %v9588
    %v9621 = vpack.c.b16 %v9591, %v9589
    %v9622 = vpack.c.b16 %v9594, %v9592
    %v9623 = vpack.c.b16 %v9595, %v9593
    %v9624 = vpack.c.b16 %v9598, %v9596
    %v9625 = vpack.c.b16 %v9599, %v9597
    %v9626 = vpack.c.b16 %v9602, %v9600
    %v9627 = vpack.c.b16 %v9603, %v9601
    %v9628 = vpack.c.b16 %v9606, %v9604
    %v9629 = vpack.c.b16 %v9607, %v9605
    %v9630 = vpack.c.b16 %v9610, %v9608
    %v9631 = vpack.c.b16 %v9611, %v9609
    %v9632 = vpack.c.b16 %v9614, %v9612
    %v9633 = vpack.c.b16 %v9615, %v9613
    %v9634 = vpack.c.b16 %v9618, %v9616
    %v9635 = vpack.c.b16 %v9619, %v9617
    %9652 = vmatpush.bf16.msra.mxu0 %v9634
    %9653 = vmatpush.bf16.msra.mxu0 %v9632
    %9654 = vmatpush.bf16.msra.mxu0 %v9630
    %9655 = vmatpush.bf16.msra.mxu0 %v9628
    %9656 = vmatpush.bf16.msra.mxu0 %v9626
    %9657 = vmatpush.bf16.msra.mxu0 %v9624
    %9658 = vmatpush.bf16.msra.mxu0 %v9622
    %9659 = vmatpush.bf16.msra.mxu0 %v9620
    %9660 = vmatmul.bf16.gmra.mxu0 %v9546
    %v9661 = vpop.f32.mrf.mxu0
    %v9662 = vadd.f32 %v9570, %v9661
    %v9663 = vpop.f32.mrf.mxu0
    %v9664 = vadd.f32 %v9570, %v9663
    %9665 = vmatmul.bf16.gmra.mxu0 %v9547
    %v9666 = vpop.f32.mrf.mxu0
    %v9667 = vadd.f32 %v9570, %v9666
    %v9668 = vpop.f32.mrf.mxu0
    %v9669 = vadd.f32 %v9570, %v9668
    %9670 = vmatmul.bf16.gmra.mxu0 %v9548
    %v9671 = vpop.f32.mrf.mxu0
    %v9672 = vadd.f32 %v9570, %v9671
    %v9673 = vpop.f32.mrf.mxu0
    %v9674 = vadd.f32 %v9570, %v9673
    %9675 = vmatmul.bf16.gmra.mxu0 %v9549
    %v9676 = vpop.f32.mrf.mxu0
    %v9677 = vadd.f32 %v9570, %v9676
    %v9678 = vpop.f32.mrf.mxu0
    %v9679 = vadd.f32 %v9570, %v9678
    %9680 = vmatmul.bf16.gmra.mxu0 %v9550
    %v9681 = vpop.f32.mrf.mxu0
    %v9682 = vadd.f32 %v9570, %v9681
    %v9683 = vpop.f32.mrf.mxu0
    %v9684 = vadd.f32 %v9570, %v9683
    %9685 = vmatmul.bf16.gmra.mxu0 %v9551
    %v9686 = vpop.f32.mrf.mxu0
    %v9687 = vadd.f32 %v9570, %v9686
    %v9688 = vpop.f32.mrf.mxu0
    %v9689 = vadd.f32 %v9570, %v9688
    %9690 = vmatmul.bf16.gmra.mxu0 %v9552
    %v9691 = vpop.f32.mrf.mxu0
    %v9692 = vadd.f32 %v9570, %v9691
    %v9693 = vpop.f32.mrf.mxu0
    %v9694 = vadd.f32 %v9570, %v9693
    %9695 = vmatmul.bf16.gmra.mxu0 %v9553
    %v9696 = vpop.f32.mrf.mxu0
    %v9697 = vadd.f32 %v9570, %v9696
    %v9698 = vpop.f32.mrf.mxu0
    %v9699 = vadd.f32 %v9570, %v9698
    %9700 = vdwg.mxu0
    %9701 = vmatpush.bf16.msra.mxu0 %v9635
    %9702 = vmatpush.bf16.msra.mxu0 %v9633
    %9703 = vmatpush.bf16.msra.mxu0 %v9631
    %9704 = vmatpush.bf16.msra.mxu0 %v9629
    %9705 = vmatpush.bf16.msra.mxu0 %v9627
    %9706 = vmatpush.bf16.msra.mxu0 %v9625
    %9707 = vmatpush.bf16.msra.mxu0 %v9623
    %9708 = vmatpush.bf16.msra.mxu0 %v9621
    %9709 = vmatmul.bf16.gmra.mxu0 %v9546
    %v9710 = vpop.f32.mrf.mxu0
    %v9711 = vadd.f32 %v9571, %v9710
    %v9712 = vpop.f32.mrf.mxu0
    %v9713 = vadd.f32 %v9571, %v9712
    %9714 = vmatmul.bf16.gmra.mxu0 %v9547
    %v9715 = vpop.f32.mrf.mxu0
    %v9716 = vadd.f32 %v9571, %v9715
    %v9717 = vpop.f32.mrf.mxu0
    %v9718 = vadd.f32 %v9571, %v9717
    %9719 = vmatmul.bf16.gmra.mxu0 %v9548
    %v9720 = vpop.f32.mrf.mxu0
    %v9721 = vadd.f32 %v9571, %v9720
    %v9722 = vpop.f32.mrf.mxu0
    %v9723 = vadd.f32 %v9571, %v9722
    %9724 = vmatmul.bf16.gmra.mxu0 %v9549
    %v9725 = vpop.f32.mrf.mxu0
    %v9726 = vadd.f32 %v9571, %v9725
    %v9727 = vpop.f32.mrf.mxu0
    %v9728 = vadd.f32 %v9571, %v9727
    %9729 = vmatmul.bf16.gmra.mxu0 %v9550
    %v9730 = vpop.f32.mrf.mxu0
    %v9731 = vadd.f32 %v9571, %v9730
    %v9732 = vpop.f32.mrf.mxu0
    %v9733 = vadd.f32 %v9571, %v9732
    %9734 = vmatmul.bf16.gmra.mxu0 %v9551
    %v9735 = vpop.f32.mrf.mxu0
    %v9736 = vadd.f32 %v9571, %v9735
    %v9737 = vpop.f32.mrf.mxu0
    %v9738 = vadd.f32 %v9571, %v9737
    %9739 = vmatmul.bf16.gmra.mxu0 %v9552
    %v9740 = vpop.f32.mrf.mxu0
    %v9741 = vadd.f32 %v9571, %v9740
    %v9742 = vpop.f32.mrf.mxu0
    %v9743 = vadd.f32 %v9571, %v9742
    %9744 = vmatmul.bf16.gmra.mxu0 %v9553
    %v9745 = vpop.f32.mrf.mxu0
    %v9746 = vadd.f32 %v9571, %v9745
    %v9747 = vpop.f32.mrf.mxu0
    %v9748 = vadd.f32 %v9571, %v9747
    %9749 = vdwg.mxu0
    %v9750 = vadd.f32 %v8752, %v9662
    %v9751 = vadd.f32 %v8753, %v9711
    %v9752 = vadd.f32 %v8754, %v9664
    %v9753 = vadd.f32 %v8755, %v9713
    %v9754 = vadd.f32 %v8756, %v9667
    %v9755 = vadd.f32 %v8757, %v9716
    %v9756 = vadd.f32 %v8758, %v9669
    %v9757 = vadd.f32 %v8759, %v9718
    %v9758 = vadd.f32 %v8760, %v9672
    %v9759 = vadd.f32 %v8761, %v9721
    %v9760 = vadd.f32 %v8762, %v9674
    %v9761 = vadd.f32 %v8763, %v9723
    %v9762 = vadd.f32 %v8764, %v9677
    %v9763 = vadd.f32 %v8765, %v9726
    %v9764 = vadd.f32 %v8766, %v9679
    %v9765 = vadd.f32 %v8767, %v9728
    %v9766 = vadd.f32 %v8768, %v9682
    %v9767 = vadd.f32 %v8769, %v9731
    %v9768 = vadd.f32 %v8770, %v9684
    %v9769 = vadd.f32 %v8771, %v9733
    %v9770 = vadd.f32 %v8772, %v9687
    %v9771 = vadd.f32 %v8773, %v9736
    %v9772 = vadd.f32 %v8774, %v9689
    %v9773 = vadd.f32 %v8775, %v9738
    %v9774 = vadd.f32 %v8776, %v9692
    %v9775 = vadd.f32 %v8777, %v9741
    %v9776 = vadd.f32 %v8778, %v9694
    %v9777 = vadd.f32 %v8779, %v9743
    %v9778 = vadd.f32 %v8780, %v9697
    %v9779 = vadd.f32 %v8781, %v9746
    %v9780 = vadd.f32 %v8782, %v9699
    %v9781 = vadd.f32 %v8783, %v9748
    %9782 = vst [vmem:[#allocation13] sm:$0xff] %v9750
    %9783 = vst [vmem:[#allocation13 + $0x8] sm:$0xff] %v9751
    %9784 = vst [vmem:[#allocation13 + $0x10] sm:$0xff] %v9752
    %9785 = vst [vmem:[#allocation13 + $0x18] sm:$0xff] %v9753
    %9786 = vst [vmem:[#allocation13 + $0x20] sm:$0xff] %v9754
    %9787 = vst [vmem:[#allocation13 + $0x28] sm:$0xff] %v9755
    %9788 = vst [vmem:[#allocation13 + $0x30] sm:$0xff] %v9756
    %9789 = vst [vmem:[#allocation13 + $0x38] sm:$0xff] %v9757
    %9790 = vst [vmem:[#allocation13 + $0x40] sm:$0xff] %v9758
    %9791 = vst [vmem:[#allocation13 + $0x48] sm:$0xff] %v9759
    %9792 = vst [vmem:[#allocation13 + $0x50] sm:$0xff] %v9760
    %9793 = vst [vmem:[#allocation13 + $0x58] sm:$0xff] %v9761
    %9794 = vst [vmem:[#allocation13 + $0x60] sm:$0xff] %v9762
    %9795 = vst [vmem:[#allocation13 + $0x68] sm:$0xff] %v9763
    %9796 = vst [vmem:[#allocation13 + $0x70] sm:$0xff] %v9764
    %9797 = vst [vmem:[#allocation13 + $0x78] sm:$0xff] %v9765
    %9798 = vst [vmem:[#allocation13 + $0x80] sm:$0xff] %v9766
    %9799 = vst [vmem:[#allocation13 + $0x88] sm:$0xff] %v9767
    %9800 = vst [vmem:[#allocation13 + $0x90] sm:$0xff] %v9768
    %9801 = vst [vmem:[#allocation13 + $0x98] sm:$0xff] %v9769
    %9802 = vst [vmem:[#allocation13 + $0xa0] sm:$0xff] %v9770
    %9803 = vst [vmem:[#allocation13 + $0xa8] sm:$0xff] %v9771
    %9804 = vst [vmem:[#allocation13 + $0xb0] sm:$0xff] %v9772
    %9805 = vst [vmem:[#allocation13 + $0xb8] sm:$0xff] %v9773
    %9806 = vst [vmem:[#allocation13 + $0xc0] sm:$0xff] %v9774
    %9807 = vst [vmem:[#allocation13 + $0xc8] sm:$0xff] %v9775
    %9808 = vst [vmem:[#allocation13 + $0xd0] sm:$0xff] %v9776
    %9809 = vst [vmem:[#allocation13 + $0xd8] sm:$0xff] %v9777
    %9810 = vst [vmem:[#allocation13 + $0xe0] sm:$0xff] %v9778
    %9811 = vst [vmem:[#allocation13 + $0xe8] sm:$0xff] %v9779
    %9812 = vst [vmem:[#allocation13 + $0xf0] sm:$0xff] %v9780
    %9813 = vst [vmem:[#allocation13 + $0xf8] sm:$0xff] %v9781
    // Predicated region
    $region54: #{tpu_custom_call.1} parent=1 // pred_check
      _
    $region55: #{tpu_custom_call.1} parent=1 // pred_check_branch
      %9815 = sbr.rel (0) target = $region57
    $region56: #{tpu_custom_call.1} parent=1 // pred_region
      %9817 = vsyncadd [#allocation4], 0
      %s9818 = sshll.u32 [#allocation13], 4
      %s9819 = int_to_ptr.vmem [resolvable:$true] %s9818
      %s9820 = sshll.u32 %s7, 4
      %s9821 = int_to_ptr.hbm [resolvable:$true] %s9820
      %9826 = dma.vmem_to_hbm [thread:$0]  %s9819, 4096, %s9821, [#allocation4], 256, 256, 16
    $region57: #{tpu_custom_call.1} parent=1 // pred_fallthru
      _
    // Predicated region
    $region58: #{tpu_custom_call.1} parent=1 // pred_check
      _
    $region59: #{tpu_custom_call.1} parent=1 // pred_check_branch
      %9828 = sbr.rel (0) target = $region61
    $region60: #{tpu_custom_call.1} parent=1 // pred_region
      %9830 = dma.done [#allocation4], 4096
    $region61: #{tpu_custom_call.1} parent=1 // pred_fallthru
      _
    %9831 = vsyncpa [#allocation3], 1
    %9832 = vsyncpa [#allocation6], 1
    %9833 = vsyncpa [#allocation9], 1
    %9834 = vsyncpa [#allocation12], 1
    %9835 = vsyncpa [#allocation4], 1

</llo_original>
